<compile_context>
chip_gen: v7x
topology: tpu7x:2x2x1
jax: 0.10.0
libtpu: 0.0.40
codegen_flags: <defaults>
</compile_context>

<pallas_src>
import jax
import jax.numpy as jnp
from jax import lax
from jax.experimental import pallas as pl
from jax.experimental.pallas import tpu as pltpu

NP = 128            # padded lane width (one MXU / lane tile)
NR = 8              # padded active row count (one sublane group); needs n,m <= 8
NS_COLD = 16        # Newton-Schulz steps for the one-time cold-start inverse
NS_WARM_FAST = 2    # NS refinements per fast VI step (warm-started)
NS_WARM_POLISH = 3  # NS refinements per polish VI step
VI_FAST_MAX = 48    # cap on bf16 value-iteration steps (early-exit while_loop)
VI_TOL = 1e-2       # early-exit threshold on max|P_{k+1} - P_k|
VI_POLISH = 6       # final full-precision polish iterations


def _mm_fast(x, y):
    # single-pass bf16 MXU matmul with f32 accumulation (bulk of the chain).
    return jnp.dot(x.astype(jnp.bfloat16), y.astype(jnp.bfloat16),
                   preferred_element_type=jnp.float32)


def _mm_exact(x, y):
    # full f32 accuracy for the short polish phase only.
    return jnp.dot(x, y, preferred_element_type=jnp.float32,
                   precision=lax.Precision.HIGHEST)


def dare_kernel(a_ref, b_ref, at_ref, bt_ref, q_ref, r_ref, p_ref):
    Afull = a_ref[...]      # (128,128), nonzero block [:n,:n]
    Bfull = b_ref[...]      # (128,128), nonzero block [:n,:m]
    At8 = at_ref[...]       # (8,128)   A^T top slab
    Bt8 = bt_ref[...]       # (8,128)   B^T top slab
    Q8 = q_ref[...]         # (8,128)   symmetrized Q top slab
    R8 = r_ref[...]         # (8,128)   symmetrized R + identity pad on 8x8 diag

    f32 = jnp.float32
    ztail = jnp.zeros((NP - NR, NP), f32)

    def pad(x8):
        # (8,128) slab -> (128,128) zero-tailed tile usable as a full-K RHS.
        return jnp.concatenate([x8, ztail], axis=0)

    rows = lax.broadcasted_iota(jnp.int32, (NR, NP), 0)
    cols = lax.broadcasted_iota(jnp.int32, (NR, NP), 1)
    I8 = (rows == cols).astype(f32)            # (8,128) identity slab

    Qfull = pad(Q8)

    def inv_inf_norm(m8):
        # 1 / ||M||_inf over the active slab; X0 = c*I is contractive for SPD M.
        return 1.0 / jnp.max(jnp.sum(jnp.abs(m8), axis=-1, keepdims=True))

    def vi_step(P, G, mm, ns_extra, symmetrize):
        """One Riccati value-iteration step. P, G are zero-tailed (128,128)."""
        P8 = P[:NR, :]
        G8 = G[:NR, :]

        # All LHS operands live in the top 8 rows -> (8,128)x(128,128) matmuls.
        BtP8 = mm(Bt8, P)                       # B^T P
        AtP8 = mm(At8, P)                       # A^T P
        AtPA8 = mm(AtP8, Afull)                 # A^T P A
        AtPB8 = mm(AtP8, Bfull)                 # A^T P B
        BtPA8 = mm(BtP8, Afull)                 # B^T P A (no transpose on chain)
        M8 = R8 + mm(BtP8, Bfull)               # R + B^T P B
        Mfull = pad(M8)

        # Warm-started Newton-Schulz:  X <- 2X - (X M) X.
        # Safeguard: fall back to the provably contractive X0 = I/||M||_inf if
        # the warm start has drifted too far (cheap: reuses the first NS product).
        GM8 = mm(G8, Mfull)
        err = jnp.sum((I8 - GM8) ** 2)          # slab-restricted Frobenius^2
        c = inv_inf_norm(M8)
        w = (err < 0.81).astype(f32)
        X8 = w * G8 + (1.0 - w) * (c * I8)
        XM8 = w * GM8 + (1.0 - w) * (c * M8)
        X8 = 2.0 * X8 - mm(XM8, pad(X8))        # first NS step
        for _ in range(ns_extra):               # remaining warm refinements
            XM8 = mm(X8, Mfull)
            X8 = 2.0 * X8 - mm(XM8, pad(X8))
        Gn = pad(X8)

        S8 = mm(AtPB8, Gn)                      # A^T P B (R + B^T P B)^{-1}
        Pn8 = Q8 + AtPA8 - mm(S8, pad(BtPA8))
        delta = jnp.max(jnp.abs(Pn8 - P8))
        Pn = pad(Pn8)
        if symmetrize:
            Pn = 0.5 * (Pn + Pn.T)              # only in the short polish phase
        return Pn, Gn, delta

    # ---- one-time cold start: G0 ~= (R + B^T Q B)^{-1} ----------------------
    M08 = R8 + _mm_fast(_mm_fast(Bt8, Qfull), Bfull)
    M0full = pad(M08)

    def ns_cold(_, x8):
        return 2.0 * x8 - _mm_fast(_mm_fast(x8, M0full), pad(x8))

    X0 = inv_inf_norm(M08) * I8
    G0 = pad(lax.fori_loop(0, NS_COLD, ns_cold, X0))

    # ---- phase 1: bf16 value iteration with early exit ----------------------
    def cond(carry):
        i, delta, _, _ = carry
        return jnp.logical_and(i < VI_FAST_MAX, delta > VI_TOL)

    def body(carry):
        i, _, P, G = carry
        Pn, Gn, d = vi_step(P, G, _mm_fast, NS_WARM_FAST - 1, symmetrize=False)
        return (i + 1, d, Pn, Gn)

    _, _, P, G = lax.while_loop(
        cond, body, (jnp.int32(0), jnp.float32(1e30), Qfull, G0))

    # ---- phase 2: full-precision polish (drives residual to f32 level) ------
    def polish(_, carry):
        P, G = carry
        Pn, Gn, _ = vi_step(P, G, _mm_exact, NS_WARM_POLISH - 1, symmetrize=True)
        return (Pn, Gn)

    P, _ = lax.fori_loop(0, VI_POLISH, polish, (P, G))

    p_ref[...] = P[:NR, :]


def dare_pallas(A, B, Q, R):
    """Equivalent of dare().forward(A, B, Q, R) -> P (n, n), float32."""
    n, m = B.shape
    assert A.shape == (n, n) and Q.shape == (n, n) and R.shape == (m, m)
    # TODO(synk): the 8-row MXU specialization assumes n, m <= 8 (the small
    # control-problem regime this module targets); larger systems would need
    # the 128-row tile variant.
    assert n <= NR and m <= NR, "this kernel specializes to n, m <= 8"

    A = A.astype(jnp.float32)
    B = B.astype(jnp.float32)
    # Symmetrize Q and R exactly as the torch forward does (hoisted to wrapper).
    Qs = (0.5 * (Q + Q.T)).astype(jnp.float32)
    Rs = (0.5 * (R + R.T)).astype(jnp.float32)

    A_p = jnp.zeros((NP, NP), jnp.float32).at[:n, :n].set(A)
    B_p = jnp.zeros((NP, NP), jnp.float32).at[:n, :m].set(B)
    At8 = jnp.zeros((NR, NP), jnp.float32).at[:n, :n].set(A.T)
    Bt8 = jnp.zeros((NR, NP), jnp.float32).at[:m, :n].set(B.T)
    Q8 = jnp.zeros((NR, NP), jnp.float32).at[:n, :n].set(Qs)
    # identity-pad R inside the active 8x8 block so (R + B^T P B) stays SPD on
    # that block; the pad is exactly block-diagonal and never leaks into P.
    R8 = jnp.zeros((NR, NP), jnp.float32).at[:NR, :NR].set(
        jnp.eye(NR, dtype=jnp.float32))
    R8 = R8.at[:m, :m].set(Rs)

    # Single-shot kernel: total resident footprint < 1 MiB, nothing to
    # pipeline, so no grid / index_map machinery — operands live in VMEM.
    vmem = pl.BlockSpec(memory_space=pltpu.MemorySpace.VMEM)
    P8 = pl.pallas_call(
        dare_kernel,
        out_shape=jax.ShapeDtypeStruct((NR, NP), jnp.float32),
        in_specs=[vmem] * 6,
        out_specs=vmem,
    )(A_p, B_p, At8, Bt8, Q8, R8)
    return P8[:n, :n]


if __name__ == "__main__":
    key = jax.random.PRNGKey(0)
    n, m = 4, 2
    kA, kB, kQ, kR = jax.random.split(key, 4)

    # Stable A (small spectral radius) so the Riccati iteration converges fast.
    A = 0.5 * jax.random.normal(kA, (n, n), jnp.float32) / jnp.sqrt(n)
    B = jax.random.normal(kB, (n, m), jnp.float32)
    Lq = jax.random.normal(kQ, (n, n), jnp.float32)
    Q = Lq @ Lq.T / n + jnp.eye(n, dtype=jnp.float32)     # SPD
    Lr = jax.random.normal(kR, (m, m), jnp.float32)
    R = Lr @ Lr.T / m + jnp.eye(m, dtype=jnp.float32)     # SPD

    P = jax.block_until_ready(dare_pallas(A, B, Q, R))

    # Verify P satisfies the discrete algebraic Riccati equation.
    Qs = 0.5 * (Q + Q.T)
    Rs = 0.5 * (R + R.T)
    Mi = jnp.linalg.inv(Rs + B.T @ P @ B)
    rhs = A.T @ P @ A - A.T @ P @ B @ Mi @ B.T @ P @ A + Qs
    res = jnp.max(jnp.abs(P - rhs)) / (1.0 + jnp.max(jnp.abs(P)))
    assert float(res) < 1e-2, f"DARE residual too large: {float(res)}"
    print("KERNEL_OK")
</pallas_src>

<mosaic_0001>
module attributes {stable_mosaic.version = 11 : i64} {
  func.func @dare_kernel(%arg0: memref<128x128xf32, #tpu.memory_space<vmem>>, %arg1: memref<128x128xf32, #tpu.memory_space<vmem>>, %arg2: memref<8x128xf32, #tpu.memory_space<vmem>>, %arg3: memref<8x128xf32, #tpu.memory_space<vmem>>, %arg4: memref<8x128xf32, #tpu.memory_space<vmem>>, %arg5: memref<8x128xf32, #tpu.memory_space<vmem>>, %arg6: memref<8x128xf32, #tpu.memory_space<vmem>>) attributes {dimension_semantics = [], scalar_prefetch = 0 : i64, scratch_operands = 0 : i64, tpu.core_type = #tpu.core_type<tc>} {
    %c0 = arith.constant 0 : index
    %c0_0 = arith.constant 0 : index
    %0 = vector.load %arg0[%c0, %c0_0] : memref<128x128xf32, #tpu.memory_space<vmem>>, vector<128x128xf32>
    %c0_1 = arith.constant 0 : index
    %c0_2 = arith.constant 0 : index
    %1 = vector.load %arg1[%c0_1, %c0_2] : memref<128x128xf32, #tpu.memory_space<vmem>>, vector<128x128xf32>
    %c0_3 = arith.constant 0 : index
    %c0_4 = arith.constant 0 : index
    %2 = vector.load %arg2[%c0_3, %c0_4] : memref<8x128xf32, #tpu.memory_space<vmem>>, vector<8x128xf32>
    %c0_5 = arith.constant 0 : index
    %c0_6 = arith.constant 0 : index
    %3 = vector.load %arg3[%c0_5, %c0_6] : memref<8x128xf32, #tpu.memory_space<vmem>>, vector<8x128xf32>
    %c0_7 = arith.constant 0 : index
    %c0_8 = arith.constant 0 : index
    %4 = vector.load %arg4[%c0_7, %c0_8] : memref<8x128xf32, #tpu.memory_space<vmem>>, vector<8x128xf32>
    %c0_9 = arith.constant 0 : index
    %c0_10 = arith.constant 0 : index
    %5 = vector.load %arg5[%c0_9, %c0_10] : memref<8x128xf32, #tpu.memory_space<vmem>>, vector<8x128xf32>
    %cst = arith.constant 0.000000e+00 : f32
    %6 = vector.broadcast %cst : f32 to vector<120x128xf32>
    %7 = tpu.iota {dimensions = array<i32: 0>} : vector<8x128xi32>
    %8 = tpu.iota {dimensions = array<i32: 1>} : vector<8x128xi32>
    %9 = arith.cmpi eq, %7, %8 : vector<8x128xi32>
    %10 = arith.extui %9 : vector<8x128xi1> to vector<8x128xi32>
    %11 = arith.sitofp %10 : vector<8x128xi32> to vector<8x128xf32>
    %12 = tpu.concatenate %4, %6 in 0 : vector<8x128xf32>, vector<120x128xf32> -> vector<128x128xf32>
    %13 = arith.truncf %3 : vector<8x128xf32> to vector<8x128xbf16>
    %14 = arith.truncf %12 : vector<128x128xf32> to vector<128x128xbf16>
    %cst_11 = arith.constant dense<0.000000e+00> : vector<8x128xf32>
    %15 = tpu.matmul %13, %14, %cst_11 {dimension_numbers = #tpu.dot_dimension_numbers<[1], [0], [0], [1], [0, 0, 1, 1], [], []>} : vector<8x128xbf16>, vector<128x128xbf16>, vector<8x128xf32> -> vector<8x128xf32>
    %16 = arith.truncf %15 : vector<8x128xf32> to vector<8x128xbf16>
    %17 = arith.truncf %1 : vector<128x128xf32> to vector<128x128xbf16>
    %cst_12 = arith.constant dense<0.000000e+00> : vector<8x128xf32>
    %18 = tpu.matmul %16, %17, %cst_12 {dimension_numbers = #tpu.dot_dimension_numbers<[1], [0], [0], [1], [0, 0, 1, 1], [], []>} : vector<8x128xbf16>, vector<128x128xbf16>, vector<8x128xf32> -> vector<8x128xf32>
    %19 = arith.addf %5, %18 : vector<8x128xf32>
    %20 = tpu.concatenate %19, %6 in 0 : vector<8x128xf32>, vector<120x128xf32> -> vector<128x128xf32>
    %21 = math.absf %19 : vector<8x128xf32>
    %cst_13 = arith.constant dense<0.000000e+00> : vector<8xf32>
    %22 = vector.multi_reduction <add>, %21, %cst_13 [1] : vector<8x128xf32> to vector<8xf32>
    %23 = vector.shape_cast %22 : vector<8xf32> to vector<8x1xf32>
    %24 = vector.shape_cast %23 : vector<8x1xf32> to vector<1x8x1xf32>
    %cst_14 = arith.constant dense<0xFF800000> : vector<1xf32>
    %25 = vector.multi_reduction <maximumf>, %24, %cst_14 [1, 2] : vector<1x8x1xf32> to vector<1xf32>
    %26 = vector.shape_cast %25 : vector<1xf32> to vector<1x1x1xf32>
    %27 = vector.extract %26[0, 0, 0] : f32 from vector<1x1x1xf32>
    %cst_15 = arith.constant 1.000000e+00 : f32
    %28 = arith.divf %cst_15, %27 : f32
    %29 = vector.broadcast %28 : f32 to vector<8x128xf32>
    %30 = arith.mulf %29, %11 : vector<8x128xf32>
    %c0_i32 = arith.constant 0 : i32
    %c16_i32 = arith.constant 16 : i32
    %31 = arith.addi %c0_i32, %c16_i32 : i32
    %c1_i32 = arith.constant 1 : i32
    %32 = scf.for %arg7 = %c0_i32 to %31 step %c1_i32 iter_args(%arg8 = %30) -> (vector<8x128xf32>)  : i32 {
      %cst_22 = arith.constant 2.000000e+00 : f32
      %39 = vector.broadcast %cst_22 : f32 to vector<8x128xf32>
      %40 = arith.mulf %39, %arg8 : vector<8x128xf32>
      %41 = arith.truncf %arg8 : vector<8x128xf32> to vector<8x128xbf16>
      %42 = arith.truncf %20 : vector<128x128xf32> to vector<128x128xbf16>
      %cst_23 = arith.constant dense<0.000000e+00> : vector<8x128xf32>
      %43 = tpu.matmul %41, %42, %cst_23 {dimension_numbers = #tpu.dot_dimension_numbers<[1], [0], [0], [1], [0, 0, 1, 1], [], []>} : vector<8x128xbf16>, vector<128x128xbf16>, vector<8x128xf32> -> vector<8x128xf32>
      %44 = tpu.concatenate %arg8, %6 in 0 : vector<8x128xf32>, vector<120x128xf32> -> vector<128x128xf32>
      %45 = arith.truncf %43 : vector<8x128xf32> to vector<8x128xbf16>
      %46 = arith.truncf %44 : vector<128x128xf32> to vector<128x128xbf16>
      %cst_24 = arith.constant dense<0.000000e+00> : vector<8x128xf32>
      %47 = tpu.matmul %45, %46, %cst_24 {dimension_numbers = #tpu.dot_dimension_numbers<[1], [0], [0], [1], [0, 0, 1, 1], [], []>} : vector<8x128xbf16>, vector<128x128xbf16>, vector<8x128xf32> -> vector<8x128xf32>
      %48 = arith.subf %40, %47 : vector<8x128xf32>
      scf.yield %48 : vector<8x128xf32>
    }
    %33 = tpu.concatenate %32, %6 in 0 : vector<8x128xf32>, vector<120x128xf32> -> vector<128x128xf32>
    %c0_i32_16 = arith.constant 0 : i32
    %cst_17 = arith.constant 1.000000e+30 : f32
    %34:4 = scf.while (%arg7 = %c0_i32_16, %arg8 = %cst_17, %arg9 = %12, %arg10 = %33) : (i32, f32, vector<128x128xf32>, vector<128x128xf32>) -> (i32, f32, vector<128x128xf32>, vector<128x128xf32>) {
      %c48_i32 = arith.constant 48 : i32
      %39 = arith.cmpi slt, %arg7, %c48_i32 : i32
      %cst_22 = arith.constant 0.00999999977 : f32
      %40 = arith.cmpf ogt, %arg8, %cst_22 : f32
      %41 = arith.andi %39, %40 : i1
      scf.condition(%41) %arg7, %arg8, %arg9, %arg10 : i32, f32, vector<128x128xf32>, vector<128x128xf32>
    } do {
    ^bb0(%arg7: i32, %arg8: f32, %arg9: vector<128x128xf32>, %arg10: vector<128x128xf32>):
      %39 = vector.extract_strided_slice %arg9 {offsets = [0, 0], sizes = [8, 128], strides = [1, 1]} : vector<128x128xf32> to vector<8x128xf32>
      %40 = vector.extract_strided_slice %arg10 {offsets = [0, 0], sizes = [8, 128], strides = [1, 1]} : vector<128x128xf32> to vector<8x128xf32>
      %41 = arith.truncf %3 : vector<8x128xf32> to vector<8x128xbf16>
      %42 = arith.truncf %arg9 : vector<128x128xf32> to vector<128x128xbf16>
      %cst_22 = arith.constant dense<0.000000e+00> : vector<8x128xf32>
      %43 = tpu.matmul %41, %42, %cst_22 {dimension_numbers = #tpu.dot_dimension_numbers<[1], [0], [0], [1], [0, 0, 1, 1], [], []>} : vector<8x128xbf16>, vector<128x128xbf16>, vector<8x128xf32> -> vector<8x128xf32>
      %44 = arith.truncf %2 : vector<8x128xf32> to vector<8x128xbf16>
      %45 = arith.truncf %arg9 : vector<128x128xf32> to vector<128x128xbf16>
      %cst_23 = arith.constant dense<0.000000e+00> : vector<8x128xf32>
      %46 = tpu.matmul %44, %45, %cst_23 {dimension_numbers = #tpu.dot_dimension_numbers<[1], [0], [0], [1], [0, 0, 1, 1], [], []>} : vector<8x128xbf16>, vector<128x128xbf16>, vector<8x128xf32> -> vector<8x128xf32>
      %47 = arith.truncf %46 : vector<8x128xf32> to vector<8x128xbf16>
      %48 = arith.truncf %0 : vector<128x128xf32> to vector<128x128xbf16>
      %cst_24 = arith.constant dense<0.000000e+00> : vector<8x128xf32>
      %49 = tpu.matmul %47, %48, %cst_24 {dimension_numbers = #tpu.dot_dimension_numbers<[1], [0], [0], [1], [0, 0, 1, 1], [], []>} : vector<8x128xbf16>, vector<128x128xbf16>, vector<8x128xf32> -> vector<8x128xf32>
      %50 = arith.truncf %46 : vector<8x128xf32> to vector<8x128xbf16>
      %51 = arith.truncf %1 : vector<128x128xf32> to vector<128x128xbf16>
      %cst_25 = arith.constant dense<0.000000e+00> : vector<8x128xf32>
      %52 = tpu.matmul %50, %51, %cst_25 {dimension_numbers = #tpu.dot_dimension_numbers<[1], [0], [0], [1], [0, 0, 1, 1], [], []>} : vector<8x128xbf16>, vector<128x128xbf16>, vector<8x128xf32> -> vector<8x128xf32>
      %53 = arith.truncf %43 : vector<8x128xf32> to vector<8x128xbf16>
      %54 = arith.truncf %0 : vector<128x128xf32> to vector<128x128xbf16>
      %cst_26 = arith.constant dense<0.000000e+00> : vector<8x128xf32>
      %55 = tpu.matmul %53, %54, %cst_26 {dimension_numbers = #tpu.dot_dimension_numbers<[1], [0], [0], [1], [0, 0, 1, 1], [], []>} : vector<8x128xbf16>, vector<128x128xbf16>, vector<8x128xf32> -> vector<8x128xf32>
      %56 = arith.truncf %43 : vector<8x128xf32> to vector<8x128xbf16>
      %57 = arith.truncf %1 : vector<128x128xf32> to vector<128x128xbf16>
      %cst_27 = arith.constant dense<0.000000e+00> : vector<8x128xf32>
      %58 = tpu.matmul %56, %57, %cst_27 {dimension_numbers = #tpu.dot_dimension_numbers<[1], [0], [0], [1], [0, 0, 1, 1], [], []>} : vector<8x128xbf16>, vector<128x128xbf16>, vector<8x128xf32> -> vector<8x128xf32>
      %59 = arith.addf %5, %58 : vector<8x128xf32>
      %60 = tpu.concatenate %59, %6 in 0 : vector<8x128xf32>, vector<120x128xf32> -> vector<128x128xf32>
      %61 = arith.truncf %40 : vector<8x128xf32> to vector<8x128xbf16>
      %62 = arith.truncf %60 : vector<128x128xf32> to vector<128x128xbf16>
      %cst_28 = arith.constant dense<0.000000e+00> : vector<8x128xf32>
      %63 = tpu.matmul %61, %62, %cst_28 {dimension_numbers = #tpu.dot_dimension_numbers<[1], [0], [0], [1], [0, 0, 1, 1], [], []>} : vector<8x128xbf16>, vector<128x128xbf16>, vector<8x128xf32> -> vector<8x128xf32>
      %64 = arith.subf %11, %63 : vector<8x128xf32>
      %65 = arith.mulf %64, %64 : vector<8x128xf32>
      %66 = vector.shape_cast %65 : vector<8x128xf32> to vector<1x8x128xf32>
      %cst_29 = arith.constant dense<0.000000e+00> : vector<1xf32>
      %67 = vector.multi_reduction <add>, %66, %cst_29 [1, 2] : vector<1x8x128xf32> to vector<1xf32>
      %68 = vector.shape_cast %67 : vector<1xf32> to vector<1x1x1xf32>
      %69 = vector.extract %68[0, 0, 0] : f32 from vector<1x1x1xf32>
      %70 = math.absf %59 : vector<8x128xf32>
      %cst_30 = arith.constant dense<0.000000e+00> : vector<8xf32>
      %71 = vector.multi_reduction <add>, %70, %cst_30 [1] : vector<8x128xf32> to vector<8xf32>
      %72 = vector.shape_cast %71 : vector<8xf32> to vector<8x1xf32>
      %73 = vector.shape_cast %72 : vector<8x1xf32> to vector<1x8x1xf32>
      %cst_31 = arith.constant dense<0xFF800000> : vector<1xf32>
      %74 = vector.multi_reduction <maximumf>, %73, %cst_31 [1, 2] : vector<1x8x1xf32> to vector<1xf32>
      %75 = vector.shape_cast %74 : vector<1xf32> to vector<1x1x1xf32>
      %76 = vector.extract %75[0, 0, 0] : f32 from vector<1x1x1xf32>
      %cst_32 = arith.constant 1.000000e+00 : f32
      %77 = arith.divf %cst_32, %76 : f32
      %cst_33 = arith.constant 8.100000e-01 : f32
      %78 = arith.cmpf olt, %69, %cst_33 : f32
      %79 = arith.extui %78 : i1 to i32
      %80 = arith.sitofp %79 : i32 to f32
      %81 = vector.broadcast %80 : f32 to vector<8x128xf32>
      %82 = arith.mulf %81, %40 : vector<8x128xf32>
      %cst_34 = arith.constant 1.000000e+00 : f32
      %83 = arith.subf %cst_34, %80 : f32
      %84 = vector.broadcast %77 : f32 to vector<8x128xf32>
      %85 = arith.mulf %84, %11 : vector<8x128xf32>
      %86 = vector.broadcast %83 : f32 to vector<8x128xf32>
      %87 = arith.mulf %86, %85 : vector<8x128xf32>
      %88 = arith.addf %82, %87 : vector<8x128xf32>
      %89 = vector.broadcast %80 : f32 to vector<8x128xf32>
      %90 = arith.mulf %89, %63 : vector<8x128xf32>
      %cst_35 = arith.constant 1.000000e+00 : f32
      %91 = arith.subf %cst_35, %80 : f32
      %92 = vector.broadcast %77 : f32 to vector<8x128xf32>
      %93 = arith.mulf %92, %59 : vector<8x128xf32>
      %94 = vector.broadcast %91 : f32 to vector<8x128xf32>
      %95 = arith.mulf %94, %93 : vector<8x128xf32>
      %96 = arith.addf %90, %95 : vector<8x128xf32>
      %cst_36 = arith.constant 2.000000e+00 : f32
      %97 = vector.broadcast %cst_36 : f32 to vector<8x128xf32>
      %98 = arith.mulf %97, %88 : vector<8x128xf32>
      %99 = tpu.concatenate %88, %6 in 0 : vector<8x128xf32>, vector<120x128xf32> -> vector<128x128xf32>
      %100 = arith.truncf %96 : vector<8x128xf32> to vector<8x128xbf16>
      %101 = arith.truncf %99 : vector<128x128xf32> to vector<128x128xbf16>
      %cst_37 = arith.constant dense<0.000000e+00> : vector<8x128xf32>
      %102 = tpu.matmul %100, %101, %cst_37 {dimension_numbers = #tpu.dot_dimension_numbers<[1], [0], [0], [1], [0, 0, 1, 1], [], []>} : vector<8x128xbf16>, vector<128x128xbf16>, vector<8x128xf32> -> vector<8x128xf32>
      %103 = arith.subf %98, %102 : vector<8x128xf32>
      %104 = arith.truncf %103 : vector<8x128xf32> to vector<8x128xbf16>
      %105 = arith.truncf %60 : vector<128x128xf32> to vector<128x128xbf16>
      %cst_38 = arith.constant dense<0.000000e+00> : vector<8x128xf32>
      %106 = tpu.matmul %104, %105, %cst_38 {dimension_numbers = #tpu.dot_dimension_numbers<[1], [0], [0], [1], [0, 0, 1, 1], [], []>} : vector<8x128xbf16>, vector<128x128xbf16>, vector<8x128xf32> -> vector<8x128xf32>
      %cst_39 = arith.constant 2.000000e+00 : f32
      %107 = vector.broadcast %cst_39 : f32 to vector<8x128xf32>
      %108 = arith.mulf %107, %103 : vector<8x128xf32>
      %109 = tpu.concatenate %103, %6 in 0 : vector<8x128xf32>, vector<120x128xf32> -> vector<128x128xf32>
      %110 = arith.truncf %106 : vector<8x128xf32> to vector<8x128xbf16>
      %111 = arith.truncf %109 : vector<128x128xf32> to vector<128x128xbf16>
      %cst_40 = arith.constant dense<0.000000e+00> : vector<8x128xf32>
      %112 = tpu.matmul %110, %111, %cst_40 {dimension_numbers = #tpu.dot_dimension_numbers<[1], [0], [0], [1], [0, 0, 1, 1], [], []>} : vector<8x128xbf16>, vector<128x128xbf16>, vector<8x128xf32> -> vector<8x128xf32>
      %113 = arith.subf %108, %112 : vector<8x128xf32>
      %114 = tpu.concatenate %113, %6 in 0 : vector<8x128xf32>, vector<120x128xf32> -> vector<128x128xf32>
      %115 = arith.truncf %52 : vector<8x128xf32> to vector<8x128xbf16>
      %116 = arith.truncf %114 : vector<128x128xf32> to vector<128x128xbf16>
      %cst_41 = arith.constant dense<0.000000e+00> : vector<8x128xf32>
      %117 = tpu.matmul %115, %116, %cst_41 {dimension_numbers = #tpu.dot_dimension_numbers<[1], [0], [0], [1], [0, 0, 1, 1], [], []>} : vector<8x128xbf16>, vector<128x128xbf16>, vector<8x128xf32> -> vector<8x128xf32>
      %118 = arith.addf %4, %49 : vector<8x128xf32>
      %119 = tpu.concatenate %55, %6 in 0 : vector<8x128xf32>, vector<120x128xf32> -> vector<128x128xf32>
      %120 = arith.truncf %117 : vector<8x128xf32> to vector<8x128xbf16>
      %121 = arith.truncf %119 : vector<128x128xf32> to vector<128x128xbf16>
      %cst_42 = arith.constant dense<0.000000e+00> : vector<8x128xf32>
      %122 = tpu.matmul %120, %121, %cst_42 {dimension_numbers = #tpu.dot_dimension_numbers<[1], [0], [0], [1], [0, 0, 1, 1], [], []>} : vector<8x128xbf16>, vector<128x128xbf16>, vector<8x128xf32> -> vector<8x128xf32>
      %123 = arith.subf %118, %122 : vector<8x128xf32>
      %124 = arith.subf %123, %39 : vector<8x128xf32>
      %125 = math.absf %124 : vector<8x128xf32>
      %126 = vector.shape_cast %125 : vector<8x128xf32> to vector<1x8x128xf32>
      %cst_43 = arith.constant dense<0xFF800000> : vector<1xf32>
      %127 = vector.multi_reduction <maximumf>, %126, %cst_43 [1, 2] : vector<1x8x128xf32> to vector<1xf32>
      %128 = vector.shape_cast %127 : vector<1xf32> to vector<1x1x1xf32>
      %129 = vector.extract %128[0, 0, 0] : f32 from vector<1x1x1xf32>
      %130 = tpu.concatenate %123, %6 in 0 : vector<8x128xf32>, vector<120x128xf32> -> vector<128x128xf32>
      %c1_i32_44 = arith.constant 1 : i32
      %131 = arith.addi %arg7, %c1_i32_44 : i32
      scf.yield %131, %129, %130, %114 : i32, f32, vector<128x128xf32>, vector<128x128xf32>
    }
    %c0_i32_18 = arith.constant 0 : i32
    %c6_i32 = arith.constant 6 : i32
    %35 = arith.addi %c0_i32_18, %c6_i32 : i32
    %c1_i32_19 = arith.constant 1 : i32
    %36:2 = scf.for %arg7 = %c0_i32_18 to %35 step %c1_i32_19 iter_args(%arg8 = %34#2, %arg9 = %34#3) -> (vector<128x128xf32>, vector<128x128xf32>)  : i32 {
      %39 = vector.extract_strided_slice %arg9 {offsets = [0, 0], sizes = [8, 128], strides = [1, 1]} : vector<128x128xf32> to vector<8x128xf32>
      %cst_22 = arith.constant dense<0.000000e+00> : vector<8x128xf32>
      %40 = tpu.matmul %3, %arg8, %cst_22 {dimension_numbers = #tpu.dot_dimension_numbers<[1], [0], [0], [1], [0, 0, 1, 1], [], []>, precision = #tpu.contract_precision<fp32>} : vector<8x128xf32>, vector<128x128xf32>, vector<8x128xf32> -> vector<8x128xf32>
      %cst_23 = arith.constant dense<0.000000e+00> : vector<8x128xf32>
      %41 = tpu.matmul %2, %arg8, %cst_23 {dimension_numbers = #tpu.dot_dimension_numbers<[1], [0], [0], [1], [0, 0, 1, 1], [], []>, precision = #tpu.contract_precision<fp32>} : vector<8x128xf32>, vector<128x128xf32>, vector<8x128xf32> -> vector<8x128xf32>
      %cst_24 = arith.constant dense<0.000000e+00> : vector<8x128xf32>
      %42 = tpu.matmul %41, %0, %cst_24 {dimension_numbers = #tpu.dot_dimension_numbers<[1], [0], [0], [1], [0, 0, 1, 1], [], []>, precision = #tpu.contract_precision<fp32>} : vector<8x128xf32>, vector<128x128xf32>, vector<8x128xf32> -> vector<8x128xf32>
      %cst_25 = arith.constant dense<0.000000e+00> : vector<8x128xf32>
      %43 = tpu.matmul %41, %1, %cst_25 {dimension_numbers = #tpu.dot_dimension_numbers<[1], [0], [0], [1], [0, 0, 1, 1], [], []>, precision = #tpu.contract_precision<fp32>} : vector<8x128xf32>, vector<128x128xf32>, vector<8x128xf32> -> vector<8x128xf32>
      %cst_26 = arith.constant dense<0.000000e+00> : vector<8x128xf32>
      %44 = tpu.matmul %40, %0, %cst_26 {dimension_numbers = #tpu.dot_dimension_numbers<[1], [0], [0], [1], [0, 0, 1, 1], [], []>, precision = #tpu.contract_precision<fp32>} : vector<8x128xf32>, vector<128x128xf32>, vector<8x128xf32> -> vector<8x128xf32>
      %cst_27 = arith.constant dense<0.000000e+00> : vector<8x128xf32>
      %45 = tpu.matmul %40, %1, %cst_27 {dimension_numbers = #tpu.dot_dimension_numbers<[1], [0], [0], [1], [0, 0, 1, 1], [], []>, precision = #tpu.contract_precision<fp32>} : vector<8x128xf32>, vector<128x128xf32>, vector<8x128xf32> -> vector<8x128xf32>
      %46 = arith.addf %5, %45 : vector<8x128xf32>
      %47 = tpu.concatenate %46, %6 in 0 : vector<8x128xf32>, vector<120x128xf32> -> vector<128x128xf32>
      %cst_28 = arith.constant dense<0.000000e+00> : vector<8x128xf32>
      %48 = tpu.matmul %39, %47, %cst_28 {dimension_numbers = #tpu.dot_dimension_numbers<[1], [0], [0], [1], [0, 0, 1, 1], [], []>, precision = #tpu.contract_precision<fp32>} : vector<8x128xf32>, vector<128x128xf32>, vector<8x128xf32> -> vector<8x128xf32>
      %49 = arith.subf %11, %48 : vector<8x128xf32>
      %50 = arith.mulf %49, %49 : vector<8x128xf32>
      %51 = vector.shape_cast %50 : vector<8x128xf32> to vector<1x8x128xf32>
      %cst_29 = arith.constant dense<0.000000e+00> : vector<1xf32>
      %52 = vector.multi_reduction <add>, %51, %cst_29 [1, 2] : vector<1x8x128xf32> to vector<1xf32>
      %53 = vector.shape_cast %52 : vector<1xf32> to vector<1x1x1xf32>
      %54 = vector.extract %53[0, 0, 0] : f32 from vector<1x1x1xf32>
      %55 = math.absf %46 : vector<8x128xf32>
      %cst_30 = arith.constant dense<0.000000e+00> : vector<8xf32>
      %56 = vector.multi_reduction <add>, %55, %cst_30 [1] : vector<8x128xf32> to vector<8xf32>
      %57 = vector.shape_cast %56 : vector<8xf32> to vector<8x1xf32>
      %58 = vector.shape_cast %57 : vector<8x1xf32> to vector<1x8x1xf32>
      %cst_31 = arith.constant dense<0xFF800000> : vector<1xf32>
      %59 = vector.multi_reduction <maximumf>, %58, %cst_31 [1, 2] : vector<1x8x1xf32> to vector<1xf32>
      %60 = vector.shape_cast %59 : vector<1xf32> to vector<1x1x1xf32>
      %61 = vector.extract %60[0, 0, 0] : f32 from vector<1x1x1xf32>
      %cst_32 = arith.constant 1.000000e+00 : f32
      %62 = arith.divf %cst_32, %61 : f32
      %cst_33 = arith.constant 8.100000e-01 : f32
      %63 = arith.cmpf olt, %54, %cst_33 : f32
      %64 = arith.extui %63 : i1 to i32
      %65 = arith.sitofp %64 : i32 to f32
      %66 = vector.broadcast %65 : f32 to vector<8x128xf32>
      %67 = arith.mulf %66, %39 : vector<8x128xf32>
      %cst_34 = arith.constant 1.000000e+00 : f32
      %68 = arith.subf %cst_34, %65 : f32
      %69 = vector.broadcast %62 : f32 to vector<8x128xf32>
      %70 = arith.mulf %69, %11 : vector<8x128xf32>
      %71 = vector.broadcast %68 : f32 to vector<8x128xf32>
      %72 = arith.mulf %71, %70 : vector<8x128xf32>
      %73 = arith.addf %67, %72 : vector<8x128xf32>
      %74 = vector.broadcast %65 : f32 to vector<8x128xf32>
      %75 = arith.mulf %74, %48 : vector<8x128xf32>
      %cst_35 = arith.constant 1.000000e+00 : f32
      %76 = arith.subf %cst_35, %65 : f32
      %77 = vector.broadcast %62 : f32 to vector<8x128xf32>
      %78 = arith.mulf %77, %46 : vector<8x128xf32>
      %79 = vector.broadcast %76 : f32 to vector<8x128xf32>
      %80 = arith.mulf %79, %78 : vector<8x128xf32>
      %81 = arith.addf %75, %80 : vector<8x128xf32>
      %cst_36 = arith.constant 2.000000e+00 : f32
      %82 = vector.broadcast %cst_36 : f32 to vector<8x128xf32>
      %83 = arith.mulf %82, %73 : vector<8x128xf32>
      %84 = tpu.concatenate %73, %6 in 0 : vector<8x128xf32>, vector<120x128xf32> -> vector<128x128xf32>
      %cst_37 = arith.constant dense<0.000000e+00> : vector<8x128xf32>
      %85 = tpu.matmul %81, %84, %cst_37 {dimension_numbers = #tpu.dot_dimension_numbers<[1], [0], [0], [1], [0, 0, 1, 1], [], []>, precision = #tpu.contract_precision<fp32>} : vector<8x128xf32>, vector<128x128xf32>, vector<8x128xf32> -> vector<8x128xf32>
      %86 = arith.subf %83, %85 : vector<8x128xf32>
      %cst_38 = arith.constant dense<0.000000e+00> : vector<8x128xf32>
      %87 = tpu.matmul %86, %47, %cst_38 {dimension_numbers = #tpu.dot_dimension_numbers<[1], [0], [0], [1], [0, 0, 1, 1], [], []>, precision = #tpu.contract_precision<fp32>} : vector<8x128xf32>, vector<128x128xf32>, vector<8x128xf32> -> vector<8x128xf32>
      %cst_39 = arith.constant 2.000000e+00 : f32
      %88 = vector.broadcast %cst_39 : f32 to vector<8x128xf32>
      %89 = arith.mulf %88, %86 : vector<8x128xf32>
      %90 = tpu.concatenate %86, %6 in 0 : vector<8x128xf32>, vector<120x128xf32> -> vector<128x128xf32>
      %cst_40 = arith.constant dense<0.000000e+00> : vector<8x128xf32>
      %91 = tpu.matmul %87, %90, %cst_40 {dimension_numbers = #tpu.dot_dimension_numbers<[1], [0], [0], [1], [0, 0, 1, 1], [], []>, precision = #tpu.contract_precision<fp32>} : vector<8x128xf32>, vector<128x128xf32>, vector<8x128xf32> -> vector<8x128xf32>
      %92 = arith.subf %89, %91 : vector<8x128xf32>
      %cst_41 = arith.constant dense<0.000000e+00> : vector<8x128xf32>
      %93 = tpu.matmul %92, %47, %cst_41 {dimension_numbers = #tpu.dot_dimension_numbers<[1], [0], [0], [1], [0, 0, 1, 1], [], []>, precision = #tpu.contract_precision<fp32>} : vector<8x128xf32>, vector<128x128xf32>, vector<8x128xf32> -> vector<8x128xf32>
      %cst_42 = arith.constant 2.000000e+00 : f32
      %94 = vector.broadcast %cst_42 : f32 to vector<8x128xf32>
      %95 = arith.mulf %94, %92 : vector<8x128xf32>
      %96 = tpu.concatenate %92, %6 in 0 : vector<8x128xf32>, vector<120x128xf32> -> vector<128x128xf32>
      %cst_43 = arith.constant dense<0.000000e+00> : vector<8x128xf32>
      %97 = tpu.matmul %93, %96, %cst_43 {dimension_numbers = #tpu.dot_dimension_numbers<[1], [0], [0], [1], [0, 0, 1, 1], [], []>, precision = #tpu.contract_precision<fp32>} : vector<8x128xf32>, vector<128x128xf32>, vector<8x128xf32> -> vector<8x128xf32>
      %98 = arith.subf %95, %97 : vector<8x128xf32>
      %99 = tpu.concatenate %98, %6 in 0 : vector<8x128xf32>, vector<120x128xf32> -> vector<128x128xf32>
      %cst_44 = arith.constant dense<0.000000e+00> : vector<8x128xf32>
      %100 = tpu.matmul %43, %99, %cst_44 {dimension_numbers = #tpu.dot_dimension_numbers<[1], [0], [0], [1], [0, 0, 1, 1], [], []>, precision = #tpu.contract_precision<fp32>} : vector<8x128xf32>, vector<128x128xf32>, vector<8x128xf32> -> vector<8x128xf32>
      %101 = arith.addf %4, %42 : vector<8x128xf32>
      %102 = tpu.concatenate %44, %6 in 0 : vector<8x128xf32>, vector<120x128xf32> -> vector<128x128xf32>
      %cst_45 = arith.constant dense<0.000000e+00> : vector<8x128xf32>
      %103 = tpu.matmul %100, %102, %cst_45 {dimension_numbers = #tpu.dot_dimension_numbers<[1], [0], [0], [1], [0, 0, 1, 1], [], []>, precision = #tpu.contract_precision<fp32>} : vector<8x128xf32>, vector<128x128xf32>, vector<8x128xf32> -> vector<8x128xf32>
      %104 = arith.subf %101, %103 : vector<8x128xf32>
      %105 = tpu.concatenate %104, %6 in 0 : vector<8x128xf32>, vector<120x128xf32> -> vector<128x128xf32>
      %106 = tpu.transpose %105, [1, 0] : vector<128x128xf32> -> vector<128x128xf32>
      %107 = arith.addf %105, %106 : vector<128x128xf32>
      %cst_46 = arith.constant 5.000000e-01 : f32
      %108 = vector.broadcast %cst_46 : f32 to vector<128x128xf32>
      %109 = arith.mulf %108, %107 : vector<128x128xf32>
      scf.yield %109, %99 : vector<128x128xf32>, vector<128x128xf32>
    }
    %37 = vector.extract_strided_slice %36#0 {offsets = [0, 0], sizes = [8, 128], strides = [1, 1]} : vector<128x128xf32> to vector<8x128xf32>
    %c0_20 = arith.constant 0 : index
    %c0_21 = arith.constant 0 : index
    %38 = vector.load %arg6[%c0_20, %c0_21] : memref<8x128xf32, #tpu.memory_space<vmem>>, vector<8x128xf32>
    tpu.vector_store %arg6[%c0_20, %c0_21], %37 {strides = array<i32>} : memref<8x128xf32, #tpu.memory_space<vmem>>, vector<8x128xf32>,
    return
  }
}

</mosaic_0001>

<llo_original>
// kernel: tpu_custom_call.1
$region0: #{tpu_custom_call.1}
  #allocation0 [shape = 'u32[]', space=smem, size = 0x4, offset = 0x4, fixed_abs, tag = 'smem constant byte address 0x4 - core index']
  #allocation1 [shape = 'u32[144,128]{1,0:T(1,128)}', space=vmem, size = 0x12000, scoped, tag = 'internal scratch']
  %s0 = inlined_call_operand.hbm [shape: f32[128,128], index: 0, kind: input, shape index: {}]
  %s1 = inlined_call_operand.hbm [shape: f32[128,128], index: 1, kind: input, shape index: {}]
  %s2 = inlined_call_operand.hbm [shape: f32[8,128], index: 2, kind: input, shape index: {}]
  %s3 = inlined_call_operand.vmem [shape: f32[8,128], index: 3, kind: input, shape index: {}]
  %s4 = inlined_call_operand.hbm [shape: f32[8,128], index: 4, kind: input, shape index: {}]
  %s5 = inlined_call_operand.vmem [shape: f32[8,128], index: 5, kind: input, shape index: {}]
  %s6 = inlined_call_operand.hbm [shape: f32[8,128], index: 6, kind: output, shape index: {}]
  %s7 = sld [smem:[#allocation0]]
  $region71: #{tpu_custom_call.1} parent=0
    _
  %s9 = ssub.s32 1, %s7
  %s10 = scalar_select 0, %s9, %s7
  $region1: #{tpu_custom_call.1} parent=0
    #allocation2 [shape = 'u8[65536]{0}', space=vmem, size = 0x10000, scoped, tag = 'input window, operand 0, single buffered']
    #allocation3 [shape = 's32[1]{0}', space=sflag, size = 0x4, scoped, tag = 'scoped memory for tpu_custom_call.1']
    #allocation4 [shape = 's32[1]{0}', space=sflag, size = 0x4, scoped, tag = 'scoped memory for tpu_custom_call.1']
    #allocation5 [shape = 'u8[65536]{0}', space=vmem, size = 0x10000, scoped, tag = 'input window, operand 1, single buffered']
    #allocation6 [shape = 's32[1]{0}', space=sflag, size = 0x4, scoped, tag = 'scoped memory for tpu_custom_call.1']
    #allocation7 [shape = 'u8[4096]{0}', space=vmem, size = 0x1000, scoped, tag = 'input window, operand 2, single buffered']
    #allocation8 [shape = 'u8[4096]{0}', space=vmem, size = 0x1000, scoped, tag = 'input window, operand 4, single buffered']
    #allocation9 [shape = 's32[1]{0}', space=sflag, size = 0x4, scoped, tag = 'scoped memory for tpu_custom_call.1']
    #allocation10 [shape = 'u8[4096]{0}', space=vmem, size = 0x1000, scoped, tag = 'output window, operand 0, single buffered']
    %11 = vsyncpa [#allocation3], 0
    %12 = vsyncpa [#allocation6], 0
    %13 = vsyncpa [#allocation9], 0
    %14 = vsyncpa [#allocation4], 0
    // Predicated region
    $region2: #{tpu_custom_call.1} parent=1 // pred_check
      _
    $region3: #{tpu_custom_call.1} parent=1 // pred_check_branch
      %16 = sbr.rel (0) target = $region5
    $region4: #{tpu_custom_call.1} parent=1 // pred_region
      %s18 = ssub.s32 2048, 2048
      %19 = vsyncadd [#allocation3], %s18
      %s20 = sshll.u32 [#allocation2], 4
      %s21 = int_to_ptr.vmem [resolvable:$true] %s20
      %26 = dma.hbm_to_vmem [thread:$0]  %s0, 2048, %s21, [#allocation3], 128, 128, 8
    $region5: #{tpu_custom_call.1} parent=1 // pred_fallthru
      _
    // Predicated region
    $region6: #{tpu_custom_call.1} parent=1 // pred_check
      _
    $region7: #{tpu_custom_call.1} parent=1 // pred_check_branch
      %28 = sbr.rel (0) target = $region9
    $region8: #{tpu_custom_call.1} parent=1 // pred_region
      %s30 = ssub.s32 2048, 2048
      %31 = vsyncadd [#allocation6], %s30
      %s32 = sshll.u32 [#allocation5], 4
      %s33 = int_to_ptr.vmem [resolvable:$true] %s32
      %38 = dma.hbm_to_vmem [thread:$0]  %s1, 2048, %s33, [#allocation6], 128, 128, 8
    $region9: #{tpu_custom_call.1} parent=1 // pred_fallthru
      _
    // Predicated region
    $region10: #{tpu_custom_call.1} parent=1 // pred_check
      _
    $region11: #{tpu_custom_call.1} parent=1 // pred_check_branch
      %40 = sbr.rel (0) target = $region13
    $region12: #{tpu_custom_call.1} parent=1 // pred_region
      %s42 = ssub.s32 128, 128
      %43 = vsyncadd [#allocation6], %s42
      %s45 = sshll.u32 [#allocation7], 4
      %s46 = int_to_ptr.vmem [resolvable:$true] %s45
      %48 = dma.hbm_to_vmem [thread:$0]  %s2, 128, %s46, [#allocation6]
    $region13: #{tpu_custom_call.1} parent=1 // pred_fallthru
      _
    // Predicated region
    $region14: #{tpu_custom_call.1} parent=1 // pred_check
      _
    $region15: #{tpu_custom_call.1} parent=1 // pred_check_branch
      %50 = sbr.rel (0) target = $region17
    $region16: #{tpu_custom_call.1} parent=1 // pred_region
      _
    $region17: #{tpu_custom_call.1} parent=1 // pred_fallthru
      _
    // Predicated region
    $region18: #{tpu_custom_call.1} parent=1 // pred_check
      _
    $region19: #{tpu_custom_call.1} parent=1 // pred_check_branch
      %52 = sbr.rel (0) target = $region21
    $region20: #{tpu_custom_call.1} parent=1 // pred_region
      %s54 = ssub.s32 128, 128
      %55 = vsyncadd [#allocation9], %s54
      %s57 = sshll.u32 [#allocation8], 4
      %s58 = int_to_ptr.vmem [resolvable:$true] %s57
      %60 = dma.hbm_to_vmem [thread:$0]  %s4, 128, %s58, [#allocation9]
    $region21: #{tpu_custom_call.1} parent=1 // pred_fallthru
      _
    // Predicated region
    $region22: #{tpu_custom_call.1} parent=1 // pred_check
      _
    $region23: #{tpu_custom_call.1} parent=1 // pred_check_branch
      %62 = sbr.rel (0) target = $region25
    $region24: #{tpu_custom_call.1} parent=1 // pred_region
      _
    $region25: #{tpu_custom_call.1} parent=1 // pred_fallthru
      _
    // Predicated region
    $region26: #{tpu_custom_call.1} parent=1 // pred_check
      _
    $region27: #{tpu_custom_call.1} parent=1 // pred_check_branch
      %64 = sbr.rel (0) target = $region29
    $region28: #{tpu_custom_call.1} parent=1 // pred_region
      %65 = dma.done [#allocation3], 2048
    $region29: #{tpu_custom_call.1} parent=1 // pred_fallthru
      _
    // Predicated region
    $region30: #{tpu_custom_call.1} parent=1 // pred_check
      _
    $region31: #{tpu_custom_call.1} parent=1 // pred_check_branch
      %67 = sbr.rel (0) target = $region33
    $region32: #{tpu_custom_call.1} parent=1 // pred_region
      %68 = dma.done [#allocation6], 2048
    $region33: #{tpu_custom_call.1} parent=1 // pred_fallthru
      _
    // Predicated region
    $region34: #{tpu_custom_call.1} parent=1 // pred_check
      _
    $region35: #{tpu_custom_call.1} parent=1 // pred_check_branch
      %70 = sbr.rel (0) target = $region37
    $region36: #{tpu_custom_call.1} parent=1 // pred_region
      %71 = dma.done [#allocation6], 128
    $region37: #{tpu_custom_call.1} parent=1 // pred_fallthru
      _
    // Predicated region
    $region38: #{tpu_custom_call.1} parent=1 // pred_check
      _
    $region39: #{tpu_custom_call.1} parent=1 // pred_check_branch
      %73 = sbr.rel (0) target = $region41
    $region40: #{tpu_custom_call.1} parent=1 // pred_region
      %74 = dma.done [#allocation9], 128
    $region41: #{tpu_custom_call.1} parent=1 // pred_fallthru
      _
    %v76 = vld [vmem:[#allocation2] sm:$0xff]
    %v77 = vld [vmem:[#allocation2 + $0x8] sm:$0xff]
    %v78 = vld [vmem:[#allocation2 + $0x10] sm:$0xff]
    %v79 = vld [vmem:[#allocation2 + $0x18] sm:$0xff]
    %v80 = vld [vmem:[#allocation2 + $0x20] sm:$0xff]
    %v81 = vld [vmem:[#allocation2 + $0x28] sm:$0xff]
    %v82 = vld [vmem:[#allocation2 + $0x30] sm:$0xff]
    %v83 = vld [vmem:[#allocation2 + $0x38] sm:$0xff]
    %v84 = vld [vmem:[#allocation2 + $0x40] sm:$0xff]
    %v85 = vld [vmem:[#allocation2 + $0x48] sm:$0xff]
    %v86 = vld [vmem:[#allocation2 + $0x50] sm:$0xff]
    %v87 = vld [vmem:[#allocation2 + $0x58] sm:$0xff]
    %v88 = vld [vmem:[#allocation2 + $0x60] sm:$0xff]
    %v89 = vld [vmem:[#allocation2 + $0x68] sm:$0xff]
    %v90 = vld [vmem:[#allocation2 + $0x70] sm:$0xff]
    %v91 = vld [vmem:[#allocation2 + $0x78] sm:$0xff]
    %v92 = vld [vmem:[#allocation5] sm:$0xff]
    %v93 = vld [vmem:[#allocation5 + $0x8] sm:$0xff]
    %v94 = vld [vmem:[#allocation5 + $0x10] sm:$0xff]
    %v95 = vld [vmem:[#allocation5 + $0x18] sm:$0xff]
    %v96 = vld [vmem:[#allocation5 + $0x20] sm:$0xff]
    %v97 = vld [vmem:[#allocation5 + $0x28] sm:$0xff]
    %v98 = vld [vmem:[#allocation5 + $0x30] sm:$0xff]
    %v99 = vld [vmem:[#allocation5 + $0x38] sm:$0xff]
    %v100 = vld [vmem:[#allocation5 + $0x40] sm:$0xff]
    %v101 = vld [vmem:[#allocation5 + $0x48] sm:$0xff]
    %v102 = vld [vmem:[#allocation5 + $0x50] sm:$0xff]
    %v103 = vld [vmem:[#allocation5 + $0x58] sm:$0xff]
    %v104 = vld [vmem:[#allocation5 + $0x60] sm:$0xff]
    %v105 = vld [vmem:[#allocation5 + $0x68] sm:$0xff]
    %v106 = vld [vmem:[#allocation5 + $0x70] sm:$0xff]
    %v107 = vld [vmem:[#allocation5 + $0x78] sm:$0xff]
    %v108 = vld [vmem:[#allocation7] sm:$0xff]
    %v109 = vld [vmem:[%s3] sm:$0xff]
    %v110 = vld [vmem:[#allocation8] sm:$0xff]
    %v111 = vld [vmem:[%s5] sm:$0xff]
    %v112 = vlaneseq
    %v113 = vshrl.u32 %v112, 7
    %v114 = vlaneseq
    %v115 = vand.u32 %v114, 127
    %vm116 = vcmp.eq.s32.totalorder %v113, %v115
    %v117 = vsel %vm116, 1, 0
    %v118 = vcvt.s32.f32 %v117
    %v119 = vpack.c.bf16 %v109, %v109
    %v120 = vpack.c.bf16 0.0, %v110
    %v121 = vpack.c.bf16 0.0, 0.0
    %122 = vmatprep.subr.bf16.mxu0 0
    %123 = vmatpush1.bf16.msra.mxu0 %v120
    %124 = vmatprep.subr.bf16.mxu0 0
    %125 = vmatpush1.bf16.msra.mxu0 %v121
    %126 = vmatprep.subr.bf16.mxu0 0
    %127 = vmatpush1.bf16.msra.mxu0 %v121
    %128 = vmatprep.subr.bf16.mxu0 0
    %129 = vmatpush1.bf16.msra.mxu0 %v121
    %130 = vmatprep.subr.bf16.mxu0 0
    %131 = vmatpush1.bf16.msra.mxu0 %v121
    %132 = vmatprep.subr.bf16.mxu0 0
    %133 = vmatpush1.bf16.msra.mxu0 %v121
    %134 = vmatprep.subr.bf16.mxu0 0
    %135 = vmatpush1.bf16.msra.mxu0 %v121
    %136 = vmatprep.subr.bf16.mxu0 0
    %137 = vmatpush1.bf16.msra.mxu0 %v121
    %138 = vmatprep.subr.bf16.mxu0 0
    %139 = vmatpush1.bf16.msra.mxu0 0
    %140 = vmatprep.subr.bf16.mxu0 0
    %141 = vmatpush1.bf16.msra.mxu0 0
    %142 = vmatprep.subr.bf16.mxu0 0
    %143 = vmatpush1.bf16.msra.mxu0 0
    %144 = vmatprep.subr.bf16.mxu0 0
    %145 = vmatpush1.bf16.msra.mxu0 0
    %146 = vmatprep.subr.bf16.mxu0 0
    %147 = vmatpush1.bf16.msra.mxu0 0
    %148 = vmatprep.subr.bf16.mxu0 0
    %149 = vmatpush1.bf16.msra.mxu0 0
    %150 = vmatprep.subr.bf16.mxu0 0
    %151 = vmatpush1.bf16.msra.mxu0 0
    %152 = vmatprep.subr.bf16.mxu0 0
    %153 = vmatpush1.bf16.msra.mxu0 0
    %154 = vmatprep.mubr.bf16.mxu0 0
    %155 = vmatmul.mubr.bf16.gmra.mrb[0].mxu0 %v119
    %v156 = vpop.f32.mrb[0].mxu0
    %v157 = vadd.f32 0.0, %v156
    %v158 = vpop.f32.mrb[0].mxu0
    %v159 = vpop.f32.mrb[0].mxu0
    %v160 = vpop.f32.mrb[0].mxu0
    %161 = vdwg.mxu0
    %v162 = vpack.c.bf16 %v157, %v157
    %v163 = vpack.c.bf16 %v93, %v92
    %v164 = vpack.c.bf16 %v95, %v94
    %v165 = vpack.c.bf16 %v97, %v96
    %v166 = vpack.c.bf16 %v99, %v98
    %v167 = vpack.c.bf16 %v101, %v100
    %v168 = vpack.c.bf16 %v103, %v102
    %v169 = vpack.c.bf16 %v105, %v104
    %v170 = vpack.c.bf16 %v107, %v106
    %171 = vmatprep.subr.bf16.mxu0 0
    %172 = vmatpush1.bf16.msra.mxu0 %v163
    %173 = vmatprep.subr.bf16.mxu0 0
    %174 = vmatpush1.bf16.msra.mxu0 %v164
    %175 = vmatprep.subr.bf16.mxu0 0
    %176 = vmatpush1.bf16.msra.mxu0 %v165
    %177 = vmatprep.subr.bf16.mxu0 0
    %178 = vmatpush1.bf16.msra.mxu0 %v166
    %179 = vmatprep.subr.bf16.mxu0 0
    %180 = vmatpush1.bf16.msra.mxu0 %v167
    %181 = vmatprep.subr.bf16.mxu0 0
    %182 = vmatpush1.bf16.msra.mxu0 %v168
    %183 = vmatprep.subr.bf16.mxu0 0
    %184 = vmatpush1.bf16.msra.mxu0 %v169
    %185 = vmatprep.subr.bf16.mxu0 0
    %186 = vmatpush1.bf16.msra.mxu0 %v170
    %187 = vmatprep.subr.bf16.mxu0 0
    %188 = vmatpush1.bf16.msra.mxu0 0
    %189 = vmatprep.subr.bf16.mxu0 0
    %190 = vmatpush1.bf16.msra.mxu0 0
    %191 = vmatprep.subr.bf16.mxu0 0
    %192 = vmatpush1.bf16.msra.mxu0 0
    %193 = vmatprep.subr.bf16.mxu0 0
    %194 = vmatpush1.bf16.msra.mxu0 0
    %195 = vmatprep.subr.bf16.mxu0 0
    %196 = vmatpush1.bf16.msra.mxu0 0
    %197 = vmatprep.subr.bf16.mxu0 0
    %198 = vmatpush1.bf16.msra.mxu0 0
    %199 = vmatprep.subr.bf16.mxu0 0
    %200 = vmatpush1.bf16.msra.mxu0 0
    %201 = vmatprep.subr.bf16.mxu0 0
    %202 = vmatpush1.bf16.msra.mxu0 0
    %203 = vmatprep.mubr.bf16.mxu0 0
    %204 = vmatmul.mubr.bf16.gmra.mrb[0].mxu0 %v162
    %v205 = vpop.f32.mrb[0].mxu0
    %v206 = vadd.f32 0.0, %v205
    %v207 = vpop.f32.mrb[0].mxu0
    %v208 = vpop.f32.mrb[0].mxu0
    %v209 = vpop.f32.mrb[0].mxu0
    %210 = vdwg.mxu0
    %v211 = vadd.f32 %v111, %v206
    %v212 = vand.u32 2147483647, %v211
    %213 = vadd.xlane.f32.xlu0 %v212
    %v214 = vpop.xlane.xlu0 %213
    %v215 = vrot.slane %v214, 4
    %v216 = vmax.f32 %v214, %v215
    %v217 = vrot.slane %v216, 2
    %v218 = vmax.f32 %v216, %v217
    %v219 = vrot.slane %v218, 1
    %v220 = vmax.f32 %v218, %v219
    %s221 = vtos %v220
    %v222 = vstv %s221
    %v223 = vrcp.pop %v222
    %s224 = vtos %v223
    %v225 = vstv %s224
    %v226 = vmul.f32 %v225, %v118
    loop: start=0, step=1, limit=16
    $region42: #{tpu_custom_call.1} parent=1 // loop_pre_header
      _
    $region43: #{tpu_custom_call.1} parent=1 // loop_header
      %s228 = sphi 0, %s232
      %p229 = scmp.ge.s32.totalorder %s228, 16
      %v233 = vphi %v226, %v319
    $region44: #{tpu_custom_call.1} parent=1 // loop_header_branch
      %231 = sbr.rel (%p229) target = $region48
    $region45: #{tpu_custom_call.1} parent=1 // loop_body
      %v234 = vmul.f32 %v233, 2.0
      %v235 = vpack.c.bf16 %v233, %v233
      %v236 = vpack.c.bf16 0.0, %v211
      %237 = vmatprep.subr.bf16.mxu0 0
      %238 = vmatpush1.bf16.msra.mxu0 %v236
      %239 = vmatprep.subr.bf16.mxu0 0
      %240 = vmatpush1.bf16.msra.mxu0 %v121
      %241 = vmatprep.subr.bf16.mxu0 0
      %242 = vmatpush1.bf16.msra.mxu0 %v121
      %243 = vmatprep.subr.bf16.mxu0 0
      %244 = vmatpush1.bf16.msra.mxu0 %v121
      %245 = vmatprep.subr.bf16.mxu0 0
      %246 = vmatpush1.bf16.msra.mxu0 %v121
      %247 = vmatprep.subr.bf16.mxu0 0
      %248 = vmatpush1.bf16.msra.mxu0 %v121
      %249 = vmatprep.subr.bf16.mxu0 0
      %250 = vmatpush1.bf16.msra.mxu0 %v121
      %251 = vmatprep.subr.bf16.mxu0 0
      %252 = vmatpush1.bf16.msra.mxu0 %v121
      %253 = vmatprep.subr.bf16.mxu0 0
      %254 = vmatpush1.bf16.msra.mxu0 0
      %255 = vmatprep.subr.bf16.mxu0 0
      %256 = vmatpush1.bf16.msra.mxu0 0
      %257 = vmatprep.subr.bf16.mxu0 0
      %258 = vmatpush1.bf16.msra.mxu0 0
      %259 = vmatprep.subr.bf16.mxu0 0
      %260 = vmatpush1.bf16.msra.mxu0 0
      %261 = vmatprep.subr.bf16.mxu0 0
      %262 = vmatpush1.bf16.msra.mxu0 0
      %263 = vmatprep.subr.bf16.mxu0 0
      %264 = vmatpush1.bf16.msra.mxu0 0
      %265 = vmatprep.subr.bf16.mxu0 0
      %266 = vmatpush1.bf16.msra.mxu0 0
      %267 = vmatprep.subr.bf16.mxu0 0
      %268 = vmatpush1.bf16.msra.mxu0 0
      %269 = vmatprep.mubr.bf16.mxu0 0
      %270 = vmatmul.mubr.bf16.gmra.mrb[0].mxu0 %v235
      %v271 = vpop.f32.mrb[0].mxu0
      %v272 = vadd.f32 0.0, %v271
      %v273 = vpop.f32.mrb[0].mxu0
      %v274 = vpop.f32.mrb[0].mxu0
      %v275 = vpop.f32.mrb[0].mxu0
      %276 = vdwg.mxu0
      %v277 = vpack.c.bf16 %v272, %v272
      %v278 = vpack.c.bf16 0.0, %v233
      %279 = vmatprep.subr.bf16.mxu0 0
      %280 = vmatpush1.bf16.msra.mxu0 %v278
      %281 = vmatprep.subr.bf16.mxu0 0
      %282 = vmatpush1.bf16.msra.mxu0 %v121
      %283 = vmatprep.subr.bf16.mxu0 0
      %284 = vmatpush1.bf16.msra.mxu0 %v121
      %285 = vmatprep.subr.bf16.mxu0 0
      %286 = vmatpush1.bf16.msra.mxu0 %v121
      %287 = vmatprep.subr.bf16.mxu0 0
      %288 = vmatpush1.bf16.msra.mxu0 %v121
      %289 = vmatprep.subr.bf16.mxu0 0
      %290 = vmatpush1.bf16.msra.mxu0 %v121
      %291 = vmatprep.subr.bf16.mxu0 0
      %292 = vmatpush1.bf16.msra.mxu0 %v121
      %293 = vmatprep.subr.bf16.mxu0 0
      %294 = vmatpush1.bf16.msra.mxu0 %v121
      %295 = vmatprep.subr.bf16.mxu0 0
      %296 = vmatpush1.bf16.msra.mxu0 0
      %297 = vmatprep.subr.bf16.mxu0 0
      %298 = vmatpush1.bf16.msra.mxu0 0
      %299 = vmatprep.subr.bf16.mxu0 0
      %300 = vmatpush1.bf16.msra.mxu0 0
      %301 = vmatprep.subr.bf16.mxu0 0
      %302 = vmatpush1.bf16.msra.mxu0 0
      %303 = vmatprep.subr.bf16.mxu0 0
      %304 = vmatpush1.bf16.msra.mxu0 0
      %305 = vmatprep.subr.bf16.mxu0 0
      %306 = vmatpush1.bf16.msra.mxu0 0
      %307 = vmatprep.subr.bf16.mxu0 0
      %308 = vmatpush1.bf16.msra.mxu0 0
      %309 = vmatprep.subr.bf16.mxu0 0
      %310 = vmatpush1.bf16.msra.mxu0 0
      %311 = vmatprep.mubr.bf16.mxu0 0
      %312 = vmatmul.mubr.bf16.gmra.mrb[0].mxu0 %v277
      %v313 = vpop.f32.mrb[0].mxu0
      %v314 = vadd.f32 0.0, %v313
      %v315 = vpop.f32.mrb[0].mxu0
      %v316 = vpop.f32.mrb[0].mxu0
      %v317 = vpop.f32.mrb[0].mxu0
      %318 = vdwg.mxu0
      %v319 = vsub.f32 %v234, %v314
    $region46: #{tpu_custom_call.1} parent=1 // loop_footer
      %s232 = sadd.s32 1, %s228
    $region47: #{tpu_custom_call.1} parent=1 // loop_footer_branch
      %227 = sbr.rel target = $region43
    $region48: #{tpu_custom_call.1} parent=1 // loop_exit
      _
    // While loop
    $region49: #{tpu_custom_call.1} parent=1 // loop_pre_header
      _
    $region50: #{tpu_custom_call.1} parent=1 // loop_header
      %s321 = sphi 0, %s891
      %s322 = sphi 1e+30, %s890
      %v323 = vphi %v110, %v879
      %v324 = vphi %v233, %v793
      %p325 = scmp.lt.s32.totalorder %s321, 48
      %p326 = scmp.gt.f32.partialorder %s322, 0.01
      %p327 = pnand %p325, %p326
      %p328 = pneg %p327
    $region51: #{tpu_custom_call.1} parent=1 // loop_header_branch
      %330 = sbr.rel (%p327) target = $region55
    $region52: #{tpu_custom_call.1} parent=1 // loop_body
      %v331 = vpack.c.bf16 0.0, %v323
      %332 = vmatprep.subr.bf16.mxu0 0
      %333 = vmatpush1.bf16.msra.mxu0 %v331
      %334 = vmatprep.subr.bf16.mxu0 0
      %335 = vmatpush1.bf16.msra.mxu0 %v121
      %336 = vmatprep.subr.bf16.mxu0 0
      %337 = vmatpush1.bf16.msra.mxu0 %v121
      %338 = vmatprep.subr.bf16.mxu0 0
      %339 = vmatpush1.bf16.msra.mxu0 %v121
      %340 = vmatprep.subr.bf16.mxu0 0
      %341 = vmatpush1.bf16.msra.mxu0 %v121
      %342 = vmatprep.subr.bf16.mxu0 0
      %343 = vmatpush1.bf16.msra.mxu0 %v121
      %344 = vmatprep.subr.bf16.mxu0 0
      %345 = vmatpush1.bf16.msra.mxu0 %v121
      %346 = vmatprep.subr.bf16.mxu0 0
      %347 = vmatpush1.bf16.msra.mxu0 %v121
      %348 = vmatprep.subr.bf16.mxu0 0
      %349 = vmatpush1.bf16.msra.mxu0 0
      %350 = vmatprep.subr.bf16.mxu0 0
      %351 = vmatpush1.bf16.msra.mxu0 0
      %352 = vmatprep.subr.bf16.mxu0 0
      %353 = vmatpush1.bf16.msra.mxu0 0
      %354 = vmatprep.subr.bf16.mxu0 0
      %355 = vmatpush1.bf16.msra.mxu0 0
      %356 = vmatprep.subr.bf16.mxu0 0
      %357 = vmatpush1.bf16.msra.mxu0 0
      %358 = vmatprep.subr.bf16.mxu0 0
      %359 = vmatpush1.bf16.msra.mxu0 0
      %360 = vmatprep.subr.bf16.mxu0 0
      %361 = vmatpush1.bf16.msra.mxu0 0
      %362 = vmatprep.subr.bf16.mxu0 0
      %363 = vmatpush1.bf16.msra.mxu0 0
      %364 = vmatprep.mubr.bf16.mxu0 0
      %365 = vmatmul.mubr.bf16.gmra.mrb[0].mxu0 %v119
      %v366 = vpop.f32.mrb[0].mxu0
      %v367 = vadd.f32 0.0, %v366
      %v368 = vpop.f32.mrb[0].mxu0
      %v369 = vpop.f32.mrb[0].mxu0
      %v370 = vpop.f32.mrb[0].mxu0
      %371 = vdwg.mxu0
      %v372 = vpack.c.bf16 %v108, %v108
      %373 = vmatprep.subr.bf16.mxu0 0
      %374 = vmatpush1.bf16.msra.mxu0 %v331
      %375 = vmatprep.subr.bf16.mxu0 0
      %376 = vmatpush1.bf16.msra.mxu0 %v121
      %377 = vmatprep.subr.bf16.mxu0 0
      %378 = vmatpush1.bf16.msra.mxu0 %v121
      %379 = vmatprep.subr.bf16.mxu0 0
      %380 = vmatpush1.bf16.msra.mxu0 %v121
      %381 = vmatprep.subr.bf16.mxu0 0
      %382 = vmatpush1.bf16.msra.mxu0 %v121
      %383 = vmatprep.subr.bf16.mxu0 0
      %384 = vmatpush1.bf16.msra.mxu0 %v121
      %385 = vmatprep.subr.bf16.mxu0 0
      %386 = vmatpush1.bf16.msra.mxu0 %v121
      %387 = vmatprep.subr.bf16.mxu0 0
      %388 = vmatpush1.bf16.msra.mxu0 %v121
      %389 = vmatprep.subr.bf16.mxu0 0
      %390 = vmatpush1.bf16.msra.mxu0 0
      %391 = vmatprep.subr.bf16.mxu0 0
      %392 = vmatpush1.bf16.msra.mxu0 0
      %393 = vmatprep.subr.bf16.mxu0 0
      %394 = vmatpush1.bf16.msra.mxu0 0
      %395 = vmatprep.subr.bf16.mxu0 0
      %396 = vmatpush1.bf16.msra.mxu0 0
      %397 = vmatprep.subr.bf16.mxu0 0
      %398 = vmatpush1.bf16.msra.mxu0 0
      %399 = vmatprep.subr.bf16.mxu0 0
      %400 = vmatpush1.bf16.msra.mxu0 0
      %401 = vmatprep.subr.bf16.mxu0 0
      %402 = vmatpush1.bf16.msra.mxu0 0
      %403 = vmatprep.subr.bf16.mxu0 0
      %404 = vmatpush1.bf16.msra.mxu0 0
      %405 = vmatprep.mubr.bf16.mxu0 0
      %406 = vmatmul.mubr.bf16.gmra.mrb[0].mxu0 %v372
      %v407 = vpop.f32.mrb[0].mxu0
      %v408 = vadd.f32 0.0, %v407
      %v409 = vpop.f32.mrb[0].mxu0
      %v410 = vpop.f32.mrb[0].mxu0
      %v411 = vpop.f32.mrb[0].mxu0
      %412 = vdwg.mxu0
      %v413 = vpack.c.bf16 %v408, %v408
      %v414 = vpack.c.bf16 %v77, %v76
      %v415 = vpack.c.bf16 %v79, %v78
      %v416 = vpack.c.bf16 %v81, %v80
      %v417 = vpack.c.bf16 %v83, %v82
      %v418 = vpack.c.bf16 %v85, %v84
      %v419 = vpack.c.bf16 %v87, %v86
      %v420 = vpack.c.bf16 %v89, %v88
      %v421 = vpack.c.bf16 %v91, %v90
      %422 = vmatprep.subr.bf16.mxu0 0
      %423 = vmatpush1.bf16.msra.mxu0 %v414
      %424 = vmatprep.subr.bf16.mxu0 0
      %425 = vmatpush1.bf16.msra.mxu0 %v415
      %426 = vmatprep.subr.bf16.mxu0 0
      %427 = vmatpush1.bf16.msra.mxu0 %v416
      %428 = vmatprep.subr.bf16.mxu0 0
      %429 = vmatpush1.bf16.msra.mxu0 %v417
      %430 = vmatprep.subr.bf16.mxu0 0
      %431 = vmatpush1.bf16.msra.mxu0 %v418
      %432 = vmatprep.subr.bf16.mxu0 0
      %433 = vmatpush1.bf16.msra.mxu0 %v419
      %434 = vmatprep.subr.bf16.mxu0 0
      %435 = vmatpush1.bf16.msra.mxu0 %v420
      %436 = vmatprep.subr.bf16.mxu0 0
      %437 = vmatpush1.bf16.msra.mxu0 %v421
      %438 = vmatprep.subr.bf16.mxu0 0
      %439 = vmatpush1.bf16.msra.mxu0 0
      %440 = vmatprep.subr.bf16.mxu0 0
      %441 = vmatpush1.bf16.msra.mxu0 0
      %442 = vmatprep.subr.bf16.mxu0 0
      %443 = vmatpush1.bf16.msra.mxu0 0
      %444 = vmatprep.subr.bf16.mxu0 0
      %445 = vmatpush1.bf16.msra.mxu0 0
      %446 = vmatprep.subr.bf16.mxu0 0
      %447 = vmatpush1.bf16.msra.mxu0 0
      %448 = vmatprep.subr.bf16.mxu0 0
      %449 = vmatpush1.bf16.msra.mxu0 0
      %450 = vmatprep.subr.bf16.mxu0 0
      %451 = vmatpush1.bf16.msra.mxu0 0
      %452 = vmatprep.subr.bf16.mxu0 0
      %453 = vmatpush1.bf16.msra.mxu0 0
      %454 = vmatprep.mubr.bf16.mxu0 0
      %455 = vmatmul.mubr.bf16.gmra.mrb[0].mxu0 %v413
      %v456 = vpop.f32.mrb[0].mxu0
      %v457 = vadd.f32 0.0, %v456
      %v458 = vpop.f32.mrb[0].mxu0
      %v459 = vpop.f32.mrb[0].mxu0
      %v460 = vpop.f32.mrb[0].mxu0
      %461 = vdwg.mxu0
      %462 = vmatprep.subr.bf16.mxu0 0
      %463 = vmatpush1.bf16.msra.mxu0 %v163
      %464 = vmatprep.subr.bf16.mxu0 0
      %465 = vmatpush1.bf16.msra.mxu0 %v164
      %466 = vmatprep.subr.bf16.mxu0 0
      %467 = vmatpush1.bf16.msra.mxu0 %v165
      %468 = vmatprep.subr.bf16.mxu0 0
      %469 = vmatpush1.bf16.msra.mxu0 %v166
      %470 = vmatprep.subr.bf16.mxu0 0
      %471 = vmatpush1.bf16.msra.mxu0 %v167
      %472 = vmatprep.subr.bf16.mxu0 0
      %473 = vmatpush1.bf16.msra.mxu0 %v168
      %474 = vmatprep.subr.bf16.mxu0 0
      %475 = vmatpush1.bf16.msra.mxu0 %v169
      %476 = vmatprep.subr.bf16.mxu0 0
      %477 = vmatpush1.bf16.msra.mxu0 %v170
      %478 = vmatprep.subr.bf16.mxu0 0
      %479 = vmatpush1.bf16.msra.mxu0 0
      %480 = vmatprep.subr.bf16.mxu0 0
      %481 = vmatpush1.bf16.msra.mxu0 0
      %482 = vmatprep.subr.bf16.mxu0 0
      %483 = vmatpush1.bf16.msra.mxu0 0
      %484 = vmatprep.subr.bf16.mxu0 0
      %485 = vmatpush1.bf16.msra.mxu0 0
      %486 = vmatprep.subr.bf16.mxu0 0
      %487 = vmatpush1.bf16.msra.mxu0 0
      %488 = vmatprep.subr.bf16.mxu0 0
      %489 = vmatpush1.bf16.msra.mxu0 0
      %490 = vmatprep.subr.bf16.mxu0 0
      %491 = vmatpush1.bf16.msra.mxu0 0
      %492 = vmatprep.subr.bf16.mxu0 0
      %493 = vmatpush1.bf16.msra.mxu0 0
      %494 = vmatprep.mubr.bf16.mxu0 0
      %495 = vmatmul.mubr.bf16.gmra.mrb[0].mxu0 %v413
      %v496 = vpop.f32.mrb[0].mxu0
      %v497 = vadd.f32 0.0, %v496
      %v498 = vpop.f32.mrb[0].mxu0
      %v499 = vpop.f32.mrb[0].mxu0
      %v500 = vpop.f32.mrb[0].mxu0
      %501 = vdwg.mxu0
      %v502 = vpack.c.bf16 %v367, %v367
      %503 = vmatprep.subr.bf16.mxu0 0
      %504 = vmatpush1.bf16.msra.mxu0 %v414
      %505 = vmatprep.subr.bf16.mxu0 0
      %506 = vmatpush1.bf16.msra.mxu0 %v415
      %507 = vmatprep.subr.bf16.mxu0 0
      %508 = vmatpush1.bf16.msra.mxu0 %v416
      %509 = vmatprep.subr.bf16.mxu0 0
      %510 = vmatpush1.bf16.msra.mxu0 %v417
      %511 = vmatprep.subr.bf16.mxu0 0
      %512 = vmatpush1.bf16.msra.mxu0 %v418
      %513 = vmatprep.subr.bf16.mxu0 0
      %514 = vmatpush1.bf16.msra.mxu0 %v419
      %515 = vmatprep.subr.bf16.mxu0 0
      %516 = vmatpush1.bf16.msra.mxu0 %v420
      %517 = vmatprep.subr.bf16.mxu0 0
      %518 = vmatpush1.bf16.msra.mxu0 %v421
      %519 = vmatprep.subr.bf16.mxu0 0
      %520 = vmatpush1.bf16.msra.mxu0 0
      %521 = vmatprep.subr.bf16.mxu0 0
      %522 = vmatpush1.bf16.msra.mxu0 0
      %523 = vmatprep.subr.bf16.mxu0 0
      %524 = vmatpush1.bf16.msra.mxu0 0
      %525 = vmatprep.subr.bf16.mxu0 0
      %526 = vmatpush1.bf16.msra.mxu0 0
      %527 = vmatprep.subr.bf16.mxu0 0
      %528 = vmatpush1.bf16.msra.mxu0 0
      %529 = vmatprep.subr.bf16.mxu0 0
      %530 = vmatpush1.bf16.msra.mxu0 0
      %531 = vmatprep.subr.bf16.mxu0 0
      %532 = vmatpush1.bf16.msra.mxu0 0
      %533 = vmatprep.subr.bf16.mxu0 0
      %534 = vmatpush1.bf16.msra.mxu0 0
      %535 = vmatprep.mubr.bf16.mxu0 0
      %536 = vmatmul.mubr.bf16.gmra.mrb[0].mxu0 %v502
      %v537 = vpop.f32.mrb[0].mxu0
      %v538 = vadd.f32 0.0, %v537
      %v539 = vpop.f32.mrb[0].mxu0
      %v540 = vpop.f32.mrb[0].mxu0
      %v541 = vpop.f32.mrb[0].mxu0
      %542 = vdwg.mxu0
      %543 = vmatprep.subr.bf16.mxu0 0
      %544 = vmatpush1.bf16.msra.mxu0 %v163
      %545 = vmatprep.subr.bf16.mxu0 0
      %546 = vmatpush1.bf16.msra.mxu0 %v164
      %547 = vmatprep.subr.bf16.mxu0 0
      %548 = vmatpush1.bf16.msra.mxu0 %v165
      %549 = vmatprep.subr.bf16.mxu0 0
      %550 = vmatpush1.bf16.msra.mxu0 %v166
      %551 = vmatprep.subr.bf16.mxu0 0
      %552 = vmatpush1.bf16.msra.mxu0 %v167
      %553 = vmatprep.subr.bf16.mxu0 0
      %554 = vmatpush1.bf16.msra.mxu0 %v168
      %555 = vmatprep.subr.bf16.mxu0 0
      %556 = vmatpush1.bf16.msra.mxu0 %v169
      %557 = vmatprep.subr.bf16.mxu0 0
      %558 = vmatpush1.bf16.msra.mxu0 %v170
      %559 = vmatprep.subr.bf16.mxu0 0
      %560 = vmatpush1.bf16.msra.mxu0 0
      %561 = vmatprep.subr.bf16.mxu0 0
      %562 = vmatpush1.bf16.msra.mxu0 0
      %563 = vmatprep.subr.bf16.mxu0 0
      %564 = vmatpush1.bf16.msra.mxu0 0
      %565 = vmatprep.subr.bf16.mxu0 0
      %566 = vmatpush1.bf16.msra.mxu0 0
      %567 = vmatprep.subr.bf16.mxu0 0
      %568 = vmatpush1.bf16.msra.mxu0 0
      %569 = vmatprep.subr.bf16.mxu0 0
      %570 = vmatpush1.bf16.msra.mxu0 0
      %571 = vmatprep.subr.bf16.mxu0 0
      %572 = vmatpush1.bf16.msra.mxu0 0
      %573 = vmatprep.subr.bf16.mxu0 0
      %574 = vmatpush1.bf16.msra.mxu0 0
      %575 = vmatprep.mubr.bf16.mxu0 0
      %576 = vmatmul.mubr.bf16.gmra.mrb[0].mxu0 %v502
      %v577 = vpop.f32.mrb[0].mxu0
      %v578 = vadd.f32 0.0, %v577
      %v579 = vpop.f32.mrb[0].mxu0
      %v580 = vpop.f32.mrb[0].mxu0
      %v581 = vpop.f32.mrb[0].mxu0
      %582 = vdwg.mxu0
      %v583 = vadd.f32 %v111, %v578
      %v584 = vpack.c.bf16 %v324, %v324
      %v585 = vpack.c.bf16 0.0, %v583
      %586 = vmatprep.subr.bf16.mxu0 0
      %587 = vmatpush1.bf16.msra.mxu0 %v585
      %588 = vmatprep.subr.bf16.mxu0 0
      %589 = vmatpush1.bf16.msra.mxu0 %v121
      %590 = vmatprep.subr.bf16.mxu0 0
      %591 = vmatpush1.bf16.msra.mxu0 %v121
      %592 = vmatprep.subr.bf16.mxu0 0
      %593 = vmatpush1.bf16.msra.mxu0 %v121
      %594 = vmatprep.subr.bf16.mxu0 0
      %595 = vmatpush1.bf16.msra.mxu0 %v121
      %596 = vmatprep.subr.bf16.mxu0 0
      %597 = vmatpush1.bf16.msra.mxu0 %v121
      %598 = vmatprep.subr.bf16.mxu0 0
      %599 = vmatpush1.bf16.msra.mxu0 %v121
      %600 = vmatprep.subr.bf16.mxu0 0
      %601 = vmatpush1.bf16.msra.mxu0 %v121
      %602 = vmatprep.subr.bf16.mxu0 0
      %603 = vmatpush1.bf16.msra.mxu0 0
      %604 = vmatprep.subr.bf16.mxu0 0
      %605 = vmatpush1.bf16.msra.mxu0 0
      %606 = vmatprep.subr.bf16.mxu0 0
      %607 = vmatpush1.bf16.msra.mxu0 0
      %608 = vmatprep.subr.bf16.mxu0 0
      %609 = vmatpush1.bf16.msra.mxu0 0
      %610 = vmatprep.subr.bf16.mxu0 0
      %611 = vmatpush1.bf16.msra.mxu0 0
      %612 = vmatprep.subr.bf16.mxu0 0
      %613 = vmatpush1.bf16.msra.mxu0 0
      %614 = vmatprep.subr.bf16.mxu0 0
      %615 = vmatpush1.bf16.msra.mxu0 0
      %616 = vmatprep.subr.bf16.mxu0 0
      %617 = vmatpush1.bf16.msra.mxu0 0
      %618 = vmatprep.mubr.bf16.mxu0 0
      %619 = vmatmul.mubr.bf16.gmra.mrb[0].mxu0 %v584
      %v620 = vpop.f32.mrb[0].mxu0
      %v621 = vadd.f32 0.0, %v620
      %v622 = vpop.f32.mrb[0].mxu0
      %v623 = vpop.f32.mrb[0].mxu0
      %v624 = vpop.f32.mrb[0].mxu0
      %625 = vdwg.mxu0
      %v626 = vsub.f32 %v118, %v621
      %v627 = vmul.f32 %v626, %v626
      %628 = vadd.xlane.f32.xlu0 %v627
      %v629 = vpop.xlane.xlu0 %628
      %v630 = vrot.slane %v629, 4
      %v631 = vadd.f32 %v629, %v630
      %v632 = vrot.slane %v631, 2
      %v633 = vadd.f32 %v631, %v632
      %v634 = vrot.slane %v633, 1
      %v635 = vadd.f32 %v633, %v634
      %s636 = vtos %v635
      %v637 = vand.u32 2147483647, %v583
      %638 = vadd.xlane.f32.xlu0 %v637
      %v639 = vpop.xlane.xlu0 %638
      %v640 = vrot.slane %v639, 4
      %v641 = vmax.f32 %v639, %v640
      %v642 = vrot.slane %v641, 2
      %v643 = vmax.f32 %v641, %v642
      %v644 = vrot.slane %v643, 1
      %v645 = vmax.f32 %v643, %v644
      %s646 = vtos %v645
      %v647 = vstv %s646
      %v648 = vrcp.pop %v647
      %s649 = vtos %v648
      %p650 = scmp.lt.f32.partialorder %s636, 0.81
      %s651 = scalar_select %p650, 1, 0
      %s652 = scvt.s32.f32 %s651
      %v653 = vstv %s652
      %v654 = vmul.f32 %v653, %v324
      %s655 = ssub.f32 1.0, %s652
      %v656 = vstv %s649
      %v657 = vmul.f32 %v656, %v118
      %v658 = vstv %s655
      %v659 = vmul.f32 %v658, %v657
      %v660 = vadd.f32 %v654, %v659
      %v661 = vmul.f32 %v653, %v621
      %v662 = vmul.f32 %v656, %v583
      %v663 = vmul.f32 %v658, %v662
      %v664 = vadd.f32 %v661, %v663
      %v665 = vmul.f32 %v660, 2.0
      %v666 = vpack.c.bf16 %v664, %v664
      %v667 = vpack.c.bf16 0.0, %v660
      %668 = vmatprep.subr.bf16.mxu0 0
      %669 = vmatpush1.bf16.msra.mxu0 %v667
      %670 = vmatprep.subr.bf16.mxu0 0
      %671 = vmatpush1.bf16.msra.mxu0 %v121
      %672 = vmatprep.subr.bf16.mxu0 0
      %673 = vmatpush1.bf16.msra.mxu0 %v121
      %674 = vmatprep.subr.bf16.mxu0 0
      %675 = vmatpush1.bf16.msra.mxu0 %v121
      %676 = vmatprep.subr.bf16.mxu0 0
      %677 = vmatpush1.bf16.msra.mxu0 %v121
      %678 = vmatprep.subr.bf16.mxu0 0
      %679 = vmatpush1.bf16.msra.mxu0 %v121
      %680 = vmatprep.subr.bf16.mxu0 0
      %681 = vmatpush1.bf16.msra.mxu0 %v121
      %682 = vmatprep.subr.bf16.mxu0 0
      %683 = vmatpush1.bf16.msra.mxu0 %v121
      %684 = vmatprep.subr.bf16.mxu0 0
      %685 = vmatpush1.bf16.msra.mxu0 0
      %686 = vmatprep.subr.bf16.mxu0 0
      %687 = vmatpush1.bf16.msra.mxu0 0
      %688 = vmatprep.subr.bf16.mxu0 0
      %689 = vmatpush1.bf16.msra.mxu0 0
      %690 = vmatprep.subr.bf16.mxu0 0
      %691 = vmatpush1.bf16.msra.mxu0 0
      %692 = vmatprep.subr.bf16.mxu0 0
      %693 = vmatpush1.bf16.msra.mxu0 0
      %694 = vmatprep.subr.bf16.mxu0 0
      %695 = vmatpush1.bf16.msra.mxu0 0
      %696 = vmatprep.subr.bf16.mxu0 0
      %697 = vmatpush1.bf16.msra.mxu0 0
      %698 = vmatprep.subr.bf16.mxu0 0
      %699 = vmatpush1.bf16.msra.mxu0 0
      %700 = vmatprep.mubr.bf16.mxu0 0
      %701 = vmatmul.mubr.bf16.gmra.mrb[0].mxu0 %v666
      %v702 = vpop.f32.mrb[0].mxu0
      %v703 = vadd.f32 0.0, %v702
      %v704 = vpop.f32.mrb[0].mxu0
      %v705 = vpop.f32.mrb[0].mxu0
      %v706 = vpop.f32.mrb[0].mxu0
      %707 = vdwg.mxu0
      %v708 = vsub.f32 %v665, %v703
      %v709 = vpack.c.bf16 %v708, %v708
      %710 = vmatprep.subr.bf16.mxu0 0
      %711 = vmatpush1.bf16.msra.mxu0 %v585
      %712 = vmatprep.subr.bf16.mxu0 0
      %713 = vmatpush1.bf16.msra.mxu0 %v121
      %714 = vmatprep.subr.bf16.mxu0 0
      %715 = vmatpush1.bf16.msra.mxu0 %v121
      %716 = vmatprep.subr.bf16.mxu0 0
      %717 = vmatpush1.bf16.msra.mxu0 %v121
      %718 = vmatprep.subr.bf16.mxu0 0
      %719 = vmatpush1.bf16.msra.mxu0 %v121
      %720 = vmatprep.subr.bf16.mxu0 0
      %721 = vmatpush1.bf16.msra.mxu0 %v121
      %722 = vmatprep.subr.bf16.mxu0 0
      %723 = vmatpush1.bf16.msra.mxu0 %v121
      %724 = vmatprep.subr.bf16.mxu0 0
      %725 = vmatpush1.bf16.msra.mxu0 %v121
      %726 = vmatprep.subr.bf16.mxu0 0
      %727 = vmatpush1.bf16.msra.mxu0 0
      %728 = vmatprep.subr.bf16.mxu0 0
      %729 = vmatpush1.bf16.msra.mxu0 0
      %730 = vmatprep.subr.bf16.mxu0 0
      %731 = vmatpush1.bf16.msra.mxu0 0
      %732 = vmatprep.subr.bf16.mxu0 0
      %733 = vmatpush1.bf16.msra.mxu0 0
      %734 = vmatprep.subr.bf16.mxu0 0
      %735 = vmatpush1.bf16.msra.mxu0 0
      %736 = vmatprep.subr.bf16.mxu0 0
      %737 = vmatpush1.bf16.msra.mxu0 0
      %738 = vmatprep.subr.bf16.mxu0 0
      %739 = vmatpush1.bf16.msra.mxu0 0
      %740 = vmatprep.subr.bf16.mxu0 0
      %741 = vmatpush1.bf16.msra.mxu0 0
      %742 = vmatprep.mubr.bf16.mxu0 0
      %743 = vmatmul.mubr.bf16.gmra.mrb[0].mxu0 %v709
      %v744 = vpop.f32.mrb[0].mxu0
      %v745 = vadd.f32 0.0, %v744
      %v746 = vpop.f32.mrb[0].mxu0
      %v747 = vpop.f32.mrb[0].mxu0
      %v748 = vpop.f32.mrb[0].mxu0
      %749 = vdwg.mxu0
      %v750 = vmul.f32 %v708, 2.0
      %v751 = vpack.c.bf16 %v745, %v745
      %v752 = vpack.c.bf16 0.0, %v708
      %753 = vmatprep.subr.bf16.mxu0 0
      %754 = vmatpush1.bf16.msra.mxu0 %v752
      %755 = vmatprep.subr.bf16.mxu0 0
      %756 = vmatpush1.bf16.msra.mxu0 %v121
      %757 = vmatprep.subr.bf16.mxu0 0
      %758 = vmatpush1.bf16.msra.mxu0 %v121
      %759 = vmatprep.subr.bf16.mxu0 0
      %760 = vmatpush1.bf16.msra.mxu0 %v121
      %761 = vmatprep.subr.bf16.mxu0 0
      %762 = vmatpush1.bf16.msra.mxu0 %v121
      %763 = vmatprep.subr.bf16.mxu0 0
      %764 = vmatpush1.bf16.msra.mxu0 %v121
      %765 = vmatprep.subr.bf16.mxu0 0
      %766 = vmatpush1.bf16.msra.mxu0 %v121
      %767 = vmatprep.subr.bf16.mxu0 0
      %768 = vmatpush1.bf16.msra.mxu0 %v121
      %769 = vmatprep.subr.bf16.mxu0 0
      %770 = vmatpush1.bf16.msra.mxu0 0
      %771 = vmatprep.subr.bf16.mxu0 0
      %772 = vmatpush1.bf16.msra.mxu0 0
      %773 = vmatprep.subr.bf16.mxu0 0
      %774 = vmatpush1.bf16.msra.mxu0 0
      %775 = vmatprep.subr.bf16.mxu0 0
      %776 = vmatpush1.bf16.msra.mxu0 0
      %777 = vmatprep.subr.bf16.mxu0 0
      %778 = vmatpush1.bf16.msra.mxu0 0
      %779 = vmatprep.subr.bf16.mxu0 0
      %780 = vmatpush1.bf16.msra.mxu0 0
      %781 = vmatprep.subr.bf16.mxu0 0
      %782 = vmatpush1.bf16.msra.mxu0 0
      %783 = vmatprep.subr.bf16.mxu0 0
      %784 = vmatpush1.bf16.msra.mxu0 0
      %785 = vmatprep.mubr.bf16.mxu0 0
      %786 = vmatmul.mubr.bf16.gmra.mrb[0].mxu0 %v751
      %v787 = vpop.f32.mrb[0].mxu0
      %v788 = vadd.f32 0.0, %v787
      %v789 = vpop.f32.mrb[0].mxu0
      %v790 = vpop.f32.mrb[0].mxu0
      %v791 = vpop.f32.mrb[0].mxu0
      %792 = vdwg.mxu0
      %v793 = vsub.f32 %v750, %v788
      %v794 = vpack.c.bf16 %v497, %v497
      %v795 = vpack.c.bf16 0.0, %v793
      %796 = vmatprep.subr.bf16.mxu0 0
      %797 = vmatpush1.bf16.msra.mxu0 %v795
      %798 = vmatprep.subr.bf16.mxu0 0
      %799 = vmatpush1.bf16.msra.mxu0 %v121
      %800 = vmatprep.subr.bf16.mxu0 0
      %801 = vmatpush1.bf16.msra.mxu0 %v121
      %802 = vmatprep.subr.bf16.mxu0 0
      %803 = vmatpush1.bf16.msra.mxu0 %v121
      %804 = vmatprep.subr.bf16.mxu0 0
      %805 = vmatpush1.bf16.msra.mxu0 %v121
      %806 = vmatprep.subr.bf16.mxu0 0
      %807 = vmatpush1.bf16.msra.mxu0 %v121
      %808 = vmatprep.subr.bf16.mxu0 0
      %809 = vmatpush1.bf16.msra.mxu0 %v121
      %810 = vmatprep.subr.bf16.mxu0 0
      %811 = vmatpush1.bf16.msra.mxu0 %v121
      %812 = vmatprep.subr.bf16.mxu0 0
      %813 = vmatpush1.bf16.msra.mxu0 0
      %814 = vmatprep.subr.bf16.mxu0 0
      %815 = vmatpush1.bf16.msra.mxu0 0
      %816 = vmatprep.subr.bf16.mxu0 0
      %817 = vmatpush1.bf16.msra.mxu0 0
      %818 = vmatprep.subr.bf16.mxu0 0
      %819 = vmatpush1.bf16.msra.mxu0 0
      %820 = vmatprep.subr.bf16.mxu0 0
      %821 = vmatpush1.bf16.msra.mxu0 0
      %822 = vmatprep.subr.bf16.mxu0 0
      %823 = vmatpush1.bf16.msra.mxu0 0
      %824 = vmatprep.subr.bf16.mxu0 0
      %825 = vmatpush1.bf16.msra.mxu0 0
      %826 = vmatprep.subr.bf16.mxu0 0
      %827 = vmatpush1.bf16.msra.mxu0 0
      %828 = vmatprep.mubr.bf16.mxu0 0
      %829 = vmatmul.mubr.bf16.gmra.mrb[0].mxu0 %v794
      %v830 = vpop.f32.mrb[0].mxu0
      %v831 = vadd.f32 0.0, %v830
      %v832 = vpop.f32.mrb[0].mxu0
      %v833 = vpop.f32.mrb[0].mxu0
      %v834 = vpop.f32.mrb[0].mxu0
      %835 = vdwg.mxu0
      %v836 = vadd.f32 %v110, %v457
      %v837 = vpack.c.bf16 %v831, %v831
      %v838 = vpack.c.bf16 0.0, %v538
      %839 = vmatprep.subr.bf16.mxu0 0
      %840 = vmatpush1.bf16.msra.mxu0 %v838
      %841 = vmatprep.subr.bf16.mxu0 0
      %842 = vmatpush1.bf16.msra.mxu0 %v121
      %843 = vmatprep.subr.bf16.mxu0 0
      %844 = vmatpush1.bf16.msra.mxu0 %v121
      %845 = vmatprep.subr.bf16.mxu0 0
      %846 = vmatpush1.bf16.msra.mxu0 %v121
      %847 = vmatprep.subr.bf16.mxu0 0
      %848 = vmatpush1.bf16.msra.mxu0 %v121
      %849 = vmatprep.subr.bf16.mxu0 0
      %850 = vmatpush1.bf16.msra.mxu0 %v121
      %851 = vmatprep.subr.bf16.mxu0 0
      %852 = vmatpush1.bf16.msra.mxu0 %v121
      %853 = vmatprep.subr.bf16.mxu0 0
      %854 = vmatpush1.bf16.msra.mxu0 %v121
      %855 = vmatprep.subr.bf16.mxu0 0
      %856 = vmatpush1.bf16.msra.mxu0 0
      %857 = vmatprep.subr.bf16.mxu0 0
      %858 = vmatpush1.bf16.msra.mxu0 0
      %859 = vmatprep.subr.bf16.mxu0 0
      %860 = vmatpush1.bf16.msra.mxu0 0
      %861 = vmatprep.subr.bf16.mxu0 0
      %862 = vmatpush1.bf16.msra.mxu0 0
      %863 = vmatprep.subr.bf16.mxu0 0
      %864 = vmatpush1.bf16.msra.mxu0 0
      %865 = vmatprep.subr.bf16.mxu0 0
      %866 = vmatpush1.bf16.msra.mxu0 0
      %867 = vmatprep.subr.bf16.mxu0 0
      %868 = vmatpush1.bf16.msra.mxu0 0
      %869 = vmatprep.subr.bf16.mxu0 0
      %870 = vmatpush1.bf16.msra.mxu0 0
      %871 = vmatprep.mubr.bf16.mxu0 0
      %872 = vmatmul.mubr.bf16.gmra.mrb[0].mxu0 %v837
      %v873 = vpop.f32.mrb[0].mxu0
      %v874 = vadd.f32 0.0, %v873
      %v875 = vpop.f32.mrb[0].mxu0
      %v876 = vpop.f32.mrb[0].mxu0
      %v877 = vpop.f32.mrb[0].mxu0
      %878 = vdwg.mxu0
      %v879 = vsub.f32 %v836, %v874
      %v880 = vsub.f32 %v879, %v323
      %v881 = vand.u32 2147483647, %v880
      %882 = vmax.xlane.f32.xlu0 %v881
      %v883 = vpop.xlane.xlu0 %882
      %v884 = vrot.slane %v883, 4
      %v885 = vmax.f32 %v883, %v884
      %v886 = vrot.slane %v885, 2
      %v887 = vmax.f32 %v885, %v886
      %v888 = vrot.slane %v887, 1
      %v889 = vmax.f32 %v887, %v888
      %s890 = vtos %v889
      %s891 = sadd.s32 %s321, 1
    $region53: #{tpu_custom_call.1} parent=1 // loop_footer
      _
    $region54: #{tpu_custom_call.1} parent=1 // loop_footer_branch
      %320 = sbr.rel target = $region50
    $region55: #{tpu_custom_call.1} parent=1 // loop_exit
      _
    loop: start=0, step=1, limit=6
    $region56: #{tpu_custom_call.1} parent=1 // loop_pre_header
      _
    $region57: #{tpu_custom_call.1} parent=1 // loop_header
      %s893 = sphi 0, %s897
      %p894 = scmp.ge.s32.totalorder %s893, 6
      %v898 = vphi %v323, %v8425
      %v899 = vphi 0.0, %v8426
      %v900 = vphi 0.0, %v8427
      %v901 = vphi 0.0, %v8428
      %v902 = vphi 0.0, %v8429
      %v903 = vphi 0.0, %v8430
      %v904 = vphi 0.0, %v8431
      %v905 = vphi 0.0, %v8432
      %v906 = vphi 0.0, %v8433
      %v907 = vphi 0.0, %v8434
      %v908 = vphi 0.0, %v8435
      %v909 = vphi 0.0, %v8436
      %v910 = vphi 0.0, %v8437
      %v911 = vphi 0.0, %v8438
      %v912 = vphi 0.0, %v8439
      %v913 = vphi 0.0, %v8440
      %v914 = vphi %v324, %v7482
    $region58: #{tpu_custom_call.1} parent=1 // loop_header_branch
      %896 = sbr.rel (%p894) target = $region62
    $region59: #{tpu_custom_call.1} parent=1 // loop_body
      %915 = vmatprep.subr.mxu0 0.0
      %v916 = vand.u32 %v898, 4294901760
      %917 = vmatpush1.msra.mxu0 %v916
      %918 = vmatprep.subr.mxu0 0.0
      %v919 = vand.u32 %v899, 4294901760
      %920 = vmatpush1.msra.mxu0 %v919
      %921 = vmatprep.subr.mxu0 0.0
      %v922 = vand.u32 %v900, 4294901760
      %923 = vmatpush1.msra.mxu0 %v922
      %924 = vmatprep.subr.mxu0 0.0
      %v925 = vand.u32 %v901, 4294901760
      %926 = vmatpush1.msra.mxu0 %v925
      %927 = vmatprep.subr.mxu0 0.0
      %v928 = vand.u32 %v902, 4294901760
      %929 = vmatpush1.msra.mxu0 %v928
      %930 = vmatprep.subr.mxu0 0.0
      %v931 = vand.u32 %v903, 4294901760
      %932 = vmatpush1.msra.mxu0 %v931
      %933 = vmatprep.subr.mxu0 0.0
      %v934 = vand.u32 %v904, 4294901760
      %935 = vmatpush1.msra.mxu0 %v934
      %936 = vmatprep.subr.mxu0 0.0
      %v937 = vand.u32 %v905, 4294901760
      %938 = vmatpush1.msra.mxu0 %v937
      %939 = vmatprep.subr.mxu0 0.0
      %v940 = vand.u32 %v906, 4294901760
      %941 = vmatpush1.msra.mxu0 %v940
      %942 = vmatprep.subr.mxu0 0.0
      %v943 = vand.u32 %v907, 4294901760
      %944 = vmatpush1.msra.mxu0 %v943
      %945 = vmatprep.subr.mxu0 0.0
      %v946 = vand.u32 %v908, 4294901760
      %947 = vmatpush1.msra.mxu0 %v946
      %948 = vmatprep.subr.mxu0 0.0
      %v949 = vand.u32 %v909, 4294901760
      %950 = vmatpush1.msra.mxu0 %v949
      %951 = vmatprep.subr.mxu0 0.0
      %v952 = vand.u32 %v910, 4294901760
      %953 = vmatpush1.msra.mxu0 %v952
      %954 = vmatprep.subr.mxu0 0.0
      %v955 = vand.u32 %v911, 4294901760
      %956 = vmatpush1.msra.mxu0 %v955
      %957 = vmatprep.subr.mxu0 0.0
      %v958 = vand.u32 %v912, 4294901760
      %959 = vmatpush1.msra.mxu0 %v958
      %960 = vmatprep.subr.mxu0 0.0
      %v961 = vand.u32 %v913, 4294901760
      %962 = vmatpush1.msra.mxu0 %v961
      %963 = vmatprep.subr.mxu0 0.0
      %964 = vmatpush1.msra.mxu0 0.0
      %965 = vmatprep.subr.mxu0 0.0
      %966 = vmatpush1.msra.mxu0 0.0
      %967 = vmatprep.subr.mxu0 0.0
      %968 = vmatpush1.msra.mxu0 0.0
      %969 = vmatprep.subr.mxu0 0.0
      %970 = vmatpush1.msra.mxu0 0.0
      %971 = vmatprep.subr.mxu0 0.0
      %972 = vmatpush1.msra.mxu0 0.0
      %973 = vmatprep.subr.mxu0 0.0
      %974 = vmatpush1.msra.mxu0 0.0
      %975 = vmatprep.subr.mxu0 0.0
      %976 = vmatpush1.msra.mxu0 0.0
      %977 = vmatprep.subr.mxu0 0.0
      %978 = vmatpush1.msra.mxu0 0.0
      %979 = vmatprep.subr.mxu0 0.0
      %980 = vmatpush1.msra.mxu0 0.0
      %981 = vmatprep.subr.mxu0 0.0
      %982 = vmatpush1.msra.mxu0 0.0
      %983 = vmatprep.subr.mxu0 0.0
      %984 = vmatpush1.msra.mxu0 0.0
      %985 = vmatprep.subr.mxu0 0.0
      %986 = vmatpush1.msra.mxu0 0.0
      %987 = vmatprep.subr.mxu0 0.0
      %988 = vmatpush1.msra.mxu0 0.0
      %989 = vmatprep.subr.mxu0 0.0
      %990 = vmatpush1.msra.mxu0 0.0
      %991 = vmatprep.subr.mxu0 0.0
      %992 = vmatpush1.msra.mxu0 0.0
      %993 = vmatprep.subr.mxu0 0.0
      %994 = vmatpush1.msra.mxu0 0.0
      %995 = vmatprep.mubr.f32.mxu0 0.0
      %v996 = vand.u32 %v109, 4294901760
      %v997 = vsub.f32 %v109, %v996
      %v998 = vand.u32 %v997, 4294901760
      %v999 = vsub.f32 %v997, %v998
      %v1000 = vand.u32 %v999, 4294901760
      %1001 = vmatmul.mubr.f32.gmra.mrb[0].mxu0 %v1000
      %v1002 = vpop.f32.mrb[0].mxu0
      %v1003 = vadd.f32 0.0, %v1002
      %v1004 = vpop.f32.mrb[0].mxu0
      %1005 = vdwg.mxu0
      %1006 = vmatprep.subr.mxu0 0.0
      %v1007 = vand.u32 %v898, 4294901760
      %v1008 = vsub.f32 %v898, %v1007
      %v1009 = vand.u32 %v1008, 4294901760
      %v1010 = vsub.f32 %v1008, %v1009
      %v1011 = vand.u32 %v1010, 4294901760
      %1012 = vmatpush1.msra.mxu0 %v1011
      %1013 = vmatprep.subr.mxu0 0.0
      %v1014 = vand.u32 %v899, 4294901760
      %v1015 = vsub.f32 %v899, %v1014
      %v1016 = vand.u32 %v1015, 4294901760
      %v1017 = vsub.f32 %v1015, %v1016
      %v1018 = vand.u32 %v1017, 4294901760
      %1019 = vmatpush1.msra.mxu0 %v1018
      %1020 = vmatprep.subr.mxu0 0.0
      %v1021 = vand.u32 %v900, 4294901760
      %v1022 = vsub.f32 %v900, %v1021
      %v1023 = vand.u32 %v1022, 4294901760
      %v1024 = vsub.f32 %v1022, %v1023
      %v1025 = vand.u32 %v1024, 4294901760
      %1026 = vmatpush1.msra.mxu0 %v1025
      %1027 = vmatprep.subr.mxu0 0.0
      %v1028 = vand.u32 %v901, 4294901760
      %v1029 = vsub.f32 %v901, %v1028
      %v1030 = vand.u32 %v1029, 4294901760
      %v1031 = vsub.f32 %v1029, %v1030
      %v1032 = vand.u32 %v1031, 4294901760
      %1033 = vmatpush1.msra.mxu0 %v1032
      %1034 = vmatprep.subr.mxu0 0.0
      %v1035 = vand.u32 %v902, 4294901760
      %v1036 = vsub.f32 %v902, %v1035
      %v1037 = vand.u32 %v1036, 4294901760
      %v1038 = vsub.f32 %v1036, %v1037
      %v1039 = vand.u32 %v1038, 4294901760
      %1040 = vmatpush1.msra.mxu0 %v1039
      %1041 = vmatprep.subr.mxu0 0.0
      %v1042 = vand.u32 %v903, 4294901760
      %v1043 = vsub.f32 %v903, %v1042
      %v1044 = vand.u32 %v1043, 4294901760
      %v1045 = vsub.f32 %v1043, %v1044
      %v1046 = vand.u32 %v1045, 4294901760
      %1047 = vmatpush1.msra.mxu0 %v1046
      %1048 = vmatprep.subr.mxu0 0.0
      %v1049 = vand.u32 %v904, 4294901760
      %v1050 = vsub.f32 %v904, %v1049
      %v1051 = vand.u32 %v1050, 4294901760
      %v1052 = vsub.f32 %v1050, %v1051
      %v1053 = vand.u32 %v1052, 4294901760
      %1054 = vmatpush1.msra.mxu0 %v1053
      %1055 = vmatprep.subr.mxu0 0.0
      %v1056 = vand.u32 %v905, 4294901760
      %v1057 = vsub.f32 %v905, %v1056
      %v1058 = vand.u32 %v1057, 4294901760
      %v1059 = vsub.f32 %v1057, %v1058
      %v1060 = vand.u32 %v1059, 4294901760
      %1061 = vmatpush1.msra.mxu0 %v1060
      %1062 = vmatprep.subr.mxu0 0.0
      %v1063 = vand.u32 %v906, 4294901760
      %v1064 = vsub.f32 %v906, %v1063
      %v1065 = vand.u32 %v1064, 4294901760
      %v1066 = vsub.f32 %v1064, %v1065
      %v1067 = vand.u32 %v1066, 4294901760
      %1068 = vmatpush1.msra.mxu0 %v1067
      %1069 = vmatprep.subr.mxu0 0.0
      %v1070 = vand.u32 %v907, 4294901760
      %v1071 = vsub.f32 %v907, %v1070
      %v1072 = vand.u32 %v1071, 4294901760
      %v1073 = vsub.f32 %v1071, %v1072
      %v1074 = vand.u32 %v1073, 4294901760
      %1075 = vmatpush1.msra.mxu0 %v1074
      %1076 = vmatprep.subr.mxu0 0.0
      %v1077 = vand.u32 %v908, 4294901760
      %v1078 = vsub.f32 %v908, %v1077
      %v1079 = vand.u32 %v1078, 4294901760
      %v1080 = vsub.f32 %v1078, %v1079
      %v1081 = vand.u32 %v1080, 4294901760
      %1082 = vmatpush1.msra.mxu0 %v1081
      %1083 = vmatprep.subr.mxu0 0.0
      %v1084 = vand.u32 %v909, 4294901760
      %v1085 = vsub.f32 %v909, %v1084
      %v1086 = vand.u32 %v1085, 4294901760
      %v1087 = vsub.f32 %v1085, %v1086
      %v1088 = vand.u32 %v1087, 4294901760
      %1089 = vmatpush1.msra.mxu0 %v1088
      %1090 = vmatprep.subr.mxu0 0.0
      %v1091 = vand.u32 %v910, 4294901760
      %v1092 = vsub.f32 %v910, %v1091
      %v1093 = vand.u32 %v1092, 4294901760
      %v1094 = vsub.f32 %v1092, %v1093
      %v1095 = vand.u32 %v1094, 4294901760
      %1096 = vmatpush1.msra.mxu0 %v1095
      %1097 = vmatprep.subr.mxu0 0.0
      %v1098 = vand.u32 %v911, 4294901760
      %v1099 = vsub.f32 %v911, %v1098
      %v1100 = vand.u32 %v1099, 4294901760
      %v1101 = vsub.f32 %v1099, %v1100
      %v1102 = vand.u32 %v1101, 4294901760
      %1103 = vmatpush1.msra.mxu0 %v1102
      %1104 = vmatprep.subr.mxu0 0.0
      %v1105 = vand.u32 %v912, 4294901760
      %v1106 = vsub.f32 %v912, %v1105
      %v1107 = vand.u32 %v1106, 4294901760
      %v1108 = vsub.f32 %v1106, %v1107
      %v1109 = vand.u32 %v1108, 4294901760
      %1110 = vmatpush1.msra.mxu0 %v1109
      %1111 = vmatprep.subr.mxu0 0.0
      %v1112 = vand.u32 %v913, 4294901760
      %v1113 = vsub.f32 %v913, %v1112
      %v1114 = vand.u32 %v1113, 4294901760
      %v1115 = vsub.f32 %v1113, %v1114
      %v1116 = vand.u32 %v1115, 4294901760
      %1117 = vmatpush1.msra.mxu0 %v1116
      %1118 = vmatprep.subr.mxu0 0.0
      %1119 = vmatpush1.msra.mxu0 0.0
      %1120 = vmatprep.subr.mxu0 0.0
      %1121 = vmatpush1.msra.mxu0 0.0
      %1122 = vmatprep.subr.mxu0 0.0
      %1123 = vmatpush1.msra.mxu0 0.0
      %1124 = vmatprep.subr.mxu0 0.0
      %1125 = vmatpush1.msra.mxu0 0.0
      %1126 = vmatprep.subr.mxu0 0.0
      %1127 = vmatpush1.msra.mxu0 0.0
      %1128 = vmatprep.subr.mxu0 0.0
      %1129 = vmatpush1.msra.mxu0 0.0
      %1130 = vmatprep.subr.mxu0 0.0
      %1131 = vmatpush1.msra.mxu0 0.0
      %1132 = vmatprep.subr.mxu0 0.0
      %1133 = vmatpush1.msra.mxu0 0.0
      %1134 = vmatprep.subr.mxu0 0.0
      %1135 = vmatpush1.msra.mxu0 0.0
      %1136 = vmatprep.subr.mxu0 0.0
      %1137 = vmatpush1.msra.mxu0 0.0
      %1138 = vmatprep.subr.mxu0 0.0
      %1139 = vmatpush1.msra.mxu0 0.0
      %1140 = vmatprep.subr.mxu0 0.0
      %1141 = vmatpush1.msra.mxu0 0.0
      %1142 = vmatprep.subr.mxu0 0.0
      %1143 = vmatpush1.msra.mxu0 0.0
      %1144 = vmatprep.subr.mxu0 0.0
      %1145 = vmatpush1.msra.mxu0 0.0
      %1146 = vmatprep.subr.mxu0 0.0
      %1147 = vmatpush1.msra.mxu0 0.0
      %1148 = vmatprep.subr.mxu0 0.0
      %1149 = vmatpush1.msra.mxu0 0.0
      %1150 = vmatprep.mubr.f32.mxu0 0.0
      %v1151 = vand.u32 %v109, 4294901760
      %1152 = vmatmul.mubr.f32.gmra.mrb[0].mxu0 %v1151
      %v1153 = vpop.f32.mrb[0].mxu0
      %v1154 = vadd.f32 %v1003, %v1153
      %v1155 = vpop.f32.mrb[0].mxu0
      %1156 = vdwg.mxu0
      %1157 = vmatprep.subr.mxu0 0.0
      %v1158 = vand.u32 %v898, 4294901760
      %v1159 = vsub.f32 %v898, %v1158
      %1160 = vmatpush1.msra.mxu0 %v1159
      %1161 = vmatprep.subr.mxu0 0.0
      %v1162 = vand.u32 %v899, 4294901760
      %v1163 = vsub.f32 %v899, %v1162
      %1164 = vmatpush1.msra.mxu0 %v1163
      %1165 = vmatprep.subr.mxu0 0.0
      %v1166 = vand.u32 %v900, 4294901760
      %v1167 = vsub.f32 %v900, %v1166
      %1168 = vmatpush1.msra.mxu0 %v1167
      %1169 = vmatprep.subr.mxu0 0.0
      %v1170 = vand.u32 %v901, 4294901760
      %v1171 = vsub.f32 %v901, %v1170
      %1172 = vmatpush1.msra.mxu0 %v1171
      %1173 = vmatprep.subr.mxu0 0.0
      %v1174 = vand.u32 %v902, 4294901760
      %v1175 = vsub.f32 %v902, %v1174
      %1176 = vmatpush1.msra.mxu0 %v1175
      %1177 = vmatprep.subr.mxu0 0.0
      %v1178 = vand.u32 %v903, 4294901760
      %v1179 = vsub.f32 %v903, %v1178
      %1180 = vmatpush1.msra.mxu0 %v1179
      %1181 = vmatprep.subr.mxu0 0.0
      %v1182 = vand.u32 %v904, 4294901760
      %v1183 = vsub.f32 %v904, %v1182
      %1184 = vmatpush1.msra.mxu0 %v1183
      %1185 = vmatprep.subr.mxu0 0.0
      %v1186 = vand.u32 %v905, 4294901760
      %v1187 = vsub.f32 %v905, %v1186
      %1188 = vmatpush1.msra.mxu0 %v1187
      %1189 = vmatprep.subr.mxu0 0.0
      %v1190 = vand.u32 %v906, 4294901760
      %v1191 = vsub.f32 %v906, %v1190
      %1192 = vmatpush1.msra.mxu0 %v1191
      %1193 = vmatprep.subr.mxu0 0.0
      %v1194 = vand.u32 %v907, 4294901760
      %v1195 = vsub.f32 %v907, %v1194
      %1196 = vmatpush1.msra.mxu0 %v1195
      %1197 = vmatprep.subr.mxu0 0.0
      %v1198 = vand.u32 %v908, 4294901760
      %v1199 = vsub.f32 %v908, %v1198
      %1200 = vmatpush1.msra.mxu0 %v1199
      %1201 = vmatprep.subr.mxu0 0.0
      %v1202 = vand.u32 %v909, 4294901760
      %v1203 = vsub.f32 %v909, %v1202
      %1204 = vmatpush1.msra.mxu0 %v1203
      %1205 = vmatprep.subr.mxu0 0.0
      %v1206 = vand.u32 %v910, 4294901760
      %v1207 = vsub.f32 %v910, %v1206
      %1208 = vmatpush1.msra.mxu0 %v1207
      %1209 = vmatprep.subr.mxu0 0.0
      %v1210 = vand.u32 %v911, 4294901760
      %v1211 = vsub.f32 %v911, %v1210
      %1212 = vmatpush1.msra.mxu0 %v1211
      %1213 = vmatprep.subr.mxu0 0.0
      %v1214 = vand.u32 %v912, 4294901760
      %v1215 = vsub.f32 %v912, %v1214
      %1216 = vmatpush1.msra.mxu0 %v1215
      %1217 = vmatprep.subr.mxu0 0.0
      %v1218 = vand.u32 %v913, 4294901760
      %v1219 = vsub.f32 %v913, %v1218
      %1220 = vmatpush1.msra.mxu0 %v1219
      %1221 = vmatprep.subr.mxu0 0.0
      %1222 = vmatpush1.msra.mxu0 0.0
      %1223 = vmatprep.subr.mxu0 0.0
      %1224 = vmatpush1.msra.mxu0 0.0
      %1225 = vmatprep.subr.mxu0 0.0
      %1226 = vmatpush1.msra.mxu0 0.0
      %1227 = vmatprep.subr.mxu0 0.0
      %1228 = vmatpush1.msra.mxu0 0.0
      %1229 = vmatprep.subr.mxu0 0.0
      %1230 = vmatpush1.msra.mxu0 0.0
      %1231 = vmatprep.subr.mxu0 0.0
      %1232 = vmatpush1.msra.mxu0 0.0
      %1233 = vmatprep.subr.mxu0 0.0
      %1234 = vmatpush1.msra.mxu0 0.0
      %1235 = vmatprep.subr.mxu0 0.0
      %1236 = vmatpush1.msra.mxu0 0.0
      %1237 = vmatprep.subr.mxu0 0.0
      %1238 = vmatpush1.msra.mxu0 0.0
      %1239 = vmatprep.subr.mxu0 0.0
      %1240 = vmatpush1.msra.mxu0 0.0
      %1241 = vmatprep.subr.mxu0 0.0
      %1242 = vmatpush1.msra.mxu0 0.0
      %1243 = vmatprep.subr.mxu0 0.0
      %1244 = vmatpush1.msra.mxu0 0.0
      %1245 = vmatprep.subr.mxu0 0.0
      %1246 = vmatpush1.msra.mxu0 0.0
      %1247 = vmatprep.subr.mxu0 0.0
      %1248 = vmatpush1.msra.mxu0 0.0
      %1249 = vmatprep.subr.mxu0 0.0
      %1250 = vmatpush1.msra.mxu0 0.0
      %1251 = vmatprep.subr.mxu0 0.0
      %1252 = vmatpush1.msra.mxu0 0.0
      %1253 = vmatprep.mubr.f32.mxu0 0.0
      %v1254 = vand.u32 %v109, 4294901760
      %v1255 = vsub.f32 %v109, %v1254
      %1256 = vmatmul.mubr.f32.gmra.mrb[0].mxu0 %v1255
      %v1257 = vpop.f32.mrb[0].mxu0
      %v1258 = vadd.f32 %v1154, %v1257
      %v1259 = vpop.f32.mrb[0].mxu0
      %1260 = vdwg.mxu0
      %1261 = vmatprep.subr.mxu0 0.0
      %v1262 = vand.u32 %v898, 4294901760
      %1263 = vmatpush1.msra.mxu0 %v1262
      %1264 = vmatprep.subr.mxu0 0.0
      %v1265 = vand.u32 %v899, 4294901760
      %1266 = vmatpush1.msra.mxu0 %v1265
      %1267 = vmatprep.subr.mxu0 0.0
      %v1268 = vand.u32 %v900, 4294901760
      %1269 = vmatpush1.msra.mxu0 %v1268
      %1270 = vmatprep.subr.mxu0 0.0
      %v1271 = vand.u32 %v901, 4294901760
      %1272 = vmatpush1.msra.mxu0 %v1271
      %1273 = vmatprep.subr.mxu0 0.0
      %v1274 = vand.u32 %v902, 4294901760
      %1275 = vmatpush1.msra.mxu0 %v1274
      %1276 = vmatprep.subr.mxu0 0.0
      %v1277 = vand.u32 %v903, 4294901760
      %1278 = vmatpush1.msra.mxu0 %v1277
      %1279 = vmatprep.subr.mxu0 0.0
      %v1280 = vand.u32 %v904, 4294901760
      %1281 = vmatpush1.msra.mxu0 %v1280
      %1282 = vmatprep.subr.mxu0 0.0
      %v1283 = vand.u32 %v905, 4294901760
      %1284 = vmatpush1.msra.mxu0 %v1283
      %1285 = vmatprep.subr.mxu0 0.0
      %v1286 = vand.u32 %v906, 4294901760
      %1287 = vmatpush1.msra.mxu0 %v1286
      %1288 = vmatprep.subr.mxu0 0.0
      %v1289 = vand.u32 %v907, 4294901760
      %1290 = vmatpush1.msra.mxu0 %v1289
      %1291 = vmatprep.subr.mxu0 0.0
      %v1292 = vand.u32 %v908, 4294901760
      %1293 = vmatpush1.msra.mxu0 %v1292
      %1294 = vmatprep.subr.mxu0 0.0
      %v1295 = vand.u32 %v909, 4294901760
      %1296 = vmatpush1.msra.mxu0 %v1295
      %1297 = vmatprep.subr.mxu0 0.0
      %v1298 = vand.u32 %v910, 4294901760
      %1299 = vmatpush1.msra.mxu0 %v1298
      %1300 = vmatprep.subr.mxu0 0.0
      %v1301 = vand.u32 %v911, 4294901760
      %1302 = vmatpush1.msra.mxu0 %v1301
      %1303 = vmatprep.subr.mxu0 0.0
      %v1304 = vand.u32 %v912, 4294901760
      %1305 = vmatpush1.msra.mxu0 %v1304
      %1306 = vmatprep.subr.mxu0 0.0
      %v1307 = vand.u32 %v913, 4294901760
      %1308 = vmatpush1.msra.mxu0 %v1307
      %1309 = vmatprep.subr.mxu0 0.0
      %1310 = vmatpush1.msra.mxu0 0.0
      %1311 = vmatprep.subr.mxu0 0.0
      %1312 = vmatpush1.msra.mxu0 0.0
      %1313 = vmatprep.subr.mxu0 0.0
      %1314 = vmatpush1.msra.mxu0 0.0
      %1315 = vmatprep.subr.mxu0 0.0
      %1316 = vmatpush1.msra.mxu0 0.0
      %1317 = vmatprep.subr.mxu0 0.0
      %1318 = vmatpush1.msra.mxu0 0.0
      %1319 = vmatprep.subr.mxu0 0.0
      %1320 = vmatpush1.msra.mxu0 0.0
      %1321 = vmatprep.subr.mxu0 0.0
      %1322 = vmatpush1.msra.mxu0 0.0
      %1323 = vmatprep.subr.mxu0 0.0
      %1324 = vmatpush1.msra.mxu0 0.0
      %1325 = vmatprep.subr.mxu0 0.0
      %1326 = vmatpush1.msra.mxu0 0.0
      %1327 = vmatprep.subr.mxu0 0.0
      %1328 = vmatpush1.msra.mxu0 0.0
      %1329 = vmatprep.subr.mxu0 0.0
      %1330 = vmatpush1.msra.mxu0 0.0
      %1331 = vmatprep.subr.mxu0 0.0
      %1332 = vmatpush1.msra.mxu0 0.0
      %1333 = vmatprep.subr.mxu0 0.0
      %1334 = vmatpush1.msra.mxu0 0.0
      %1335 = vmatprep.subr.mxu0 0.0
      %1336 = vmatpush1.msra.mxu0 0.0
      %1337 = vmatprep.subr.mxu0 0.0
      %1338 = vmatpush1.msra.mxu0 0.0
      %1339 = vmatprep.subr.mxu0 0.0
      %1340 = vmatpush1.msra.mxu0 0.0
      %1341 = vmatprep.mubr.f32.mxu0 0.0
      %v1342 = vand.u32 %v109, 4294901760
      %v1343 = vsub.f32 %v109, %v1342
      %v1344 = vand.u32 %v1343, 4294901760
      %1345 = vmatmul.mubr.f32.gmra.mrb[0].mxu0 %v1344
      %v1346 = vpop.f32.mrb[0].mxu0
      %v1347 = vadd.f32 %v1258, %v1346
      %v1348 = vpop.f32.mrb[0].mxu0
      %1349 = vdwg.mxu0
      %1350 = vmatprep.subr.mxu0 0.0
      %v1351 = vand.u32 %v898, 4294901760
      %v1352 = vsub.f32 %v898, %v1351
      %v1353 = vand.u32 %v1352, 4294901760
      %1354 = vmatpush1.msra.mxu0 %v1353
      %1355 = vmatprep.subr.mxu0 0.0
      %v1356 = vand.u32 %v899, 4294901760
      %v1357 = vsub.f32 %v899, %v1356
      %v1358 = vand.u32 %v1357, 4294901760
      %1359 = vmatpush1.msra.mxu0 %v1358
      %1360 = vmatprep.subr.mxu0 0.0
      %v1361 = vand.u32 %v900, 4294901760
      %v1362 = vsub.f32 %v900, %v1361
      %v1363 = vand.u32 %v1362, 4294901760
      %1364 = vmatpush1.msra.mxu0 %v1363
      %1365 = vmatprep.subr.mxu0 0.0
      %v1366 = vand.u32 %v901, 4294901760
      %v1367 = vsub.f32 %v901, %v1366
      %v1368 = vand.u32 %v1367, 4294901760
      %1369 = vmatpush1.msra.mxu0 %v1368
      %1370 = vmatprep.subr.mxu0 0.0
      %v1371 = vand.u32 %v902, 4294901760
      %v1372 = vsub.f32 %v902, %v1371
      %v1373 = vand.u32 %v1372, 4294901760
      %1374 = vmatpush1.msra.mxu0 %v1373
      %1375 = vmatprep.subr.mxu0 0.0
      %v1376 = vand.u32 %v903, 4294901760
      %v1377 = vsub.f32 %v903, %v1376
      %v1378 = vand.u32 %v1377, 4294901760
      %1379 = vmatpush1.msra.mxu0 %v1378
      %1380 = vmatprep.subr.mxu0 0.0
      %v1381 = vand.u32 %v904, 4294901760
      %v1382 = vsub.f32 %v904, %v1381
      %v1383 = vand.u32 %v1382, 4294901760
      %1384 = vmatpush1.msra.mxu0 %v1383
      %1385 = vmatprep.subr.mxu0 0.0
      %v1386 = vand.u32 %v905, 4294901760
      %v1387 = vsub.f32 %v905, %v1386
      %v1388 = vand.u32 %v1387, 4294901760
      %1389 = vmatpush1.msra.mxu0 %v1388
      %1390 = vmatprep.subr.mxu0 0.0
      %v1391 = vand.u32 %v906, 4294901760
      %v1392 = vsub.f32 %v906, %v1391
      %v1393 = vand.u32 %v1392, 4294901760
      %1394 = vmatpush1.msra.mxu0 %v1393
      %1395 = vmatprep.subr.mxu0 0.0
      %v1396 = vand.u32 %v907, 4294901760
      %v1397 = vsub.f32 %v907, %v1396
      %v1398 = vand.u32 %v1397, 4294901760
      %1399 = vmatpush1.msra.mxu0 %v1398
      %1400 = vmatprep.subr.mxu0 0.0
      %v1401 = vand.u32 %v908, 4294901760
      %v1402 = vsub.f32 %v908, %v1401
      %v1403 = vand.u32 %v1402, 4294901760
      %1404 = vmatpush1.msra.mxu0 %v1403
      %1405 = vmatprep.subr.mxu0 0.0
      %v1406 = vand.u32 %v909, 4294901760
      %v1407 = vsub.f32 %v909, %v1406
      %v1408 = vand.u32 %v1407, 4294901760
      %1409 = vmatpush1.msra.mxu0 %v1408
      %1410 = vmatprep.subr.mxu0 0.0
      %v1411 = vand.u32 %v910, 4294901760
      %v1412 = vsub.f32 %v910, %v1411
      %v1413 = vand.u32 %v1412, 4294901760
      %1414 = vmatpush1.msra.mxu0 %v1413
      %1415 = vmatprep.subr.mxu0 0.0
      %v1416 = vand.u32 %v911, 4294901760
      %v1417 = vsub.f32 %v911, %v1416
      %v1418 = vand.u32 %v1417, 4294901760
      %1419 = vmatpush1.msra.mxu0 %v1418
      %1420 = vmatprep.subr.mxu0 0.0
      %v1421 = vand.u32 %v912, 4294901760
      %v1422 = vsub.f32 %v912, %v1421
      %v1423 = vand.u32 %v1422, 4294901760
      %1424 = vmatpush1.msra.mxu0 %v1423
      %1425 = vmatprep.subr.mxu0 0.0
      %v1426 = vand.u32 %v913, 4294901760
      %v1427 = vsub.f32 %v913, %v1426
      %v1428 = vand.u32 %v1427, 4294901760
      %1429 = vmatpush1.msra.mxu0 %v1428
      %1430 = vmatprep.subr.mxu0 0.0
      %1431 = vmatpush1.msra.mxu0 0.0
      %1432 = vmatprep.subr.mxu0 0.0
      %1433 = vmatpush1.msra.mxu0 0.0
      %1434 = vmatprep.subr.mxu0 0.0
      %1435 = vmatpush1.msra.mxu0 0.0
      %1436 = vmatprep.subr.mxu0 0.0
      %1437 = vmatpush1.msra.mxu0 0.0
      %1438 = vmatprep.subr.mxu0 0.0
      %1439 = vmatpush1.msra.mxu0 0.0
      %1440 = vmatprep.subr.mxu0 0.0
      %1441 = vmatpush1.msra.mxu0 0.0
      %1442 = vmatprep.subr.mxu0 0.0
      %1443 = vmatpush1.msra.mxu0 0.0
      %1444 = vmatprep.subr.mxu0 0.0
      %1445 = vmatpush1.msra.mxu0 0.0
      %1446 = vmatprep.subr.mxu0 0.0
      %1447 = vmatpush1.msra.mxu0 0.0
      %1448 = vmatprep.subr.mxu0 0.0
      %1449 = vmatpush1.msra.mxu0 0.0
      %1450 = vmatprep.subr.mxu0 0.0
      %1451 = vmatpush1.msra.mxu0 0.0
      %1452 = vmatprep.subr.mxu0 0.0
      %1453 = vmatpush1.msra.mxu0 0.0
      %1454 = vmatprep.subr.mxu0 0.0
      %1455 = vmatpush1.msra.mxu0 0.0
      %1456 = vmatprep.subr.mxu0 0.0
      %1457 = vmatpush1.msra.mxu0 0.0
      %1458 = vmatprep.subr.mxu0 0.0
      %1459 = vmatpush1.msra.mxu0 0.0
      %1460 = vmatprep.subr.mxu0 0.0
      %1461 = vmatpush1.msra.mxu0 0.0
      %1462 = vmatprep.mubr.f32.mxu0 0.0
      %v1463 = vand.u32 %v109, 4294901760
      %1464 = vmatmul.mubr.f32.gmra.mrb[0].mxu0 %v1463
      %v1465 = vpop.f32.mrb[0].mxu0
      %v1466 = vadd.f32 %v1347, %v1465
      %v1467 = vpop.f32.mrb[0].mxu0
      %1468 = vdwg.mxu0
      %1469 = vmatprep.subr.mxu0 0.0
      %v1470 = vand.u32 %v898, 4294901760
      %1471 = vmatpush1.msra.mxu0 %v1470
      %1472 = vmatprep.subr.mxu0 0.0
      %v1473 = vand.u32 %v899, 4294901760
      %1474 = vmatpush1.msra.mxu0 %v1473
      %1475 = vmatprep.subr.mxu0 0.0
      %v1476 = vand.u32 %v900, 4294901760
      %1477 = vmatpush1.msra.mxu0 %v1476
      %1478 = vmatprep.subr.mxu0 0.0
      %v1479 = vand.u32 %v901, 4294901760
      %1480 = vmatpush1.msra.mxu0 %v1479
      %1481 = vmatprep.subr.mxu0 0.0
      %v1482 = vand.u32 %v902, 4294901760
      %1483 = vmatpush1.msra.mxu0 %v1482
      %1484 = vmatprep.subr.mxu0 0.0
      %v1485 = vand.u32 %v903, 4294901760
      %1486 = vmatpush1.msra.mxu0 %v1485
      %1487 = vmatprep.subr.mxu0 0.0
      %v1488 = vand.u32 %v904, 4294901760
      %1489 = vmatpush1.msra.mxu0 %v1488
      %1490 = vmatprep.subr.mxu0 0.0
      %v1491 = vand.u32 %v905, 4294901760
      %1492 = vmatpush1.msra.mxu0 %v1491
      %1493 = vmatprep.subr.mxu0 0.0
      %v1494 = vand.u32 %v906, 4294901760
      %1495 = vmatpush1.msra.mxu0 %v1494
      %1496 = vmatprep.subr.mxu0 0.0
      %v1497 = vand.u32 %v907, 4294901760
      %1498 = vmatpush1.msra.mxu0 %v1497
      %1499 = vmatprep.subr.mxu0 0.0
      %v1500 = vand.u32 %v908, 4294901760
      %1501 = vmatpush1.msra.mxu0 %v1500
      %1502 = vmatprep.subr.mxu0 0.0
      %v1503 = vand.u32 %v909, 4294901760
      %1504 = vmatpush1.msra.mxu0 %v1503
      %1505 = vmatprep.subr.mxu0 0.0
      %v1506 = vand.u32 %v910, 4294901760
      %1507 = vmatpush1.msra.mxu0 %v1506
      %1508 = vmatprep.subr.mxu0 0.0
      %v1509 = vand.u32 %v911, 4294901760
      %1510 = vmatpush1.msra.mxu0 %v1509
      %1511 = vmatprep.subr.mxu0 0.0
      %v1512 = vand.u32 %v912, 4294901760
      %1513 = vmatpush1.msra.mxu0 %v1512
      %1514 = vmatprep.subr.mxu0 0.0
      %v1515 = vand.u32 %v913, 4294901760
      %1516 = vmatpush1.msra.mxu0 %v1515
      %1517 = vmatprep.subr.mxu0 0.0
      %1518 = vmatpush1.msra.mxu0 0.0
      %1519 = vmatprep.subr.mxu0 0.0
      %1520 = vmatpush1.msra.mxu0 0.0
      %1521 = vmatprep.subr.mxu0 0.0
      %1522 = vmatpush1.msra.mxu0 0.0
      %1523 = vmatprep.subr.mxu0 0.0
      %1524 = vmatpush1.msra.mxu0 0.0
      %1525 = vmatprep.subr.mxu0 0.0
      %1526 = vmatpush1.msra.mxu0 0.0
      %1527 = vmatprep.subr.mxu0 0.0
      %1528 = vmatpush1.msra.mxu0 0.0
      %1529 = vmatprep.subr.mxu0 0.0
      %1530 = vmatpush1.msra.mxu0 0.0
      %1531 = vmatprep.subr.mxu0 0.0
      %1532 = vmatpush1.msra.mxu0 0.0
      %1533 = vmatprep.subr.mxu0 0.0
      %1534 = vmatpush1.msra.mxu0 0.0
      %1535 = vmatprep.subr.mxu0 0.0
      %1536 = vmatpush1.msra.mxu0 0.0
      %1537 = vmatprep.subr.mxu0 0.0
      %1538 = vmatpush1.msra.mxu0 0.0
      %1539 = vmatprep.subr.mxu0 0.0
      %1540 = vmatpush1.msra.mxu0 0.0
      %1541 = vmatprep.subr.mxu0 0.0
      %1542 = vmatpush1.msra.mxu0 0.0
      %1543 = vmatprep.subr.mxu0 0.0
      %1544 = vmatpush1.msra.mxu0 0.0
      %1545 = vmatprep.subr.mxu0 0.0
      %1546 = vmatpush1.msra.mxu0 0.0
      %1547 = vmatprep.subr.mxu0 0.0
      %1548 = vmatpush1.msra.mxu0 0.0
      %1549 = vmatprep.mubr.f32.mxu0 0.0
      %v1550 = vand.u32 %v109, 4294901760
      %1551 = vmatmul.mubr.f32.gmra.mrb[0].mxu0 %v1550
      %v1552 = vpop.f32.mrb[0].mxu0
      %v1553 = vadd.f32 %v1466, %v1552
      %v1554 = vpop.f32.mrb[0].mxu0
      %1555 = vdwg.mxu0
      %1556 = vmatprep.subr.mxu0 0.0
      %v1557 = vand.u32 %v898, 4294901760
      %1558 = vmatpush1.msra.mxu0 %v1557
      %1559 = vmatprep.subr.mxu0 0.0
      %v1560 = vand.u32 %v899, 4294901760
      %1561 = vmatpush1.msra.mxu0 %v1560
      %1562 = vmatprep.subr.mxu0 0.0
      %v1563 = vand.u32 %v900, 4294901760
      %1564 = vmatpush1.msra.mxu0 %v1563
      %1565 = vmatprep.subr.mxu0 0.0
      %v1566 = vand.u32 %v901, 4294901760
      %1567 = vmatpush1.msra.mxu0 %v1566
      %1568 = vmatprep.subr.mxu0 0.0
      %v1569 = vand.u32 %v902, 4294901760
      %1570 = vmatpush1.msra.mxu0 %v1569
      %1571 = vmatprep.subr.mxu0 0.0
      %v1572 = vand.u32 %v903, 4294901760
      %1573 = vmatpush1.msra.mxu0 %v1572
      %1574 = vmatprep.subr.mxu0 0.0
      %v1575 = vand.u32 %v904, 4294901760
      %1576 = vmatpush1.msra.mxu0 %v1575
      %1577 = vmatprep.subr.mxu0 0.0
      %v1578 = vand.u32 %v905, 4294901760
      %1579 = vmatpush1.msra.mxu0 %v1578
      %1580 = vmatprep.subr.mxu0 0.0
      %v1581 = vand.u32 %v906, 4294901760
      %1582 = vmatpush1.msra.mxu0 %v1581
      %1583 = vmatprep.subr.mxu0 0.0
      %v1584 = vand.u32 %v907, 4294901760
      %1585 = vmatpush1.msra.mxu0 %v1584
      %1586 = vmatprep.subr.mxu0 0.0
      %v1587 = vand.u32 %v908, 4294901760
      %1588 = vmatpush1.msra.mxu0 %v1587
      %1589 = vmatprep.subr.mxu0 0.0
      %v1590 = vand.u32 %v909, 4294901760
      %1591 = vmatpush1.msra.mxu0 %v1590
      %1592 = vmatprep.subr.mxu0 0.0
      %v1593 = vand.u32 %v910, 4294901760
      %1594 = vmatpush1.msra.mxu0 %v1593
      %1595 = vmatprep.subr.mxu0 0.0
      %v1596 = vand.u32 %v911, 4294901760
      %1597 = vmatpush1.msra.mxu0 %v1596
      %1598 = vmatprep.subr.mxu0 0.0
      %v1599 = vand.u32 %v912, 4294901760
      %1600 = vmatpush1.msra.mxu0 %v1599
      %1601 = vmatprep.subr.mxu0 0.0
      %v1602 = vand.u32 %v913, 4294901760
      %1603 = vmatpush1.msra.mxu0 %v1602
      %1604 = vmatprep.subr.mxu0 0.0
      %1605 = vmatpush1.msra.mxu0 0.0
      %1606 = vmatprep.subr.mxu0 0.0
      %1607 = vmatpush1.msra.mxu0 0.0
      %1608 = vmatprep.subr.mxu0 0.0
      %1609 = vmatpush1.msra.mxu0 0.0
      %1610 = vmatprep.subr.mxu0 0.0
      %1611 = vmatpush1.msra.mxu0 0.0
      %1612 = vmatprep.subr.mxu0 0.0
      %1613 = vmatpush1.msra.mxu0 0.0
      %1614 = vmatprep.subr.mxu0 0.0
      %1615 = vmatpush1.msra.mxu0 0.0
      %1616 = vmatprep.subr.mxu0 0.0
      %1617 = vmatpush1.msra.mxu0 0.0
      %1618 = vmatprep.subr.mxu0 0.0
      %1619 = vmatpush1.msra.mxu0 0.0
      %1620 = vmatprep.subr.mxu0 0.0
      %1621 = vmatpush1.msra.mxu0 0.0
      %1622 = vmatprep.subr.mxu0 0.0
      %1623 = vmatpush1.msra.mxu0 0.0
      %1624 = vmatprep.subr.mxu0 0.0
      %1625 = vmatpush1.msra.mxu0 0.0
      %1626 = vmatprep.subr.mxu0 0.0
      %1627 = vmatpush1.msra.mxu0 0.0
      %1628 = vmatprep.subr.mxu0 0.0
      %1629 = vmatpush1.msra.mxu0 0.0
      %1630 = vmatprep.subr.mxu0 0.0
      %1631 = vmatpush1.msra.mxu0 0.0
      %1632 = vmatprep.subr.mxu0 0.0
      %1633 = vmatpush1.msra.mxu0 0.0
      %1634 = vmatprep.subr.mxu0 0.0
      %1635 = vmatpush1.msra.mxu0 0.0
      %1636 = vmatprep.mubr.f32.mxu0 0.0
      %v1637 = vand.u32 %v108, 4294901760
      %v1638 = vsub.f32 %v108, %v1637
      %v1639 = vand.u32 %v1638, 4294901760
      %v1640 = vsub.f32 %v1638, %v1639
      %v1641 = vand.u32 %v1640, 4294901760
      %1642 = vmatmul.mubr.f32.gmra.mrb[0].mxu0 %v1641
      %v1643 = vpop.f32.mrb[0].mxu0
      %v1644 = vadd.f32 0.0, %v1643
      %v1645 = vpop.f32.mrb[0].mxu0
      %1646 = vdwg.mxu0
      %1647 = vmatprep.subr.mxu0 0.0
      %v1648 = vand.u32 %v898, 4294901760
      %v1649 = vsub.f32 %v898, %v1648
      %v1650 = vand.u32 %v1649, 4294901760
      %v1651 = vsub.f32 %v1649, %v1650
      %v1652 = vand.u32 %v1651, 4294901760
      %1653 = vmatpush1.msra.mxu0 %v1652
      %1654 = vmatprep.subr.mxu0 0.0
      %v1655 = vand.u32 %v899, 4294901760
      %v1656 = vsub.f32 %v899, %v1655
      %v1657 = vand.u32 %v1656, 4294901760
      %v1658 = vsub.f32 %v1656, %v1657
      %v1659 = vand.u32 %v1658, 4294901760
      %1660 = vmatpush1.msra.mxu0 %v1659
      %1661 = vmatprep.subr.mxu0 0.0
      %v1662 = vand.u32 %v900, 4294901760
      %v1663 = vsub.f32 %v900, %v1662
      %v1664 = vand.u32 %v1663, 4294901760
      %v1665 = vsub.f32 %v1663, %v1664
      %v1666 = vand.u32 %v1665, 4294901760
      %1667 = vmatpush1.msra.mxu0 %v1666
      %1668 = vmatprep.subr.mxu0 0.0
      %v1669 = vand.u32 %v901, 4294901760
      %v1670 = vsub.f32 %v901, %v1669
      %v1671 = vand.u32 %v1670, 4294901760
      %v1672 = vsub.f32 %v1670, %v1671
      %v1673 = vand.u32 %v1672, 4294901760
      %1674 = vmatpush1.msra.mxu0 %v1673
      %1675 = vmatprep.subr.mxu0 0.0
      %v1676 = vand.u32 %v902, 4294901760
      %v1677 = vsub.f32 %v902, %v1676
      %v1678 = vand.u32 %v1677, 4294901760
      %v1679 = vsub.f32 %v1677, %v1678
      %v1680 = vand.u32 %v1679, 4294901760
      %1681 = vmatpush1.msra.mxu0 %v1680
      %1682 = vmatprep.subr.mxu0 0.0
      %v1683 = vand.u32 %v903, 4294901760
      %v1684 = vsub.f32 %v903, %v1683
      %v1685 = vand.u32 %v1684, 4294901760
      %v1686 = vsub.f32 %v1684, %v1685
      %v1687 = vand.u32 %v1686, 4294901760
      %1688 = vmatpush1.msra.mxu0 %v1687
      %1689 = vmatprep.subr.mxu0 0.0
      %v1690 = vand.u32 %v904, 4294901760
      %v1691 = vsub.f32 %v904, %v1690
      %v1692 = vand.u32 %v1691, 4294901760
      %v1693 = vsub.f32 %v1691, %v1692
      %v1694 = vand.u32 %v1693, 4294901760
      %1695 = vmatpush1.msra.mxu0 %v1694
      %1696 = vmatprep.subr.mxu0 0.0
      %v1697 = vand.u32 %v905, 4294901760
      %v1698 = vsub.f32 %v905, %v1697
      %v1699 = vand.u32 %v1698, 4294901760
      %v1700 = vsub.f32 %v1698, %v1699
      %v1701 = vand.u32 %v1700, 4294901760
      %1702 = vmatpush1.msra.mxu0 %v1701
      %1703 = vmatprep.subr.mxu0 0.0
      %v1704 = vand.u32 %v906, 4294901760
      %v1705 = vsub.f32 %v906, %v1704
      %v1706 = vand.u32 %v1705, 4294901760
      %v1707 = vsub.f32 %v1705, %v1706
      %v1708 = vand.u32 %v1707, 4294901760
      %1709 = vmatpush1.msra.mxu0 %v1708
      %1710 = vmatprep.subr.mxu0 0.0
      %v1711 = vand.u32 %v907, 4294901760
      %v1712 = vsub.f32 %v907, %v1711
      %v1713 = vand.u32 %v1712, 4294901760
      %v1714 = vsub.f32 %v1712, %v1713
      %v1715 = vand.u32 %v1714, 4294901760
      %1716 = vmatpush1.msra.mxu0 %v1715
      %1717 = vmatprep.subr.mxu0 0.0
      %v1718 = vand.u32 %v908, 4294901760
      %v1719 = vsub.f32 %v908, %v1718
      %v1720 = vand.u32 %v1719, 4294901760
      %v1721 = vsub.f32 %v1719, %v1720
      %v1722 = vand.u32 %v1721, 4294901760
      %1723 = vmatpush1.msra.mxu0 %v1722
      %1724 = vmatprep.subr.mxu0 0.0
      %v1725 = vand.u32 %v909, 4294901760
      %v1726 = vsub.f32 %v909, %v1725
      %v1727 = vand.u32 %v1726, 4294901760
      %v1728 = vsub.f32 %v1726, %v1727
      %v1729 = vand.u32 %v1728, 4294901760
      %1730 = vmatpush1.msra.mxu0 %v1729
      %1731 = vmatprep.subr.mxu0 0.0
      %v1732 = vand.u32 %v910, 4294901760
      %v1733 = vsub.f32 %v910, %v1732
      %v1734 = vand.u32 %v1733, 4294901760
      %v1735 = vsub.f32 %v1733, %v1734
      %v1736 = vand.u32 %v1735, 4294901760
      %1737 = vmatpush1.msra.mxu0 %v1736
      %1738 = vmatprep.subr.mxu0 0.0
      %v1739 = vand.u32 %v911, 4294901760
      %v1740 = vsub.f32 %v911, %v1739
      %v1741 = vand.u32 %v1740, 4294901760
      %v1742 = vsub.f32 %v1740, %v1741
      %v1743 = vand.u32 %v1742, 4294901760
      %1744 = vmatpush1.msra.mxu0 %v1743
      %1745 = vmatprep.subr.mxu0 0.0
      %v1746 = vand.u32 %v912, 4294901760
      %v1747 = vsub.f32 %v912, %v1746
      %v1748 = vand.u32 %v1747, 4294901760
      %v1749 = vsub.f32 %v1747, %v1748
      %v1750 = vand.u32 %v1749, 4294901760
      %1751 = vmatpush1.msra.mxu0 %v1750
      %1752 = vmatprep.subr.mxu0 0.0
      %v1753 = vand.u32 %v913, 4294901760
      %v1754 = vsub.f32 %v913, %v1753
      %v1755 = vand.u32 %v1754, 4294901760
      %v1756 = vsub.f32 %v1754, %v1755
      %v1757 = vand.u32 %v1756, 4294901760
      %1758 = vmatpush1.msra.mxu0 %v1757
      %1759 = vmatprep.subr.mxu0 0.0
      %1760 = vmatpush1.msra.mxu0 0.0
      %1761 = vmatprep.subr.mxu0 0.0
      %1762 = vmatpush1.msra.mxu0 0.0
      %1763 = vmatprep.subr.mxu0 0.0
      %1764 = vmatpush1.msra.mxu0 0.0
      %1765 = vmatprep.subr.mxu0 0.0
      %1766 = vmatpush1.msra.mxu0 0.0
      %1767 = vmatprep.subr.mxu0 0.0
      %1768 = vmatpush1.msra.mxu0 0.0
      %1769 = vmatprep.subr.mxu0 0.0
      %1770 = vmatpush1.msra.mxu0 0.0
      %1771 = vmatprep.subr.mxu0 0.0
      %1772 = vmatpush1.msra.mxu0 0.0
      %1773 = vmatprep.subr.mxu0 0.0
      %1774 = vmatpush1.msra.mxu0 0.0
      %1775 = vmatprep.subr.mxu0 0.0
      %1776 = vmatpush1.msra.mxu0 0.0
      %1777 = vmatprep.subr.mxu0 0.0
      %1778 = vmatpush1.msra.mxu0 0.0
      %1779 = vmatprep.subr.mxu0 0.0
      %1780 = vmatpush1.msra.mxu0 0.0
      %1781 = vmatprep.subr.mxu0 0.0
      %1782 = vmatpush1.msra.mxu0 0.0
      %1783 = vmatprep.subr.mxu0 0.0
      %1784 = vmatpush1.msra.mxu0 0.0
      %1785 = vmatprep.subr.mxu0 0.0
      %1786 = vmatpush1.msra.mxu0 0.0
      %1787 = vmatprep.subr.mxu0 0.0
      %1788 = vmatpush1.msra.mxu0 0.0
      %1789 = vmatprep.subr.mxu0 0.0
      %1790 = vmatpush1.msra.mxu0 0.0
      %1791 = vmatprep.mubr.f32.mxu0 0.0
      %v1792 = vand.u32 %v108, 4294901760
      %1793 = vmatmul.mubr.f32.gmra.mrb[0].mxu0 %v1792
      %v1794 = vpop.f32.mrb[0].mxu0
      %v1795 = vadd.f32 %v1644, %v1794
      %v1796 = vpop.f32.mrb[0].mxu0
      %1797 = vdwg.mxu0
      %1798 = vmatprep.subr.mxu0 0.0
      %v1799 = vand.u32 %v898, 4294901760
      %v1800 = vsub.f32 %v898, %v1799
      %1801 = vmatpush1.msra.mxu0 %v1800
      %1802 = vmatprep.subr.mxu0 0.0
      %v1803 = vand.u32 %v899, 4294901760
      %v1804 = vsub.f32 %v899, %v1803
      %1805 = vmatpush1.msra.mxu0 %v1804
      %1806 = vmatprep.subr.mxu0 0.0
      %v1807 = vand.u32 %v900, 4294901760
      %v1808 = vsub.f32 %v900, %v1807
      %1809 = vmatpush1.msra.mxu0 %v1808
      %1810 = vmatprep.subr.mxu0 0.0
      %v1811 = vand.u32 %v901, 4294901760
      %v1812 = vsub.f32 %v901, %v1811
      %1813 = vmatpush1.msra.mxu0 %v1812
      %1814 = vmatprep.subr.mxu0 0.0
      %v1815 = vand.u32 %v902, 4294901760
      %v1816 = vsub.f32 %v902, %v1815
      %1817 = vmatpush1.msra.mxu0 %v1816
      %1818 = vmatprep.subr.mxu0 0.0
      %v1819 = vand.u32 %v903, 4294901760
      %v1820 = vsub.f32 %v903, %v1819
      %1821 = vmatpush1.msra.mxu0 %v1820
      %1822 = vmatprep.subr.mxu0 0.0
      %v1823 = vand.u32 %v904, 4294901760
      %v1824 = vsub.f32 %v904, %v1823
      %1825 = vmatpush1.msra.mxu0 %v1824
      %1826 = vmatprep.subr.mxu0 0.0
      %v1827 = vand.u32 %v905, 4294901760
      %v1828 = vsub.f32 %v905, %v1827
      %1829 = vmatpush1.msra.mxu0 %v1828
      %1830 = vmatprep.subr.mxu0 0.0
      %v1831 = vand.u32 %v906, 4294901760
      %v1832 = vsub.f32 %v906, %v1831
      %1833 = vmatpush1.msra.mxu0 %v1832
      %1834 = vmatprep.subr.mxu0 0.0
      %v1835 = vand.u32 %v907, 4294901760
      %v1836 = vsub.f32 %v907, %v1835
      %1837 = vmatpush1.msra.mxu0 %v1836
      %1838 = vmatprep.subr.mxu0 0.0
      %v1839 = vand.u32 %v908, 4294901760
      %v1840 = vsub.f32 %v908, %v1839
      %1841 = vmatpush1.msra.mxu0 %v1840
      %1842 = vmatprep.subr.mxu0 0.0
      %v1843 = vand.u32 %v909, 4294901760
      %v1844 = vsub.f32 %v909, %v1843
      %1845 = vmatpush1.msra.mxu0 %v1844
      %1846 = vmatprep.subr.mxu0 0.0
      %v1847 = vand.u32 %v910, 4294901760
      %v1848 = vsub.f32 %v910, %v1847
      %1849 = vmatpush1.msra.mxu0 %v1848
      %1850 = vmatprep.subr.mxu0 0.0
      %v1851 = vand.u32 %v911, 4294901760
      %v1852 = vsub.f32 %v911, %v1851
      %1853 = vmatpush1.msra.mxu0 %v1852
      %1854 = vmatprep.subr.mxu0 0.0
      %v1855 = vand.u32 %v912, 4294901760
      %v1856 = vsub.f32 %v912, %v1855
      %1857 = vmatpush1.msra.mxu0 %v1856
      %1858 = vmatprep.subr.mxu0 0.0
      %v1859 = vand.u32 %v913, 4294901760
      %v1860 = vsub.f32 %v913, %v1859
      %1861 = vmatpush1.msra.mxu0 %v1860
      %1862 = vmatprep.subr.mxu0 0.0
      %1863 = vmatpush1.msra.mxu0 0.0
      %1864 = vmatprep.subr.mxu0 0.0
      %1865 = vmatpush1.msra.mxu0 0.0
      %1866 = vmatprep.subr.mxu0 0.0
      %1867 = vmatpush1.msra.mxu0 0.0
      %1868 = vmatprep.subr.mxu0 0.0
      %1869 = vmatpush1.msra.mxu0 0.0
      %1870 = vmatprep.subr.mxu0 0.0
      %1871 = vmatpush1.msra.mxu0 0.0
      %1872 = vmatprep.subr.mxu0 0.0
      %1873 = vmatpush1.msra.mxu0 0.0
      %1874 = vmatprep.subr.mxu0 0.0
      %1875 = vmatpush1.msra.mxu0 0.0
      %1876 = vmatprep.subr.mxu0 0.0
      %1877 = vmatpush1.msra.mxu0 0.0
      %1878 = vmatprep.subr.mxu0 0.0
      %1879 = vmatpush1.msra.mxu0 0.0
      %1880 = vmatprep.subr.mxu0 0.0
      %1881 = vmatpush1.msra.mxu0 0.0
      %1882 = vmatprep.subr.mxu0 0.0
      %1883 = vmatpush1.msra.mxu0 0.0
      %1884 = vmatprep.subr.mxu0 0.0
      %1885 = vmatpush1.msra.mxu0 0.0
      %1886 = vmatprep.subr.mxu0 0.0
      %1887 = vmatpush1.msra.mxu0 0.0
      %1888 = vmatprep.subr.mxu0 0.0
      %1889 = vmatpush1.msra.mxu0 0.0
      %1890 = vmatprep.subr.mxu0 0.0
      %1891 = vmatpush1.msra.mxu0 0.0
      %1892 = vmatprep.subr.mxu0 0.0
      %1893 = vmatpush1.msra.mxu0 0.0
      %1894 = vmatprep.mubr.f32.mxu0 0.0
      %v1895 = vand.u32 %v108, 4294901760
      %v1896 = vsub.f32 %v108, %v1895
      %1897 = vmatmul.mubr.f32.gmra.mrb[0].mxu0 %v1896
      %v1898 = vpop.f32.mrb[0].mxu0
      %v1899 = vadd.f32 %v1795, %v1898
      %v1900 = vpop.f32.mrb[0].mxu0
      %1901 = vdwg.mxu0
      %1902 = vmatprep.subr.mxu0 0.0
      %v1903 = vand.u32 %v898, 4294901760
      %1904 = vmatpush1.msra.mxu0 %v1903
      %1905 = vmatprep.subr.mxu0 0.0
      %v1906 = vand.u32 %v899, 4294901760
      %1907 = vmatpush1.msra.mxu0 %v1906
      %1908 = vmatprep.subr.mxu0 0.0
      %v1909 = vand.u32 %v900, 4294901760
      %1910 = vmatpush1.msra.mxu0 %v1909
      %1911 = vmatprep.subr.mxu0 0.0
      %v1912 = vand.u32 %v901, 4294901760
      %1913 = vmatpush1.msra.mxu0 %v1912
      %1914 = vmatprep.subr.mxu0 0.0
      %v1915 = vand.u32 %v902, 4294901760
      %1916 = vmatpush1.msra.mxu0 %v1915
      %1917 = vmatprep.subr.mxu0 0.0
      %v1918 = vand.u32 %v903, 4294901760
      %1919 = vmatpush1.msra.mxu0 %v1918
      %1920 = vmatprep.subr.mxu0 0.0
      %v1921 = vand.u32 %v904, 4294901760
      %1922 = vmatpush1.msra.mxu0 %v1921
      %1923 = vmatprep.subr.mxu0 0.0
      %v1924 = vand.u32 %v905, 4294901760
      %1925 = vmatpush1.msra.mxu0 %v1924
      %1926 = vmatprep.subr.mxu0 0.0
      %v1927 = vand.u32 %v906, 4294901760
      %1928 = vmatpush1.msra.mxu0 %v1927
      %1929 = vmatprep.subr.mxu0 0.0
      %v1930 = vand.u32 %v907, 4294901760
      %1931 = vmatpush1.msra.mxu0 %v1930
      %1932 = vmatprep.subr.mxu0 0.0
      %v1933 = vand.u32 %v908, 4294901760
      %1934 = vmatpush1.msra.mxu0 %v1933
      %1935 = vmatprep.subr.mxu0 0.0
      %v1936 = vand.u32 %v909, 4294901760
      %1937 = vmatpush1.msra.mxu0 %v1936
      %1938 = vmatprep.subr.mxu0 0.0
      %v1939 = vand.u32 %v910, 4294901760
      %1940 = vmatpush1.msra.mxu0 %v1939
      %1941 = vmatprep.subr.mxu0 0.0
      %v1942 = vand.u32 %v911, 4294901760
      %1943 = vmatpush1.msra.mxu0 %v1942
      %1944 = vmatprep.subr.mxu0 0.0
      %v1945 = vand.u32 %v912, 4294901760
      %1946 = vmatpush1.msra.mxu0 %v1945
      %1947 = vmatprep.subr.mxu0 0.0
      %v1948 = vand.u32 %v913, 4294901760
      %1949 = vmatpush1.msra.mxu0 %v1948
      %1950 = vmatprep.subr.mxu0 0.0
      %1951 = vmatpush1.msra.mxu0 0.0
      %1952 = vmatprep.subr.mxu0 0.0
      %1953 = vmatpush1.msra.mxu0 0.0
      %1954 = vmatprep.subr.mxu0 0.0
      %1955 = vmatpush1.msra.mxu0 0.0
      %1956 = vmatprep.subr.mxu0 0.0
      %1957 = vmatpush1.msra.mxu0 0.0
      %1958 = vmatprep.subr.mxu0 0.0
      %1959 = vmatpush1.msra.mxu0 0.0
      %1960 = vmatprep.subr.mxu0 0.0
      %1961 = vmatpush1.msra.mxu0 0.0
      %1962 = vmatprep.subr.mxu0 0.0
      %1963 = vmatpush1.msra.mxu0 0.0
      %1964 = vmatprep.subr.mxu0 0.0
      %1965 = vmatpush1.msra.mxu0 0.0
      %1966 = vmatprep.subr.mxu0 0.0
      %1967 = vmatpush1.msra.mxu0 0.0
      %1968 = vmatprep.subr.mxu0 0.0
      %1969 = vmatpush1.msra.mxu0 0.0
      %1970 = vmatprep.subr.mxu0 0.0
      %1971 = vmatpush1.msra.mxu0 0.0
      %1972 = vmatprep.subr.mxu0 0.0
      %1973 = vmatpush1.msra.mxu0 0.0
      %1974 = vmatprep.subr.mxu0 0.0
      %1975 = vmatpush1.msra.mxu0 0.0
      %1976 = vmatprep.subr.mxu0 0.0
      %1977 = vmatpush1.msra.mxu0 0.0
      %1978 = vmatprep.subr.mxu0 0.0
      %1979 = vmatpush1.msra.mxu0 0.0
      %1980 = vmatprep.subr.mxu0 0.0
      %1981 = vmatpush1.msra.mxu0 0.0
      %1982 = vmatprep.mubr.f32.mxu0 0.0
      %v1983 = vand.u32 %v108, 4294901760
      %v1984 = vsub.f32 %v108, %v1983
      %v1985 = vand.u32 %v1984, 4294901760
      %1986 = vmatmul.mubr.f32.gmra.mrb[0].mxu0 %v1985
      %v1987 = vpop.f32.mrb[0].mxu0
      %v1988 = vadd.f32 %v1899, %v1987
      %v1989 = vpop.f32.mrb[0].mxu0
      %1990 = vdwg.mxu0
      %1991 = vmatprep.subr.mxu0 0.0
      %v1992 = vand.u32 %v898, 4294901760
      %v1993 = vsub.f32 %v898, %v1992
      %v1994 = vand.u32 %v1993, 4294901760
      %1995 = vmatpush1.msra.mxu0 %v1994
      %1996 = vmatprep.subr.mxu0 0.0
      %v1997 = vand.u32 %v899, 4294901760
      %v1998 = vsub.f32 %v899, %v1997
      %v1999 = vand.u32 %v1998, 4294901760
      %2000 = vmatpush1.msra.mxu0 %v1999
      %2001 = vmatprep.subr.mxu0 0.0
      %v2002 = vand.u32 %v900, 4294901760
      %v2003 = vsub.f32 %v900, %v2002
      %v2004 = vand.u32 %v2003, 4294901760
      %2005 = vmatpush1.msra.mxu0 %v2004
      %2006 = vmatprep.subr.mxu0 0.0
      %v2007 = vand.u32 %v901, 4294901760
      %v2008 = vsub.f32 %v901, %v2007
      %v2009 = vand.u32 %v2008, 4294901760
      %2010 = vmatpush1.msra.mxu0 %v2009
      %2011 = vmatprep.subr.mxu0 0.0
      %v2012 = vand.u32 %v902, 4294901760
      %v2013 = vsub.f32 %v902, %v2012
      %v2014 = vand.u32 %v2013, 4294901760
      %2015 = vmatpush1.msra.mxu0 %v2014
      %2016 = vmatprep.subr.mxu0 0.0
      %v2017 = vand.u32 %v903, 4294901760
      %v2018 = vsub.f32 %v903, %v2017
      %v2019 = vand.u32 %v2018, 4294901760
      %2020 = vmatpush1.msra.mxu0 %v2019
      %2021 = vmatprep.subr.mxu0 0.0
      %v2022 = vand.u32 %v904, 4294901760
      %v2023 = vsub.f32 %v904, %v2022
      %v2024 = vand.u32 %v2023, 4294901760
      %2025 = vmatpush1.msra.mxu0 %v2024
      %2026 = vmatprep.subr.mxu0 0.0
      %v2027 = vand.u32 %v905, 4294901760
      %v2028 = vsub.f32 %v905, %v2027
      %v2029 = vand.u32 %v2028, 4294901760
      %2030 = vmatpush1.msra.mxu0 %v2029
      %2031 = vmatprep.subr.mxu0 0.0
      %v2032 = vand.u32 %v906, 4294901760
      %v2033 = vsub.f32 %v906, %v2032
      %v2034 = vand.u32 %v2033, 4294901760
      %2035 = vmatpush1.msra.mxu0 %v2034
      %2036 = vmatprep.subr.mxu0 0.0
      %v2037 = vand.u32 %v907, 4294901760
      %v2038 = vsub.f32 %v907, %v2037
      %v2039 = vand.u32 %v2038, 4294901760
      %2040 = vmatpush1.msra.mxu0 %v2039
      %2041 = vmatprep.subr.mxu0 0.0
      %v2042 = vand.u32 %v908, 4294901760
      %v2043 = vsub.f32 %v908, %v2042
      %v2044 = vand.u32 %v2043, 4294901760
      %2045 = vmatpush1.msra.mxu0 %v2044
      %2046 = vmatprep.subr.mxu0 0.0
      %v2047 = vand.u32 %v909, 4294901760
      %v2048 = vsub.f32 %v909, %v2047
      %v2049 = vand.u32 %v2048, 4294901760
      %2050 = vmatpush1.msra.mxu0 %v2049
      %2051 = vmatprep.subr.mxu0 0.0
      %v2052 = vand.u32 %v910, 4294901760
      %v2053 = vsub.f32 %v910, %v2052
      %v2054 = vand.u32 %v2053, 4294901760
      %2055 = vmatpush1.msra.mxu0 %v2054
      %2056 = vmatprep.subr.mxu0 0.0
      %v2057 = vand.u32 %v911, 4294901760
      %v2058 = vsub.f32 %v911, %v2057
      %v2059 = vand.u32 %v2058, 4294901760
      %2060 = vmatpush1.msra.mxu0 %v2059
      %2061 = vmatprep.subr.mxu0 0.0
      %v2062 = vand.u32 %v912, 4294901760
      %v2063 = vsub.f32 %v912, %v2062
      %v2064 = vand.u32 %v2063, 4294901760
      %2065 = vmatpush1.msra.mxu0 %v2064
      %2066 = vmatprep.subr.mxu0 0.0
      %v2067 = vand.u32 %v913, 4294901760
      %v2068 = vsub.f32 %v913, %v2067
      %v2069 = vand.u32 %v2068, 4294901760
      %2070 = vmatpush1.msra.mxu0 %v2069
      %2071 = vmatprep.subr.mxu0 0.0
      %2072 = vmatpush1.msra.mxu0 0.0
      %2073 = vmatprep.subr.mxu0 0.0
      %2074 = vmatpush1.msra.mxu0 0.0
      %2075 = vmatprep.subr.mxu0 0.0
      %2076 = vmatpush1.msra.mxu0 0.0
      %2077 = vmatprep.subr.mxu0 0.0
      %2078 = vmatpush1.msra.mxu0 0.0
      %2079 = vmatprep.subr.mxu0 0.0
      %2080 = vmatpush1.msra.mxu0 0.0
      %2081 = vmatprep.subr.mxu0 0.0
      %2082 = vmatpush1.msra.mxu0 0.0
      %2083 = vmatprep.subr.mxu0 0.0
      %2084 = vmatpush1.msra.mxu0 0.0
      %2085 = vmatprep.subr.mxu0 0.0
      %2086 = vmatpush1.msra.mxu0 0.0
      %2087 = vmatprep.subr.mxu0 0.0
      %2088 = vmatpush1.msra.mxu0 0.0
      %2089 = vmatprep.subr.mxu0 0.0
      %2090 = vmatpush1.msra.mxu0 0.0
      %2091 = vmatprep.subr.mxu0 0.0
      %2092 = vmatpush1.msra.mxu0 0.0
      %2093 = vmatprep.subr.mxu0 0.0
      %2094 = vmatpush1.msra.mxu0 0.0
      %2095 = vmatprep.subr.mxu0 0.0
      %2096 = vmatpush1.msra.mxu0 0.0
      %2097 = vmatprep.subr.mxu0 0.0
      %2098 = vmatpush1.msra.mxu0 0.0
      %2099 = vmatprep.subr.mxu0 0.0
      %2100 = vmatpush1.msra.mxu0 0.0
      %2101 = vmatprep.subr.mxu0 0.0
      %2102 = vmatpush1.msra.mxu0 0.0
      %2103 = vmatprep.mubr.f32.mxu0 0.0
      %v2104 = vand.u32 %v108, 4294901760
      %2105 = vmatmul.mubr.f32.gmra.mrb[0].mxu0 %v2104
      %v2106 = vpop.f32.mrb[0].mxu0
      %v2107 = vadd.f32 %v1988, %v2106
      %v2108 = vpop.f32.mrb[0].mxu0
      %2109 = vdwg.mxu0
      %2110 = vmatprep.subr.mxu0 0.0
      %v2111 = vand.u32 %v898, 4294901760
      %2112 = vmatpush1.msra.mxu0 %v2111
      %2113 = vmatprep.subr.mxu0 0.0
      %v2114 = vand.u32 %v899, 4294901760
      %2115 = vmatpush1.msra.mxu0 %v2114
      %2116 = vmatprep.subr.mxu0 0.0
      %v2117 = vand.u32 %v900, 4294901760
      %2118 = vmatpush1.msra.mxu0 %v2117
      %2119 = vmatprep.subr.mxu0 0.0
      %v2120 = vand.u32 %v901, 4294901760
      %2121 = vmatpush1.msra.mxu0 %v2120
      %2122 = vmatprep.subr.mxu0 0.0
      %v2123 = vand.u32 %v902, 4294901760
      %2124 = vmatpush1.msra.mxu0 %v2123
      %2125 = vmatprep.subr.mxu0 0.0
      %v2126 = vand.u32 %v903, 4294901760
      %2127 = vmatpush1.msra.mxu0 %v2126
      %2128 = vmatprep.subr.mxu0 0.0
      %v2129 = vand.u32 %v904, 4294901760
      %2130 = vmatpush1.msra.mxu0 %v2129
      %2131 = vmatprep.subr.mxu0 0.0
      %v2132 = vand.u32 %v905, 4294901760
      %2133 = vmatpush1.msra.mxu0 %v2132
      %2134 = vmatprep.subr.mxu0 0.0
      %v2135 = vand.u32 %v906, 4294901760
      %2136 = vmatpush1.msra.mxu0 %v2135
      %2137 = vmatprep.subr.mxu0 0.0
      %v2138 = vand.u32 %v907, 4294901760
      %2139 = vmatpush1.msra.mxu0 %v2138
      %2140 = vmatprep.subr.mxu0 0.0
      %v2141 = vand.u32 %v908, 4294901760
      %2142 = vmatpush1.msra.mxu0 %v2141
      %2143 = vmatprep.subr.mxu0 0.0
      %v2144 = vand.u32 %v909, 4294901760
      %2145 = vmatpush1.msra.mxu0 %v2144
      %2146 = vmatprep.subr.mxu0 0.0
      %v2147 = vand.u32 %v910, 4294901760
      %2148 = vmatpush1.msra.mxu0 %v2147
      %2149 = vmatprep.subr.mxu0 0.0
      %v2150 = vand.u32 %v911, 4294901760
      %2151 = vmatpush1.msra.mxu0 %v2150
      %2152 = vmatprep.subr.mxu0 0.0
      %v2153 = vand.u32 %v912, 4294901760
      %2154 = vmatpush1.msra.mxu0 %v2153
      %2155 = vmatprep.subr.mxu0 0.0
      %v2156 = vand.u32 %v913, 4294901760
      %2157 = vmatpush1.msra.mxu0 %v2156
      %2158 = vmatprep.subr.mxu0 0.0
      %2159 = vmatpush1.msra.mxu0 0.0
      %2160 = vmatprep.subr.mxu0 0.0
      %2161 = vmatpush1.msra.mxu0 0.0
      %2162 = vmatprep.subr.mxu0 0.0
      %2163 = vmatpush1.msra.mxu0 0.0
      %2164 = vmatprep.subr.mxu0 0.0
      %2165 = vmatpush1.msra.mxu0 0.0
      %2166 = vmatprep.subr.mxu0 0.0
      %2167 = vmatpush1.msra.mxu0 0.0
      %2168 = vmatprep.subr.mxu0 0.0
      %2169 = vmatpush1.msra.mxu0 0.0
      %2170 = vmatprep.subr.mxu0 0.0
      %2171 = vmatpush1.msra.mxu0 0.0
      %2172 = vmatprep.subr.mxu0 0.0
      %2173 = vmatpush1.msra.mxu0 0.0
      %2174 = vmatprep.subr.mxu0 0.0
      %2175 = vmatpush1.msra.mxu0 0.0
      %2176 = vmatprep.subr.mxu0 0.0
      %2177 = vmatpush1.msra.mxu0 0.0
      %2178 = vmatprep.subr.mxu0 0.0
      %2179 = vmatpush1.msra.mxu0 0.0
      %2180 = vmatprep.subr.mxu0 0.0
      %2181 = vmatpush1.msra.mxu0 0.0
      %2182 = vmatprep.subr.mxu0 0.0
      %2183 = vmatpush1.msra.mxu0 0.0
      %2184 = vmatprep.subr.mxu0 0.0
      %2185 = vmatpush1.msra.mxu0 0.0
      %2186 = vmatprep.subr.mxu0 0.0
      %2187 = vmatpush1.msra.mxu0 0.0
      %2188 = vmatprep.subr.mxu0 0.0
      %2189 = vmatpush1.msra.mxu0 0.0
      %2190 = vmatprep.mubr.f32.mxu0 0.0
      %v2191 = vand.u32 %v108, 4294901760
      %2192 = vmatmul.mubr.f32.gmra.mrb[0].mxu0 %v2191
      %v2193 = vpop.f32.mrb[0].mxu0
      %v2194 = vadd.f32 %v2107, %v2193
      %v2195 = vpop.f32.mrb[0].mxu0
      %2196 = vdwg.mxu0
      %2197 = vmatprep.subr.mxu0 0.0
      %v2198 = vand.u32 %v76, 4294901760
      %2199 = vmatpush1.msra.mxu0 %v2198
      %2200 = vmatprep.subr.mxu0 0.0
      %v2201 = vand.u32 %v77, 4294901760
      %2202 = vmatpush1.msra.mxu0 %v2201
      %2203 = vmatprep.subr.mxu0 0.0
      %v2204 = vand.u32 %v78, 4294901760
      %2205 = vmatpush1.msra.mxu0 %v2204
      %2206 = vmatprep.subr.mxu0 0.0
      %v2207 = vand.u32 %v79, 4294901760
      %2208 = vmatpush1.msra.mxu0 %v2207
      %2209 = vmatprep.subr.mxu0 0.0
      %v2210 = vand.u32 %v80, 4294901760
      %2211 = vmatpush1.msra.mxu0 %v2210
      %2212 = vmatprep.subr.mxu0 0.0
      %v2213 = vand.u32 %v81, 4294901760
      %2214 = vmatpush1.msra.mxu0 %v2213
      %2215 = vmatprep.subr.mxu0 0.0
      %v2216 = vand.u32 %v82, 4294901760
      %2217 = vmatpush1.msra.mxu0 %v2216
      %2218 = vmatprep.subr.mxu0 0.0
      %v2219 = vand.u32 %v83, 4294901760
      %2220 = vmatpush1.msra.mxu0 %v2219
      %2221 = vmatprep.subr.mxu0 0.0
      %v2222 = vand.u32 %v84, 4294901760
      %2223 = vmatpush1.msra.mxu0 %v2222
      %2224 = vmatprep.subr.mxu0 0.0
      %v2225 = vand.u32 %v85, 4294901760
      %2226 = vmatpush1.msra.mxu0 %v2225
      %2227 = vmatprep.subr.mxu0 0.0
      %v2228 = vand.u32 %v86, 4294901760
      %2229 = vmatpush1.msra.mxu0 %v2228
      %2230 = vmatprep.subr.mxu0 0.0
      %v2231 = vand.u32 %v87, 4294901760
      %2232 = vmatpush1.msra.mxu0 %v2231
      %2233 = vmatprep.subr.mxu0 0.0
      %v2234 = vand.u32 %v88, 4294901760
      %2235 = vmatpush1.msra.mxu0 %v2234
      %2236 = vmatprep.subr.mxu0 0.0
      %v2237 = vand.u32 %v89, 4294901760
      %2238 = vmatpush1.msra.mxu0 %v2237
      %2239 = vmatprep.subr.mxu0 0.0
      %v2240 = vand.u32 %v90, 4294901760
      %2241 = vmatpush1.msra.mxu0 %v2240
      %2242 = vmatprep.subr.mxu0 0.0
      %v2243 = vand.u32 %v91, 4294901760
      %2244 = vmatpush1.msra.mxu0 %v2243
      %2245 = vmatprep.subr.mxu0 0.0
      %2246 = vmatpush1.msra.mxu0 0.0
      %2247 = vmatprep.subr.mxu0 0.0
      %2248 = vmatpush1.msra.mxu0 0.0
      %2249 = vmatprep.subr.mxu0 0.0
      %2250 = vmatpush1.msra.mxu0 0.0
      %2251 = vmatprep.subr.mxu0 0.0
      %2252 = vmatpush1.msra.mxu0 0.0
      %2253 = vmatprep.subr.mxu0 0.0
      %2254 = vmatpush1.msra.mxu0 0.0
      %2255 = vmatprep.subr.mxu0 0.0
      %2256 = vmatpush1.msra.mxu0 0.0
      %2257 = vmatprep.subr.mxu0 0.0
      %2258 = vmatpush1.msra.mxu0 0.0
      %2259 = vmatprep.subr.mxu0 0.0
      %2260 = vmatpush1.msra.mxu0 0.0
      %2261 = vmatprep.subr.mxu0 0.0
      %2262 = vmatpush1.msra.mxu0 0.0
      %2263 = vmatprep.subr.mxu0 0.0
      %2264 = vmatpush1.msra.mxu0 0.0
      %2265 = vmatprep.subr.mxu0 0.0
      %2266 = vmatpush1.msra.mxu0 0.0
      %2267 = vmatprep.subr.mxu0 0.0
      %2268 = vmatpush1.msra.mxu0 0.0
      %2269 = vmatprep.subr.mxu0 0.0
      %2270 = vmatpush1.msra.mxu0 0.0
      %2271 = vmatprep.subr.mxu0 0.0
      %2272 = vmatpush1.msra.mxu0 0.0
      %2273 = vmatprep.subr.mxu0 0.0
      %2274 = vmatpush1.msra.mxu0 0.0
      %2275 = vmatprep.subr.mxu0 0.0
      %2276 = vmatpush1.msra.mxu0 0.0
      %2277 = vmatprep.mubr.f32.mxu0 0.0
      %v2278 = vand.u32 %v2194, 4294901760
      %v2279 = vsub.f32 %v2194, %v2278
      %v2280 = vand.u32 %v2279, 4294901760
      %v2281 = vsub.f32 %v2279, %v2280
      %v2282 = vand.u32 %v2281, 4294901760
      %2283 = vmatmul.mubr.f32.gmra.mrb[0].mxu0 %v2282
      %v2284 = vpop.f32.mrb[0].mxu0
      %v2285 = vadd.f32 0.0, %v2284
      %v2286 = vpop.f32.mrb[0].mxu0
      %2287 = vdwg.mxu0
      %2288 = vmatprep.subr.mxu0 0.0
      %v2289 = vand.u32 %v76, 4294901760
      %v2290 = vsub.f32 %v76, %v2289
      %v2291 = vand.u32 %v2290, 4294901760
      %v2292 = vsub.f32 %v2290, %v2291
      %v2293 = vand.u32 %v2292, 4294901760
      %2294 = vmatpush1.msra.mxu0 %v2293
      %2295 = vmatprep.subr.mxu0 0.0
      %v2296 = vand.u32 %v77, 4294901760
      %v2297 = vsub.f32 %v77, %v2296
      %v2298 = vand.u32 %v2297, 4294901760
      %v2299 = vsub.f32 %v2297, %v2298
      %v2300 = vand.u32 %v2299, 4294901760
      %2301 = vmatpush1.msra.mxu0 %v2300
      %2302 = vmatprep.subr.mxu0 0.0
      %v2303 = vand.u32 %v78, 4294901760
      %v2304 = vsub.f32 %v78, %v2303
      %v2305 = vand.u32 %v2304, 4294901760
      %v2306 = vsub.f32 %v2304, %v2305
      %v2307 = vand.u32 %v2306, 4294901760
      %2308 = vmatpush1.msra.mxu0 %v2307
      %2309 = vmatprep.subr.mxu0 0.0
      %v2310 = vand.u32 %v79, 4294901760
      %v2311 = vsub.f32 %v79, %v2310
      %v2312 = vand.u32 %v2311, 4294901760
      %v2313 = vsub.f32 %v2311, %v2312
      %v2314 = vand.u32 %v2313, 4294901760
      %2315 = vmatpush1.msra.mxu0 %v2314
      %2316 = vmatprep.subr.mxu0 0.0
      %v2317 = vand.u32 %v80, 4294901760
      %v2318 = vsub.f32 %v80, %v2317
      %v2319 = vand.u32 %v2318, 4294901760
      %v2320 = vsub.f32 %v2318, %v2319
      %v2321 = vand.u32 %v2320, 4294901760
      %2322 = vmatpush1.msra.mxu0 %v2321
      %2323 = vmatprep.subr.mxu0 0.0
      %v2324 = vand.u32 %v81, 4294901760
      %v2325 = vsub.f32 %v81, %v2324
      %v2326 = vand.u32 %v2325, 4294901760
      %v2327 = vsub.f32 %v2325, %v2326
      %v2328 = vand.u32 %v2327, 4294901760
      %2329 = vmatpush1.msra.mxu0 %v2328
      %2330 = vmatprep.subr.mxu0 0.0
      %v2331 = vand.u32 %v82, 4294901760
      %v2332 = vsub.f32 %v82, %v2331
      %v2333 = vand.u32 %v2332, 4294901760
      %v2334 = vsub.f32 %v2332, %v2333
      %v2335 = vand.u32 %v2334, 4294901760
      %2336 = vmatpush1.msra.mxu0 %v2335
      %2337 = vmatprep.subr.mxu0 0.0
      %v2338 = vand.u32 %v83, 4294901760
      %v2339 = vsub.f32 %v83, %v2338
      %v2340 = vand.u32 %v2339, 4294901760
      %v2341 = vsub.f32 %v2339, %v2340
      %v2342 = vand.u32 %v2341, 4294901760
      %2343 = vmatpush1.msra.mxu0 %v2342
      %2344 = vmatprep.subr.mxu0 0.0
      %v2345 = vand.u32 %v84, 4294901760
      %v2346 = vsub.f32 %v84, %v2345
      %v2347 = vand.u32 %v2346, 4294901760
      %v2348 = vsub.f32 %v2346, %v2347
      %v2349 = vand.u32 %v2348, 4294901760
      %2350 = vmatpush1.msra.mxu0 %v2349
      %2351 = vmatprep.subr.mxu0 0.0
      %v2352 = vand.u32 %v85, 4294901760
      %v2353 = vsub.f32 %v85, %v2352
      %v2354 = vand.u32 %v2353, 4294901760
      %v2355 = vsub.f32 %v2353, %v2354
      %v2356 = vand.u32 %v2355, 4294901760
      %2357 = vmatpush1.msra.mxu0 %v2356
      %2358 = vmatprep.subr.mxu0 0.0
      %v2359 = vand.u32 %v86, 4294901760
      %v2360 = vsub.f32 %v86, %v2359
      %v2361 = vand.u32 %v2360, 4294901760
      %v2362 = vsub.f32 %v2360, %v2361
      %v2363 = vand.u32 %v2362, 4294901760
      %2364 = vmatpush1.msra.mxu0 %v2363
      %2365 = vmatprep.subr.mxu0 0.0
      %v2366 = vand.u32 %v87, 4294901760
      %v2367 = vsub.f32 %v87, %v2366
      %v2368 = vand.u32 %v2367, 4294901760
      %v2369 = vsub.f32 %v2367, %v2368
      %v2370 = vand.u32 %v2369, 4294901760
      %2371 = vmatpush1.msra.mxu0 %v2370
      %2372 = vmatprep.subr.mxu0 0.0
      %v2373 = vand.u32 %v88, 4294901760
      %v2374 = vsub.f32 %v88, %v2373
      %v2375 = vand.u32 %v2374, 4294901760
      %v2376 = vsub.f32 %v2374, %v2375
      %v2377 = vand.u32 %v2376, 4294901760
      %2378 = vmatpush1.msra.mxu0 %v2377
      %2379 = vmatprep.subr.mxu0 0.0
      %v2380 = vand.u32 %v89, 4294901760
      %v2381 = vsub.f32 %v89, %v2380
      %v2382 = vand.u32 %v2381, 4294901760
      %v2383 = vsub.f32 %v2381, %v2382
      %v2384 = vand.u32 %v2383, 4294901760
      %2385 = vmatpush1.msra.mxu0 %v2384
      %2386 = vmatprep.subr.mxu0 0.0
      %v2387 = vand.u32 %v90, 4294901760
      %v2388 = vsub.f32 %v90, %v2387
      %v2389 = vand.u32 %v2388, 4294901760
      %v2390 = vsub.f32 %v2388, %v2389
      %v2391 = vand.u32 %v2390, 4294901760
      %2392 = vmatpush1.msra.mxu0 %v2391
      %2393 = vmatprep.subr.mxu0 0.0
      %v2394 = vand.u32 %v91, 4294901760
      %v2395 = vsub.f32 %v91, %v2394
      %v2396 = vand.u32 %v2395, 4294901760
      %v2397 = vsub.f32 %v2395, %v2396
      %v2398 = vand.u32 %v2397, 4294901760
      %2399 = vmatpush1.msra.mxu0 %v2398
      %2400 = vmatprep.subr.mxu0 0.0
      %2401 = vmatpush1.msra.mxu0 0.0
      %2402 = vmatprep.subr.mxu0 0.0
      %2403 = vmatpush1.msra.mxu0 0.0
      %2404 = vmatprep.subr.mxu0 0.0
      %2405 = vmatpush1.msra.mxu0 0.0
      %2406 = vmatprep.subr.mxu0 0.0
      %2407 = vmatpush1.msra.mxu0 0.0
      %2408 = vmatprep.subr.mxu0 0.0
      %2409 = vmatpush1.msra.mxu0 0.0
      %2410 = vmatprep.subr.mxu0 0.0
      %2411 = vmatpush1.msra.mxu0 0.0
      %2412 = vmatprep.subr.mxu0 0.0
      %2413 = vmatpush1.msra.mxu0 0.0
      %2414 = vmatprep.subr.mxu0 0.0
      %2415 = vmatpush1.msra.mxu0 0.0
      %2416 = vmatprep.subr.mxu0 0.0
      %2417 = vmatpush1.msra.mxu0 0.0
      %2418 = vmatprep.subr.mxu0 0.0
      %2419 = vmatpush1.msra.mxu0 0.0
      %2420 = vmatprep.subr.mxu0 0.0
      %2421 = vmatpush1.msra.mxu0 0.0
      %2422 = vmatprep.subr.mxu0 0.0
      %2423 = vmatpush1.msra.mxu0 0.0
      %2424 = vmatprep.subr.mxu0 0.0
      %2425 = vmatpush1.msra.mxu0 0.0
      %2426 = vmatprep.subr.mxu0 0.0
      %2427 = vmatpush1.msra.mxu0 0.0
      %2428 = vmatprep.subr.mxu0 0.0
      %2429 = vmatpush1.msra.mxu0 0.0
      %2430 = vmatprep.subr.mxu0 0.0
      %2431 = vmatpush1.msra.mxu0 0.0
      %2432 = vmatprep.mubr.f32.mxu0 0.0
      %v2433 = vand.u32 %v2194, 4294901760
      %2434 = vmatmul.mubr.f32.gmra.mrb[0].mxu0 %v2433
      %v2435 = vpop.f32.mrb[0].mxu0
      %v2436 = vadd.f32 %v2285, %v2435
      %v2437 = vpop.f32.mrb[0].mxu0
      %2438 = vdwg.mxu0
      %2439 = vmatprep.subr.mxu0 0.0
      %v2440 = vand.u32 %v76, 4294901760
      %v2441 = vsub.f32 %v76, %v2440
      %2442 = vmatpush1.msra.mxu0 %v2441
      %2443 = vmatprep.subr.mxu0 0.0
      %v2444 = vand.u32 %v77, 4294901760
      %v2445 = vsub.f32 %v77, %v2444
      %2446 = vmatpush1.msra.mxu0 %v2445
      %2447 = vmatprep.subr.mxu0 0.0
      %v2448 = vand.u32 %v78, 4294901760
      %v2449 = vsub.f32 %v78, %v2448
      %2450 = vmatpush1.msra.mxu0 %v2449
      %2451 = vmatprep.subr.mxu0 0.0
      %v2452 = vand.u32 %v79, 4294901760
      %v2453 = vsub.f32 %v79, %v2452
      %2454 = vmatpush1.msra.mxu0 %v2453
      %2455 = vmatprep.subr.mxu0 0.0
      %v2456 = vand.u32 %v80, 4294901760
      %v2457 = vsub.f32 %v80, %v2456
      %2458 = vmatpush1.msra.mxu0 %v2457
      %2459 = vmatprep.subr.mxu0 0.0
      %v2460 = vand.u32 %v81, 4294901760
      %v2461 = vsub.f32 %v81, %v2460
      %2462 = vmatpush1.msra.mxu0 %v2461
      %2463 = vmatprep.subr.mxu0 0.0
      %v2464 = vand.u32 %v82, 4294901760
      %v2465 = vsub.f32 %v82, %v2464
      %2466 = vmatpush1.msra.mxu0 %v2465
      %2467 = vmatprep.subr.mxu0 0.0
      %v2468 = vand.u32 %v83, 4294901760
      %v2469 = vsub.f32 %v83, %v2468
      %2470 = vmatpush1.msra.mxu0 %v2469
      %2471 = vmatprep.subr.mxu0 0.0
      %v2472 = vand.u32 %v84, 4294901760
      %v2473 = vsub.f32 %v84, %v2472
      %2474 = vmatpush1.msra.mxu0 %v2473
      %2475 = vmatprep.subr.mxu0 0.0
      %v2476 = vand.u32 %v85, 4294901760
      %v2477 = vsub.f32 %v85, %v2476
      %2478 = vmatpush1.msra.mxu0 %v2477
      %2479 = vmatprep.subr.mxu0 0.0
      %v2480 = vand.u32 %v86, 4294901760
      %v2481 = vsub.f32 %v86, %v2480
      %2482 = vmatpush1.msra.mxu0 %v2481
      %2483 = vmatprep.subr.mxu0 0.0
      %v2484 = vand.u32 %v87, 4294901760
      %v2485 = vsub.f32 %v87, %v2484
      %2486 = vmatpush1.msra.mxu0 %v2485
      %2487 = vmatprep.subr.mxu0 0.0
      %v2488 = vand.u32 %v88, 4294901760
      %v2489 = vsub.f32 %v88, %v2488
      %2490 = vmatpush1.msra.mxu0 %v2489
      %2491 = vmatprep.subr.mxu0 0.0
      %v2492 = vand.u32 %v89, 4294901760
      %v2493 = vsub.f32 %v89, %v2492
      %2494 = vmatpush1.msra.mxu0 %v2493
      %2495 = vmatprep.subr.mxu0 0.0
      %v2496 = vand.u32 %v90, 4294901760
      %v2497 = vsub.f32 %v90, %v2496
      %2498 = vmatpush1.msra.mxu0 %v2497
      %2499 = vmatprep.subr.mxu0 0.0
      %v2500 = vand.u32 %v91, 4294901760
      %v2501 = vsub.f32 %v91, %v2500
      %2502 = vmatpush1.msra.mxu0 %v2501
      %2503 = vmatprep.subr.mxu0 0.0
      %2504 = vmatpush1.msra.mxu0 0.0
      %2505 = vmatprep.subr.mxu0 0.0
      %2506 = vmatpush1.msra.mxu0 0.0
      %2507 = vmatprep.subr.mxu0 0.0
      %2508 = vmatpush1.msra.mxu0 0.0
      %2509 = vmatprep.subr.mxu0 0.0
      %2510 = vmatpush1.msra.mxu0 0.0
      %2511 = vmatprep.subr.mxu0 0.0
      %2512 = vmatpush1.msra.mxu0 0.0
      %2513 = vmatprep.subr.mxu0 0.0
      %2514 = vmatpush1.msra.mxu0 0.0
      %2515 = vmatprep.subr.mxu0 0.0
      %2516 = vmatpush1.msra.mxu0 0.0
      %2517 = vmatprep.subr.mxu0 0.0
      %2518 = vmatpush1.msra.mxu0 0.0
      %2519 = vmatprep.subr.mxu0 0.0
      %2520 = vmatpush1.msra.mxu0 0.0
      %2521 = vmatprep.subr.mxu0 0.0
      %2522 = vmatpush1.msra.mxu0 0.0
      %2523 = vmatprep.subr.mxu0 0.0
      %2524 = vmatpush1.msra.mxu0 0.0
      %2525 = vmatprep.subr.mxu0 0.0
      %2526 = vmatpush1.msra.mxu0 0.0
      %2527 = vmatprep.subr.mxu0 0.0
      %2528 = vmatpush1.msra.mxu0 0.0
      %2529 = vmatprep.subr.mxu0 0.0
      %2530 = vmatpush1.msra.mxu0 0.0
      %2531 = vmatprep.subr.mxu0 0.0
      %2532 = vmatpush1.msra.mxu0 0.0
      %2533 = vmatprep.subr.mxu0 0.0
      %2534 = vmatpush1.msra.mxu0 0.0
      %2535 = vmatprep.mubr.f32.mxu0 0.0
      %v2536 = vand.u32 %v2194, 4294901760
      %v2537 = vsub.f32 %v2194, %v2536
      %2538 = vmatmul.mubr.f32.gmra.mrb[0].mxu0 %v2537
      %v2539 = vpop.f32.mrb[0].mxu0
      %v2540 = vadd.f32 %v2436, %v2539
      %v2541 = vpop.f32.mrb[0].mxu0
      %2542 = vdwg.mxu0
      %2543 = vmatprep.subr.mxu0 0.0
      %v2544 = vand.u32 %v76, 4294901760
      %2545 = vmatpush1.msra.mxu0 %v2544
      %2546 = vmatprep.subr.mxu0 0.0
      %v2547 = vand.u32 %v77, 4294901760
      %2548 = vmatpush1.msra.mxu0 %v2547
      %2549 = vmatprep.subr.mxu0 0.0
      %v2550 = vand.u32 %v78, 4294901760
      %2551 = vmatpush1.msra.mxu0 %v2550
      %2552 = vmatprep.subr.mxu0 0.0
      %v2553 = vand.u32 %v79, 4294901760
      %2554 = vmatpush1.msra.mxu0 %v2553
      %2555 = vmatprep.subr.mxu0 0.0
      %v2556 = vand.u32 %v80, 4294901760
      %2557 = vmatpush1.msra.mxu0 %v2556
      %2558 = vmatprep.subr.mxu0 0.0
      %v2559 = vand.u32 %v81, 4294901760
      %2560 = vmatpush1.msra.mxu0 %v2559
      %2561 = vmatprep.subr.mxu0 0.0
      %v2562 = vand.u32 %v82, 4294901760
      %2563 = vmatpush1.msra.mxu0 %v2562
      %2564 = vmatprep.subr.mxu0 0.0
      %v2565 = vand.u32 %v83, 4294901760
      %2566 = vmatpush1.msra.mxu0 %v2565
      %2567 = vmatprep.subr.mxu0 0.0
      %v2568 = vand.u32 %v84, 4294901760
      %2569 = vmatpush1.msra.mxu0 %v2568
      %2570 = vmatprep.subr.mxu0 0.0
      %v2571 = vand.u32 %v85, 4294901760
      %2572 = vmatpush1.msra.mxu0 %v2571
      %2573 = vmatprep.subr.mxu0 0.0
      %v2574 = vand.u32 %v86, 4294901760
      %2575 = vmatpush1.msra.mxu0 %v2574
      %2576 = vmatprep.subr.mxu0 0.0
      %v2577 = vand.u32 %v87, 4294901760
      %2578 = vmatpush1.msra.mxu0 %v2577
      %2579 = vmatprep.subr.mxu0 0.0
      %v2580 = vand.u32 %v88, 4294901760
      %2581 = vmatpush1.msra.mxu0 %v2580
      %2582 = vmatprep.subr.mxu0 0.0
      %v2583 = vand.u32 %v89, 4294901760
      %2584 = vmatpush1.msra.mxu0 %v2583
      %2585 = vmatprep.subr.mxu0 0.0
      %v2586 = vand.u32 %v90, 4294901760
      %2587 = vmatpush1.msra.mxu0 %v2586
      %2588 = vmatprep.subr.mxu0 0.0
      %v2589 = vand.u32 %v91, 4294901760
      %2590 = vmatpush1.msra.mxu0 %v2589
      %2591 = vmatprep.subr.mxu0 0.0
      %2592 = vmatpush1.msra.mxu0 0.0
      %2593 = vmatprep.subr.mxu0 0.0
      %2594 = vmatpush1.msra.mxu0 0.0
      %2595 = vmatprep.subr.mxu0 0.0
      %2596 = vmatpush1.msra.mxu0 0.0
      %2597 = vmatprep.subr.mxu0 0.0
      %2598 = vmatpush1.msra.mxu0 0.0
      %2599 = vmatprep.subr.mxu0 0.0
      %2600 = vmatpush1.msra.mxu0 0.0
      %2601 = vmatprep.subr.mxu0 0.0
      %2602 = vmatpush1.msra.mxu0 0.0
      %2603 = vmatprep.subr.mxu0 0.0
      %2604 = vmatpush1.msra.mxu0 0.0
      %2605 = vmatprep.subr.mxu0 0.0
      %2606 = vmatpush1.msra.mxu0 0.0
      %2607 = vmatprep.subr.mxu0 0.0
      %2608 = vmatpush1.msra.mxu0 0.0
      %2609 = vmatprep.subr.mxu0 0.0
      %2610 = vmatpush1.msra.mxu0 0.0
      %2611 = vmatprep.subr.mxu0 0.0
      %2612 = vmatpush1.msra.mxu0 0.0
      %2613 = vmatprep.subr.mxu0 0.0
      %2614 = vmatpush1.msra.mxu0 0.0
      %2615 = vmatprep.subr.mxu0 0.0
      %2616 = vmatpush1.msra.mxu0 0.0
      %2617 = vmatprep.subr.mxu0 0.0
      %2618 = vmatpush1.msra.mxu0 0.0
      %2619 = vmatprep.subr.mxu0 0.0
      %2620 = vmatpush1.msra.mxu0 0.0
      %2621 = vmatprep.subr.mxu0 0.0
      %2622 = vmatpush1.msra.mxu0 0.0
      %2623 = vmatprep.mubr.f32.mxu0 0.0
      %v2624 = vand.u32 %v2194, 4294901760
      %v2625 = vsub.f32 %v2194, %v2624
      %v2626 = vand.u32 %v2625, 4294901760
      %2627 = vmatmul.mubr.f32.gmra.mrb[0].mxu0 %v2626
      %v2628 = vpop.f32.mrb[0].mxu0
      %v2629 = vadd.f32 %v2540, %v2628
      %v2630 = vpop.f32.mrb[0].mxu0
      %2631 = vdwg.mxu0
      %2632 = vmatprep.subr.mxu0 0.0
      %v2633 = vand.u32 %v76, 4294901760
      %v2634 = vsub.f32 %v76, %v2633
      %v2635 = vand.u32 %v2634, 4294901760
      %2636 = vmatpush1.msra.mxu0 %v2635
      %2637 = vmatprep.subr.mxu0 0.0
      %v2638 = vand.u32 %v77, 4294901760
      %v2639 = vsub.f32 %v77, %v2638
      %v2640 = vand.u32 %v2639, 4294901760
      %2641 = vmatpush1.msra.mxu0 %v2640
      %2642 = vmatprep.subr.mxu0 0.0
      %v2643 = vand.u32 %v78, 4294901760
      %v2644 = vsub.f32 %v78, %v2643
      %v2645 = vand.u32 %v2644, 4294901760
      %2646 = vmatpush1.msra.mxu0 %v2645
      %2647 = vmatprep.subr.mxu0 0.0
      %v2648 = vand.u32 %v79, 4294901760
      %v2649 = vsub.f32 %v79, %v2648
      %v2650 = vand.u32 %v2649, 4294901760
      %2651 = vmatpush1.msra.mxu0 %v2650
      %2652 = vmatprep.subr.mxu0 0.0
      %v2653 = vand.u32 %v80, 4294901760
      %v2654 = vsub.f32 %v80, %v2653
      %v2655 = vand.u32 %v2654, 4294901760
      %2656 = vmatpush1.msra.mxu0 %v2655
      %2657 = vmatprep.subr.mxu0 0.0
      %v2658 = vand.u32 %v81, 4294901760
      %v2659 = vsub.f32 %v81, %v2658
      %v2660 = vand.u32 %v2659, 4294901760
      %2661 = vmatpush1.msra.mxu0 %v2660
      %2662 = vmatprep.subr.mxu0 0.0
      %v2663 = vand.u32 %v82, 4294901760
      %v2664 = vsub.f32 %v82, %v2663
      %v2665 = vand.u32 %v2664, 4294901760
      %2666 = vmatpush1.msra.mxu0 %v2665
      %2667 = vmatprep.subr.mxu0 0.0
      %v2668 = vand.u32 %v83, 4294901760
      %v2669 = vsub.f32 %v83, %v2668
      %v2670 = vand.u32 %v2669, 4294901760
      %2671 = vmatpush1.msra.mxu0 %v2670
      %2672 = vmatprep.subr.mxu0 0.0
      %v2673 = vand.u32 %v84, 4294901760
      %v2674 = vsub.f32 %v84, %v2673
      %v2675 = vand.u32 %v2674, 4294901760
      %2676 = vmatpush1.msra.mxu0 %v2675
      %2677 = vmatprep.subr.mxu0 0.0
      %v2678 = vand.u32 %v85, 4294901760
      %v2679 = vsub.f32 %v85, %v2678
      %v2680 = vand.u32 %v2679, 4294901760
      %2681 = vmatpush1.msra.mxu0 %v2680
      %2682 = vmatprep.subr.mxu0 0.0
      %v2683 = vand.u32 %v86, 4294901760
      %v2684 = vsub.f32 %v86, %v2683
      %v2685 = vand.u32 %v2684, 4294901760
      %2686 = vmatpush1.msra.mxu0 %v2685
      %2687 = vmatprep.subr.mxu0 0.0
      %v2688 = vand.u32 %v87, 4294901760
      %v2689 = vsub.f32 %v87, %v2688
      %v2690 = vand.u32 %v2689, 4294901760
      %2691 = vmatpush1.msra.mxu0 %v2690
      %2692 = vmatprep.subr.mxu0 0.0
      %v2693 = vand.u32 %v88, 4294901760
      %v2694 = vsub.f32 %v88, %v2693
      %v2695 = vand.u32 %v2694, 4294901760
      %2696 = vmatpush1.msra.mxu0 %v2695
      %2697 = vmatprep.subr.mxu0 0.0
      %v2698 = vand.u32 %v89, 4294901760
      %v2699 = vsub.f32 %v89, %v2698
      %v2700 = vand.u32 %v2699, 4294901760
      %2701 = vmatpush1.msra.mxu0 %v2700
      %2702 = vmatprep.subr.mxu0 0.0
      %v2703 = vand.u32 %v90, 4294901760
      %v2704 = vsub.f32 %v90, %v2703
      %v2705 = vand.u32 %v2704, 4294901760
      %2706 = vmatpush1.msra.mxu0 %v2705
      %2707 = vmatprep.subr.mxu0 0.0
      %v2708 = vand.u32 %v91, 4294901760
      %v2709 = vsub.f32 %v91, %v2708
      %v2710 = vand.u32 %v2709, 4294901760
      %2711 = vmatpush1.msra.mxu0 %v2710
      %2712 = vmatprep.subr.mxu0 0.0
      %2713 = vmatpush1.msra.mxu0 0.0
      %2714 = vmatprep.subr.mxu0 0.0
      %2715 = vmatpush1.msra.mxu0 0.0
      %2716 = vmatprep.subr.mxu0 0.0
      %2717 = vmatpush1.msra.mxu0 0.0
      %2718 = vmatprep.subr.mxu0 0.0
      %2719 = vmatpush1.msra.mxu0 0.0
      %2720 = vmatprep.subr.mxu0 0.0
      %2721 = vmatpush1.msra.mxu0 0.0
      %2722 = vmatprep.subr.mxu0 0.0
      %2723 = vmatpush1.msra.mxu0 0.0
      %2724 = vmatprep.subr.mxu0 0.0
      %2725 = vmatpush1.msra.mxu0 0.0
      %2726 = vmatprep.subr.mxu0 0.0
      %2727 = vmatpush1.msra.mxu0 0.0
      %2728 = vmatprep.subr.mxu0 0.0
      %2729 = vmatpush1.msra.mxu0 0.0
      %2730 = vmatprep.subr.mxu0 0.0
      %2731 = vmatpush1.msra.mxu0 0.0
      %2732 = vmatprep.subr.mxu0 0.0
      %2733 = vmatpush1.msra.mxu0 0.0
      %2734 = vmatprep.subr.mxu0 0.0
      %2735 = vmatpush1.msra.mxu0 0.0
      %2736 = vmatprep.subr.mxu0 0.0
      %2737 = vmatpush1.msra.mxu0 0.0
      %2738 = vmatprep.subr.mxu0 0.0
      %2739 = vmatpush1.msra.mxu0 0.0
      %2740 = vmatprep.subr.mxu0 0.0
      %2741 = vmatpush1.msra.mxu0 0.0
      %2742 = vmatprep.subr.mxu0 0.0
      %2743 = vmatpush1.msra.mxu0 0.0
      %2744 = vmatprep.mubr.f32.mxu0 0.0
      %v2745 = vand.u32 %v2194, 4294901760
      %2746 = vmatmul.mubr.f32.gmra.mrb[0].mxu0 %v2745
      %v2747 = vpop.f32.mrb[0].mxu0
      %v2748 = vadd.f32 %v2629, %v2747
      %v2749 = vpop.f32.mrb[0].mxu0
      %2750 = vdwg.mxu0
      %2751 = vmatprep.subr.mxu0 0.0
      %v2752 = vand.u32 %v76, 4294901760
      %2753 = vmatpush1.msra.mxu0 %v2752
      %2754 = vmatprep.subr.mxu0 0.0
      %v2755 = vand.u32 %v77, 4294901760
      %2756 = vmatpush1.msra.mxu0 %v2755
      %2757 = vmatprep.subr.mxu0 0.0
      %v2758 = vand.u32 %v78, 4294901760
      %2759 = vmatpush1.msra.mxu0 %v2758
      %2760 = vmatprep.subr.mxu0 0.0
      %v2761 = vand.u32 %v79, 4294901760
      %2762 = vmatpush1.msra.mxu0 %v2761
      %2763 = vmatprep.subr.mxu0 0.0
      %v2764 = vand.u32 %v80, 4294901760
      %2765 = vmatpush1.msra.mxu0 %v2764
      %2766 = vmatprep.subr.mxu0 0.0
      %v2767 = vand.u32 %v81, 4294901760
      %2768 = vmatpush1.msra.mxu0 %v2767
      %2769 = vmatprep.subr.mxu0 0.0
      %v2770 = vand.u32 %v82, 4294901760
      %2771 = vmatpush1.msra.mxu0 %v2770
      %2772 = vmatprep.subr.mxu0 0.0
      %v2773 = vand.u32 %v83, 4294901760
      %2774 = vmatpush1.msra.mxu0 %v2773
      %2775 = vmatprep.subr.mxu0 0.0
      %v2776 = vand.u32 %v84, 4294901760
      %2777 = vmatpush1.msra.mxu0 %v2776
      %2778 = vmatprep.subr.mxu0 0.0
      %v2779 = vand.u32 %v85, 4294901760
      %2780 = vmatpush1.msra.mxu0 %v2779
      %2781 = vmatprep.subr.mxu0 0.0
      %v2782 = vand.u32 %v86, 4294901760
      %2783 = vmatpush1.msra.mxu0 %v2782
      %2784 = vmatprep.subr.mxu0 0.0
      %v2785 = vand.u32 %v87, 4294901760
      %2786 = vmatpush1.msra.mxu0 %v2785
      %2787 = vmatprep.subr.mxu0 0.0
      %v2788 = vand.u32 %v88, 4294901760
      %2789 = vmatpush1.msra.mxu0 %v2788
      %2790 = vmatprep.subr.mxu0 0.0
      %v2791 = vand.u32 %v89, 4294901760
      %2792 = vmatpush1.msra.mxu0 %v2791
      %2793 = vmatprep.subr.mxu0 0.0
      %v2794 = vand.u32 %v90, 4294901760
      %2795 = vmatpush1.msra.mxu0 %v2794
      %2796 = vmatprep.subr.mxu0 0.0
      %v2797 = vand.u32 %v91, 4294901760
      %2798 = vmatpush1.msra.mxu0 %v2797
      %2799 = vmatprep.subr.mxu0 0.0
      %2800 = vmatpush1.msra.mxu0 0.0
      %2801 = vmatprep.subr.mxu0 0.0
      %2802 = vmatpush1.msra.mxu0 0.0
      %2803 = vmatprep.subr.mxu0 0.0
      %2804 = vmatpush1.msra.mxu0 0.0
      %2805 = vmatprep.subr.mxu0 0.0
      %2806 = vmatpush1.msra.mxu0 0.0
      %2807 = vmatprep.subr.mxu0 0.0
      %2808 = vmatpush1.msra.mxu0 0.0
      %2809 = vmatprep.subr.mxu0 0.0
      %2810 = vmatpush1.msra.mxu0 0.0
      %2811 = vmatprep.subr.mxu0 0.0
      %2812 = vmatpush1.msra.mxu0 0.0
      %2813 = vmatprep.subr.mxu0 0.0
      %2814 = vmatpush1.msra.mxu0 0.0
      %2815 = vmatprep.subr.mxu0 0.0
      %2816 = vmatpush1.msra.mxu0 0.0
      %2817 = vmatprep.subr.mxu0 0.0
      %2818 = vmatpush1.msra.mxu0 0.0
      %2819 = vmatprep.subr.mxu0 0.0
      %2820 = vmatpush1.msra.mxu0 0.0
      %2821 = vmatprep.subr.mxu0 0.0
      %2822 = vmatpush1.msra.mxu0 0.0
      %2823 = vmatprep.subr.mxu0 0.0
      %2824 = vmatpush1.msra.mxu0 0.0
      %2825 = vmatprep.subr.mxu0 0.0
      %2826 = vmatpush1.msra.mxu0 0.0
      %2827 = vmatprep.subr.mxu0 0.0
      %2828 = vmatpush1.msra.mxu0 0.0
      %2829 = vmatprep.subr.mxu0 0.0
      %2830 = vmatpush1.msra.mxu0 0.0
      %2831 = vmatprep.mubr.f32.mxu0 0.0
      %v2832 = vand.u32 %v2194, 4294901760
      %2833 = vmatmul.mubr.f32.gmra.mrb[0].mxu0 %v2832
      %v2834 = vpop.f32.mrb[0].mxu0
      %v2835 = vadd.f32 %v2748, %v2834
      %v2836 = vpop.f32.mrb[0].mxu0
      %2837 = vdwg.mxu0
      %2838 = vmatprep.subr.mxu0 0.0
      %v2839 = vand.u32 %v92, 4294901760
      %2840 = vmatpush1.msra.mxu0 %v2839
      %2841 = vmatprep.subr.mxu0 0.0
      %v2842 = vand.u32 %v93, 4294901760
      %2843 = vmatpush1.msra.mxu0 %v2842
      %2844 = vmatprep.subr.mxu0 0.0
      %v2845 = vand.u32 %v94, 4294901760
      %2846 = vmatpush1.msra.mxu0 %v2845
      %2847 = vmatprep.subr.mxu0 0.0
      %v2848 = vand.u32 %v95, 4294901760
      %2849 = vmatpush1.msra.mxu0 %v2848
      %2850 = vmatprep.subr.mxu0 0.0
      %v2851 = vand.u32 %v96, 4294901760
      %2852 = vmatpush1.msra.mxu0 %v2851
      %2853 = vmatprep.subr.mxu0 0.0
      %v2854 = vand.u32 %v97, 4294901760
      %2855 = vmatpush1.msra.mxu0 %v2854
      %2856 = vmatprep.subr.mxu0 0.0
      %v2857 = vand.u32 %v98, 4294901760
      %2858 = vmatpush1.msra.mxu0 %v2857
      %2859 = vmatprep.subr.mxu0 0.0
      %v2860 = vand.u32 %v99, 4294901760
      %2861 = vmatpush1.msra.mxu0 %v2860
      %2862 = vmatprep.subr.mxu0 0.0
      %v2863 = vand.u32 %v100, 4294901760
      %2864 = vmatpush1.msra.mxu0 %v2863
      %2865 = vmatprep.subr.mxu0 0.0
      %v2866 = vand.u32 %v101, 4294901760
      %2867 = vmatpush1.msra.mxu0 %v2866
      %2868 = vmatprep.subr.mxu0 0.0
      %v2869 = vand.u32 %v102, 4294901760
      %2870 = vmatpush1.msra.mxu0 %v2869
      %2871 = vmatprep.subr.mxu0 0.0
      %v2872 = vand.u32 %v103, 4294901760
      %2873 = vmatpush1.msra.mxu0 %v2872
      %2874 = vmatprep.subr.mxu0 0.0
      %v2875 = vand.u32 %v104, 4294901760
      %2876 = vmatpush1.msra.mxu0 %v2875
      %2877 = vmatprep.subr.mxu0 0.0
      %v2878 = vand.u32 %v105, 4294901760
      %2879 = vmatpush1.msra.mxu0 %v2878
      %2880 = vmatprep.subr.mxu0 0.0
      %v2881 = vand.u32 %v106, 4294901760
      %2882 = vmatpush1.msra.mxu0 %v2881
      %2883 = vmatprep.subr.mxu0 0.0
      %v2884 = vand.u32 %v107, 4294901760
      %2885 = vmatpush1.msra.mxu0 %v2884
      %2886 = vmatprep.subr.mxu0 0.0
      %2887 = vmatpush1.msra.mxu0 0.0
      %2888 = vmatprep.subr.mxu0 0.0
      %2889 = vmatpush1.msra.mxu0 0.0
      %2890 = vmatprep.subr.mxu0 0.0
      %2891 = vmatpush1.msra.mxu0 0.0
      %2892 = vmatprep.subr.mxu0 0.0
      %2893 = vmatpush1.msra.mxu0 0.0
      %2894 = vmatprep.subr.mxu0 0.0
      %2895 = vmatpush1.msra.mxu0 0.0
      %2896 = vmatprep.subr.mxu0 0.0
      %2897 = vmatpush1.msra.mxu0 0.0
      %2898 = vmatprep.subr.mxu0 0.0
      %2899 = vmatpush1.msra.mxu0 0.0
      %2900 = vmatprep.subr.mxu0 0.0
      %2901 = vmatpush1.msra.mxu0 0.0
      %2902 = vmatprep.subr.mxu0 0.0
      %2903 = vmatpush1.msra.mxu0 0.0
      %2904 = vmatprep.subr.mxu0 0.0
      %2905 = vmatpush1.msra.mxu0 0.0
      %2906 = vmatprep.subr.mxu0 0.0
      %2907 = vmatpush1.msra.mxu0 0.0
      %2908 = vmatprep.subr.mxu0 0.0
      %2909 = vmatpush1.msra.mxu0 0.0
      %2910 = vmatprep.subr.mxu0 0.0
      %2911 = vmatpush1.msra.mxu0 0.0
      %2912 = vmatprep.subr.mxu0 0.0
      %2913 = vmatpush1.msra.mxu0 0.0
      %2914 = vmatprep.subr.mxu0 0.0
      %2915 = vmatpush1.msra.mxu0 0.0
      %2916 = vmatprep.subr.mxu0 0.0
      %2917 = vmatpush1.msra.mxu0 0.0
      %2918 = vmatprep.mubr.f32.mxu0 0.0
      %v2919 = vand.u32 %v2194, 4294901760
      %v2920 = vsub.f32 %v2194, %v2919
      %v2921 = vand.u32 %v2920, 4294901760
      %v2922 = vsub.f32 %v2920, %v2921
      %v2923 = vand.u32 %v2922, 4294901760
      %2924 = vmatmul.mubr.f32.gmra.mrb[0].mxu0 %v2923
      %v2925 = vpop.f32.mrb[0].mxu0
      %v2926 = vadd.f32 0.0, %v2925
      %v2927 = vpop.f32.mrb[0].mxu0
      %2928 = vdwg.mxu0
      %2929 = vmatprep.subr.mxu0 0.0
      %v2930 = vand.u32 %v92, 4294901760
      %v2931 = vsub.f32 %v92, %v2930
      %v2932 = vand.u32 %v2931, 4294901760
      %v2933 = vsub.f32 %v2931, %v2932
      %v2934 = vand.u32 %v2933, 4294901760
      %2935 = vmatpush1.msra.mxu0 %v2934
      %2936 = vmatprep.subr.mxu0 0.0
      %v2937 = vand.u32 %v93, 4294901760
      %v2938 = vsub.f32 %v93, %v2937
      %v2939 = vand.u32 %v2938, 4294901760
      %v2940 = vsub.f32 %v2938, %v2939
      %v2941 = vand.u32 %v2940, 4294901760
      %2942 = vmatpush1.msra.mxu0 %v2941
      %2943 = vmatprep.subr.mxu0 0.0
      %v2944 = vand.u32 %v94, 4294901760
      %v2945 = vsub.f32 %v94, %v2944
      %v2946 = vand.u32 %v2945, 4294901760
      %v2947 = vsub.f32 %v2945, %v2946
      %v2948 = vand.u32 %v2947, 4294901760
      %2949 = vmatpush1.msra.mxu0 %v2948
      %2950 = vmatprep.subr.mxu0 0.0
      %v2951 = vand.u32 %v95, 4294901760
      %v2952 = vsub.f32 %v95, %v2951
      %v2953 = vand.u32 %v2952, 4294901760
      %v2954 = vsub.f32 %v2952, %v2953
      %v2955 = vand.u32 %v2954, 4294901760
      %2956 = vmatpush1.msra.mxu0 %v2955
      %2957 = vmatprep.subr.mxu0 0.0
      %v2958 = vand.u32 %v96, 4294901760
      %v2959 = vsub.f32 %v96, %v2958
      %v2960 = vand.u32 %v2959, 4294901760
      %v2961 = vsub.f32 %v2959, %v2960
      %v2962 = vand.u32 %v2961, 4294901760
      %2963 = vmatpush1.msra.mxu0 %v2962
      %2964 = vmatprep.subr.mxu0 0.0
      %v2965 = vand.u32 %v97, 4294901760
      %v2966 = vsub.f32 %v97, %v2965
      %v2967 = vand.u32 %v2966, 4294901760
      %v2968 = vsub.f32 %v2966, %v2967
      %v2969 = vand.u32 %v2968, 4294901760
      %2970 = vmatpush1.msra.mxu0 %v2969
      %2971 = vmatprep.subr.mxu0 0.0
      %v2972 = vand.u32 %v98, 4294901760
      %v2973 = vsub.f32 %v98, %v2972
      %v2974 = vand.u32 %v2973, 4294901760
      %v2975 = vsub.f32 %v2973, %v2974
      %v2976 = vand.u32 %v2975, 4294901760
      %2977 = vmatpush1.msra.mxu0 %v2976
      %2978 = vmatprep.subr.mxu0 0.0
      %v2979 = vand.u32 %v99, 4294901760
      %v2980 = vsub.f32 %v99, %v2979
      %v2981 = vand.u32 %v2980, 4294901760
      %v2982 = vsub.f32 %v2980, %v2981
      %v2983 = vand.u32 %v2982, 4294901760
      %2984 = vmatpush1.msra.mxu0 %v2983
      %2985 = vmatprep.subr.mxu0 0.0
      %v2986 = vand.u32 %v100, 4294901760
      %v2987 = vsub.f32 %v100, %v2986
      %v2988 = vand.u32 %v2987, 4294901760
      %v2989 = vsub.f32 %v2987, %v2988
      %v2990 = vand.u32 %v2989, 4294901760
      %2991 = vmatpush1.msra.mxu0 %v2990
      %2992 = vmatprep.subr.mxu0 0.0
      %v2993 = vand.u32 %v101, 4294901760
      %v2994 = vsub.f32 %v101, %v2993
      %v2995 = vand.u32 %v2994, 4294901760
      %v2996 = vsub.f32 %v2994, %v2995
      %v2997 = vand.u32 %v2996, 4294901760
      %2998 = vmatpush1.msra.mxu0 %v2997
      %2999 = vmatprep.subr.mxu0 0.0
      %v3000 = vand.u32 %v102, 4294901760
      %v3001 = vsub.f32 %v102, %v3000
      %v3002 = vand.u32 %v3001, 4294901760
      %v3003 = vsub.f32 %v3001, %v3002
      %v3004 = vand.u32 %v3003, 4294901760
      %3005 = vmatpush1.msra.mxu0 %v3004
      %3006 = vmatprep.subr.mxu0 0.0
      %v3007 = vand.u32 %v103, 4294901760
      %v3008 = vsub.f32 %v103, %v3007
      %v3009 = vand.u32 %v3008, 4294901760
      %v3010 = vsub.f32 %v3008, %v3009
      %v3011 = vand.u32 %v3010, 4294901760
      %3012 = vmatpush1.msra.mxu0 %v3011
      %3013 = vmatprep.subr.mxu0 0.0
      %v3014 = vand.u32 %v104, 4294901760
      %v3015 = vsub.f32 %v104, %v3014
      %v3016 = vand.u32 %v3015, 4294901760
      %v3017 = vsub.f32 %v3015, %v3016
      %v3018 = vand.u32 %v3017, 4294901760
      %3019 = vmatpush1.msra.mxu0 %v3018
      %3020 = vmatprep.subr.mxu0 0.0
      %v3021 = vand.u32 %v105, 4294901760
      %v3022 = vsub.f32 %v105, %v3021
      %v3023 = vand.u32 %v3022, 4294901760
      %v3024 = vsub.f32 %v3022, %v3023
      %v3025 = vand.u32 %v3024, 4294901760
      %3026 = vmatpush1.msra.mxu0 %v3025
      %3027 = vmatprep.subr.mxu0 0.0
      %v3028 = vand.u32 %v106, 4294901760
      %v3029 = vsub.f32 %v106, %v3028
      %v3030 = vand.u32 %v3029, 4294901760
      %v3031 = vsub.f32 %v3029, %v3030
      %v3032 = vand.u32 %v3031, 4294901760
      %3033 = vmatpush1.msra.mxu0 %v3032
      %3034 = vmatprep.subr.mxu0 0.0
      %v3035 = vand.u32 %v107, 4294901760
      %v3036 = vsub.f32 %v107, %v3035
      %v3037 = vand.u32 %v3036, 4294901760
      %v3038 = vsub.f32 %v3036, %v3037
      %v3039 = vand.u32 %v3038, 4294901760
      %3040 = vmatpush1.msra.mxu0 %v3039
      %3041 = vmatprep.subr.mxu0 0.0
      %3042 = vmatpush1.msra.mxu0 0.0
      %3043 = vmatprep.subr.mxu0 0.0
      %3044 = vmatpush1.msra.mxu0 0.0
      %3045 = vmatprep.subr.mxu0 0.0
      %3046 = vmatpush1.msra.mxu0 0.0
      %3047 = vmatprep.subr.mxu0 0.0
      %3048 = vmatpush1.msra.mxu0 0.0
      %3049 = vmatprep.subr.mxu0 0.0
      %3050 = vmatpush1.msra.mxu0 0.0
      %3051 = vmatprep.subr.mxu0 0.0
      %3052 = vmatpush1.msra.mxu0 0.0
      %3053 = vmatprep.subr.mxu0 0.0
      %3054 = vmatpush1.msra.mxu0 0.0
      %3055 = vmatprep.subr.mxu0 0.0
      %3056 = vmatpush1.msra.mxu0 0.0
      %3057 = vmatprep.subr.mxu0 0.0
      %3058 = vmatpush1.msra.mxu0 0.0
      %3059 = vmatprep.subr.mxu0 0.0
      %3060 = vmatpush1.msra.mxu0 0.0
      %3061 = vmatprep.subr.mxu0 0.0
      %3062 = vmatpush1.msra.mxu0 0.0
      %3063 = vmatprep.subr.mxu0 0.0
      %3064 = vmatpush1.msra.mxu0 0.0
      %3065 = vmatprep.subr.mxu0 0.0
      %3066 = vmatpush1.msra.mxu0 0.0
      %3067 = vmatprep.subr.mxu0 0.0
      %3068 = vmatpush1.msra.mxu0 0.0
      %3069 = vmatprep.subr.mxu0 0.0
      %3070 = vmatpush1.msra.mxu0 0.0
      %3071 = vmatprep.subr.mxu0 0.0
      %3072 = vmatpush1.msra.mxu0 0.0
      %3073 = vmatprep.mubr.f32.mxu0 0.0
      %v3074 = vand.u32 %v2194, 4294901760
      %3075 = vmatmul.mubr.f32.gmra.mrb[0].mxu0 %v3074
      %v3076 = vpop.f32.mrb[0].mxu0
      %v3077 = vadd.f32 %v2926, %v3076
      %v3078 = vpop.f32.mrb[0].mxu0
      %3079 = vdwg.mxu0
      %3080 = vmatprep.subr.mxu0 0.0
      %v3081 = vand.u32 %v92, 4294901760
      %v3082 = vsub.f32 %v92, %v3081
      %3083 = vmatpush1.msra.mxu0 %v3082
      %3084 = vmatprep.subr.mxu0 0.0
      %v3085 = vand.u32 %v93, 4294901760
      %v3086 = vsub.f32 %v93, %v3085
      %3087 = vmatpush1.msra.mxu0 %v3086
      %3088 = vmatprep.subr.mxu0 0.0
      %v3089 = vand.u32 %v94, 4294901760
      %v3090 = vsub.f32 %v94, %v3089
      %3091 = vmatpush1.msra.mxu0 %v3090
      %3092 = vmatprep.subr.mxu0 0.0
      %v3093 = vand.u32 %v95, 4294901760
      %v3094 = vsub.f32 %v95, %v3093
      %3095 = vmatpush1.msra.mxu0 %v3094
      %3096 = vmatprep.subr.mxu0 0.0
      %v3097 = vand.u32 %v96, 4294901760
      %v3098 = vsub.f32 %v96, %v3097
      %3099 = vmatpush1.msra.mxu0 %v3098
      %3100 = vmatprep.subr.mxu0 0.0
      %v3101 = vand.u32 %v97, 4294901760
      %v3102 = vsub.f32 %v97, %v3101
      %3103 = vmatpush1.msra.mxu0 %v3102
      %3104 = vmatprep.subr.mxu0 0.0
      %v3105 = vand.u32 %v98, 4294901760
      %v3106 = vsub.f32 %v98, %v3105
      %3107 = vmatpush1.msra.mxu0 %v3106
      %3108 = vmatprep.subr.mxu0 0.0
      %v3109 = vand.u32 %v99, 4294901760
      %v3110 = vsub.f32 %v99, %v3109
      %3111 = vmatpush1.msra.mxu0 %v3110
      %3112 = vmatprep.subr.mxu0 0.0
      %v3113 = vand.u32 %v100, 4294901760
      %v3114 = vsub.f32 %v100, %v3113
      %3115 = vmatpush1.msra.mxu0 %v3114
      %3116 = vmatprep.subr.mxu0 0.0
      %v3117 = vand.u32 %v101, 4294901760
      %v3118 = vsub.f32 %v101, %v3117
      %3119 = vmatpush1.msra.mxu0 %v3118
      %3120 = vmatprep.subr.mxu0 0.0
      %v3121 = vand.u32 %v102, 4294901760
      %v3122 = vsub.f32 %v102, %v3121
      %3123 = vmatpush1.msra.mxu0 %v3122
      %3124 = vmatprep.subr.mxu0 0.0
      %v3125 = vand.u32 %v103, 4294901760
      %v3126 = vsub.f32 %v103, %v3125
      %3127 = vmatpush1.msra.mxu0 %v3126
      %3128 = vmatprep.subr.mxu0 0.0
      %v3129 = vand.u32 %v104, 4294901760
      %v3130 = vsub.f32 %v104, %v3129
      %3131 = vmatpush1.msra.mxu0 %v3130
      %3132 = vmatprep.subr.mxu0 0.0
      %v3133 = vand.u32 %v105, 4294901760
      %v3134 = vsub.f32 %v105, %v3133
      %3135 = vmatpush1.msra.mxu0 %v3134
      %3136 = vmatprep.subr.mxu0 0.0
      %v3137 = vand.u32 %v106, 4294901760
      %v3138 = vsub.f32 %v106, %v3137
      %3139 = vmatpush1.msra.mxu0 %v3138
      %3140 = vmatprep.subr.mxu0 0.0
      %v3141 = vand.u32 %v107, 4294901760
      %v3142 = vsub.f32 %v107, %v3141
      %3143 = vmatpush1.msra.mxu0 %v3142
      %3144 = vmatprep.subr.mxu0 0.0
      %3145 = vmatpush1.msra.mxu0 0.0
      %3146 = vmatprep.subr.mxu0 0.0
      %3147 = vmatpush1.msra.mxu0 0.0
      %3148 = vmatprep.subr.mxu0 0.0
      %3149 = vmatpush1.msra.mxu0 0.0
      %3150 = vmatprep.subr.mxu0 0.0
      %3151 = vmatpush1.msra.mxu0 0.0
      %3152 = vmatprep.subr.mxu0 0.0
      %3153 = vmatpush1.msra.mxu0 0.0
      %3154 = vmatprep.subr.mxu0 0.0
      %3155 = vmatpush1.msra.mxu0 0.0
      %3156 = vmatprep.subr.mxu0 0.0
      %3157 = vmatpush1.msra.mxu0 0.0
      %3158 = vmatprep.subr.mxu0 0.0
      %3159 = vmatpush1.msra.mxu0 0.0
      %3160 = vmatprep.subr.mxu0 0.0
      %3161 = vmatpush1.msra.mxu0 0.0
      %3162 = vmatprep.subr.mxu0 0.0
      %3163 = vmatpush1.msra.mxu0 0.0
      %3164 = vmatprep.subr.mxu0 0.0
      %3165 = vmatpush1.msra.mxu0 0.0
      %3166 = vmatprep.subr.mxu0 0.0
      %3167 = vmatpush1.msra.mxu0 0.0
      %3168 = vmatprep.subr.mxu0 0.0
      %3169 = vmatpush1.msra.mxu0 0.0
      %3170 = vmatprep.subr.mxu0 0.0
      %3171 = vmatpush1.msra.mxu0 0.0
      %3172 = vmatprep.subr.mxu0 0.0
      %3173 = vmatpush1.msra.mxu0 0.0
      %3174 = vmatprep.subr.mxu0 0.0
      %3175 = vmatpush1.msra.mxu0 0.0
      %3176 = vmatprep.mubr.f32.mxu0 0.0
      %v3177 = vand.u32 %v2194, 4294901760
      %v3178 = vsub.f32 %v2194, %v3177
      %3179 = vmatmul.mubr.f32.gmra.mrb[0].mxu0 %v3178
      %v3180 = vpop.f32.mrb[0].mxu0
      %v3181 = vadd.f32 %v3077, %v3180
      %v3182 = vpop.f32.mrb[0].mxu0
      %3183 = vdwg.mxu0
      %3184 = vmatprep.subr.mxu0 0.0
      %v3185 = vand.u32 %v92, 4294901760
      %3186 = vmatpush1.msra.mxu0 %v3185
      %3187 = vmatprep.subr.mxu0 0.0
      %v3188 = vand.u32 %v93, 4294901760
      %3189 = vmatpush1.msra.mxu0 %v3188
      %3190 = vmatprep.subr.mxu0 0.0
      %v3191 = vand.u32 %v94, 4294901760
      %3192 = vmatpush1.msra.mxu0 %v3191
      %3193 = vmatprep.subr.mxu0 0.0
      %v3194 = vand.u32 %v95, 4294901760
      %3195 = vmatpush1.msra.mxu0 %v3194
      %3196 = vmatprep.subr.mxu0 0.0
      %v3197 = vand.u32 %v96, 4294901760
      %3198 = vmatpush1.msra.mxu0 %v3197
      %3199 = vmatprep.subr.mxu0 0.0
      %v3200 = vand.u32 %v97, 4294901760
      %3201 = vmatpush1.msra.mxu0 %v3200
      %3202 = vmatprep.subr.mxu0 0.0
      %v3203 = vand.u32 %v98, 4294901760
      %3204 = vmatpush1.msra.mxu0 %v3203
      %3205 = vmatprep.subr.mxu0 0.0
      %v3206 = vand.u32 %v99, 4294901760
      %3207 = vmatpush1.msra.mxu0 %v3206
      %3208 = vmatprep.subr.mxu0 0.0
      %v3209 = vand.u32 %v100, 4294901760
      %3210 = vmatpush1.msra.mxu0 %v3209
      %3211 = vmatprep.subr.mxu0 0.0
      %v3212 = vand.u32 %v101, 4294901760
      %3213 = vmatpush1.msra.mxu0 %v3212
      %3214 = vmatprep.subr.mxu0 0.0
      %v3215 = vand.u32 %v102, 4294901760
      %3216 = vmatpush1.msra.mxu0 %v3215
      %3217 = vmatprep.subr.mxu0 0.0
      %v3218 = vand.u32 %v103, 4294901760
      %3219 = vmatpush1.msra.mxu0 %v3218
      %3220 = vmatprep.subr.mxu0 0.0
      %v3221 = vand.u32 %v104, 4294901760
      %3222 = vmatpush1.msra.mxu0 %v3221
      %3223 = vmatprep.subr.mxu0 0.0
      %v3224 = vand.u32 %v105, 4294901760
      %3225 = vmatpush1.msra.mxu0 %v3224
      %3226 = vmatprep.subr.mxu0 0.0
      %v3227 = vand.u32 %v106, 4294901760
      %3228 = vmatpush1.msra.mxu0 %v3227
      %3229 = vmatprep.subr.mxu0 0.0
      %v3230 = vand.u32 %v107, 4294901760
      %3231 = vmatpush1.msra.mxu0 %v3230
      %3232 = vmatprep.subr.mxu0 0.0
      %3233 = vmatpush1.msra.mxu0 0.0
      %3234 = vmatprep.subr.mxu0 0.0
      %3235 = vmatpush1.msra.mxu0 0.0
      %3236 = vmatprep.subr.mxu0 0.0
      %3237 = vmatpush1.msra.mxu0 0.0
      %3238 = vmatprep.subr.mxu0 0.0
      %3239 = vmatpush1.msra.mxu0 0.0
      %3240 = vmatprep.subr.mxu0 0.0
      %3241 = vmatpush1.msra.mxu0 0.0
      %3242 = vmatprep.subr.mxu0 0.0
      %3243 = vmatpush1.msra.mxu0 0.0
      %3244 = vmatprep.subr.mxu0 0.0
      %3245 = vmatpush1.msra.mxu0 0.0
      %3246 = vmatprep.subr.mxu0 0.0
      %3247 = vmatpush1.msra.mxu0 0.0
      %3248 = vmatprep.subr.mxu0 0.0
      %3249 = vmatpush1.msra.mxu0 0.0
      %3250 = vmatprep.subr.mxu0 0.0
      %3251 = vmatpush1.msra.mxu0 0.0
      %3252 = vmatprep.subr.mxu0 0.0
      %3253 = vmatpush1.msra.mxu0 0.0
      %3254 = vmatprep.subr.mxu0 0.0
      %3255 = vmatpush1.msra.mxu0 0.0
      %3256 = vmatprep.subr.mxu0 0.0
      %3257 = vmatpush1.msra.mxu0 0.0
      %3258 = vmatprep.subr.mxu0 0.0
      %3259 = vmatpush1.msra.mxu0 0.0
      %3260 = vmatprep.subr.mxu0 0.0
      %3261 = vmatpush1.msra.mxu0 0.0
      %3262 = vmatprep.subr.mxu0 0.0
      %3263 = vmatpush1.msra.mxu0 0.0
      %3264 = vmatprep.mubr.f32.mxu0 0.0
      %v3265 = vand.u32 %v2194, 4294901760
      %v3266 = vsub.f32 %v2194, %v3265
      %v3267 = vand.u32 %v3266, 4294901760
      %3268 = vmatmul.mubr.f32.gmra.mrb[0].mxu0 %v3267
      %v3269 = vpop.f32.mrb[0].mxu0
      %v3270 = vadd.f32 %v3181, %v3269
      %v3271 = vpop.f32.mrb[0].mxu0
      %3272 = vdwg.mxu0
      %3273 = vmatprep.subr.mxu0 0.0
      %v3274 = vand.u32 %v92, 4294901760
      %v3275 = vsub.f32 %v92, %v3274
      %v3276 = vand.u32 %v3275, 4294901760
      %3277 = vmatpush1.msra.mxu0 %v3276
      %3278 = vmatprep.subr.mxu0 0.0
      %v3279 = vand.u32 %v93, 4294901760
      %v3280 = vsub.f32 %v93, %v3279
      %v3281 = vand.u32 %v3280, 4294901760
      %3282 = vmatpush1.msra.mxu0 %v3281
      %3283 = vmatprep.subr.mxu0 0.0
      %v3284 = vand.u32 %v94, 4294901760
      %v3285 = vsub.f32 %v94, %v3284
      %v3286 = vand.u32 %v3285, 4294901760
      %3287 = vmatpush1.msra.mxu0 %v3286
      %3288 = vmatprep.subr.mxu0 0.0
      %v3289 = vand.u32 %v95, 4294901760
      %v3290 = vsub.f32 %v95, %v3289
      %v3291 = vand.u32 %v3290, 4294901760
      %3292 = vmatpush1.msra.mxu0 %v3291
      %3293 = vmatprep.subr.mxu0 0.0
      %v3294 = vand.u32 %v96, 4294901760
      %v3295 = vsub.f32 %v96, %v3294
      %v3296 = vand.u32 %v3295, 4294901760
      %3297 = vmatpush1.msra.mxu0 %v3296
      %3298 = vmatprep.subr.mxu0 0.0
      %v3299 = vand.u32 %v97, 4294901760
      %v3300 = vsub.f32 %v97, %v3299
      %v3301 = vand.u32 %v3300, 4294901760
      %3302 = vmatpush1.msra.mxu0 %v3301
      %3303 = vmatprep.subr.mxu0 0.0
      %v3304 = vand.u32 %v98, 4294901760
      %v3305 = vsub.f32 %v98, %v3304
      %v3306 = vand.u32 %v3305, 4294901760
      %3307 = vmatpush1.msra.mxu0 %v3306
      %3308 = vmatprep.subr.mxu0 0.0
      %v3309 = vand.u32 %v99, 4294901760
      %v3310 = vsub.f32 %v99, %v3309
      %v3311 = vand.u32 %v3310, 4294901760
      %3312 = vmatpush1.msra.mxu0 %v3311
      %3313 = vmatprep.subr.mxu0 0.0
      %v3314 = vand.u32 %v100, 4294901760
      %v3315 = vsub.f32 %v100, %v3314
      %v3316 = vand.u32 %v3315, 4294901760
      %3317 = vmatpush1.msra.mxu0 %v3316
      %3318 = vmatprep.subr.mxu0 0.0
      %v3319 = vand.u32 %v101, 4294901760
      %v3320 = vsub.f32 %v101, %v3319
      %v3321 = vand.u32 %v3320, 4294901760
      %3322 = vmatpush1.msra.mxu0 %v3321
      %3323 = vmatprep.subr.mxu0 0.0
      %v3324 = vand.u32 %v102, 4294901760
      %v3325 = vsub.f32 %v102, %v3324
      %v3326 = vand.u32 %v3325, 4294901760
      %3327 = vmatpush1.msra.mxu0 %v3326
      %3328 = vmatprep.subr.mxu0 0.0
      %v3329 = vand.u32 %v103, 4294901760
      %v3330 = vsub.f32 %v103, %v3329
      %v3331 = vand.u32 %v3330, 4294901760
      %3332 = vmatpush1.msra.mxu0 %v3331
      %3333 = vmatprep.subr.mxu0 0.0
      %v3334 = vand.u32 %v104, 4294901760
      %v3335 = vsub.f32 %v104, %v3334
      %v3336 = vand.u32 %v3335, 4294901760
      %3337 = vmatpush1.msra.mxu0 %v3336
      %3338 = vmatprep.subr.mxu0 0.0
      %v3339 = vand.u32 %v105, 4294901760
      %v3340 = vsub.f32 %v105, %v3339
      %v3341 = vand.u32 %v3340, 4294901760
      %3342 = vmatpush1.msra.mxu0 %v3341
      %3343 = vmatprep.subr.mxu0 0.0
      %v3344 = vand.u32 %v106, 4294901760
      %v3345 = vsub.f32 %v106, %v3344
      %v3346 = vand.u32 %v3345, 4294901760
      %3347 = vmatpush1.msra.mxu0 %v3346
      %3348 = vmatprep.subr.mxu0 0.0
      %v3349 = vand.u32 %v107, 4294901760
      %v3350 = vsub.f32 %v107, %v3349
      %v3351 = vand.u32 %v3350, 4294901760
      %3352 = vmatpush1.msra.mxu0 %v3351
      %3353 = vmatprep.subr.mxu0 0.0
      %3354 = vmatpush1.msra.mxu0 0.0
      %3355 = vmatprep.subr.mxu0 0.0
      %3356 = vmatpush1.msra.mxu0 0.0
      %3357 = vmatprep.subr.mxu0 0.0
      %3358 = vmatpush1.msra.mxu0 0.0
      %3359 = vmatprep.subr.mxu0 0.0
      %3360 = vmatpush1.msra.mxu0 0.0
      %3361 = vmatprep.subr.mxu0 0.0
      %3362 = vmatpush1.msra.mxu0 0.0
      %3363 = vmatprep.subr.mxu0 0.0
      %3364 = vmatpush1.msra.mxu0 0.0
      %3365 = vmatprep.subr.mxu0 0.0
      %3366 = vmatpush1.msra.mxu0 0.0
      %3367 = vmatprep.subr.mxu0 0.0
      %3368 = vmatpush1.msra.mxu0 0.0
      %3369 = vmatprep.subr.mxu0 0.0
      %3370 = vmatpush1.msra.mxu0 0.0
      %3371 = vmatprep.subr.mxu0 0.0
      %3372 = vmatpush1.msra.mxu0 0.0
      %3373 = vmatprep.subr.mxu0 0.0
      %3374 = vmatpush1.msra.mxu0 0.0
      %3375 = vmatprep.subr.mxu0 0.0
      %3376 = vmatpush1.msra.mxu0 0.0
      %3377 = vmatprep.subr.mxu0 0.0
      %3378 = vmatpush1.msra.mxu0 0.0
      %3379 = vmatprep.subr.mxu0 0.0
      %3380 = vmatpush1.msra.mxu0 0.0
      %3381 = vmatprep.subr.mxu0 0.0
      %3382 = vmatpush1.msra.mxu0 0.0
      %3383 = vmatprep.subr.mxu0 0.0
      %3384 = vmatpush1.msra.mxu0 0.0
      %3385 = vmatprep.mubr.f32.mxu0 0.0
      %v3386 = vand.u32 %v2194, 4294901760
      %3387 = vmatmul.mubr.f32.gmra.mrb[0].mxu0 %v3386
      %v3388 = vpop.f32.mrb[0].mxu0
      %v3389 = vadd.f32 %v3270, %v3388
      %v3390 = vpop.f32.mrb[0].mxu0
      %3391 = vdwg.mxu0
      %3392 = vmatprep.subr.mxu0 0.0
      %v3393 = vand.u32 %v92, 4294901760
      %3394 = vmatpush1.msra.mxu0 %v3393
      %3395 = vmatprep.subr.mxu0 0.0
      %v3396 = vand.u32 %v93, 4294901760
      %3397 = vmatpush1.msra.mxu0 %v3396
      %3398 = vmatprep.subr.mxu0 0.0
      %v3399 = vand.u32 %v94, 4294901760
      %3400 = vmatpush1.msra.mxu0 %v3399
      %3401 = vmatprep.subr.mxu0 0.0
      %v3402 = vand.u32 %v95, 4294901760
      %3403 = vmatpush1.msra.mxu0 %v3402
      %3404 = vmatprep.subr.mxu0 0.0
      %v3405 = vand.u32 %v96, 4294901760
      %3406 = vmatpush1.msra.mxu0 %v3405
      %3407 = vmatprep.subr.mxu0 0.0
      %v3408 = vand.u32 %v97, 4294901760
      %3409 = vmatpush1.msra.mxu0 %v3408
      %3410 = vmatprep.subr.mxu0 0.0
      %v3411 = vand.u32 %v98, 4294901760
      %3412 = vmatpush1.msra.mxu0 %v3411
      %3413 = vmatprep.subr.mxu0 0.0
      %v3414 = vand.u32 %v99, 4294901760
      %3415 = vmatpush1.msra.mxu0 %v3414
      %3416 = vmatprep.subr.mxu0 0.0
      %v3417 = vand.u32 %v100, 4294901760
      %3418 = vmatpush1.msra.mxu0 %v3417
      %3419 = vmatprep.subr.mxu0 0.0
      %v3420 = vand.u32 %v101, 4294901760
      %3421 = vmatpush1.msra.mxu0 %v3420
      %3422 = vmatprep.subr.mxu0 0.0
      %v3423 = vand.u32 %v102, 4294901760
      %3424 = vmatpush1.msra.mxu0 %v3423
      %3425 = vmatprep.subr.mxu0 0.0
      %v3426 = vand.u32 %v103, 4294901760
      %3427 = vmatpush1.msra.mxu0 %v3426
      %3428 = vmatprep.subr.mxu0 0.0
      %v3429 = vand.u32 %v104, 4294901760
      %3430 = vmatpush1.msra.mxu0 %v3429
      %3431 = vmatprep.subr.mxu0 0.0
      %v3432 = vand.u32 %v105, 4294901760
      %3433 = vmatpush1.msra.mxu0 %v3432
      %3434 = vmatprep.subr.mxu0 0.0
      %v3435 = vand.u32 %v106, 4294901760
      %3436 = vmatpush1.msra.mxu0 %v3435
      %3437 = vmatprep.subr.mxu0 0.0
      %v3438 = vand.u32 %v107, 4294901760
      %3439 = vmatpush1.msra.mxu0 %v3438
      %3440 = vmatprep.subr.mxu0 0.0
      %3441 = vmatpush1.msra.mxu0 0.0
      %3442 = vmatprep.subr.mxu0 0.0
      %3443 = vmatpush1.msra.mxu0 0.0
      %3444 = vmatprep.subr.mxu0 0.0
      %3445 = vmatpush1.msra.mxu0 0.0
      %3446 = vmatprep.subr.mxu0 0.0
      %3447 = vmatpush1.msra.mxu0 0.0
      %3448 = vmatprep.subr.mxu0 0.0
      %3449 = vmatpush1.msra.mxu0 0.0
      %3450 = vmatprep.subr.mxu0 0.0
      %3451 = vmatpush1.msra.mxu0 0.0
      %3452 = vmatprep.subr.mxu0 0.0
      %3453 = vmatpush1.msra.mxu0 0.0
      %3454 = vmatprep.subr.mxu0 0.0
      %3455 = vmatpush1.msra.mxu0 0.0
      %3456 = vmatprep.subr.mxu0 0.0
      %3457 = vmatpush1.msra.mxu0 0.0
      %3458 = vmatprep.subr.mxu0 0.0
      %3459 = vmatpush1.msra.mxu0 0.0
      %3460 = vmatprep.subr.mxu0 0.0
      %3461 = vmatpush1.msra.mxu0 0.0
      %3462 = vmatprep.subr.mxu0 0.0
      %3463 = vmatpush1.msra.mxu0 0.0
      %3464 = vmatprep.subr.mxu0 0.0
      %3465 = vmatpush1.msra.mxu0 0.0
      %3466 = vmatprep.subr.mxu0 0.0
      %3467 = vmatpush1.msra.mxu0 0.0
      %3468 = vmatprep.subr.mxu0 0.0
      %3469 = vmatpush1.msra.mxu0 0.0
      %3470 = vmatprep.subr.mxu0 0.0
      %3471 = vmatpush1.msra.mxu0 0.0
      %3472 = vmatprep.mubr.f32.mxu0 0.0
      %v3473 = vand.u32 %v2194, 4294901760
      %3474 = vmatmul.mubr.f32.gmra.mrb[0].mxu0 %v3473
      %v3475 = vpop.f32.mrb[0].mxu0
      %v3476 = vadd.f32 %v3389, %v3475
      %v3477 = vpop.f32.mrb[0].mxu0
      %3478 = vdwg.mxu0
      %3479 = vmatprep.subr.mxu0 0.0
      %v3480 = vand.u32 %v76, 4294901760
      %3481 = vmatpush1.msra.mxu0 %v3480
      %3482 = vmatprep.subr.mxu0 0.0
      %v3483 = vand.u32 %v77, 4294901760
      %3484 = vmatpush1.msra.mxu0 %v3483
      %3485 = vmatprep.subr.mxu0 0.0
      %v3486 = vand.u32 %v78, 4294901760
      %3487 = vmatpush1.msra.mxu0 %v3486
      %3488 = vmatprep.subr.mxu0 0.0
      %v3489 = vand.u32 %v79, 4294901760
      %3490 = vmatpush1.msra.mxu0 %v3489
      %3491 = vmatprep.subr.mxu0 0.0
      %v3492 = vand.u32 %v80, 4294901760
      %3493 = vmatpush1.msra.mxu0 %v3492
      %3494 = vmatprep.subr.mxu0 0.0
      %v3495 = vand.u32 %v81, 4294901760
      %3496 = vmatpush1.msra.mxu0 %v3495
      %3497 = vmatprep.subr.mxu0 0.0
      %v3498 = vand.u32 %v82, 4294901760
      %3499 = vmatpush1.msra.mxu0 %v3498
      %3500 = vmatprep.subr.mxu0 0.0
      %v3501 = vand.u32 %v83, 4294901760
      %3502 = vmatpush1.msra.mxu0 %v3501
      %3503 = vmatprep.subr.mxu0 0.0
      %v3504 = vand.u32 %v84, 4294901760
      %3505 = vmatpush1.msra.mxu0 %v3504
      %3506 = vmatprep.subr.mxu0 0.0
      %v3507 = vand.u32 %v85, 4294901760
      %3508 = vmatpush1.msra.mxu0 %v3507
      %3509 = vmatprep.subr.mxu0 0.0
      %v3510 = vand.u32 %v86, 4294901760
      %3511 = vmatpush1.msra.mxu0 %v3510
      %3512 = vmatprep.subr.mxu0 0.0
      %v3513 = vand.u32 %v87, 4294901760
      %3514 = vmatpush1.msra.mxu0 %v3513
      %3515 = vmatprep.subr.mxu0 0.0
      %v3516 = vand.u32 %v88, 4294901760
      %3517 = vmatpush1.msra.mxu0 %v3516
      %3518 = vmatprep.subr.mxu0 0.0
      %v3519 = vand.u32 %v89, 4294901760
      %3520 = vmatpush1.msra.mxu0 %v3519
      %3521 = vmatprep.subr.mxu0 0.0
      %v3522 = vand.u32 %v90, 4294901760
      %3523 = vmatpush1.msra.mxu0 %v3522
      %3524 = vmatprep.subr.mxu0 0.0
      %v3525 = vand.u32 %v91, 4294901760
      %3526 = vmatpush1.msra.mxu0 %v3525
      %3527 = vmatprep.subr.mxu0 0.0
      %3528 = vmatpush1.msra.mxu0 0.0
      %3529 = vmatprep.subr.mxu0 0.0
      %3530 = vmatpush1.msra.mxu0 0.0
      %3531 = vmatprep.subr.mxu0 0.0
      %3532 = vmatpush1.msra.mxu0 0.0
      %3533 = vmatprep.subr.mxu0 0.0
      %3534 = vmatpush1.msra.mxu0 0.0
      %3535 = vmatprep.subr.mxu0 0.0
      %3536 = vmatpush1.msra.mxu0 0.0
      %3537 = vmatprep.subr.mxu0 0.0
      %3538 = vmatpush1.msra.mxu0 0.0
      %3539 = vmatprep.subr.mxu0 0.0
      %3540 = vmatpush1.msra.mxu0 0.0
      %3541 = vmatprep.subr.mxu0 0.0
      %3542 = vmatpush1.msra.mxu0 0.0
      %3543 = vmatprep.subr.mxu0 0.0
      %3544 = vmatpush1.msra.mxu0 0.0
      %3545 = vmatprep.subr.mxu0 0.0
      %3546 = vmatpush1.msra.mxu0 0.0
      %3547 = vmatprep.subr.mxu0 0.0
      %3548 = vmatpush1.msra.mxu0 0.0
      %3549 = vmatprep.subr.mxu0 0.0
      %3550 = vmatpush1.msra.mxu0 0.0
      %3551 = vmatprep.subr.mxu0 0.0
      %3552 = vmatpush1.msra.mxu0 0.0
      %3553 = vmatprep.subr.mxu0 0.0
      %3554 = vmatpush1.msra.mxu0 0.0
      %3555 = vmatprep.subr.mxu0 0.0
      %3556 = vmatpush1.msra.mxu0 0.0
      %3557 = vmatprep.subr.mxu0 0.0
      %3558 = vmatpush1.msra.mxu0 0.0
      %3559 = vmatprep.mubr.f32.mxu0 0.0
      %v3560 = vand.u32 %v1553, 4294901760
      %v3561 = vsub.f32 %v1553, %v3560
      %v3562 = vand.u32 %v3561, 4294901760
      %v3563 = vsub.f32 %v3561, %v3562
      %v3564 = vand.u32 %v3563, 4294901760
      %3565 = vmatmul.mubr.f32.gmra.mrb[0].mxu0 %v3564
      %v3566 = vpop.f32.mrb[0].mxu0
      %v3567 = vadd.f32 0.0, %v3566
      %v3568 = vpop.f32.mrb[0].mxu0
      %3569 = vdwg.mxu0
      %3570 = vmatprep.subr.mxu0 0.0
      %v3571 = vand.u32 %v76, 4294901760
      %v3572 = vsub.f32 %v76, %v3571
      %v3573 = vand.u32 %v3572, 4294901760
      %v3574 = vsub.f32 %v3572, %v3573
      %v3575 = vand.u32 %v3574, 4294901760
      %3576 = vmatpush1.msra.mxu0 %v3575
      %3577 = vmatprep.subr.mxu0 0.0
      %v3578 = vand.u32 %v77, 4294901760
      %v3579 = vsub.f32 %v77, %v3578
      %v3580 = vand.u32 %v3579, 4294901760
      %v3581 = vsub.f32 %v3579, %v3580
      %v3582 = vand.u32 %v3581, 4294901760
      %3583 = vmatpush1.msra.mxu0 %v3582
      %3584 = vmatprep.subr.mxu0 0.0
      %v3585 = vand.u32 %v78, 4294901760
      %v3586 = vsub.f32 %v78, %v3585
      %v3587 = vand.u32 %v3586, 4294901760
      %v3588 = vsub.f32 %v3586, %v3587
      %v3589 = vand.u32 %v3588, 4294901760
      %3590 = vmatpush1.msra.mxu0 %v3589
      %3591 = vmatprep.subr.mxu0 0.0
      %v3592 = vand.u32 %v79, 4294901760
      %v3593 = vsub.f32 %v79, %v3592
      %v3594 = vand.u32 %v3593, 4294901760
      %v3595 = vsub.f32 %v3593, %v3594
      %v3596 = vand.u32 %v3595, 4294901760
      %3597 = vmatpush1.msra.mxu0 %v3596
      %3598 = vmatprep.subr.mxu0 0.0
      %v3599 = vand.u32 %v80, 4294901760
      %v3600 = vsub.f32 %v80, %v3599
      %v3601 = vand.u32 %v3600, 4294901760
      %v3602 = vsub.f32 %v3600, %v3601
      %v3603 = vand.u32 %v3602, 4294901760
      %3604 = vmatpush1.msra.mxu0 %v3603
      %3605 = vmatprep.subr.mxu0 0.0
      %v3606 = vand.u32 %v81, 4294901760
      %v3607 = vsub.f32 %v81, %v3606
      %v3608 = vand.u32 %v3607, 4294901760
      %v3609 = vsub.f32 %v3607, %v3608
      %v3610 = vand.u32 %v3609, 4294901760
      %3611 = vmatpush1.msra.mxu0 %v3610
      %3612 = vmatprep.subr.mxu0 0.0
      %v3613 = vand.u32 %v82, 4294901760
      %v3614 = vsub.f32 %v82, %v3613
      %v3615 = vand.u32 %v3614, 4294901760
      %v3616 = vsub.f32 %v3614, %v3615
      %v3617 = vand.u32 %v3616, 4294901760
      %3618 = vmatpush1.msra.mxu0 %v3617
      %3619 = vmatprep.subr.mxu0 0.0
      %v3620 = vand.u32 %v83, 4294901760
      %v3621 = vsub.f32 %v83, %v3620
      %v3622 = vand.u32 %v3621, 4294901760
      %v3623 = vsub.f32 %v3621, %v3622
      %v3624 = vand.u32 %v3623, 4294901760
      %3625 = vmatpush1.msra.mxu0 %v3624
      %3626 = vmatprep.subr.mxu0 0.0
      %v3627 = vand.u32 %v84, 4294901760
      %v3628 = vsub.f32 %v84, %v3627
      %v3629 = vand.u32 %v3628, 4294901760
      %v3630 = vsub.f32 %v3628, %v3629
      %v3631 = vand.u32 %v3630, 4294901760
      %3632 = vmatpush1.msra.mxu0 %v3631
      %3633 = vmatprep.subr.mxu0 0.0
      %v3634 = vand.u32 %v85, 4294901760
      %v3635 = vsub.f32 %v85, %v3634
      %v3636 = vand.u32 %v3635, 4294901760
      %v3637 = vsub.f32 %v3635, %v3636
      %v3638 = vand.u32 %v3637, 4294901760
      %3639 = vmatpush1.msra.mxu0 %v3638
      %3640 = vmatprep.subr.mxu0 0.0
      %v3641 = vand.u32 %v86, 4294901760
      %v3642 = vsub.f32 %v86, %v3641
      %v3643 = vand.u32 %v3642, 4294901760
      %v3644 = vsub.f32 %v3642, %v3643
      %v3645 = vand.u32 %v3644, 4294901760
      %3646 = vmatpush1.msra.mxu0 %v3645
      %3647 = vmatprep.subr.mxu0 0.0
      %v3648 = vand.u32 %v87, 4294901760
      %v3649 = vsub.f32 %v87, %v3648
      %v3650 = vand.u32 %v3649, 4294901760
      %v3651 = vsub.f32 %v3649, %v3650
      %v3652 = vand.u32 %v3651, 4294901760
      %3653 = vmatpush1.msra.mxu0 %v3652
      %3654 = vmatprep.subr.mxu0 0.0
      %v3655 = vand.u32 %v88, 4294901760
      %v3656 = vsub.f32 %v88, %v3655
      %v3657 = vand.u32 %v3656, 4294901760
      %v3658 = vsub.f32 %v3656, %v3657
      %v3659 = vand.u32 %v3658, 4294901760
      %3660 = vmatpush1.msra.mxu0 %v3659
      %3661 = vmatprep.subr.mxu0 0.0
      %v3662 = vand.u32 %v89, 4294901760
      %v3663 = vsub.f32 %v89, %v3662
      %v3664 = vand.u32 %v3663, 4294901760
      %v3665 = vsub.f32 %v3663, %v3664
      %v3666 = vand.u32 %v3665, 4294901760
      %3667 = vmatpush1.msra.mxu0 %v3666
      %3668 = vmatprep.subr.mxu0 0.0
      %v3669 = vand.u32 %v90, 4294901760
      %v3670 = vsub.f32 %v90, %v3669
      %v3671 = vand.u32 %v3670, 4294901760
      %v3672 = vsub.f32 %v3670, %v3671
      %v3673 = vand.u32 %v3672, 4294901760
      %3674 = vmatpush1.msra.mxu0 %v3673
      %3675 = vmatprep.subr.mxu0 0.0
      %v3676 = vand.u32 %v91, 4294901760
      %v3677 = vsub.f32 %v91, %v3676
      %v3678 = vand.u32 %v3677, 4294901760
      %v3679 = vsub.f32 %v3677, %v3678
      %v3680 = vand.u32 %v3679, 4294901760
      %3681 = vmatpush1.msra.mxu0 %v3680
      %3682 = vmatprep.subr.mxu0 0.0
      %3683 = vmatpush1.msra.mxu0 0.0
      %3684 = vmatprep.subr.mxu0 0.0
      %3685 = vmatpush1.msra.mxu0 0.0
      %3686 = vmatprep.subr.mxu0 0.0
      %3687 = vmatpush1.msra.mxu0 0.0
      %3688 = vmatprep.subr.mxu0 0.0
      %3689 = vmatpush1.msra.mxu0 0.0
      %3690 = vmatprep.subr.mxu0 0.0
      %3691 = vmatpush1.msra.mxu0 0.0
      %3692 = vmatprep.subr.mxu0 0.0
      %3693 = vmatpush1.msra.mxu0 0.0
      %3694 = vmatprep.subr.mxu0 0.0
      %3695 = vmatpush1.msra.mxu0 0.0
      %3696 = vmatprep.subr.mxu0 0.0
      %3697 = vmatpush1.msra.mxu0 0.0
      %3698 = vmatprep.subr.mxu0 0.0
      %3699 = vmatpush1.msra.mxu0 0.0
      %3700 = vmatprep.subr.mxu0 0.0
      %3701 = vmatpush1.msra.mxu0 0.0
      %3702 = vmatprep.subr.mxu0 0.0
      %3703 = vmatpush1.msra.mxu0 0.0
      %3704 = vmatprep.subr.mxu0 0.0
      %3705 = vmatpush1.msra.mxu0 0.0
      %3706 = vmatprep.subr.mxu0 0.0
      %3707 = vmatpush1.msra.mxu0 0.0
      %3708 = vmatprep.subr.mxu0 0.0
      %3709 = vmatpush1.msra.mxu0 0.0
      %3710 = vmatprep.subr.mxu0 0.0
      %3711 = vmatpush1.msra.mxu0 0.0
      %3712 = vmatprep.subr.mxu0 0.0
      %3713 = vmatpush1.msra.mxu0 0.0
      %3714 = vmatprep.mubr.f32.mxu0 0.0
      %v3715 = vand.u32 %v1553, 4294901760
      %3716 = vmatmul.mubr.f32.gmra.mrb[0].mxu0 %v3715
      %v3717 = vpop.f32.mrb[0].mxu0
      %v3718 = vadd.f32 %v3567, %v3717
      %v3719 = vpop.f32.mrb[0].mxu0
      %3720 = vdwg.mxu0
      %3721 = vmatprep.subr.mxu0 0.0
      %v3722 = vand.u32 %v76, 4294901760
      %v3723 = vsub.f32 %v76, %v3722
      %3724 = vmatpush1.msra.mxu0 %v3723
      %3725 = vmatprep.subr.mxu0 0.0
      %v3726 = vand.u32 %v77, 4294901760
      %v3727 = vsub.f32 %v77, %v3726
      %3728 = vmatpush1.msra.mxu0 %v3727
      %3729 = vmatprep.subr.mxu0 0.0
      %v3730 = vand.u32 %v78, 4294901760
      %v3731 = vsub.f32 %v78, %v3730
      %3732 = vmatpush1.msra.mxu0 %v3731
      %3733 = vmatprep.subr.mxu0 0.0
      %v3734 = vand.u32 %v79, 4294901760
      %v3735 = vsub.f32 %v79, %v3734
      %3736 = vmatpush1.msra.mxu0 %v3735
      %3737 = vmatprep.subr.mxu0 0.0
      %v3738 = vand.u32 %v80, 4294901760
      %v3739 = vsub.f32 %v80, %v3738
      %3740 = vmatpush1.msra.mxu0 %v3739
      %3741 = vmatprep.subr.mxu0 0.0
      %v3742 = vand.u32 %v81, 4294901760
      %v3743 = vsub.f32 %v81, %v3742
      %3744 = vmatpush1.msra.mxu0 %v3743
      %3745 = vmatprep.subr.mxu0 0.0
      %v3746 = vand.u32 %v82, 4294901760
      %v3747 = vsub.f32 %v82, %v3746
      %3748 = vmatpush1.msra.mxu0 %v3747
      %3749 = vmatprep.subr.mxu0 0.0
      %v3750 = vand.u32 %v83, 4294901760
      %v3751 = vsub.f32 %v83, %v3750
      %3752 = vmatpush1.msra.mxu0 %v3751
      %3753 = vmatprep.subr.mxu0 0.0
      %v3754 = vand.u32 %v84, 4294901760
      %v3755 = vsub.f32 %v84, %v3754
      %3756 = vmatpush1.msra.mxu0 %v3755
      %3757 = vmatprep.subr.mxu0 0.0
      %v3758 = vand.u32 %v85, 4294901760
      %v3759 = vsub.f32 %v85, %v3758
      %3760 = vmatpush1.msra.mxu0 %v3759
      %3761 = vmatprep.subr.mxu0 0.0
      %v3762 = vand.u32 %v86, 4294901760
      %v3763 = vsub.f32 %v86, %v3762
      %3764 = vmatpush1.msra.mxu0 %v3763
      %3765 = vmatprep.subr.mxu0 0.0
      %v3766 = vand.u32 %v87, 4294901760
      %v3767 = vsub.f32 %v87, %v3766
      %3768 = vmatpush1.msra.mxu0 %v3767
      %3769 = vmatprep.subr.mxu0 0.0
      %v3770 = vand.u32 %v88, 4294901760
      %v3771 = vsub.f32 %v88, %v3770
      %3772 = vmatpush1.msra.mxu0 %v3771
      %3773 = vmatprep.subr.mxu0 0.0
      %v3774 = vand.u32 %v89, 4294901760
      %v3775 = vsub.f32 %v89, %v3774
      %3776 = vmatpush1.msra.mxu0 %v3775
      %3777 = vmatprep.subr.mxu0 0.0
      %v3778 = vand.u32 %v90, 4294901760
      %v3779 = vsub.f32 %v90, %v3778
      %3780 = vmatpush1.msra.mxu0 %v3779
      %3781 = vmatprep.subr.mxu0 0.0
      %v3782 = vand.u32 %v91, 4294901760
      %v3783 = vsub.f32 %v91, %v3782
      %3784 = vmatpush1.msra.mxu0 %v3783
      %3785 = vmatprep.subr.mxu0 0.0
      %3786 = vmatpush1.msra.mxu0 0.0
      %3787 = vmatprep.subr.mxu0 0.0
      %3788 = vmatpush1.msra.mxu0 0.0
      %3789 = vmatprep.subr.mxu0 0.0
      %3790 = vmatpush1.msra.mxu0 0.0
      %3791 = vmatprep.subr.mxu0 0.0
      %3792 = vmatpush1.msra.mxu0 0.0
      %3793 = vmatprep.subr.mxu0 0.0
      %3794 = vmatpush1.msra.mxu0 0.0
      %3795 = vmatprep.subr.mxu0 0.0
      %3796 = vmatpush1.msra.mxu0 0.0
      %3797 = vmatprep.subr.mxu0 0.0
      %3798 = vmatpush1.msra.mxu0 0.0
      %3799 = vmatprep.subr.mxu0 0.0
      %3800 = vmatpush1.msra.mxu0 0.0
      %3801 = vmatprep.subr.mxu0 0.0
      %3802 = vmatpush1.msra.mxu0 0.0
      %3803 = vmatprep.subr.mxu0 0.0
      %3804 = vmatpush1.msra.mxu0 0.0
      %3805 = vmatprep.subr.mxu0 0.0
      %3806 = vmatpush1.msra.mxu0 0.0
      %3807 = vmatprep.subr.mxu0 0.0
      %3808 = vmatpush1.msra.mxu0 0.0
      %3809 = vmatprep.subr.mxu0 0.0
      %3810 = vmatpush1.msra.mxu0 0.0
      %3811 = vmatprep.subr.mxu0 0.0
      %3812 = vmatpush1.msra.mxu0 0.0
      %3813 = vmatprep.subr.mxu0 0.0
      %3814 = vmatpush1.msra.mxu0 0.0
      %3815 = vmatprep.subr.mxu0 0.0
      %3816 = vmatpush1.msra.mxu0 0.0
      %3817 = vmatprep.mubr.f32.mxu0 0.0
      %v3818 = vand.u32 %v1553, 4294901760
      %v3819 = vsub.f32 %v1553, %v3818
      %3820 = vmatmul.mubr.f32.gmra.mrb[0].mxu0 %v3819
      %v3821 = vpop.f32.mrb[0].mxu0
      %v3822 = vadd.f32 %v3718, %v3821
      %v3823 = vpop.f32.mrb[0].mxu0
      %3824 = vdwg.mxu0
      %3825 = vmatprep.subr.mxu0 0.0
      %v3826 = vand.u32 %v76, 4294901760
      %3827 = vmatpush1.msra.mxu0 %v3826
      %3828 = vmatprep.subr.mxu0 0.0
      %v3829 = vand.u32 %v77, 4294901760
      %3830 = vmatpush1.msra.mxu0 %v3829
      %3831 = vmatprep.subr.mxu0 0.0
      %v3832 = vand.u32 %v78, 4294901760
      %3833 = vmatpush1.msra.mxu0 %v3832
      %3834 = vmatprep.subr.mxu0 0.0
      %v3835 = vand.u32 %v79, 4294901760
      %3836 = vmatpush1.msra.mxu0 %v3835
      %3837 = vmatprep.subr.mxu0 0.0
      %v3838 = vand.u32 %v80, 4294901760
      %3839 = vmatpush1.msra.mxu0 %v3838
      %3840 = vmatprep.subr.mxu0 0.0
      %v3841 = vand.u32 %v81, 4294901760
      %3842 = vmatpush1.msra.mxu0 %v3841
      %3843 = vmatprep.subr.mxu0 0.0
      %v3844 = vand.u32 %v82, 4294901760
      %3845 = vmatpush1.msra.mxu0 %v3844
      %3846 = vmatprep.subr.mxu0 0.0
      %v3847 = vand.u32 %v83, 4294901760
      %3848 = vmatpush1.msra.mxu0 %v3847
      %3849 = vmatprep.subr.mxu0 0.0
      %v3850 = vand.u32 %v84, 4294901760
      %3851 = vmatpush1.msra.mxu0 %v3850
      %3852 = vmatprep.subr.mxu0 0.0
      %v3853 = vand.u32 %v85, 4294901760
      %3854 = vmatpush1.msra.mxu0 %v3853
      %3855 = vmatprep.subr.mxu0 0.0
      %v3856 = vand.u32 %v86, 4294901760
      %3857 = vmatpush1.msra.mxu0 %v3856
      %3858 = vmatprep.subr.mxu0 0.0
      %v3859 = vand.u32 %v87, 4294901760
      %3860 = vmatpush1.msra.mxu0 %v3859
      %3861 = vmatprep.subr.mxu0 0.0
      %v3862 = vand.u32 %v88, 4294901760
      %3863 = vmatpush1.msra.mxu0 %v3862
      %3864 = vmatprep.subr.mxu0 0.0
      %v3865 = vand.u32 %v89, 4294901760
      %3866 = vmatpush1.msra.mxu0 %v3865
      %3867 = vmatprep.subr.mxu0 0.0
      %v3868 = vand.u32 %v90, 4294901760
      %3869 = vmatpush1.msra.mxu0 %v3868
      %3870 = vmatprep.subr.mxu0 0.0
      %v3871 = vand.u32 %v91, 4294901760
      %3872 = vmatpush1.msra.mxu0 %v3871
      %3873 = vmatprep.subr.mxu0 0.0
      %3874 = vmatpush1.msra.mxu0 0.0
      %3875 = vmatprep.subr.mxu0 0.0
      %3876 = vmatpush1.msra.mxu0 0.0
      %3877 = vmatprep.subr.mxu0 0.0
      %3878 = vmatpush1.msra.mxu0 0.0
      %3879 = vmatprep.subr.mxu0 0.0
      %3880 = vmatpush1.msra.mxu0 0.0
      %3881 = vmatprep.subr.mxu0 0.0
      %3882 = vmatpush1.msra.mxu0 0.0
      %3883 = vmatprep.subr.mxu0 0.0
      %3884 = vmatpush1.msra.mxu0 0.0
      %3885 = vmatprep.subr.mxu0 0.0
      %3886 = vmatpush1.msra.mxu0 0.0
      %3887 = vmatprep.subr.mxu0 0.0
      %3888 = vmatpush1.msra.mxu0 0.0
      %3889 = vmatprep.subr.mxu0 0.0
      %3890 = vmatpush1.msra.mxu0 0.0
      %3891 = vmatprep.subr.mxu0 0.0
      %3892 = vmatpush1.msra.mxu0 0.0
      %3893 = vmatprep.subr.mxu0 0.0
      %3894 = vmatpush1.msra.mxu0 0.0
      %3895 = vmatprep.subr.mxu0 0.0
      %3896 = vmatpush1.msra.mxu0 0.0
      %3897 = vmatprep.subr.mxu0 0.0
      %3898 = vmatpush1.msra.mxu0 0.0
      %3899 = vmatprep.subr.mxu0 0.0
      %3900 = vmatpush1.msra.mxu0 0.0
      %3901 = vmatprep.subr.mxu0 0.0
      %3902 = vmatpush1.msra.mxu0 0.0
      %3903 = vmatprep.subr.mxu0 0.0
      %3904 = vmatpush1.msra.mxu0 0.0
      %3905 = vmatprep.mubr.f32.mxu0 0.0
      %v3906 = vand.u32 %v1553, 4294901760
      %v3907 = vsub.f32 %v1553, %v3906
      %v3908 = vand.u32 %v3907, 4294901760
      %3909 = vmatmul.mubr.f32.gmra.mrb[0].mxu0 %v3908
      %v3910 = vpop.f32.mrb[0].mxu0
      %v3911 = vadd.f32 %v3822, %v3910
      %v3912 = vpop.f32.mrb[0].mxu0
      %3913 = vdwg.mxu0
      %3914 = vmatprep.subr.mxu0 0.0
      %v3915 = vand.u32 %v76, 4294901760
      %v3916 = vsub.f32 %v76, %v3915
      %v3917 = vand.u32 %v3916, 4294901760
      %3918 = vmatpush1.msra.mxu0 %v3917
      %3919 = vmatprep.subr.mxu0 0.0
      %v3920 = vand.u32 %v77, 4294901760
      %v3921 = vsub.f32 %v77, %v3920
      %v3922 = vand.u32 %v3921, 4294901760
      %3923 = vmatpush1.msra.mxu0 %v3922
      %3924 = vmatprep.subr.mxu0 0.0
      %v3925 = vand.u32 %v78, 4294901760
      %v3926 = vsub.f32 %v78, %v3925
      %v3927 = vand.u32 %v3926, 4294901760
      %3928 = vmatpush1.msra.mxu0 %v3927
      %3929 = vmatprep.subr.mxu0 0.0
      %v3930 = vand.u32 %v79, 4294901760
      %v3931 = vsub.f32 %v79, %v3930
      %v3932 = vand.u32 %v3931, 4294901760
      %3933 = vmatpush1.msra.mxu0 %v3932
      %3934 = vmatprep.subr.mxu0 0.0
      %v3935 = vand.u32 %v80, 4294901760
      %v3936 = vsub.f32 %v80, %v3935
      %v3937 = vand.u32 %v3936, 4294901760
      %3938 = vmatpush1.msra.mxu0 %v3937
      %3939 = vmatprep.subr.mxu0 0.0
      %v3940 = vand.u32 %v81, 4294901760
      %v3941 = vsub.f32 %v81, %v3940
      %v3942 = vand.u32 %v3941, 4294901760
      %3943 = vmatpush1.msra.mxu0 %v3942
      %3944 = vmatprep.subr.mxu0 0.0
      %v3945 = vand.u32 %v82, 4294901760
      %v3946 = vsub.f32 %v82, %v3945
      %v3947 = vand.u32 %v3946, 4294901760
      %3948 = vmatpush1.msra.mxu0 %v3947
      %3949 = vmatprep.subr.mxu0 0.0
      %v3950 = vand.u32 %v83, 4294901760
      %v3951 = vsub.f32 %v83, %v3950
      %v3952 = vand.u32 %v3951, 4294901760
      %3953 = vmatpush1.msra.mxu0 %v3952
      %3954 = vmatprep.subr.mxu0 0.0
      %v3955 = vand.u32 %v84, 4294901760
      %v3956 = vsub.f32 %v84, %v3955
      %v3957 = vand.u32 %v3956, 4294901760
      %3958 = vmatpush1.msra.mxu0 %v3957
      %3959 = vmatprep.subr.mxu0 0.0
      %v3960 = vand.u32 %v85, 4294901760
      %v3961 = vsub.f32 %v85, %v3960
      %v3962 = vand.u32 %v3961, 4294901760
      %3963 = vmatpush1.msra.mxu0 %v3962
      %3964 = vmatprep.subr.mxu0 0.0
      %v3965 = vand.u32 %v86, 4294901760
      %v3966 = vsub.f32 %v86, %v3965
      %v3967 = vand.u32 %v3966, 4294901760
      %3968 = vmatpush1.msra.mxu0 %v3967
      %3969 = vmatprep.subr.mxu0 0.0
      %v3970 = vand.u32 %v87, 4294901760
      %v3971 = vsub.f32 %v87, %v3970
      %v3972 = vand.u32 %v3971, 4294901760
      %3973 = vmatpush1.msra.mxu0 %v3972
      %3974 = vmatprep.subr.mxu0 0.0
      %v3975 = vand.u32 %v88, 4294901760
      %v3976 = vsub.f32 %v88, %v3975
      %v3977 = vand.u32 %v3976, 4294901760
      %3978 = vmatpush1.msra.mxu0 %v3977
      %3979 = vmatprep.subr.mxu0 0.0
      %v3980 = vand.u32 %v89, 4294901760
      %v3981 = vsub.f32 %v89, %v3980
      %v3982 = vand.u32 %v3981, 4294901760
      %3983 = vmatpush1.msra.mxu0 %v3982
      %3984 = vmatprep.subr.mxu0 0.0
      %v3985 = vand.u32 %v90, 4294901760
      %v3986 = vsub.f32 %v90, %v3985
      %v3987 = vand.u32 %v3986, 4294901760
      %3988 = vmatpush1.msra.mxu0 %v3987
      %3989 = vmatprep.subr.mxu0 0.0
      %v3990 = vand.u32 %v91, 4294901760
      %v3991 = vsub.f32 %v91, %v3990
      %v3992 = vand.u32 %v3991, 4294901760
      %3993 = vmatpush1.msra.mxu0 %v3992
      %3994 = vmatprep.subr.mxu0 0.0
      %3995 = vmatpush1.msra.mxu0 0.0
      %3996 = vmatprep.subr.mxu0 0.0
      %3997 = vmatpush1.msra.mxu0 0.0
      %3998 = vmatprep.subr.mxu0 0.0
      %3999 = vmatpush1.msra.mxu0 0.0
      %4000 = vmatprep.subr.mxu0 0.0
      %4001 = vmatpush1.msra.mxu0 0.0
      %4002 = vmatprep.subr.mxu0 0.0
      %4003 = vmatpush1.msra.mxu0 0.0
      %4004 = vmatprep.subr.mxu0 0.0
      %4005 = vmatpush1.msra.mxu0 0.0
      %4006 = vmatprep.subr.mxu0 0.0
      %4007 = vmatpush1.msra.mxu0 0.0
      %4008 = vmatprep.subr.mxu0 0.0
      %4009 = vmatpush1.msra.mxu0 0.0
      %4010 = vmatprep.subr.mxu0 0.0
      %4011 = vmatpush1.msra.mxu0 0.0
      %4012 = vmatprep.subr.mxu0 0.0
      %4013 = vmatpush1.msra.mxu0 0.0
      %4014 = vmatprep.subr.mxu0 0.0
      %4015 = vmatpush1.msra.mxu0 0.0
      %4016 = vmatprep.subr.mxu0 0.0
      %4017 = vmatpush1.msra.mxu0 0.0
      %4018 = vmatprep.subr.mxu0 0.0
      %4019 = vmatpush1.msra.mxu0 0.0
      %4020 = vmatprep.subr.mxu0 0.0
      %4021 = vmatpush1.msra.mxu0 0.0
      %4022 = vmatprep.subr.mxu0 0.0
      %4023 = vmatpush1.msra.mxu0 0.0
      %4024 = vmatprep.subr.mxu0 0.0
      %4025 = vmatpush1.msra.mxu0 0.0
      %4026 = vmatprep.mubr.f32.mxu0 0.0
      %v4027 = vand.u32 %v1553, 4294901760
      %4028 = vmatmul.mubr.f32.gmra.mrb[0].mxu0 %v4027
      %v4029 = vpop.f32.mrb[0].mxu0
      %v4030 = vadd.f32 %v3911, %v4029
      %v4031 = vpop.f32.mrb[0].mxu0
      %4032 = vdwg.mxu0
      %4033 = vmatprep.subr.mxu0 0.0
      %v4034 = vand.u32 %v76, 4294901760
      %4035 = vmatpush1.msra.mxu0 %v4034
      %4036 = vmatprep.subr.mxu0 0.0
      %v4037 = vand.u32 %v77, 4294901760
      %4038 = vmatpush1.msra.mxu0 %v4037
      %4039 = vmatprep.subr.mxu0 0.0
      %v4040 = vand.u32 %v78, 4294901760
      %4041 = vmatpush1.msra.mxu0 %v4040
      %4042 = vmatprep.subr.mxu0 0.0
      %v4043 = vand.u32 %v79, 4294901760
      %4044 = vmatpush1.msra.mxu0 %v4043
      %4045 = vmatprep.subr.mxu0 0.0
      %v4046 = vand.u32 %v80, 4294901760
      %4047 = vmatpush1.msra.mxu0 %v4046
      %4048 = vmatprep.subr.mxu0 0.0
      %v4049 = vand.u32 %v81, 4294901760
      %4050 = vmatpush1.msra.mxu0 %v4049
      %4051 = vmatprep.subr.mxu0 0.0
      %v4052 = vand.u32 %v82, 4294901760
      %4053 = vmatpush1.msra.mxu0 %v4052
      %4054 = vmatprep.subr.mxu0 0.0
      %v4055 = vand.u32 %v83, 4294901760
      %4056 = vmatpush1.msra.mxu0 %v4055
      %4057 = vmatprep.subr.mxu0 0.0
      %v4058 = vand.u32 %v84, 4294901760
      %4059 = vmatpush1.msra.mxu0 %v4058
      %4060 = vmatprep.subr.mxu0 0.0
      %v4061 = vand.u32 %v85, 4294901760
      %4062 = vmatpush1.msra.mxu0 %v4061
      %4063 = vmatprep.subr.mxu0 0.0
      %v4064 = vand.u32 %v86, 4294901760
      %4065 = vmatpush1.msra.mxu0 %v4064
      %4066 = vmatprep.subr.mxu0 0.0
      %v4067 = vand.u32 %v87, 4294901760
      %4068 = vmatpush1.msra.mxu0 %v4067
      %4069 = vmatprep.subr.mxu0 0.0
      %v4070 = vand.u32 %v88, 4294901760
      %4071 = vmatpush1.msra.mxu0 %v4070
      %4072 = vmatprep.subr.mxu0 0.0
      %v4073 = vand.u32 %v89, 4294901760
      %4074 = vmatpush1.msra.mxu0 %v4073
      %4075 = vmatprep.subr.mxu0 0.0
      %v4076 = vand.u32 %v90, 4294901760
      %4077 = vmatpush1.msra.mxu0 %v4076
      %4078 = vmatprep.subr.mxu0 0.0
      %v4079 = vand.u32 %v91, 4294901760
      %4080 = vmatpush1.msra.mxu0 %v4079
      %4081 = vmatprep.subr.mxu0 0.0
      %4082 = vmatpush1.msra.mxu0 0.0
      %4083 = vmatprep.subr.mxu0 0.0
      %4084 = vmatpush1.msra.mxu0 0.0
      %4085 = vmatprep.subr.mxu0 0.0
      %4086 = vmatpush1.msra.mxu0 0.0
      %4087 = vmatprep.subr.mxu0 0.0
      %4088 = vmatpush1.msra.mxu0 0.0
      %4089 = vmatprep.subr.mxu0 0.0
      %4090 = vmatpush1.msra.mxu0 0.0
      %4091 = vmatprep.subr.mxu0 0.0
      %4092 = vmatpush1.msra.mxu0 0.0
      %4093 = vmatprep.subr.mxu0 0.0
      %4094 = vmatpush1.msra.mxu0 0.0
      %4095 = vmatprep.subr.mxu0 0.0
      %4096 = vmatpush1.msra.mxu0 0.0
      %4097 = vmatprep.subr.mxu0 0.0
      %4098 = vmatpush1.msra.mxu0 0.0
      %4099 = vmatprep.subr.mxu0 0.0
      %4100 = vmatpush1.msra.mxu0 0.0
      %4101 = vmatprep.subr.mxu0 0.0
      %4102 = vmatpush1.msra.mxu0 0.0
      %4103 = vmatprep.subr.mxu0 0.0
      %4104 = vmatpush1.msra.mxu0 0.0
      %4105 = vmatprep.subr.mxu0 0.0
      %4106 = vmatpush1.msra.mxu0 0.0
      %4107 = vmatprep.subr.mxu0 0.0
      %4108 = vmatpush1.msra.mxu0 0.0
      %4109 = vmatprep.subr.mxu0 0.0
      %4110 = vmatpush1.msra.mxu0 0.0
      %4111 = vmatprep.subr.mxu0 0.0
      %4112 = vmatpush1.msra.mxu0 0.0
      %4113 = vmatprep.mubr.f32.mxu0 0.0
      %v4114 = vand.u32 %v1553, 4294901760
      %4115 = vmatmul.mubr.f32.gmra.mrb[0].mxu0 %v4114
      %v4116 = vpop.f32.mrb[0].mxu0
      %v4117 = vadd.f32 %v4030, %v4116
      %v4118 = vpop.f32.mrb[0].mxu0
      %4119 = vdwg.mxu0
      %4120 = vmatprep.subr.mxu0 0.0
      %v4121 = vand.u32 %v92, 4294901760
      %4122 = vmatpush1.msra.mxu0 %v4121
      %4123 = vmatprep.subr.mxu0 0.0
      %v4124 = vand.u32 %v93, 4294901760
      %4125 = vmatpush1.msra.mxu0 %v4124
      %4126 = vmatprep.subr.mxu0 0.0
      %v4127 = vand.u32 %v94, 4294901760
      %4128 = vmatpush1.msra.mxu0 %v4127
      %4129 = vmatprep.subr.mxu0 0.0
      %v4130 = vand.u32 %v95, 4294901760
      %4131 = vmatpush1.msra.mxu0 %v4130
      %4132 = vmatprep.subr.mxu0 0.0
      %v4133 = vand.u32 %v96, 4294901760
      %4134 = vmatpush1.msra.mxu0 %v4133
      %4135 = vmatprep.subr.mxu0 0.0
      %v4136 = vand.u32 %v97, 4294901760
      %4137 = vmatpush1.msra.mxu0 %v4136
      %4138 = vmatprep.subr.mxu0 0.0
      %v4139 = vand.u32 %v98, 4294901760
      %4140 = vmatpush1.msra.mxu0 %v4139
      %4141 = vmatprep.subr.mxu0 0.0
      %v4142 = vand.u32 %v99, 4294901760
      %4143 = vmatpush1.msra.mxu0 %v4142
      %4144 = vmatprep.subr.mxu0 0.0
      %v4145 = vand.u32 %v100, 4294901760
      %4146 = vmatpush1.msra.mxu0 %v4145
      %4147 = vmatprep.subr.mxu0 0.0
      %v4148 = vand.u32 %v101, 4294901760
      %4149 = vmatpush1.msra.mxu0 %v4148
      %4150 = vmatprep.subr.mxu0 0.0
      %v4151 = vand.u32 %v102, 4294901760
      %4152 = vmatpush1.msra.mxu0 %v4151
      %4153 = vmatprep.subr.mxu0 0.0
      %v4154 = vand.u32 %v103, 4294901760
      %4155 = vmatpush1.msra.mxu0 %v4154
      %4156 = vmatprep.subr.mxu0 0.0
      %v4157 = vand.u32 %v104, 4294901760
      %4158 = vmatpush1.msra.mxu0 %v4157
      %4159 = vmatprep.subr.mxu0 0.0
      %v4160 = vand.u32 %v105, 4294901760
      %4161 = vmatpush1.msra.mxu0 %v4160
      %4162 = vmatprep.subr.mxu0 0.0
      %v4163 = vand.u32 %v106, 4294901760
      %4164 = vmatpush1.msra.mxu0 %v4163
      %4165 = vmatprep.subr.mxu0 0.0
      %v4166 = vand.u32 %v107, 4294901760
      %4167 = vmatpush1.msra.mxu0 %v4166
      %4168 = vmatprep.subr.mxu0 0.0
      %4169 = vmatpush1.msra.mxu0 0.0
      %4170 = vmatprep.subr.mxu0 0.0
      %4171 = vmatpush1.msra.mxu0 0.0
      %4172 = vmatprep.subr.mxu0 0.0
      %4173 = vmatpush1.msra.mxu0 0.0
      %4174 = vmatprep.subr.mxu0 0.0
      %4175 = vmatpush1.msra.mxu0 0.0
      %4176 = vmatprep.subr.mxu0 0.0
      %4177 = vmatpush1.msra.mxu0 0.0
      %4178 = vmatprep.subr.mxu0 0.0
      %4179 = vmatpush1.msra.mxu0 0.0
      %4180 = vmatprep.subr.mxu0 0.0
      %4181 = vmatpush1.msra.mxu0 0.0
      %4182 = vmatprep.subr.mxu0 0.0
      %4183 = vmatpush1.msra.mxu0 0.0
      %4184 = vmatprep.subr.mxu0 0.0
      %4185 = vmatpush1.msra.mxu0 0.0
      %4186 = vmatprep.subr.mxu0 0.0
      %4187 = vmatpush1.msra.mxu0 0.0
      %4188 = vmatprep.subr.mxu0 0.0
      %4189 = vmatpush1.msra.mxu0 0.0
      %4190 = vmatprep.subr.mxu0 0.0
      %4191 = vmatpush1.msra.mxu0 0.0
      %4192 = vmatprep.subr.mxu0 0.0
      %4193 = vmatpush1.msra.mxu0 0.0
      %4194 = vmatprep.subr.mxu0 0.0
      %4195 = vmatpush1.msra.mxu0 0.0
      %4196 = vmatprep.subr.mxu0 0.0
      %4197 = vmatpush1.msra.mxu0 0.0
      %4198 = vmatprep.subr.mxu0 0.0
      %4199 = vmatpush1.msra.mxu0 0.0
      %4200 = vmatprep.mubr.f32.mxu0 0.0
      %v4201 = vand.u32 %v1553, 4294901760
      %v4202 = vsub.f32 %v1553, %v4201
      %v4203 = vand.u32 %v4202, 4294901760
      %v4204 = vsub.f32 %v4202, %v4203
      %v4205 = vand.u32 %v4204, 4294901760
      %4206 = vmatmul.mubr.f32.gmra.mrb[0].mxu0 %v4205
      %v4207 = vpop.f32.mrb[0].mxu0
      %v4208 = vadd.f32 0.0, %v4207
      %v4209 = vpop.f32.mrb[0].mxu0
      %4210 = vdwg.mxu0
      %4211 = vmatprep.subr.mxu0 0.0
      %v4212 = vand.u32 %v92, 4294901760
      %v4213 = vsub.f32 %v92, %v4212
      %v4214 = vand.u32 %v4213, 4294901760
      %v4215 = vsub.f32 %v4213, %v4214
      %v4216 = vand.u32 %v4215, 4294901760
      %4217 = vmatpush1.msra.mxu0 %v4216
      %4218 = vmatprep.subr.mxu0 0.0
      %v4219 = vand.u32 %v93, 4294901760
      %v4220 = vsub.f32 %v93, %v4219
      %v4221 = vand.u32 %v4220, 4294901760
      %v4222 = vsub.f32 %v4220, %v4221
      %v4223 = vand.u32 %v4222, 4294901760
      %4224 = vmatpush1.msra.mxu0 %v4223
      %4225 = vmatprep.subr.mxu0 0.0
      %v4226 = vand.u32 %v94, 4294901760
      %v4227 = vsub.f32 %v94, %v4226
      %v4228 = vand.u32 %v4227, 4294901760
      %v4229 = vsub.f32 %v4227, %v4228
      %v4230 = vand.u32 %v4229, 4294901760
      %4231 = vmatpush1.msra.mxu0 %v4230
      %4232 = vmatprep.subr.mxu0 0.0
      %v4233 = vand.u32 %v95, 4294901760
      %v4234 = vsub.f32 %v95, %v4233
      %v4235 = vand.u32 %v4234, 4294901760
      %v4236 = vsub.f32 %v4234, %v4235
      %v4237 = vand.u32 %v4236, 4294901760
      %4238 = vmatpush1.msra.mxu0 %v4237
      %4239 = vmatprep.subr.mxu0 0.0
      %v4240 = vand.u32 %v96, 4294901760
      %v4241 = vsub.f32 %v96, %v4240
      %v4242 = vand.u32 %v4241, 4294901760
      %v4243 = vsub.f32 %v4241, %v4242
      %v4244 = vand.u32 %v4243, 4294901760
      %4245 = vmatpush1.msra.mxu0 %v4244
      %4246 = vmatprep.subr.mxu0 0.0
      %v4247 = vand.u32 %v97, 4294901760
      %v4248 = vsub.f32 %v97, %v4247
      %v4249 = vand.u32 %v4248, 4294901760
      %v4250 = vsub.f32 %v4248, %v4249
      %v4251 = vand.u32 %v4250, 4294901760
      %4252 = vmatpush1.msra.mxu0 %v4251
      %4253 = vmatprep.subr.mxu0 0.0
      %v4254 = vand.u32 %v98, 4294901760
      %v4255 = vsub.f32 %v98, %v4254
      %v4256 = vand.u32 %v4255, 4294901760
      %v4257 = vsub.f32 %v4255, %v4256
      %v4258 = vand.u32 %v4257, 4294901760
      %4259 = vmatpush1.msra.mxu0 %v4258
      %4260 = vmatprep.subr.mxu0 0.0
      %v4261 = vand.u32 %v99, 4294901760
      %v4262 = vsub.f32 %v99, %v4261
      %v4263 = vand.u32 %v4262, 4294901760
      %v4264 = vsub.f32 %v4262, %v4263
      %v4265 = vand.u32 %v4264, 4294901760
      %4266 = vmatpush1.msra.mxu0 %v4265
      %4267 = vmatprep.subr.mxu0 0.0
      %v4268 = vand.u32 %v100, 4294901760
      %v4269 = vsub.f32 %v100, %v4268
      %v4270 = vand.u32 %v4269, 4294901760
      %v4271 = vsub.f32 %v4269, %v4270
      %v4272 = vand.u32 %v4271, 4294901760
      %4273 = vmatpush1.msra.mxu0 %v4272
      %4274 = vmatprep.subr.mxu0 0.0
      %v4275 = vand.u32 %v101, 4294901760
      %v4276 = vsub.f32 %v101, %v4275
      %v4277 = vand.u32 %v4276, 4294901760
      %v4278 = vsub.f32 %v4276, %v4277
      %v4279 = vand.u32 %v4278, 4294901760
      %4280 = vmatpush1.msra.mxu0 %v4279
      %4281 = vmatprep.subr.mxu0 0.0
      %v4282 = vand.u32 %v102, 4294901760
      %v4283 = vsub.f32 %v102, %v4282
      %v4284 = vand.u32 %v4283, 4294901760
      %v4285 = vsub.f32 %v4283, %v4284
      %v4286 = vand.u32 %v4285, 4294901760
      %4287 = vmatpush1.msra.mxu0 %v4286
      %4288 = vmatprep.subr.mxu0 0.0
      %v4289 = vand.u32 %v103, 4294901760
      %v4290 = vsub.f32 %v103, %v4289
      %v4291 = vand.u32 %v4290, 4294901760
      %v4292 = vsub.f32 %v4290, %v4291
      %v4293 = vand.u32 %v4292, 4294901760
      %4294 = vmatpush1.msra.mxu0 %v4293
      %4295 = vmatprep.subr.mxu0 0.0
      %v4296 = vand.u32 %v104, 4294901760
      %v4297 = vsub.f32 %v104, %v4296
      %v4298 = vand.u32 %v4297, 4294901760
      %v4299 = vsub.f32 %v4297, %v4298
      %v4300 = vand.u32 %v4299, 4294901760
      %4301 = vmatpush1.msra.mxu0 %v4300
      %4302 = vmatprep.subr.mxu0 0.0
      %v4303 = vand.u32 %v105, 4294901760
      %v4304 = vsub.f32 %v105, %v4303
      %v4305 = vand.u32 %v4304, 4294901760
      %v4306 = vsub.f32 %v4304, %v4305
      %v4307 = vand.u32 %v4306, 4294901760
      %4308 = vmatpush1.msra.mxu0 %v4307
      %4309 = vmatprep.subr.mxu0 0.0
      %v4310 = vand.u32 %v106, 4294901760
      %v4311 = vsub.f32 %v106, %v4310
      %v4312 = vand.u32 %v4311, 4294901760
      %v4313 = vsub.f32 %v4311, %v4312
      %v4314 = vand.u32 %v4313, 4294901760
      %4315 = vmatpush1.msra.mxu0 %v4314
      %4316 = vmatprep.subr.mxu0 0.0
      %v4317 = vand.u32 %v107, 4294901760
      %v4318 = vsub.f32 %v107, %v4317
      %v4319 = vand.u32 %v4318, 4294901760
      %v4320 = vsub.f32 %v4318, %v4319
      %v4321 = vand.u32 %v4320, 4294901760
      %4322 = vmatpush1.msra.mxu0 %v4321
      %4323 = vmatprep.subr.mxu0 0.0
      %4324 = vmatpush1.msra.mxu0 0.0
      %4325 = vmatprep.subr.mxu0 0.0
      %4326 = vmatpush1.msra.mxu0 0.0
      %4327 = vmatprep.subr.mxu0 0.0
      %4328 = vmatpush1.msra.mxu0 0.0
      %4329 = vmatprep.subr.mxu0 0.0
      %4330 = vmatpush1.msra.mxu0 0.0
      %4331 = vmatprep.subr.mxu0 0.0
      %4332 = vmatpush1.msra.mxu0 0.0
      %4333 = vmatprep.subr.mxu0 0.0
      %4334 = vmatpush1.msra.mxu0 0.0
      %4335 = vmatprep.subr.mxu0 0.0
      %4336 = vmatpush1.msra.mxu0 0.0
      %4337 = vmatprep.subr.mxu0 0.0
      %4338 = vmatpush1.msra.mxu0 0.0
      %4339 = vmatprep.subr.mxu0 0.0
      %4340 = vmatpush1.msra.mxu0 0.0
      %4341 = vmatprep.subr.mxu0 0.0
      %4342 = vmatpush1.msra.mxu0 0.0
      %4343 = vmatprep.subr.mxu0 0.0
      %4344 = vmatpush1.msra.mxu0 0.0
      %4345 = vmatprep.subr.mxu0 0.0
      %4346 = vmatpush1.msra.mxu0 0.0
      %4347 = vmatprep.subr.mxu0 0.0
      %4348 = vmatpush1.msra.mxu0 0.0
      %4349 = vmatprep.subr.mxu0 0.0
      %4350 = vmatpush1.msra.mxu0 0.0
      %4351 = vmatprep.subr.mxu0 0.0
      %4352 = vmatpush1.msra.mxu0 0.0
      %4353 = vmatprep.subr.mxu0 0.0
      %4354 = vmatpush1.msra.mxu0 0.0
      %4355 = vmatprep.mubr.f32.mxu0 0.0
      %v4356 = vand.u32 %v1553, 4294901760
      %4357 = vmatmul.mubr.f32.gmra.mrb[0].mxu0 %v4356
      %v4358 = vpop.f32.mrb[0].mxu0
      %v4359 = vadd.f32 %v4208, %v4358
      %v4360 = vpop.f32.mrb[0].mxu0
      %4361 = vdwg.mxu0
      %4362 = vmatprep.subr.mxu0 0.0
      %v4363 = vand.u32 %v92, 4294901760
      %v4364 = vsub.f32 %v92, %v4363
      %4365 = vmatpush1.msra.mxu0 %v4364
      %4366 = vmatprep.subr.mxu0 0.0
      %v4367 = vand.u32 %v93, 4294901760
      %v4368 = vsub.f32 %v93, %v4367
      %4369 = vmatpush1.msra.mxu0 %v4368
      %4370 = vmatprep.subr.mxu0 0.0
      %v4371 = vand.u32 %v94, 4294901760
      %v4372 = vsub.f32 %v94, %v4371
      %4373 = vmatpush1.msra.mxu0 %v4372
      %4374 = vmatprep.subr.mxu0 0.0
      %v4375 = vand.u32 %v95, 4294901760
      %v4376 = vsub.f32 %v95, %v4375
      %4377 = vmatpush1.msra.mxu0 %v4376
      %4378 = vmatprep.subr.mxu0 0.0
      %v4379 = vand.u32 %v96, 4294901760
      %v4380 = vsub.f32 %v96, %v4379
      %4381 = vmatpush1.msra.mxu0 %v4380
      %4382 = vmatprep.subr.mxu0 0.0
      %v4383 = vand.u32 %v97, 4294901760
      %v4384 = vsub.f32 %v97, %v4383
      %4385 = vmatpush1.msra.mxu0 %v4384
      %4386 = vmatprep.subr.mxu0 0.0
      %v4387 = vand.u32 %v98, 4294901760
      %v4388 = vsub.f32 %v98, %v4387
      %4389 = vmatpush1.msra.mxu0 %v4388
      %4390 = vmatprep.subr.mxu0 0.0
      %v4391 = vand.u32 %v99, 4294901760
      %v4392 = vsub.f32 %v99, %v4391
      %4393 = vmatpush1.msra.mxu0 %v4392
      %4394 = vmatprep.subr.mxu0 0.0
      %v4395 = vand.u32 %v100, 4294901760
      %v4396 = vsub.f32 %v100, %v4395
      %4397 = vmatpush1.msra.mxu0 %v4396
      %4398 = vmatprep.subr.mxu0 0.0
      %v4399 = vand.u32 %v101, 4294901760
      %v4400 = vsub.f32 %v101, %v4399
      %4401 = vmatpush1.msra.mxu0 %v4400
      %4402 = vmatprep.subr.mxu0 0.0
      %v4403 = vand.u32 %v102, 4294901760
      %v4404 = vsub.f32 %v102, %v4403
      %4405 = vmatpush1.msra.mxu0 %v4404
      %4406 = vmatprep.subr.mxu0 0.0
      %v4407 = vand.u32 %v103, 4294901760
      %v4408 = vsub.f32 %v103, %v4407
      %4409 = vmatpush1.msra.mxu0 %v4408
      %4410 = vmatprep.subr.mxu0 0.0
      %v4411 = vand.u32 %v104, 4294901760
      %v4412 = vsub.f32 %v104, %v4411
      %4413 = vmatpush1.msra.mxu0 %v4412
      %4414 = vmatprep.subr.mxu0 0.0
      %v4415 = vand.u32 %v105, 4294901760
      %v4416 = vsub.f32 %v105, %v4415
      %4417 = vmatpush1.msra.mxu0 %v4416
      %4418 = vmatprep.subr.mxu0 0.0
      %v4419 = vand.u32 %v106, 4294901760
      %v4420 = vsub.f32 %v106, %v4419
      %4421 = vmatpush1.msra.mxu0 %v4420
      %4422 = vmatprep.subr.mxu0 0.0
      %v4423 = vand.u32 %v107, 4294901760
      %v4424 = vsub.f32 %v107, %v4423
      %4425 = vmatpush1.msra.mxu0 %v4424
      %4426 = vmatprep.subr.mxu0 0.0
      %4427 = vmatpush1.msra.mxu0 0.0
      %4428 = vmatprep.subr.mxu0 0.0
      %4429 = vmatpush1.msra.mxu0 0.0
      %4430 = vmatprep.subr.mxu0 0.0
      %4431 = vmatpush1.msra.mxu0 0.0
      %4432 = vmatprep.subr.mxu0 0.0
      %4433 = vmatpush1.msra.mxu0 0.0
      %4434 = vmatprep.subr.mxu0 0.0
      %4435 = vmatpush1.msra.mxu0 0.0
      %4436 = vmatprep.subr.mxu0 0.0
      %4437 = vmatpush1.msra.mxu0 0.0
      %4438 = vmatprep.subr.mxu0 0.0
      %4439 = vmatpush1.msra.mxu0 0.0
      %4440 = vmatprep.subr.mxu0 0.0
      %4441 = vmatpush1.msra.mxu0 0.0
      %4442 = vmatprep.subr.mxu0 0.0
      %4443 = vmatpush1.msra.mxu0 0.0
      %4444 = vmatprep.subr.mxu0 0.0
      %4445 = vmatpush1.msra.mxu0 0.0
      %4446 = vmatprep.subr.mxu0 0.0
      %4447 = vmatpush1.msra.mxu0 0.0
      %4448 = vmatprep.subr.mxu0 0.0
      %4449 = vmatpush1.msra.mxu0 0.0
      %4450 = vmatprep.subr.mxu0 0.0
      %4451 = vmatpush1.msra.mxu0 0.0
      %4452 = vmatprep.subr.mxu0 0.0
      %4453 = vmatpush1.msra.mxu0 0.0
      %4454 = vmatprep.subr.mxu0 0.0
      %4455 = vmatpush1.msra.mxu0 0.0
      %4456 = vmatprep.subr.mxu0 0.0
      %4457 = vmatpush1.msra.mxu0 0.0
      %4458 = vmatprep.mubr.f32.mxu0 0.0
      %v4459 = vand.u32 %v1553, 4294901760
      %v4460 = vsub.f32 %v1553, %v4459
      %4461 = vmatmul.mubr.f32.gmra.mrb[0].mxu0 %v4460
      %v4462 = vpop.f32.mrb[0].mxu0
      %v4463 = vadd.f32 %v4359, %v4462
      %v4464 = vpop.f32.mrb[0].mxu0
      %4465 = vdwg.mxu0
      %4466 = vmatprep.subr.mxu0 0.0
      %v4467 = vand.u32 %v92, 4294901760
      %4468 = vmatpush1.msra.mxu0 %v4467
      %4469 = vmatprep.subr.mxu0 0.0
      %v4470 = vand.u32 %v93, 4294901760
      %4471 = vmatpush1.msra.mxu0 %v4470
      %4472 = vmatprep.subr.mxu0 0.0
      %v4473 = vand.u32 %v94, 4294901760
      %4474 = vmatpush1.msra.mxu0 %v4473
      %4475 = vmatprep.subr.mxu0 0.0
      %v4476 = vand.u32 %v95, 4294901760
      %4477 = vmatpush1.msra.mxu0 %v4476
      %4478 = vmatprep.subr.mxu0 0.0
      %v4479 = vand.u32 %v96, 4294901760
      %4480 = vmatpush1.msra.mxu0 %v4479
      %4481 = vmatprep.subr.mxu0 0.0
      %v4482 = vand.u32 %v97, 4294901760
      %4483 = vmatpush1.msra.mxu0 %v4482
      %4484 = vmatprep.subr.mxu0 0.0
      %v4485 = vand.u32 %v98, 4294901760
      %4486 = vmatpush1.msra.mxu0 %v4485
      %4487 = vmatprep.subr.mxu0 0.0
      %v4488 = vand.u32 %v99, 4294901760
      %4489 = vmatpush1.msra.mxu0 %v4488
      %4490 = vmatprep.subr.mxu0 0.0
      %v4491 = vand.u32 %v100, 4294901760
      %4492 = vmatpush1.msra.mxu0 %v4491
      %4493 = vmatprep.subr.mxu0 0.0
      %v4494 = vand.u32 %v101, 4294901760
      %4495 = vmatpush1.msra.mxu0 %v4494
      %4496 = vmatprep.subr.mxu0 0.0
      %v4497 = vand.u32 %v102, 4294901760
      %4498 = vmatpush1.msra.mxu0 %v4497
      %4499 = vmatprep.subr.mxu0 0.0
      %v4500 = vand.u32 %v103, 4294901760
      %4501 = vmatpush1.msra.mxu0 %v4500
      %4502 = vmatprep.subr.mxu0 0.0
      %v4503 = vand.u32 %v104, 4294901760
      %4504 = vmatpush1.msra.mxu0 %v4503
      %4505 = vmatprep.subr.mxu0 0.0
      %v4506 = vand.u32 %v105, 4294901760
      %4507 = vmatpush1.msra.mxu0 %v4506
      %4508 = vmatprep.subr.mxu0 0.0
      %v4509 = vand.u32 %v106, 4294901760
      %4510 = vmatpush1.msra.mxu0 %v4509
      %4511 = vmatprep.subr.mxu0 0.0
      %v4512 = vand.u32 %v107, 4294901760
      %4513 = vmatpush1.msra.mxu0 %v4512
      %4514 = vmatprep.subr.mxu0 0.0
      %4515 = vmatpush1.msra.mxu0 0.0
      %4516 = vmatprep.subr.mxu0 0.0
      %4517 = vmatpush1.msra.mxu0 0.0
      %4518 = vmatprep.subr.mxu0 0.0
      %4519 = vmatpush1.msra.mxu0 0.0
      %4520 = vmatprep.subr.mxu0 0.0
      %4521 = vmatpush1.msra.mxu0 0.0
      %4522 = vmatprep.subr.mxu0 0.0
      %4523 = vmatpush1.msra.mxu0 0.0
      %4524 = vmatprep.subr.mxu0 0.0
      %4525 = vmatpush1.msra.mxu0 0.0
      %4526 = vmatprep.subr.mxu0 0.0
      %4527 = vmatpush1.msra.mxu0 0.0
      %4528 = vmatprep.subr.mxu0 0.0
      %4529 = vmatpush1.msra.mxu0 0.0
      %4530 = vmatprep.subr.mxu0 0.0
      %4531 = vmatpush1.msra.mxu0 0.0
      %4532 = vmatprep.subr.mxu0 0.0
      %4533 = vmatpush1.msra.mxu0 0.0
      %4534 = vmatprep.subr.mxu0 0.0
      %4535 = vmatpush1.msra.mxu0 0.0
      %4536 = vmatprep.subr.mxu0 0.0
      %4537 = vmatpush1.msra.mxu0 0.0
      %4538 = vmatprep.subr.mxu0 0.0
      %4539 = vmatpush1.msra.mxu0 0.0
      %4540 = vmatprep.subr.mxu0 0.0
      %4541 = vmatpush1.msra.mxu0 0.0
      %4542 = vmatprep.subr.mxu0 0.0
      %4543 = vmatpush1.msra.mxu0 0.0
      %4544 = vmatprep.subr.mxu0 0.0
      %4545 = vmatpush1.msra.mxu0 0.0
      %4546 = vmatprep.mubr.f32.mxu0 0.0
      %v4547 = vand.u32 %v1553, 4294901760
      %v4548 = vsub.f32 %v1553, %v4547
      %v4549 = vand.u32 %v4548, 4294901760
      %4550 = vmatmul.mubr.f32.gmra.mrb[0].mxu0 %v4549
      %v4551 = vpop.f32.mrb[0].mxu0
      %v4552 = vadd.f32 %v4463, %v4551
      %v4553 = vpop.f32.mrb[0].mxu0
      %4554 = vdwg.mxu0
      %4555 = vmatprep.subr.mxu0 0.0
      %v4556 = vand.u32 %v92, 4294901760
      %v4557 = vsub.f32 %v92, %v4556
      %v4558 = vand.u32 %v4557, 4294901760
      %4559 = vmatpush1.msra.mxu0 %v4558
      %4560 = vmatprep.subr.mxu0 0.0
      %v4561 = vand.u32 %v93, 4294901760
      %v4562 = vsub.f32 %v93, %v4561
      %v4563 = vand.u32 %v4562, 4294901760
      %4564 = vmatpush1.msra.mxu0 %v4563
      %4565 = vmatprep.subr.mxu0 0.0
      %v4566 = vand.u32 %v94, 4294901760
      %v4567 = vsub.f32 %v94, %v4566
      %v4568 = vand.u32 %v4567, 4294901760
      %4569 = vmatpush1.msra.mxu0 %v4568
      %4570 = vmatprep.subr.mxu0 0.0
      %v4571 = vand.u32 %v95, 4294901760
      %v4572 = vsub.f32 %v95, %v4571
      %v4573 = vand.u32 %v4572, 4294901760
      %4574 = vmatpush1.msra.mxu0 %v4573
      %4575 = vmatprep.subr.mxu0 0.0
      %v4576 = vand.u32 %v96, 4294901760
      %v4577 = vsub.f32 %v96, %v4576
      %v4578 = vand.u32 %v4577, 4294901760
      %4579 = vmatpush1.msra.mxu0 %v4578
      %4580 = vmatprep.subr.mxu0 0.0
      %v4581 = vand.u32 %v97, 4294901760
      %v4582 = vsub.f32 %v97, %v4581
      %v4583 = vand.u32 %v4582, 4294901760
      %4584 = vmatpush1.msra.mxu0 %v4583
      %4585 = vmatprep.subr.mxu0 0.0
      %v4586 = vand.u32 %v98, 4294901760
      %v4587 = vsub.f32 %v98, %v4586
      %v4588 = vand.u32 %v4587, 4294901760
      %4589 = vmatpush1.msra.mxu0 %v4588
      %4590 = vmatprep.subr.mxu0 0.0
      %v4591 = vand.u32 %v99, 4294901760
      %v4592 = vsub.f32 %v99, %v4591
      %v4593 = vand.u32 %v4592, 4294901760
      %4594 = vmatpush1.msra.mxu0 %v4593
      %4595 = vmatprep.subr.mxu0 0.0
      %v4596 = vand.u32 %v100, 4294901760
      %v4597 = vsub.f32 %v100, %v4596
      %v4598 = vand.u32 %v4597, 4294901760
      %4599 = vmatpush1.msra.mxu0 %v4598
      %4600 = vmatprep.subr.mxu0 0.0
      %v4601 = vand.u32 %v101, 4294901760
      %v4602 = vsub.f32 %v101, %v4601
      %v4603 = vand.u32 %v4602, 4294901760
      %4604 = vmatpush1.msra.mxu0 %v4603
      %4605 = vmatprep.subr.mxu0 0.0
      %v4606 = vand.u32 %v102, 4294901760
      %v4607 = vsub.f32 %v102, %v4606
      %v4608 = vand.u32 %v4607, 4294901760
      %4609 = vmatpush1.msra.mxu0 %v4608
      %4610 = vmatprep.subr.mxu0 0.0
      %v4611 = vand.u32 %v103, 4294901760
      %v4612 = vsub.f32 %v103, %v4611
      %v4613 = vand.u32 %v4612, 4294901760
      %4614 = vmatpush1.msra.mxu0 %v4613
      %4615 = vmatprep.subr.mxu0 0.0
      %v4616 = vand.u32 %v104, 4294901760
      %v4617 = vsub.f32 %v104, %v4616
      %v4618 = vand.u32 %v4617, 4294901760
      %4619 = vmatpush1.msra.mxu0 %v4618
      %4620 = vmatprep.subr.mxu0 0.0
      %v4621 = vand.u32 %v105, 4294901760
      %v4622 = vsub.f32 %v105, %v4621
      %v4623 = vand.u32 %v4622, 4294901760
      %4624 = vmatpush1.msra.mxu0 %v4623
      %4625 = vmatprep.subr.mxu0 0.0
      %v4626 = vand.u32 %v106, 4294901760
      %v4627 = vsub.f32 %v106, %v4626
      %v4628 = vand.u32 %v4627, 4294901760
      %4629 = vmatpush1.msra.mxu0 %v4628
      %4630 = vmatprep.subr.mxu0 0.0
      %v4631 = vand.u32 %v107, 4294901760
      %v4632 = vsub.f32 %v107, %v4631
      %v4633 = vand.u32 %v4632, 4294901760
      %4634 = vmatpush1.msra.mxu0 %v4633
      %4635 = vmatprep.subr.mxu0 0.0
      %4636 = vmatpush1.msra.mxu0 0.0
      %4637 = vmatprep.subr.mxu0 0.0
      %4638 = vmatpush1.msra.mxu0 0.0
      %4639 = vmatprep.subr.mxu0 0.0
      %4640 = vmatpush1.msra.mxu0 0.0
      %4641 = vmatprep.subr.mxu0 0.0
      %4642 = vmatpush1.msra.mxu0 0.0
      %4643 = vmatprep.subr.mxu0 0.0
      %4644 = vmatpush1.msra.mxu0 0.0
      %4645 = vmatprep.subr.mxu0 0.0
      %4646 = vmatpush1.msra.mxu0 0.0
      %4647 = vmatprep.subr.mxu0 0.0
      %4648 = vmatpush1.msra.mxu0 0.0
      %4649 = vmatprep.subr.mxu0 0.0
      %4650 = vmatpush1.msra.mxu0 0.0
      %4651 = vmatprep.subr.mxu0 0.0
      %4652 = vmatpush1.msra.mxu0 0.0
      %4653 = vmatprep.subr.mxu0 0.0
      %4654 = vmatpush1.msra.mxu0 0.0
      %4655 = vmatprep.subr.mxu0 0.0
      %4656 = vmatpush1.msra.mxu0 0.0
      %4657 = vmatprep.subr.mxu0 0.0
      %4658 = vmatpush1.msra.mxu0 0.0
      %4659 = vmatprep.subr.mxu0 0.0
      %4660 = vmatpush1.msra.mxu0 0.0
      %4661 = vmatprep.subr.mxu0 0.0
      %4662 = vmatpush1.msra.mxu0 0.0
      %4663 = vmatprep.subr.mxu0 0.0
      %4664 = vmatpush1.msra.mxu0 0.0
      %4665 = vmatprep.subr.mxu0 0.0
      %4666 = vmatpush1.msra.mxu0 0.0
      %4667 = vmatprep.mubr.f32.mxu0 0.0
      %v4668 = vand.u32 %v1553, 4294901760
      %4669 = vmatmul.mubr.f32.gmra.mrb[0].mxu0 %v4668
      %v4670 = vpop.f32.mrb[0].mxu0
      %v4671 = vadd.f32 %v4552, %v4670
      %v4672 = vpop.f32.mrb[0].mxu0
      %4673 = vdwg.mxu0
      %4674 = vmatprep.subr.mxu0 0.0
      %v4675 = vand.u32 %v92, 4294901760
      %4676 = vmatpush1.msra.mxu0 %v4675
      %4677 = vmatprep.subr.mxu0 0.0
      %v4678 = vand.u32 %v93, 4294901760
      %4679 = vmatpush1.msra.mxu0 %v4678
      %4680 = vmatprep.subr.mxu0 0.0
      %v4681 = vand.u32 %v94, 4294901760
      %4682 = vmatpush1.msra.mxu0 %v4681
      %4683 = vmatprep.subr.mxu0 0.0
      %v4684 = vand.u32 %v95, 4294901760
      %4685 = vmatpush1.msra.mxu0 %v4684
      %4686 = vmatprep.subr.mxu0 0.0
      %v4687 = vand.u32 %v96, 4294901760
      %4688 = vmatpush1.msra.mxu0 %v4687
      %4689 = vmatprep.subr.mxu0 0.0
      %v4690 = vand.u32 %v97, 4294901760
      %4691 = vmatpush1.msra.mxu0 %v4690
      %4692 = vmatprep.subr.mxu0 0.0
      %v4693 = vand.u32 %v98, 4294901760
      %4694 = vmatpush1.msra.mxu0 %v4693
      %4695 = vmatprep.subr.mxu0 0.0
      %v4696 = vand.u32 %v99, 4294901760
      %4697 = vmatpush1.msra.mxu0 %v4696
      %4698 = vmatprep.subr.mxu0 0.0
      %v4699 = vand.u32 %v100, 4294901760
      %4700 = vmatpush1.msra.mxu0 %v4699
      %4701 = vmatprep.subr.mxu0 0.0
      %v4702 = vand.u32 %v101, 4294901760
      %4703 = vmatpush1.msra.mxu0 %v4702
      %4704 = vmatprep.subr.mxu0 0.0
      %v4705 = vand.u32 %v102, 4294901760
      %4706 = vmatpush1.msra.mxu0 %v4705
      %4707 = vmatprep.subr.mxu0 0.0
      %v4708 = vand.u32 %v103, 4294901760
      %4709 = vmatpush1.msra.mxu0 %v4708
      %4710 = vmatprep.subr.mxu0 0.0
      %v4711 = vand.u32 %v104, 4294901760
      %4712 = vmatpush1.msra.mxu0 %v4711
      %4713 = vmatprep.subr.mxu0 0.0
      %v4714 = vand.u32 %v105, 4294901760
      %4715 = vmatpush1.msra.mxu0 %v4714
      %4716 = vmatprep.subr.mxu0 0.0
      %v4717 = vand.u32 %v106, 4294901760
      %4718 = vmatpush1.msra.mxu0 %v4717
      %4719 = vmatprep.subr.mxu0 0.0
      %v4720 = vand.u32 %v107, 4294901760
      %4721 = vmatpush1.msra.mxu0 %v4720
      %4722 = vmatprep.subr.mxu0 0.0
      %4723 = vmatpush1.msra.mxu0 0.0
      %4724 = vmatprep.subr.mxu0 0.0
      %4725 = vmatpush1.msra.mxu0 0.0
      %4726 = vmatprep.subr.mxu0 0.0
      %4727 = vmatpush1.msra.mxu0 0.0
      %4728 = vmatprep.subr.mxu0 0.0
      %4729 = vmatpush1.msra.mxu0 0.0
      %4730 = vmatprep.subr.mxu0 0.0
      %4731 = vmatpush1.msra.mxu0 0.0
      %4732 = vmatprep.subr.mxu0 0.0
      %4733 = vmatpush1.msra.mxu0 0.0
      %4734 = vmatprep.subr.mxu0 0.0
      %4735 = vmatpush1.msra.mxu0 0.0
      %4736 = vmatprep.subr.mxu0 0.0
      %4737 = vmatpush1.msra.mxu0 0.0
      %4738 = vmatprep.subr.mxu0 0.0
      %4739 = vmatpush1.msra.mxu0 0.0
      %4740 = vmatprep.subr.mxu0 0.0
      %4741 = vmatpush1.msra.mxu0 0.0
      %4742 = vmatprep.subr.mxu0 0.0
      %4743 = vmatpush1.msra.mxu0 0.0
      %4744 = vmatprep.subr.mxu0 0.0
      %4745 = vmatpush1.msra.mxu0 0.0
      %4746 = vmatprep.subr.mxu0 0.0
      %4747 = vmatpush1.msra.mxu0 0.0
      %4748 = vmatprep.subr.mxu0 0.0
      %4749 = vmatpush1.msra.mxu0 0.0
      %4750 = vmatprep.subr.mxu0 0.0
      %4751 = vmatpush1.msra.mxu0 0.0
      %4752 = vmatprep.subr.mxu0 0.0
      %4753 = vmatpush1.msra.mxu0 0.0
      %4754 = vmatprep.mubr.f32.mxu0 0.0
      %v4755 = vand.u32 %v1553, 4294901760
      %4756 = vmatmul.mubr.f32.gmra.mrb[0].mxu0 %v4755
      %v4757 = vpop.f32.mrb[0].mxu0
      %v4758 = vadd.f32 %v4671, %v4757
      %v4759 = vpop.f32.mrb[0].mxu0
      %4760 = vdwg.mxu0
      %v4761 = vadd.f32 %v111, %v4758
      %4762 = vmatprep.subr.mxu0 0.0
      %v4763 = vand.u32 %v4761, 4294901760
      %4764 = vmatpush1.msra.mxu0 %v4763
      %4765 = vmatprep.subr.mxu0 0.0
      %4766 = vmatpush1.msra.mxu0 0.0
      %4767 = vmatprep.subr.mxu0 0.0
      %4768 = vmatpush1.msra.mxu0 0.0
      %4769 = vmatprep.subr.mxu0 0.0
      %4770 = vmatpush1.msra.mxu0 0.0
      %4771 = vmatprep.subr.mxu0 0.0
      %4772 = vmatpush1.msra.mxu0 0.0
      %4773 = vmatprep.subr.mxu0 0.0
      %4774 = vmatpush1.msra.mxu0 0.0
      %4775 = vmatprep.subr.mxu0 0.0
      %4776 = vmatpush1.msra.mxu0 0.0
      %4777 = vmatprep.subr.mxu0 0.0
      %4778 = vmatpush1.msra.mxu0 0.0
      %4779 = vmatprep.subr.mxu0 0.0
      %4780 = vmatpush1.msra.mxu0 0.0
      %4781 = vmatprep.subr.mxu0 0.0
      %4782 = vmatpush1.msra.mxu0 0.0
      %4783 = vmatprep.subr.mxu0 0.0
      %4784 = vmatpush1.msra.mxu0 0.0
      %4785 = vmatprep.subr.mxu0 0.0
      %4786 = vmatpush1.msra.mxu0 0.0
      %4787 = vmatprep.subr.mxu0 0.0
      %4788 = vmatpush1.msra.mxu0 0.0
      %4789 = vmatprep.subr.mxu0 0.0
      %4790 = vmatpush1.msra.mxu0 0.0
      %4791 = vmatprep.subr.mxu0 0.0
      %4792 = vmatpush1.msra.mxu0 0.0
      %4793 = vmatprep.subr.mxu0 0.0
      %4794 = vmatpush1.msra.mxu0 0.0
      %4795 = vmatprep.subr.mxu0 0.0
      %4796 = vmatpush1.msra.mxu0 0.0
      %4797 = vmatprep.subr.mxu0 0.0
      %4798 = vmatpush1.msra.mxu0 0.0
      %4799 = vmatprep.subr.mxu0 0.0
      %4800 = vmatpush1.msra.mxu0 0.0
      %4801 = vmatprep.subr.mxu0 0.0
      %4802 = vmatpush1.msra.mxu0 0.0
      %4803 = vmatprep.subr.mxu0 0.0
      %4804 = vmatpush1.msra.mxu0 0.0
      %4805 = vmatprep.subr.mxu0 0.0
      %4806 = vmatpush1.msra.mxu0 0.0
      %4807 = vmatprep.subr.mxu0 0.0
      %4808 = vmatpush1.msra.mxu0 0.0
      %4809 = vmatprep.subr.mxu0 0.0
      %4810 = vmatpush1.msra.mxu0 0.0
      %4811 = vmatprep.subr.mxu0 0.0
      %4812 = vmatpush1.msra.mxu0 0.0
      %4813 = vmatprep.subr.mxu0 0.0
      %4814 = vmatpush1.msra.mxu0 0.0
      %4815 = vmatprep.subr.mxu0 0.0
      %4816 = vmatpush1.msra.mxu0 0.0
      %4817 = vmatprep.subr.mxu0 0.0
      %4818 = vmatpush1.msra.mxu0 0.0
      %4819 = vmatprep.subr.mxu0 0.0
      %4820 = vmatpush1.msra.mxu0 0.0
      %4821 = vmatprep.subr.mxu0 0.0
      %4822 = vmatpush1.msra.mxu0 0.0
      %4823 = vmatprep.subr.mxu0 0.0
      %4824 = vmatpush1.msra.mxu0 0.0
      %4825 = vmatprep.subr.mxu0 0.0
      %4826 = vmatpush1.msra.mxu0 0.0
      %4827 = vmatprep.mubr.f32.mxu0 0.0
      %v4828 = vand.u32 %v914, 4294901760
      %v4829 = vsub.f32 %v914, %v4828
      %v4830 = vand.u32 %v4829, 4294901760
      %v4831 = vsub.f32 %v4829, %v4830
      %v4832 = vand.u32 %v4831, 4294901760
      %4833 = vmatmul.mubr.f32.gmra.mrb[0].mxu0 %v4832
      %v4834 = vpop.f32.mrb[0].mxu0
      %v4835 = vadd.f32 0.0, %v4834
      %v4836 = vpop.f32.mrb[0].mxu0
      %4837 = vdwg.mxu0
      %4838 = vmatprep.subr.mxu0 0.0
      %v4839 = vand.u32 %v4761, 4294901760
      %v4840 = vsub.f32 %v4761, %v4839
      %v4841 = vand.u32 %v4840, 4294901760
      %v4842 = vsub.f32 %v4840, %v4841
      %v4843 = vand.u32 %v4842, 4294901760
      %4844 = vmatpush1.msra.mxu0 %v4843
      %4845 = vmatprep.subr.mxu0 0.0
      %4846 = vmatpush1.msra.mxu0 0.0
      %4847 = vmatprep.subr.mxu0 0.0
      %4848 = vmatpush1.msra.mxu0 0.0
      %4849 = vmatprep.subr.mxu0 0.0
      %4850 = vmatpush1.msra.mxu0 0.0
      %4851 = vmatprep.subr.mxu0 0.0
      %4852 = vmatpush1.msra.mxu0 0.0
      %4853 = vmatprep.subr.mxu0 0.0
      %4854 = vmatpush1.msra.mxu0 0.0
      %4855 = vmatprep.subr.mxu0 0.0
      %4856 = vmatpush1.msra.mxu0 0.0
      %4857 = vmatprep.subr.mxu0 0.0
      %4858 = vmatpush1.msra.mxu0 0.0
      %4859 = vmatprep.subr.mxu0 0.0
      %4860 = vmatpush1.msra.mxu0 0.0
      %4861 = vmatprep.subr.mxu0 0.0
      %4862 = vmatpush1.msra.mxu0 0.0
      %4863 = vmatprep.subr.mxu0 0.0
      %4864 = vmatpush1.msra.mxu0 0.0
      %4865 = vmatprep.subr.mxu0 0.0
      %4866 = vmatpush1.msra.mxu0 0.0
      %4867 = vmatprep.subr.mxu0 0.0
      %4868 = vmatpush1.msra.mxu0 0.0
      %4869 = vmatprep.subr.mxu0 0.0
      %4870 = vmatpush1.msra.mxu0 0.0
      %4871 = vmatprep.subr.mxu0 0.0
      %4872 = vmatpush1.msra.mxu0 0.0
      %4873 = vmatprep.subr.mxu0 0.0
      %4874 = vmatpush1.msra.mxu0 0.0
      %4875 = vmatprep.subr.mxu0 0.0
      %4876 = vmatpush1.msra.mxu0 0.0
      %4877 = vmatprep.subr.mxu0 0.0
      %4878 = vmatpush1.msra.mxu0 0.0
      %4879 = vmatprep.subr.mxu0 0.0
      %4880 = vmatpush1.msra.mxu0 0.0
      %4881 = vmatprep.subr.mxu0 0.0
      %4882 = vmatpush1.msra.mxu0 0.0
      %4883 = vmatprep.subr.mxu0 0.0
      %4884 = vmatpush1.msra.mxu0 0.0
      %4885 = vmatprep.subr.mxu0 0.0
      %4886 = vmatpush1.msra.mxu0 0.0
      %4887 = vmatprep.subr.mxu0 0.0
      %4888 = vmatpush1.msra.mxu0 0.0
      %4889 = vmatprep.subr.mxu0 0.0
      %4890 = vmatpush1.msra.mxu0 0.0
      %4891 = vmatprep.subr.mxu0 0.0
      %4892 = vmatpush1.msra.mxu0 0.0
      %4893 = vmatprep.subr.mxu0 0.0
      %4894 = vmatpush1.msra.mxu0 0.0
      %4895 = vmatprep.subr.mxu0 0.0
      %4896 = vmatpush1.msra.mxu0 0.0
      %4897 = vmatprep.subr.mxu0 0.0
      %4898 = vmatpush1.msra.mxu0 0.0
      %4899 = vmatprep.subr.mxu0 0.0
      %4900 = vmatpush1.msra.mxu0 0.0
      %4901 = vmatprep.subr.mxu0 0.0
      %4902 = vmatpush1.msra.mxu0 0.0
      %4903 = vmatprep.subr.mxu0 0.0
      %4904 = vmatpush1.msra.mxu0 0.0
      %4905 = vmatprep.subr.mxu0 0.0
      %4906 = vmatpush1.msra.mxu0 0.0
      %4907 = vmatprep.mubr.f32.mxu0 0.0
      %v4908 = vand.u32 %v914, 4294901760
      %4909 = vmatmul.mubr.f32.gmra.mrb[0].mxu0 %v4908
      %v4910 = vpop.f32.mrb[0].mxu0
      %v4911 = vadd.f32 %v4835, %v4910
      %v4912 = vpop.f32.mrb[0].mxu0
      %4913 = vdwg.mxu0
      %4914 = vmatprep.subr.mxu0 0.0
      %v4915 = vand.u32 %v4761, 4294901760
      %v4916 = vsub.f32 %v4761, %v4915
      %4917 = vmatpush1.msra.mxu0 %v4916
      %4918 = vmatprep.subr.mxu0 0.0
      %4919 = vmatpush1.msra.mxu0 0.0
      %4920 = vmatprep.subr.mxu0 0.0
      %4921 = vmatpush1.msra.mxu0 0.0
      %4922 = vmatprep.subr.mxu0 0.0
      %4923 = vmatpush1.msra.mxu0 0.0
      %4924 = vmatprep.subr.mxu0 0.0
      %4925 = vmatpush1.msra.mxu0 0.0
      %4926 = vmatprep.subr.mxu0 0.0
      %4927 = vmatpush1.msra.mxu0 0.0
      %4928 = vmatprep.subr.mxu0 0.0
      %4929 = vmatpush1.msra.mxu0 0.0
      %4930 = vmatprep.subr.mxu0 0.0
      %4931 = vmatpush1.msra.mxu0 0.0
      %4932 = vmatprep.subr.mxu0 0.0
      %4933 = vmatpush1.msra.mxu0 0.0
      %4934 = vmatprep.subr.mxu0 0.0
      %4935 = vmatpush1.msra.mxu0 0.0
      %4936 = vmatprep.subr.mxu0 0.0
      %4937 = vmatpush1.msra.mxu0 0.0
      %4938 = vmatprep.subr.mxu0 0.0
      %4939 = vmatpush1.msra.mxu0 0.0
      %4940 = vmatprep.subr.mxu0 0.0
      %4941 = vmatpush1.msra.mxu0 0.0
      %4942 = vmatprep.subr.mxu0 0.0
      %4943 = vmatpush1.msra.mxu0 0.0
      %4944 = vmatprep.subr.mxu0 0.0
      %4945 = vmatpush1.msra.mxu0 0.0
      %4946 = vmatprep.subr.mxu0 0.0
      %4947 = vmatpush1.msra.mxu0 0.0
      %4948 = vmatprep.subr.mxu0 0.0
      %4949 = vmatpush1.msra.mxu0 0.0
      %4950 = vmatprep.subr.mxu0 0.0
      %4951 = vmatpush1.msra.mxu0 0.0
      %4952 = vmatprep.subr.mxu0 0.0
      %4953 = vmatpush1.msra.mxu0 0.0
      %4954 = vmatprep.subr.mxu0 0.0
      %4955 = vmatpush1.msra.mxu0 0.0
      %4956 = vmatprep.subr.mxu0 0.0
      %4957 = vmatpush1.msra.mxu0 0.0
      %4958 = vmatprep.subr.mxu0 0.0
      %4959 = vmatpush1.msra.mxu0 0.0
      %4960 = vmatprep.subr.mxu0 0.0
      %4961 = vmatpush1.msra.mxu0 0.0
      %4962 = vmatprep.subr.mxu0 0.0
      %4963 = vmatpush1.msra.mxu0 0.0
      %4964 = vmatprep.subr.mxu0 0.0
      %4965 = vmatpush1.msra.mxu0 0.0
      %4966 = vmatprep.subr.mxu0 0.0
      %4967 = vmatpush1.msra.mxu0 0.0
      %4968 = vmatprep.subr.mxu0 0.0
      %4969 = vmatpush1.msra.mxu0 0.0
      %4970 = vmatprep.subr.mxu0 0.0
      %4971 = vmatpush1.msra.mxu0 0.0
      %4972 = vmatprep.subr.mxu0 0.0
      %4973 = vmatpush1.msra.mxu0 0.0
      %4974 = vmatprep.subr.mxu0 0.0
      %4975 = vmatpush1.msra.mxu0 0.0
      %4976 = vmatprep.subr.mxu0 0.0
      %4977 = vmatpush1.msra.mxu0 0.0
      %4978 = vmatprep.subr.mxu0 0.0
      %4979 = vmatpush1.msra.mxu0 0.0
      %4980 = vmatprep.mubr.f32.mxu0 0.0
      %v4981 = vand.u32 %v914, 4294901760
      %v4982 = vsub.f32 %v914, %v4981
      %4983 = vmatmul.mubr.f32.gmra.mrb[0].mxu0 %v4982
      %v4984 = vpop.f32.mrb[0].mxu0
      %v4985 = vadd.f32 %v4911, %v4984
      %v4986 = vpop.f32.mrb[0].mxu0
      %4987 = vdwg.mxu0
      %4988 = vmatprep.subr.mxu0 0.0
      %v4989 = vand.u32 %v4761, 4294901760
      %4990 = vmatpush1.msra.mxu0 %v4989
      %4991 = vmatprep.subr.mxu0 0.0
      %4992 = vmatpush1.msra.mxu0 0.0
      %4993 = vmatprep.subr.mxu0 0.0
      %4994 = vmatpush1.msra.mxu0 0.0
      %4995 = vmatprep.subr.mxu0 0.0
      %4996 = vmatpush1.msra.mxu0 0.0
      %4997 = vmatprep.subr.mxu0 0.0
      %4998 = vmatpush1.msra.mxu0 0.0
      %4999 = vmatprep.subr.mxu0 0.0
      %5000 = vmatpush1.msra.mxu0 0.0
      %5001 = vmatprep.subr.mxu0 0.0
      %5002 = vmatpush1.msra.mxu0 0.0
      %5003 = vmatprep.subr.mxu0 0.0
      %5004 = vmatpush1.msra.mxu0 0.0
      %5005 = vmatprep.subr.mxu0 0.0
      %5006 = vmatpush1.msra.mxu0 0.0
      %5007 = vmatprep.subr.mxu0 0.0
      %5008 = vmatpush1.msra.mxu0 0.0
      %5009 = vmatprep.subr.mxu0 0.0
      %5010 = vmatpush1.msra.mxu0 0.0
      %5011 = vmatprep.subr.mxu0 0.0
      %5012 = vmatpush1.msra.mxu0 0.0
      %5013 = vmatprep.subr.mxu0 0.0
      %5014 = vmatpush1.msra.mxu0 0.0
      %5015 = vmatprep.subr.mxu0 0.0
      %5016 = vmatpush1.msra.mxu0 0.0
      %5017 = vmatprep.subr.mxu0 0.0
      %5018 = vmatpush1.msra.mxu0 0.0
      %5019 = vmatprep.subr.mxu0 0.0
      %5020 = vmatpush1.msra.mxu0 0.0
      %5021 = vmatprep.subr.mxu0 0.0
      %5022 = vmatpush1.msra.mxu0 0.0
      %5023 = vmatprep.subr.mxu0 0.0
      %5024 = vmatpush1.msra.mxu0 0.0
      %5025 = vmatprep.subr.mxu0 0.0
      %5026 = vmatpush1.msra.mxu0 0.0
      %5027 = vmatprep.subr.mxu0 0.0
      %5028 = vmatpush1.msra.mxu0 0.0
      %5029 = vmatprep.subr.mxu0 0.0
      %5030 = vmatpush1.msra.mxu0 0.0
      %5031 = vmatprep.subr.mxu0 0.0
      %5032 = vmatpush1.msra.mxu0 0.0
      %5033 = vmatprep.subr.mxu0 0.0
      %5034 = vmatpush1.msra.mxu0 0.0
      %5035 = vmatprep.subr.mxu0 0.0
      %5036 = vmatpush1.msra.mxu0 0.0
      %5037 = vmatprep.subr.mxu0 0.0
      %5038 = vmatpush1.msra.mxu0 0.0
      %5039 = vmatprep.subr.mxu0 0.0
      %5040 = vmatpush1.msra.mxu0 0.0
      %5041 = vmatprep.subr.mxu0 0.0
      %5042 = vmatpush1.msra.mxu0 0.0
      %5043 = vmatprep.subr.mxu0 0.0
      %5044 = vmatpush1.msra.mxu0 0.0
      %5045 = vmatprep.subr.mxu0 0.0
      %5046 = vmatpush1.msra.mxu0 0.0
      %5047 = vmatprep.subr.mxu0 0.0
      %5048 = vmatpush1.msra.mxu0 0.0
      %5049 = vmatprep.subr.mxu0 0.0
      %5050 = vmatpush1.msra.mxu0 0.0
      %5051 = vmatprep.subr.mxu0 0.0
      %5052 = vmatpush1.msra.mxu0 0.0
      %5053 = vmatprep.mubr.f32.mxu0 0.0
      %v5054 = vand.u32 %v914, 4294901760
      %v5055 = vsub.f32 %v914, %v5054
      %v5056 = vand.u32 %v5055, 4294901760
      %5057 = vmatmul.mubr.f32.gmra.mrb[0].mxu0 %v5056
      %v5058 = vpop.f32.mrb[0].mxu0
      %v5059 = vadd.f32 %v4985, %v5058
      %v5060 = vpop.f32.mrb[0].mxu0
      %5061 = vdwg.mxu0
      %5062 = vmatprep.subr.mxu0 0.0
      %v5063 = vand.u32 %v4761, 4294901760
      %v5064 = vsub.f32 %v4761, %v5063
      %v5065 = vand.u32 %v5064, 4294901760
      %5066 = vmatpush1.msra.mxu0 %v5065
      %5067 = vmatprep.subr.mxu0 0.0
      %5068 = vmatpush1.msra.mxu0 0.0
      %5069 = vmatprep.subr.mxu0 0.0
      %5070 = vmatpush1.msra.mxu0 0.0
      %5071 = vmatprep.subr.mxu0 0.0
      %5072 = vmatpush1.msra.mxu0 0.0
      %5073 = vmatprep.subr.mxu0 0.0
      %5074 = vmatpush1.msra.mxu0 0.0
      %5075 = vmatprep.subr.mxu0 0.0
      %5076 = vmatpush1.msra.mxu0 0.0
      %5077 = vmatprep.subr.mxu0 0.0
      %5078 = vmatpush1.msra.mxu0 0.0
      %5079 = vmatprep.subr.mxu0 0.0
      %5080 = vmatpush1.msra.mxu0 0.0
      %5081 = vmatprep.subr.mxu0 0.0
      %5082 = vmatpush1.msra.mxu0 0.0
      %5083 = vmatprep.subr.mxu0 0.0
      %5084 = vmatpush1.msra.mxu0 0.0
      %5085 = vmatprep.subr.mxu0 0.0
      %5086 = vmatpush1.msra.mxu0 0.0
      %5087 = vmatprep.subr.mxu0 0.0
      %5088 = vmatpush1.msra.mxu0 0.0
      %5089 = vmatprep.subr.mxu0 0.0
      %5090 = vmatpush1.msra.mxu0 0.0
      %5091 = vmatprep.subr.mxu0 0.0
      %5092 = vmatpush1.msra.mxu0 0.0
      %5093 = vmatprep.subr.mxu0 0.0
      %5094 = vmatpush1.msra.mxu0 0.0
      %5095 = vmatprep.subr.mxu0 0.0
      %5096 = vmatpush1.msra.mxu0 0.0
      %5097 = vmatprep.subr.mxu0 0.0
      %5098 = vmatpush1.msra.mxu0 0.0
      %5099 = vmatprep.subr.mxu0 0.0
      %5100 = vmatpush1.msra.mxu0 0.0
      %5101 = vmatprep.subr.mxu0 0.0
      %5102 = vmatpush1.msra.mxu0 0.0
      %5103 = vmatprep.subr.mxu0 0.0
      %5104 = vmatpush1.msra.mxu0 0.0
      %5105 = vmatprep.subr.mxu0 0.0
      %5106 = vmatpush1.msra.mxu0 0.0
      %5107 = vmatprep.subr.mxu0 0.0
      %5108 = vmatpush1.msra.mxu0 0.0
      %5109 = vmatprep.subr.mxu0 0.0
      %5110 = vmatpush1.msra.mxu0 0.0
      %5111 = vmatprep.subr.mxu0 0.0
      %5112 = vmatpush1.msra.mxu0 0.0
      %5113 = vmatprep.subr.mxu0 0.0
      %5114 = vmatpush1.msra.mxu0 0.0
      %5115 = vmatprep.subr.mxu0 0.0
      %5116 = vmatpush1.msra.mxu0 0.0
      %5117 = vmatprep.subr.mxu0 0.0
      %5118 = vmatpush1.msra.mxu0 0.0
      %5119 = vmatprep.subr.mxu0 0.0
      %5120 = vmatpush1.msra.mxu0 0.0
      %5121 = vmatprep.subr.mxu0 0.0
      %5122 = vmatpush1.msra.mxu0 0.0
      %5123 = vmatprep.subr.mxu0 0.0
      %5124 = vmatpush1.msra.mxu0 0.0
      %5125 = vmatprep.subr.mxu0 0.0
      %5126 = vmatpush1.msra.mxu0 0.0
      %5127 = vmatprep.subr.mxu0 0.0
      %5128 = vmatpush1.msra.mxu0 0.0
      %5129 = vmatprep.mubr.f32.mxu0 0.0
      %v5130 = vand.u32 %v914, 4294901760
      %5131 = vmatmul.mubr.f32.gmra.mrb[0].mxu0 %v5130
      %v5132 = vpop.f32.mrb[0].mxu0
      %v5133 = vadd.f32 %v5059, %v5132
      %v5134 = vpop.f32.mrb[0].mxu0
      %5135 = vdwg.mxu0
      %5136 = vmatprep.subr.mxu0 0.0
      %v5137 = vand.u32 %v4761, 4294901760
      %5138 = vmatpush1.msra.mxu0 %v5137
      %5139 = vmatprep.subr.mxu0 0.0
      %5140 = vmatpush1.msra.mxu0 0.0
      %5141 = vmatprep.subr.mxu0 0.0
      %5142 = vmatpush1.msra.mxu0 0.0
      %5143 = vmatprep.subr.mxu0 0.0
      %5144 = vmatpush1.msra.mxu0 0.0
      %5145 = vmatprep.subr.mxu0 0.0
      %5146 = vmatpush1.msra.mxu0 0.0
      %5147 = vmatprep.subr.mxu0 0.0
      %5148 = vmatpush1.msra.mxu0 0.0
      %5149 = vmatprep.subr.mxu0 0.0
      %5150 = vmatpush1.msra.mxu0 0.0
      %5151 = vmatprep.subr.mxu0 0.0
      %5152 = vmatpush1.msra.mxu0 0.0
      %5153 = vmatprep.subr.mxu0 0.0
      %5154 = vmatpush1.msra.mxu0 0.0
      %5155 = vmatprep.subr.mxu0 0.0
      %5156 = vmatpush1.msra.mxu0 0.0
      %5157 = vmatprep.subr.mxu0 0.0
      %5158 = vmatpush1.msra.mxu0 0.0
      %5159 = vmatprep.subr.mxu0 0.0
      %5160 = vmatpush1.msra.mxu0 0.0
      %5161 = vmatprep.subr.mxu0 0.0
      %5162 = vmatpush1.msra.mxu0 0.0
      %5163 = vmatprep.subr.mxu0 0.0
      %5164 = vmatpush1.msra.mxu0 0.0
      %5165 = vmatprep.subr.mxu0 0.0
      %5166 = vmatpush1.msra.mxu0 0.0
      %5167 = vmatprep.subr.mxu0 0.0
      %5168 = vmatpush1.msra.mxu0 0.0
      %5169 = vmatprep.subr.mxu0 0.0
      %5170 = vmatpush1.msra.mxu0 0.0
      %5171 = vmatprep.subr.mxu0 0.0
      %5172 = vmatpush1.msra.mxu0 0.0
      %5173 = vmatprep.subr.mxu0 0.0
      %5174 = vmatpush1.msra.mxu0 0.0
      %5175 = vmatprep.subr.mxu0 0.0
      %5176 = vmatpush1.msra.mxu0 0.0
      %5177 = vmatprep.subr.mxu0 0.0
      %5178 = vmatpush1.msra.mxu0 0.0
      %5179 = vmatprep.subr.mxu0 0.0
      %5180 = vmatpush1.msra.mxu0 0.0
      %5181 = vmatprep.subr.mxu0 0.0
      %5182 = vmatpush1.msra.mxu0 0.0
      %5183 = vmatprep.subr.mxu0 0.0
      %5184 = vmatpush1.msra.mxu0 0.0
      %5185 = vmatprep.subr.mxu0 0.0
      %5186 = vmatpush1.msra.mxu0 0.0
      %5187 = vmatprep.subr.mxu0 0.0
      %5188 = vmatpush1.msra.mxu0 0.0
      %5189 = vmatprep.subr.mxu0 0.0
      %5190 = vmatpush1.msra.mxu0 0.0
      %5191 = vmatprep.subr.mxu0 0.0
      %5192 = vmatpush1.msra.mxu0 0.0
      %5193 = vmatprep.subr.mxu0 0.0
      %5194 = vmatpush1.msra.mxu0 0.0
      %5195 = vmatprep.subr.mxu0 0.0
      %5196 = vmatpush1.msra.mxu0 0.0
      %5197 = vmatprep.subr.mxu0 0.0
      %5198 = vmatpush1.msra.mxu0 0.0
      %5199 = vmatprep.subr.mxu0 0.0
      %5200 = vmatpush1.msra.mxu0 0.0
      %5201 = vmatprep.mubr.f32.mxu0 0.0
      %v5202 = vand.u32 %v914, 4294901760
      %5203 = vmatmul.mubr.f32.gmra.mrb[0].mxu0 %v5202
      %v5204 = vpop.f32.mrb[0].mxu0
      %v5205 = vadd.f32 %v5133, %v5204
      %v5206 = vpop.f32.mrb[0].mxu0
      %5207 = vdwg.mxu0
      %v5208 = vsub.f32 %v118, %v5205
      %v5209 = vmul.f32 %v5208, %v5208
      %5210 = vadd.xlane.f32.xlu0 %v5209
      %v5211 = vpop.xlane.xlu0 %5210
      %v5212 = vrot.slane %v5211, 4
      %v5213 = vadd.f32 %v5211, %v5212
      %v5214 = vrot.slane %v5213, 2
      %v5215 = vadd.f32 %v5213, %v5214
      %v5216 = vrot.slane %v5215, 1
      %v5217 = vadd.f32 %v5215, %v5216
      %s5218 = vtos %v5217
      %v5219 = vand.u32 2147483647, %v4761
      %5220 = vadd.xlane.f32.xlu0 %v5219
      %v5221 = vpop.xlane.xlu0 %5220
      %v5222 = vrot.slane %v5221, 4
      %v5223 = vmax.f32 %v5221, %v5222
      %v5224 = vrot.slane %v5223, 2
      %v5225 = vmax.f32 %v5223, %v5224
      %v5226 = vrot.slane %v5225, 1
      %v5227 = vmax.f32 %v5225, %v5226
      %s5228 = vtos %v5227
      %v5229 = vstv %s5228
      %v5230 = vrcp.pop %v5229
      %s5231 = vtos %v5230
      %p5232 = scmp.lt.f32.partialorder %s5218, 0.81
      %s5233 = scalar_select %p5232, 1, 0
      %s5234 = scvt.s32.f32 %s5233
      %v5235 = vstv %s5234
      %v5236 = vmul.f32 %v5235, %v914
      %s5237 = ssub.f32 1.0, %s5234
      %v5238 = vstv %s5231
      %v5239 = vmul.f32 %v5238, %v118
      %v5240 = vstv %s5237
      %v5241 = vmul.f32 %v5240, %v5239
      %v5242 = vadd.f32 %v5236, %v5241
      %v5243 = vmul.f32 %v5235, %v5205
      %v5244 = vmul.f32 %v5238, %v4761
      %v5245 = vmul.f32 %v5240, %v5244
      %v5246 = vadd.f32 %v5243, %v5245
      %v5247 = vmul.f32 %v5242, 2.0
      %5248 = vmatprep.subr.mxu0 0.0
      %v5249 = vand.u32 %v5242, 4294901760
      %5250 = vmatpush1.msra.mxu0 %v5249
      %5251 = vmatprep.subr.mxu0 0.0
      %5252 = vmatpush1.msra.mxu0 0.0
      %5253 = vmatprep.subr.mxu0 0.0
      %5254 = vmatpush1.msra.mxu0 0.0
      %5255 = vmatprep.subr.mxu0 0.0
      %5256 = vmatpush1.msra.mxu0 0.0
      %5257 = vmatprep.subr.mxu0 0.0
      %5258 = vmatpush1.msra.mxu0 0.0
      %5259 = vmatprep.subr.mxu0 0.0
      %5260 = vmatpush1.msra.mxu0 0.0
      %5261 = vmatprep.subr.mxu0 0.0
      %5262 = vmatpush1.msra.mxu0 0.0
      %5263 = vmatprep.subr.mxu0 0.0
      %5264 = vmatpush1.msra.mxu0 0.0
      %5265 = vmatprep.subr.mxu0 0.0
      %5266 = vmatpush1.msra.mxu0 0.0
      %5267 = vmatprep.subr.mxu0 0.0
      %5268 = vmatpush1.msra.mxu0 0.0
      %5269 = vmatprep.subr.mxu0 0.0
      %5270 = vmatpush1.msra.mxu0 0.0
      %5271 = vmatprep.subr.mxu0 0.0
      %5272 = vmatpush1.msra.mxu0 0.0
      %5273 = vmatprep.subr.mxu0 0.0
      %5274 = vmatpush1.msra.mxu0 0.0
      %5275 = vmatprep.subr.mxu0 0.0
      %5276 = vmatpush1.msra.mxu0 0.0
      %5277 = vmatprep.subr.mxu0 0.0
      %5278 = vmatpush1.msra.mxu0 0.0
      %5279 = vmatprep.subr.mxu0 0.0
      %5280 = vmatpush1.msra.mxu0 0.0
      %5281 = vmatprep.subr.mxu0 0.0
      %5282 = vmatpush1.msra.mxu0 0.0
      %5283 = vmatprep.subr.mxu0 0.0
      %5284 = vmatpush1.msra.mxu0 0.0
      %5285 = vmatprep.subr.mxu0 0.0
      %5286 = vmatpush1.msra.mxu0 0.0
      %5287 = vmatprep.subr.mxu0 0.0
      %5288 = vmatpush1.msra.mxu0 0.0
      %5289 = vmatprep.subr.mxu0 0.0
      %5290 = vmatpush1.msra.mxu0 0.0
      %5291 = vmatprep.subr.mxu0 0.0
      %5292 = vmatpush1.msra.mxu0 0.0
      %5293 = vmatprep.subr.mxu0 0.0
      %5294 = vmatpush1.msra.mxu0 0.0
      %5295 = vmatprep.subr.mxu0 0.0
      %5296 = vmatpush1.msra.mxu0 0.0
      %5297 = vmatprep.subr.mxu0 0.0
      %5298 = vmatpush1.msra.mxu0 0.0
      %5299 = vmatprep.subr.mxu0 0.0
      %5300 = vmatpush1.msra.mxu0 0.0
      %5301 = vmatprep.subr.mxu0 0.0
      %5302 = vmatpush1.msra.mxu0 0.0
      %5303 = vmatprep.subr.mxu0 0.0
      %5304 = vmatpush1.msra.mxu0 0.0
      %5305 = vmatprep.subr.mxu0 0.0
      %5306 = vmatpush1.msra.mxu0 0.0
      %5307 = vmatprep.subr.mxu0 0.0
      %5308 = vmatpush1.msra.mxu0 0.0
      %5309 = vmatprep.subr.mxu0 0.0
      %5310 = vmatpush1.msra.mxu0 0.0
      %5311 = vmatprep.subr.mxu0 0.0
      %5312 = vmatpush1.msra.mxu0 0.0
      %5313 = vmatprep.mubr.f32.mxu0 0.0
      %v5314 = vand.u32 %v5246, 4294901760
      %v5315 = vsub.f32 %v5246, %v5314
      %v5316 = vand.u32 %v5315, 4294901760
      %v5317 = vsub.f32 %v5315, %v5316
      %v5318 = vand.u32 %v5317, 4294901760
      %5319 = vmatmul.mubr.f32.gmra.mrb[0].mxu0 %v5318
      %v5320 = vpop.f32.mrb[0].mxu0
      %v5321 = vadd.f32 0.0, %v5320
      %v5322 = vpop.f32.mrb[0].mxu0
      %5323 = vdwg.mxu0
      %5324 = vmatprep.subr.mxu0 0.0
      %v5325 = vand.u32 %v5242, 4294901760
      %v5326 = vsub.f32 %v5242, %v5325
      %v5327 = vand.u32 %v5326, 4294901760
      %v5328 = vsub.f32 %v5326, %v5327
      %v5329 = vand.u32 %v5328, 4294901760
      %5330 = vmatpush1.msra.mxu0 %v5329
      %5331 = vmatprep.subr.mxu0 0.0
      %5332 = vmatpush1.msra.mxu0 0.0
      %5333 = vmatprep.subr.mxu0 0.0
      %5334 = vmatpush1.msra.mxu0 0.0
      %5335 = vmatprep.subr.mxu0 0.0
      %5336 = vmatpush1.msra.mxu0 0.0
      %5337 = vmatprep.subr.mxu0 0.0
      %5338 = vmatpush1.msra.mxu0 0.0
      %5339 = vmatprep.subr.mxu0 0.0
      %5340 = vmatpush1.msra.mxu0 0.0
      %5341 = vmatprep.subr.mxu0 0.0
      %5342 = vmatpush1.msra.mxu0 0.0
      %5343 = vmatprep.subr.mxu0 0.0
      %5344 = vmatpush1.msra.mxu0 0.0
      %5345 = vmatprep.subr.mxu0 0.0
      %5346 = vmatpush1.msra.mxu0 0.0
      %5347 = vmatprep.subr.mxu0 0.0
      %5348 = vmatpush1.msra.mxu0 0.0
      %5349 = vmatprep.subr.mxu0 0.0
      %5350 = vmatpush1.msra.mxu0 0.0
      %5351 = vmatprep.subr.mxu0 0.0
      %5352 = vmatpush1.msra.mxu0 0.0
      %5353 = vmatprep.subr.mxu0 0.0
      %5354 = vmatpush1.msra.mxu0 0.0
      %5355 = vmatprep.subr.mxu0 0.0
      %5356 = vmatpush1.msra.mxu0 0.0
      %5357 = vmatprep.subr.mxu0 0.0
      %5358 = vmatpush1.msra.mxu0 0.0
      %5359 = vmatprep.subr.mxu0 0.0
      %5360 = vmatpush1.msra.mxu0 0.0
      %5361 = vmatprep.subr.mxu0 0.0
      %5362 = vmatpush1.msra.mxu0 0.0
      %5363 = vmatprep.subr.mxu0 0.0
      %5364 = vmatpush1.msra.mxu0 0.0
      %5365 = vmatprep.subr.mxu0 0.0
      %5366 = vmatpush1.msra.mxu0 0.0
      %5367 = vmatprep.subr.mxu0 0.0
      %5368 = vmatpush1.msra.mxu0 0.0
      %5369 = vmatprep.subr.mxu0 0.0
      %5370 = vmatpush1.msra.mxu0 0.0
      %5371 = vmatprep.subr.mxu0 0.0
      %5372 = vmatpush1.msra.mxu0 0.0
      %5373 = vmatprep.subr.mxu0 0.0
      %5374 = vmatpush1.msra.mxu0 0.0
      %5375 = vmatprep.subr.mxu0 0.0
      %5376 = vmatpush1.msra.mxu0 0.0
      %5377 = vmatprep.subr.mxu0 0.0
      %5378 = vmatpush1.msra.mxu0 0.0
      %5379 = vmatprep.subr.mxu0 0.0
      %5380 = vmatpush1.msra.mxu0 0.0
      %5381 = vmatprep.subr.mxu0 0.0
      %5382 = vmatpush1.msra.mxu0 0.0
      %5383 = vmatprep.subr.mxu0 0.0
      %5384 = vmatpush1.msra.mxu0 0.0
      %5385 = vmatprep.subr.mxu0 0.0
      %5386 = vmatpush1.msra.mxu0 0.0
      %5387 = vmatprep.subr.mxu0 0.0
      %5388 = vmatpush1.msra.mxu0 0.0
      %5389 = vmatprep.subr.mxu0 0.0
      %5390 = vmatpush1.msra.mxu0 0.0
      %5391 = vmatprep.subr.mxu0 0.0
      %5392 = vmatpush1.msra.mxu0 0.0
      %5393 = vmatprep.mubr.f32.mxu0 0.0
      %v5394 = vand.u32 %v5246, 4294901760
      %5395 = vmatmul.mubr.f32.gmra.mrb[0].mxu0 %v5394
      %v5396 = vpop.f32.mrb[0].mxu0
      %v5397 = vadd.f32 %v5321, %v5396
      %v5398 = vpop.f32.mrb[0].mxu0
      %5399 = vdwg.mxu0
      %5400 = vmatprep.subr.mxu0 0.0
      %v5401 = vand.u32 %v5242, 4294901760
      %v5402 = vsub.f32 %v5242, %v5401
      %5403 = vmatpush1.msra.mxu0 %v5402
      %5404 = vmatprep.subr.mxu0 0.0
      %5405 = vmatpush1.msra.mxu0 0.0
      %5406 = vmatprep.subr.mxu0 0.0
      %5407 = vmatpush1.msra.mxu0 0.0
      %5408 = vmatprep.subr.mxu0 0.0
      %5409 = vmatpush1.msra.mxu0 0.0
      %5410 = vmatprep.subr.mxu0 0.0
      %5411 = vmatpush1.msra.mxu0 0.0
      %5412 = vmatprep.subr.mxu0 0.0
      %5413 = vmatpush1.msra.mxu0 0.0
      %5414 = vmatprep.subr.mxu0 0.0
      %5415 = vmatpush1.msra.mxu0 0.0
      %5416 = vmatprep.subr.mxu0 0.0
      %5417 = vmatpush1.msra.mxu0 0.0
      %5418 = vmatprep.subr.mxu0 0.0
      %5419 = vmatpush1.msra.mxu0 0.0
      %5420 = vmatprep.subr.mxu0 0.0
      %5421 = vmatpush1.msra.mxu0 0.0
      %5422 = vmatprep.subr.mxu0 0.0
      %5423 = vmatpush1.msra.mxu0 0.0
      %5424 = vmatprep.subr.mxu0 0.0
      %5425 = vmatpush1.msra.mxu0 0.0
      %5426 = vmatprep.subr.mxu0 0.0
      %5427 = vmatpush1.msra.mxu0 0.0
      %5428 = vmatprep.subr.mxu0 0.0
      %5429 = vmatpush1.msra.mxu0 0.0
      %5430 = vmatprep.subr.mxu0 0.0
      %5431 = vmatpush1.msra.mxu0 0.0
      %5432 = vmatprep.subr.mxu0 0.0
      %5433 = vmatpush1.msra.mxu0 0.0
      %5434 = vmatprep.subr.mxu0 0.0
      %5435 = vmatpush1.msra.mxu0 0.0
      %5436 = vmatprep.subr.mxu0 0.0
      %5437 = vmatpush1.msra.mxu0 0.0
      %5438 = vmatprep.subr.mxu0 0.0
      %5439 = vmatpush1.msra.mxu0 0.0
      %5440 = vmatprep.subr.mxu0 0.0
      %5441 = vmatpush1.msra.mxu0 0.0
      %5442 = vmatprep.subr.mxu0 0.0
      %5443 = vmatpush1.msra.mxu0 0.0
      %5444 = vmatprep.subr.mxu0 0.0
      %5445 = vmatpush1.msra.mxu0 0.0
      %5446 = vmatprep.subr.mxu0 0.0
      %5447 = vmatpush1.msra.mxu0 0.0
      %5448 = vmatprep.subr.mxu0 0.0
      %5449 = vmatpush1.msra.mxu0 0.0
      %5450 = vmatprep.subr.mxu0 0.0
      %5451 = vmatpush1.msra.mxu0 0.0
      %5452 = vmatprep.subr.mxu0 0.0
      %5453 = vmatpush1.msra.mxu0 0.0
      %5454 = vmatprep.subr.mxu0 0.0
      %5455 = vmatpush1.msra.mxu0 0.0
      %5456 = vmatprep.subr.mxu0 0.0
      %5457 = vmatpush1.msra.mxu0 0.0
      %5458 = vmatprep.subr.mxu0 0.0
      %5459 = vmatpush1.msra.mxu0 0.0
      %5460 = vmatprep.subr.mxu0 0.0
      %5461 = vmatpush1.msra.mxu0 0.0
      %5462 = vmatprep.subr.mxu0 0.0
      %5463 = vmatpush1.msra.mxu0 0.0
      %5464 = vmatprep.subr.mxu0 0.0
      %5465 = vmatpush1.msra.mxu0 0.0
      %5466 = vmatprep.mubr.f32.mxu0 0.0
      %v5467 = vand.u32 %v5246, 4294901760
      %v5468 = vsub.f32 %v5246, %v5467
      %5469 = vmatmul.mubr.f32.gmra.mrb[0].mxu0 %v5468
      %v5470 = vpop.f32.mrb[0].mxu0
      %v5471 = vadd.f32 %v5397, %v5470
      %v5472 = vpop.f32.mrb[0].mxu0
      %5473 = vdwg.mxu0
      %5474 = vmatprep.subr.mxu0 0.0
      %v5475 = vand.u32 %v5242, 4294901760
      %5476 = vmatpush1.msra.mxu0 %v5475
      %5477 = vmatprep.subr.mxu0 0.0
      %5478 = vmatpush1.msra.mxu0 0.0
      %5479 = vmatprep.subr.mxu0 0.0
      %5480 = vmatpush1.msra.mxu0 0.0
      %5481 = vmatprep.subr.mxu0 0.0
      %5482 = vmatpush1.msra.mxu0 0.0
      %5483 = vmatprep.subr.mxu0 0.0
      %5484 = vmatpush1.msra.mxu0 0.0
      %5485 = vmatprep.subr.mxu0 0.0
      %5486 = vmatpush1.msra.mxu0 0.0
      %5487 = vmatprep.subr.mxu0 0.0
      %5488 = vmatpush1.msra.mxu0 0.0
      %5489 = vmatprep.subr.mxu0 0.0
      %5490 = vmatpush1.msra.mxu0 0.0
      %5491 = vmatprep.subr.mxu0 0.0
      %5492 = vmatpush1.msra.mxu0 0.0
      %5493 = vmatprep.subr.mxu0 0.0
      %5494 = vmatpush1.msra.mxu0 0.0
      %5495 = vmatprep.subr.mxu0 0.0
      %5496 = vmatpush1.msra.mxu0 0.0
      %5497 = vmatprep.subr.mxu0 0.0
      %5498 = vmatpush1.msra.mxu0 0.0
      %5499 = vmatprep.subr.mxu0 0.0
      %5500 = vmatpush1.msra.mxu0 0.0
      %5501 = vmatprep.subr.mxu0 0.0
      %5502 = vmatpush1.msra.mxu0 0.0
      %5503 = vmatprep.subr.mxu0 0.0
      %5504 = vmatpush1.msra.mxu0 0.0
      %5505 = vmatprep.subr.mxu0 0.0
      %5506 = vmatpush1.msra.mxu0 0.0
      %5507 = vmatprep.subr.mxu0 0.0
      %5508 = vmatpush1.msra.mxu0 0.0
      %5509 = vmatprep.subr.mxu0 0.0
      %5510 = vmatpush1.msra.mxu0 0.0
      %5511 = vmatprep.subr.mxu0 0.0
      %5512 = vmatpush1.msra.mxu0 0.0
      %5513 = vmatprep.subr.mxu0 0.0
      %5514 = vmatpush1.msra.mxu0 0.0
      %5515 = vmatprep.subr.mxu0 0.0
      %5516 = vmatpush1.msra.mxu0 0.0
      %5517 = vmatprep.subr.mxu0 0.0
      %5518 = vmatpush1.msra.mxu0 0.0
      %5519 = vmatprep.subr.mxu0 0.0
      %5520 = vmatpush1.msra.mxu0 0.0
      %5521 = vmatprep.subr.mxu0 0.0
      %5522 = vmatpush1.msra.mxu0 0.0
      %5523 = vmatprep.subr.mxu0 0.0
      %5524 = vmatpush1.msra.mxu0 0.0
      %5525 = vmatprep.subr.mxu0 0.0
      %5526 = vmatpush1.msra.mxu0 0.0
      %5527 = vmatprep.subr.mxu0 0.0
      %5528 = vmatpush1.msra.mxu0 0.0
      %5529 = vmatprep.subr.mxu0 0.0
      %5530 = vmatpush1.msra.mxu0 0.0
      %5531 = vmatprep.subr.mxu0 0.0
      %5532 = vmatpush1.msra.mxu0 0.0
      %5533 = vmatprep.subr.mxu0 0.0
      %5534 = vmatpush1.msra.mxu0 0.0
      %5535 = vmatprep.subr.mxu0 0.0
      %5536 = vmatpush1.msra.mxu0 0.0
      %5537 = vmatprep.subr.mxu0 0.0
      %5538 = vmatpush1.msra.mxu0 0.0
      %5539 = vmatprep.mubr.f32.mxu0 0.0
      %v5540 = vand.u32 %v5246, 4294901760
      %v5541 = vsub.f32 %v5246, %v5540
      %v5542 = vand.u32 %v5541, 4294901760
      %5543 = vmatmul.mubr.f32.gmra.mrb[0].mxu0 %v5542
      %v5544 = vpop.f32.mrb[0].mxu0
      %v5545 = vadd.f32 %v5471, %v5544
      %v5546 = vpop.f32.mrb[0].mxu0
      %5547 = vdwg.mxu0
      %5548 = vmatprep.subr.mxu0 0.0
      %v5549 = vand.u32 %v5242, 4294901760
      %v5550 = vsub.f32 %v5242, %v5549
      %v5551 = vand.u32 %v5550, 4294901760
      %5552 = vmatpush1.msra.mxu0 %v5551
      %5553 = vmatprep.subr.mxu0 0.0
      %5554 = vmatpush1.msra.mxu0 0.0
      %5555 = vmatprep.subr.mxu0 0.0
      %5556 = vmatpush1.msra.mxu0 0.0
      %5557 = vmatprep.subr.mxu0 0.0
      %5558 = vmatpush1.msra.mxu0 0.0
      %5559 = vmatprep.subr.mxu0 0.0
      %5560 = vmatpush1.msra.mxu0 0.0
      %5561 = vmatprep.subr.mxu0 0.0
      %5562 = vmatpush1.msra.mxu0 0.0
      %5563 = vmatprep.subr.mxu0 0.0
      %5564 = vmatpush1.msra.mxu0 0.0
      %5565 = vmatprep.subr.mxu0 0.0
      %5566 = vmatpush1.msra.mxu0 0.0
      %5567 = vmatprep.subr.mxu0 0.0
      %5568 = vmatpush1.msra.mxu0 0.0
      %5569 = vmatprep.subr.mxu0 0.0
      %5570 = vmatpush1.msra.mxu0 0.0
      %5571 = vmatprep.subr.mxu0 0.0
      %5572 = vmatpush1.msra.mxu0 0.0
      %5573 = vmatprep.subr.mxu0 0.0
      %5574 = vmatpush1.msra.mxu0 0.0
      %5575 = vmatprep.subr.mxu0 0.0
      %5576 = vmatpush1.msra.mxu0 0.0
      %5577 = vmatprep.subr.mxu0 0.0
      %5578 = vmatpush1.msra.mxu0 0.0
      %5579 = vmatprep.subr.mxu0 0.0
      %5580 = vmatpush1.msra.mxu0 0.0
      %5581 = vmatprep.subr.mxu0 0.0
      %5582 = vmatpush1.msra.mxu0 0.0
      %5583 = vmatprep.subr.mxu0 0.0
      %5584 = vmatpush1.msra.mxu0 0.0
      %5585 = vmatprep.subr.mxu0 0.0
      %5586 = vmatpush1.msra.mxu0 0.0
      %5587 = vmatprep.subr.mxu0 0.0
      %5588 = vmatpush1.msra.mxu0 0.0
      %5589 = vmatprep.subr.mxu0 0.0
      %5590 = vmatpush1.msra.mxu0 0.0
      %5591 = vmatprep.subr.mxu0 0.0
      %5592 = vmatpush1.msra.mxu0 0.0
      %5593 = vmatprep.subr.mxu0 0.0
      %5594 = vmatpush1.msra.mxu0 0.0
      %5595 = vmatprep.subr.mxu0 0.0
      %5596 = vmatpush1.msra.mxu0 0.0
      %5597 = vmatprep.subr.mxu0 0.0
      %5598 = vmatpush1.msra.mxu0 0.0
      %5599 = vmatprep.subr.mxu0 0.0
      %5600 = vmatpush1.msra.mxu0 0.0
      %5601 = vmatprep.subr.mxu0 0.0
      %5602 = vmatpush1.msra.mxu0 0.0
      %5603 = vmatprep.subr.mxu0 0.0
      %5604 = vmatpush1.msra.mxu0 0.0
      %5605 = vmatprep.subr.mxu0 0.0
      %5606 = vmatpush1.msra.mxu0 0.0
      %5607 = vmatprep.subr.mxu0 0.0
      %5608 = vmatpush1.msra.mxu0 0.0
      %5609 = vmatprep.subr.mxu0 0.0
      %5610 = vmatpush1.msra.mxu0 0.0
      %5611 = vmatprep.subr.mxu0 0.0
      %5612 = vmatpush1.msra.mxu0 0.0
      %5613 = vmatprep.subr.mxu0 0.0
      %5614 = vmatpush1.msra.mxu0 0.0
      %5615 = vmatprep.mubr.f32.mxu0 0.0
      %v5616 = vand.u32 %v5246, 4294901760
      %5617 = vmatmul.mubr.f32.gmra.mrb[0].mxu0 %v5616
      %v5618 = vpop.f32.mrb[0].mxu0
      %v5619 = vadd.f32 %v5545, %v5618
      %v5620 = vpop.f32.mrb[0].mxu0
      %5621 = vdwg.mxu0
      %5622 = vmatprep.subr.mxu0 0.0
      %v5623 = vand.u32 %v5242, 4294901760
      %5624 = vmatpush1.msra.mxu0 %v5623
      %5625 = vmatprep.subr.mxu0 0.0
      %5626 = vmatpush1.msra.mxu0 0.0
      %5627 = vmatprep.subr.mxu0 0.0
      %5628 = vmatpush1.msra.mxu0 0.0
      %5629 = vmatprep.subr.mxu0 0.0
      %5630 = vmatpush1.msra.mxu0 0.0
      %5631 = vmatprep.subr.mxu0 0.0
      %5632 = vmatpush1.msra.mxu0 0.0
      %5633 = vmatprep.subr.mxu0 0.0
      %5634 = vmatpush1.msra.mxu0 0.0
      %5635 = vmatprep.subr.mxu0 0.0
      %5636 = vmatpush1.msra.mxu0 0.0
      %5637 = vmatprep.subr.mxu0 0.0
      %5638 = vmatpush1.msra.mxu0 0.0
      %5639 = vmatprep.subr.mxu0 0.0
      %5640 = vmatpush1.msra.mxu0 0.0
      %5641 = vmatprep.subr.mxu0 0.0
      %5642 = vmatpush1.msra.mxu0 0.0
      %5643 = vmatprep.subr.mxu0 0.0
      %5644 = vmatpush1.msra.mxu0 0.0
      %5645 = vmatprep.subr.mxu0 0.0
      %5646 = vmatpush1.msra.mxu0 0.0
      %5647 = vmatprep.subr.mxu0 0.0
      %5648 = vmatpush1.msra.mxu0 0.0
      %5649 = vmatprep.subr.mxu0 0.0
      %5650 = vmatpush1.msra.mxu0 0.0
      %5651 = vmatprep.subr.mxu0 0.0
      %5652 = vmatpush1.msra.mxu0 0.0
      %5653 = vmatprep.subr.mxu0 0.0
      %5654 = vmatpush1.msra.mxu0 0.0
      %5655 = vmatprep.subr.mxu0 0.0
      %5656 = vmatpush1.msra.mxu0 0.0
      %5657 = vmatprep.subr.mxu0 0.0
      %5658 = vmatpush1.msra.mxu0 0.0
      %5659 = vmatprep.subr.mxu0 0.0
      %5660 = vmatpush1.msra.mxu0 0.0
      %5661 = vmatprep.subr.mxu0 0.0
      %5662 = vmatpush1.msra.mxu0 0.0
      %5663 = vmatprep.subr.mxu0 0.0
      %5664 = vmatpush1.msra.mxu0 0.0
      %5665 = vmatprep.subr.mxu0 0.0
      %5666 = vmatpush1.msra.mxu0 0.0
      %5667 = vmatprep.subr.mxu0 0.0
      %5668 = vmatpush1.msra.mxu0 0.0
      %5669 = vmatprep.subr.mxu0 0.0
      %5670 = vmatpush1.msra.mxu0 0.0
      %5671 = vmatprep.subr.mxu0 0.0
      %5672 = vmatpush1.msra.mxu0 0.0
      %5673 = vmatprep.subr.mxu0 0.0
      %5674 = vmatpush1.msra.mxu0 0.0
      %5675 = vmatprep.subr.mxu0 0.0
      %5676 = vmatpush1.msra.mxu0 0.0
      %5677 = vmatprep.subr.mxu0 0.0
      %5678 = vmatpush1.msra.mxu0 0.0
      %5679 = vmatprep.subr.mxu0 0.0
      %5680 = vmatpush1.msra.mxu0 0.0
      %5681 = vmatprep.subr.mxu0 0.0
      %5682 = vmatpush1.msra.mxu0 0.0
      %5683 = vmatprep.subr.mxu0 0.0
      %5684 = vmatpush1.msra.mxu0 0.0
      %5685 = vmatprep.subr.mxu0 0.0
      %5686 = vmatpush1.msra.mxu0 0.0
      %5687 = vmatprep.mubr.f32.mxu0 0.0
      %v5688 = vand.u32 %v5246, 4294901760
      %5689 = vmatmul.mubr.f32.gmra.mrb[0].mxu0 %v5688
      %v5690 = vpop.f32.mrb[0].mxu0
      %v5691 = vadd.f32 %v5619, %v5690
      %v5692 = vpop.f32.mrb[0].mxu0
      %5693 = vdwg.mxu0
      %v5694 = vsub.f32 %v5247, %v5691
      %5695 = vmatprep.subr.mxu0 0.0
      %v5696 = vand.u32 %v4761, 4294901760
      %5697 = vmatpush1.msra.mxu0 %v5696
      %5698 = vmatprep.subr.mxu0 0.0
      %5699 = vmatpush1.msra.mxu0 0.0
      %5700 = vmatprep.subr.mxu0 0.0
      %5701 = vmatpush1.msra.mxu0 0.0
      %5702 = vmatprep.subr.mxu0 0.0
      %5703 = vmatpush1.msra.mxu0 0.0
      %5704 = vmatprep.subr.mxu0 0.0
      %5705 = vmatpush1.msra.mxu0 0.0
      %5706 = vmatprep.subr.mxu0 0.0
      %5707 = vmatpush1.msra.mxu0 0.0
      %5708 = vmatprep.subr.mxu0 0.0
      %5709 = vmatpush1.msra.mxu0 0.0
      %5710 = vmatprep.subr.mxu0 0.0
      %5711 = vmatpush1.msra.mxu0 0.0
      %5712 = vmatprep.subr.mxu0 0.0
      %5713 = vmatpush1.msra.mxu0 0.0
      %5714 = vmatprep.subr.mxu0 0.0
      %5715 = vmatpush1.msra.mxu0 0.0
      %5716 = vmatprep.subr.mxu0 0.0
      %5717 = vmatpush1.msra.mxu0 0.0
      %5718 = vmatprep.subr.mxu0 0.0
      %5719 = vmatpush1.msra.mxu0 0.0
      %5720 = vmatprep.subr.mxu0 0.0
      %5721 = vmatpush1.msra.mxu0 0.0
      %5722 = vmatprep.subr.mxu0 0.0
      %5723 = vmatpush1.msra.mxu0 0.0
      %5724 = vmatprep.subr.mxu0 0.0
      %5725 = vmatpush1.msra.mxu0 0.0
      %5726 = vmatprep.subr.mxu0 0.0
      %5727 = vmatpush1.msra.mxu0 0.0
      %5728 = vmatprep.subr.mxu0 0.0
      %5729 = vmatpush1.msra.mxu0 0.0
      %5730 = vmatprep.subr.mxu0 0.0
      %5731 = vmatpush1.msra.mxu0 0.0
      %5732 = vmatprep.subr.mxu0 0.0
      %5733 = vmatpush1.msra.mxu0 0.0
      %5734 = vmatprep.subr.mxu0 0.0
      %5735 = vmatpush1.msra.mxu0 0.0
      %5736 = vmatprep.subr.mxu0 0.0
      %5737 = vmatpush1.msra.mxu0 0.0
      %5738 = vmatprep.subr.mxu0 0.0
      %5739 = vmatpush1.msra.mxu0 0.0
      %5740 = vmatprep.subr.mxu0 0.0
      %5741 = vmatpush1.msra.mxu0 0.0
      %5742 = vmatprep.subr.mxu0 0.0
      %5743 = vmatpush1.msra.mxu0 0.0
      %5744 = vmatprep.subr.mxu0 0.0
      %5745 = vmatpush1.msra.mxu0 0.0
      %5746 = vmatprep.subr.mxu0 0.0
      %5747 = vmatpush1.msra.mxu0 0.0
      %5748 = vmatprep.subr.mxu0 0.0
      %5749 = vmatpush1.msra.mxu0 0.0
      %5750 = vmatprep.subr.mxu0 0.0
      %5751 = vmatpush1.msra.mxu0 0.0
      %5752 = vmatprep.subr.mxu0 0.0
      %5753 = vmatpush1.msra.mxu0 0.0
      %5754 = vmatprep.subr.mxu0 0.0
      %5755 = vmatpush1.msra.mxu0 0.0
      %5756 = vmatprep.subr.mxu0 0.0
      %5757 = vmatpush1.msra.mxu0 0.0
      %5758 = vmatprep.subr.mxu0 0.0
      %5759 = vmatpush1.msra.mxu0 0.0
      %5760 = vmatprep.mubr.f32.mxu0 0.0
      %v5761 = vand.u32 %v5694, 4294901760
      %v5762 = vsub.f32 %v5694, %v5761
      %v5763 = vand.u32 %v5762, 4294901760
      %v5764 = vsub.f32 %v5762, %v5763
      %v5765 = vand.u32 %v5764, 4294901760
      %5766 = vmatmul.mubr.f32.gmra.mrb[0].mxu0 %v5765
      %v5767 = vpop.f32.mrb[0].mxu0
      %v5768 = vadd.f32 0.0, %v5767
      %v5769 = vpop.f32.mrb[0].mxu0
      %5770 = vdwg.mxu0
      %5771 = vmatprep.subr.mxu0 0.0
      %v5772 = vand.u32 %v4761, 4294901760
      %v5773 = vsub.f32 %v4761, %v5772
      %v5774 = vand.u32 %v5773, 4294901760
      %v5775 = vsub.f32 %v5773, %v5774
      %v5776 = vand.u32 %v5775, 4294901760
      %5777 = vmatpush1.msra.mxu0 %v5776
      %5778 = vmatprep.subr.mxu0 0.0
      %5779 = vmatpush1.msra.mxu0 0.0
      %5780 = vmatprep.subr.mxu0 0.0
      %5781 = vmatpush1.msra.mxu0 0.0
      %5782 = vmatprep.subr.mxu0 0.0
      %5783 = vmatpush1.msra.mxu0 0.0
      %5784 = vmatprep.subr.mxu0 0.0
      %5785 = vmatpush1.msra.mxu0 0.0
      %5786 = vmatprep.subr.mxu0 0.0
      %5787 = vmatpush1.msra.mxu0 0.0
      %5788 = vmatprep.subr.mxu0 0.0
      %5789 = vmatpush1.msra.mxu0 0.0
      %5790 = vmatprep.subr.mxu0 0.0
      %5791 = vmatpush1.msra.mxu0 0.0
      %5792 = vmatprep.subr.mxu0 0.0
      %5793 = vmatpush1.msra.mxu0 0.0
      %5794 = vmatprep.subr.mxu0 0.0
      %5795 = vmatpush1.msra.mxu0 0.0
      %5796 = vmatprep.subr.mxu0 0.0
      %5797 = vmatpush1.msra.mxu0 0.0
      %5798 = vmatprep.subr.mxu0 0.0
      %5799 = vmatpush1.msra.mxu0 0.0
      %5800 = vmatprep.subr.mxu0 0.0
      %5801 = vmatpush1.msra.mxu0 0.0
      %5802 = vmatprep.subr.mxu0 0.0
      %5803 = vmatpush1.msra.mxu0 0.0
      %5804 = vmatprep.subr.mxu0 0.0
      %5805 = vmatpush1.msra.mxu0 0.0
      %5806 = vmatprep.subr.mxu0 0.0
      %5807 = vmatpush1.msra.mxu0 0.0
      %5808 = vmatprep.subr.mxu0 0.0
      %5809 = vmatpush1.msra.mxu0 0.0
      %5810 = vmatprep.subr.mxu0 0.0
      %5811 = vmatpush1.msra.mxu0 0.0
      %5812 = vmatprep.subr.mxu0 0.0
      %5813 = vmatpush1.msra.mxu0 0.0
      %5814 = vmatprep.subr.mxu0 0.0
      %5815 = vmatpush1.msra.mxu0 0.0
      %5816 = vmatprep.subr.mxu0 0.0
      %5817 = vmatpush1.msra.mxu0 0.0
      %5818 = vmatprep.subr.mxu0 0.0
      %5819 = vmatpush1.msra.mxu0 0.0
      %5820 = vmatprep.subr.mxu0 0.0
      %5821 = vmatpush1.msra.mxu0 0.0
      %5822 = vmatprep.subr.mxu0 0.0
      %5823 = vmatpush1.msra.mxu0 0.0
      %5824 = vmatprep.subr.mxu0 0.0
      %5825 = vmatpush1.msra.mxu0 0.0
      %5826 = vmatprep.subr.mxu0 0.0
      %5827 = vmatpush1.msra.mxu0 0.0
      %5828 = vmatprep.subr.mxu0 0.0
      %5829 = vmatpush1.msra.mxu0 0.0
      %5830 = vmatprep.subr.mxu0 0.0
      %5831 = vmatpush1.msra.mxu0 0.0
      %5832 = vmatprep.subr.mxu0 0.0
      %5833 = vmatpush1.msra.mxu0 0.0
      %5834 = vmatprep.subr.mxu0 0.0
      %5835 = vmatpush1.msra.mxu0 0.0
      %5836 = vmatprep.subr.mxu0 0.0
      %5837 = vmatpush1.msra.mxu0 0.0
      %5838 = vmatprep.subr.mxu0 0.0
      %5839 = vmatpush1.msra.mxu0 0.0
      %5840 = vmatprep.mubr.f32.mxu0 0.0
      %v5841 = vand.u32 %v5694, 4294901760
      %5842 = vmatmul.mubr.f32.gmra.mrb[0].mxu0 %v5841
      %v5843 = vpop.f32.mrb[0].mxu0
      %v5844 = vadd.f32 %v5768, %v5843
      %v5845 = vpop.f32.mrb[0].mxu0
      %5846 = vdwg.mxu0
      %5847 = vmatprep.subr.mxu0 0.0
      %v5848 = vand.u32 %v4761, 4294901760
      %v5849 = vsub.f32 %v4761, %v5848
      %5850 = vmatpush1.msra.mxu0 %v5849
      %5851 = vmatprep.subr.mxu0 0.0
      %5852 = vmatpush1.msra.mxu0 0.0
      %5853 = vmatprep.subr.mxu0 0.0
      %5854 = vmatpush1.msra.mxu0 0.0
      %5855 = vmatprep.subr.mxu0 0.0
      %5856 = vmatpush1.msra.mxu0 0.0
      %5857 = vmatprep.subr.mxu0 0.0
      %5858 = vmatpush1.msra.mxu0 0.0
      %5859 = vmatprep.subr.mxu0 0.0
      %5860 = vmatpush1.msra.mxu0 0.0
      %5861 = vmatprep.subr.mxu0 0.0
      %5862 = vmatpush1.msra.mxu0 0.0
      %5863 = vmatprep.subr.mxu0 0.0
      %5864 = vmatpush1.msra.mxu0 0.0
      %5865 = vmatprep.subr.mxu0 0.0
      %5866 = vmatpush1.msra.mxu0 0.0
      %5867 = vmatprep.subr.mxu0 0.0
      %5868 = vmatpush1.msra.mxu0 0.0
      %5869 = vmatprep.subr.mxu0 0.0
      %5870 = vmatpush1.msra.mxu0 0.0
      %5871 = vmatprep.subr.mxu0 0.0
      %5872 = vmatpush1.msra.mxu0 0.0
      %5873 = vmatprep.subr.mxu0 0.0
      %5874 = vmatpush1.msra.mxu0 0.0
      %5875 = vmatprep.subr.mxu0 0.0
      %5876 = vmatpush1.msra.mxu0 0.0
      %5877 = vmatprep.subr.mxu0 0.0
      %5878 = vmatpush1.msra.mxu0 0.0
      %5879 = vmatprep.subr.mxu0 0.0
      %5880 = vmatpush1.msra.mxu0 0.0
      %5881 = vmatprep.subr.mxu0 0.0
      %5882 = vmatpush1.msra.mxu0 0.0
      %5883 = vmatprep.subr.mxu0 0.0
      %5884 = vmatpush1.msra.mxu0 0.0
      %5885 = vmatprep.subr.mxu0 0.0
      %5886 = vmatpush1.msra.mxu0 0.0
      %5887 = vmatprep.subr.mxu0 0.0
      %5888 = vmatpush1.msra.mxu0 0.0
      %5889 = vmatprep.subr.mxu0 0.0
      %5890 = vmatpush1.msra.mxu0 0.0
      %5891 = vmatprep.subr.mxu0 0.0
      %5892 = vmatpush1.msra.mxu0 0.0
      %5893 = vmatprep.subr.mxu0 0.0
      %5894 = vmatpush1.msra.mxu0 0.0
      %5895 = vmatprep.subr.mxu0 0.0
      %5896 = vmatpush1.msra.mxu0 0.0
      %5897 = vmatprep.subr.mxu0 0.0
      %5898 = vmatpush1.msra.mxu0 0.0
      %5899 = vmatprep.subr.mxu0 0.0
      %5900 = vmatpush1.msra.mxu0 0.0
      %5901 = vmatprep.subr.mxu0 0.0
      %5902 = vmatpush1.msra.mxu0 0.0
      %5903 = vmatprep.subr.mxu0 0.0
      %5904 = vmatpush1.msra.mxu0 0.0
      %5905 = vmatprep.subr.mxu0 0.0
      %5906 = vmatpush1.msra.mxu0 0.0
      %5907 = vmatprep.subr.mxu0 0.0
      %5908 = vmatpush1.msra.mxu0 0.0
      %5909 = vmatprep.subr.mxu0 0.0
      %5910 = vmatpush1.msra.mxu0 0.0
      %5911 = vmatprep.subr.mxu0 0.0
      %5912 = vmatpush1.msra.mxu0 0.0
      %5913 = vmatprep.mubr.f32.mxu0 0.0
      %v5914 = vand.u32 %v5694, 4294901760
      %v5915 = vsub.f32 %v5694, %v5914
      %5916 = vmatmul.mubr.f32.gmra.mrb[0].mxu0 %v5915
      %v5917 = vpop.f32.mrb[0].mxu0
      %v5918 = vadd.f32 %v5844, %v5917
      %v5919 = vpop.f32.mrb[0].mxu0
      %5920 = vdwg.mxu0
      %5921 = vmatprep.subr.mxu0 0.0
      %v5922 = vand.u32 %v4761, 4294901760
      %5923 = vmatpush1.msra.mxu0 %v5922
      %5924 = vmatprep.subr.mxu0 0.0
      %5925 = vmatpush1.msra.mxu0 0.0
      %5926 = vmatprep.subr.mxu0 0.0
      %5927 = vmatpush1.msra.mxu0 0.0
      %5928 = vmatprep.subr.mxu0 0.0
      %5929 = vmatpush1.msra.mxu0 0.0
      %5930 = vmatprep.subr.mxu0 0.0
      %5931 = vmatpush1.msra.mxu0 0.0
      %5932 = vmatprep.subr.mxu0 0.0
      %5933 = vmatpush1.msra.mxu0 0.0
      %5934 = vmatprep.subr.mxu0 0.0
      %5935 = vmatpush1.msra.mxu0 0.0
      %5936 = vmatprep.subr.mxu0 0.0
      %5937 = vmatpush1.msra.mxu0 0.0
      %5938 = vmatprep.subr.mxu0 0.0
      %5939 = vmatpush1.msra.mxu0 0.0
      %5940 = vmatprep.subr.mxu0 0.0
      %5941 = vmatpush1.msra.mxu0 0.0
      %5942 = vmatprep.subr.mxu0 0.0
      %5943 = vmatpush1.msra.mxu0 0.0
      %5944 = vmatprep.subr.mxu0 0.0
      %5945 = vmatpush1.msra.mxu0 0.0
      %5946 = vmatprep.subr.mxu0 0.0
      %5947 = vmatpush1.msra.mxu0 0.0
      %5948 = vmatprep.subr.mxu0 0.0
      %5949 = vmatpush1.msra.mxu0 0.0
      %5950 = vmatprep.subr.mxu0 0.0
      %5951 = vmatpush1.msra.mxu0 0.0
      %5952 = vmatprep.subr.mxu0 0.0
      %5953 = vmatpush1.msra.mxu0 0.0
      %5954 = vmatprep.subr.mxu0 0.0
      %5955 = vmatpush1.msra.mxu0 0.0
      %5956 = vmatprep.subr.mxu0 0.0
      %5957 = vmatpush1.msra.mxu0 0.0
      %5958 = vmatprep.subr.mxu0 0.0
      %5959 = vmatpush1.msra.mxu0 0.0
      %5960 = vmatprep.subr.mxu0 0.0
      %5961 = vmatpush1.msra.mxu0 0.0
      %5962 = vmatprep.subr.mxu0 0.0
      %5963 = vmatpush1.msra.mxu0 0.0
      %5964 = vmatprep.subr.mxu0 0.0
      %5965 = vmatpush1.msra.mxu0 0.0
      %5966 = vmatprep.subr.mxu0 0.0
      %5967 = vmatpush1.msra.mxu0 0.0
      %5968 = vmatprep.subr.mxu0 0.0
      %5969 = vmatpush1.msra.mxu0 0.0
      %5970 = vmatprep.subr.mxu0 0.0
      %5971 = vmatpush1.msra.mxu0 0.0
      %5972 = vmatprep.subr.mxu0 0.0
      %5973 = vmatpush1.msra.mxu0 0.0
      %5974 = vmatprep.subr.mxu0 0.0
      %5975 = vmatpush1.msra.mxu0 0.0
      %5976 = vmatprep.subr.mxu0 0.0
      %5977 = vmatpush1.msra.mxu0 0.0
      %5978 = vmatprep.subr.mxu0 0.0
      %5979 = vmatpush1.msra.mxu0 0.0
      %5980 = vmatprep.subr.mxu0 0.0
      %5981 = vmatpush1.msra.mxu0 0.0
      %5982 = vmatprep.subr.mxu0 0.0
      %5983 = vmatpush1.msra.mxu0 0.0
      %5984 = vmatprep.subr.mxu0 0.0
      %5985 = vmatpush1.msra.mxu0 0.0
      %5986 = vmatprep.mubr.f32.mxu0 0.0
      %v5987 = vand.u32 %v5694, 4294901760
      %v5988 = vsub.f32 %v5694, %v5987
      %v5989 = vand.u32 %v5988, 4294901760
      %5990 = vmatmul.mubr.f32.gmra.mrb[0].mxu0 %v5989
      %v5991 = vpop.f32.mrb[0].mxu0
      %v5992 = vadd.f32 %v5918, %v5991
      %v5993 = vpop.f32.mrb[0].mxu0
      %5994 = vdwg.mxu0
      %5995 = vmatprep.subr.mxu0 0.0
      %v5996 = vand.u32 %v4761, 4294901760
      %v5997 = vsub.f32 %v4761, %v5996
      %v5998 = vand.u32 %v5997, 4294901760
      %5999 = vmatpush1.msra.mxu0 %v5998
      %6000 = vmatprep.subr.mxu0 0.0
      %6001 = vmatpush1.msra.mxu0 0.0
      %6002 = vmatprep.subr.mxu0 0.0
      %6003 = vmatpush1.msra.mxu0 0.0
      %6004 = vmatprep.subr.mxu0 0.0
      %6005 = vmatpush1.msra.mxu0 0.0
      %6006 = vmatprep.subr.mxu0 0.0
      %6007 = vmatpush1.msra.mxu0 0.0
      %6008 = vmatprep.subr.mxu0 0.0
      %6009 = vmatpush1.msra.mxu0 0.0
      %6010 = vmatprep.subr.mxu0 0.0
      %6011 = vmatpush1.msra.mxu0 0.0
      %6012 = vmatprep.subr.mxu0 0.0
      %6013 = vmatpush1.msra.mxu0 0.0
      %6014 = vmatprep.subr.mxu0 0.0
      %6015 = vmatpush1.msra.mxu0 0.0
      %6016 = vmatprep.subr.mxu0 0.0
      %6017 = vmatpush1.msra.mxu0 0.0
      %6018 = vmatprep.subr.mxu0 0.0
      %6019 = vmatpush1.msra.mxu0 0.0
      %6020 = vmatprep.subr.mxu0 0.0
      %6021 = vmatpush1.msra.mxu0 0.0
      %6022 = vmatprep.subr.mxu0 0.0
      %6023 = vmatpush1.msra.mxu0 0.0
      %6024 = vmatprep.subr.mxu0 0.0
      %6025 = vmatpush1.msra.mxu0 0.0
      %6026 = vmatprep.subr.mxu0 0.0
      %6027 = vmatpush1.msra.mxu0 0.0
      %6028 = vmatprep.subr.mxu0 0.0
      %6029 = vmatpush1.msra.mxu0 0.0
      %6030 = vmatprep.subr.mxu0 0.0
      %6031 = vmatpush1.msra.mxu0 0.0
      %6032 = vmatprep.subr.mxu0 0.0
      %6033 = vmatpush1.msra.mxu0 0.0
      %6034 = vmatprep.subr.mxu0 0.0
      %6035 = vmatpush1.msra.mxu0 0.0
      %6036 = vmatprep.subr.mxu0 0.0
      %6037 = vmatpush1.msra.mxu0 0.0
      %6038 = vmatprep.subr.mxu0 0.0
      %6039 = vmatpush1.msra.mxu0 0.0
      %6040 = vmatprep.subr.mxu0 0.0
      %6041 = vmatpush1.msra.mxu0 0.0
      %6042 = vmatprep.subr.mxu0 0.0
      %6043 = vmatpush1.msra.mxu0 0.0
      %6044 = vmatprep.subr.mxu0 0.0
      %6045 = vmatpush1.msra.mxu0 0.0
      %6046 = vmatprep.subr.mxu0 0.0
      %6047 = vmatpush1.msra.mxu0 0.0
      %6048 = vmatprep.subr.mxu0 0.0
      %6049 = vmatpush1.msra.mxu0 0.0
      %6050 = vmatprep.subr.mxu0 0.0
      %6051 = vmatpush1.msra.mxu0 0.0
      %6052 = vmatprep.subr.mxu0 0.0
      %6053 = vmatpush1.msra.mxu0 0.0
      %6054 = vmatprep.subr.mxu0 0.0
      %6055 = vmatpush1.msra.mxu0 0.0
      %6056 = vmatprep.subr.mxu0 0.0
      %6057 = vmatpush1.msra.mxu0 0.0
      %6058 = vmatprep.subr.mxu0 0.0
      %6059 = vmatpush1.msra.mxu0 0.0
      %6060 = vmatprep.subr.mxu0 0.0
      %6061 = vmatpush1.msra.mxu0 0.0
      %6062 = vmatprep.mubr.f32.mxu0 0.0
      %v6063 = vand.u32 %v5694, 4294901760
      %6064 = vmatmul.mubr.f32.gmra.mrb[0].mxu0 %v6063
      %v6065 = vpop.f32.mrb[0].mxu0
      %v6066 = vadd.f32 %v5992, %v6065
      %v6067 = vpop.f32.mrb[0].mxu0
      %6068 = vdwg.mxu0
      %6069 = vmatprep.subr.mxu0 0.0
      %v6070 = vand.u32 %v4761, 4294901760
      %6071 = vmatpush1.msra.mxu0 %v6070
      %6072 = vmatprep.subr.mxu0 0.0
      %6073 = vmatpush1.msra.mxu0 0.0
      %6074 = vmatprep.subr.mxu0 0.0
      %6075 = vmatpush1.msra.mxu0 0.0
      %6076 = vmatprep.subr.mxu0 0.0
      %6077 = vmatpush1.msra.mxu0 0.0
      %6078 = vmatprep.subr.mxu0 0.0
      %6079 = vmatpush1.msra.mxu0 0.0
      %6080 = vmatprep.subr.mxu0 0.0
      %6081 = vmatpush1.msra.mxu0 0.0
      %6082 = vmatprep.subr.mxu0 0.0
      %6083 = vmatpush1.msra.mxu0 0.0
      %6084 = vmatprep.subr.mxu0 0.0
      %6085 = vmatpush1.msra.mxu0 0.0
      %6086 = vmatprep.subr.mxu0 0.0
      %6087 = vmatpush1.msra.mxu0 0.0
      %6088 = vmatprep.subr.mxu0 0.0
      %6089 = vmatpush1.msra.mxu0 0.0
      %6090 = vmatprep.subr.mxu0 0.0
      %6091 = vmatpush1.msra.mxu0 0.0
      %6092 = vmatprep.subr.mxu0 0.0
      %6093 = vmatpush1.msra.mxu0 0.0
      %6094 = vmatprep.subr.mxu0 0.0
      %6095 = vmatpush1.msra.mxu0 0.0
      %6096 = vmatprep.subr.mxu0 0.0
      %6097 = vmatpush1.msra.mxu0 0.0
      %6098 = vmatprep.subr.mxu0 0.0
      %6099 = vmatpush1.msra.mxu0 0.0
      %6100 = vmatprep.subr.mxu0 0.0
      %6101 = vmatpush1.msra.mxu0 0.0
      %6102 = vmatprep.subr.mxu0 0.0
      %6103 = vmatpush1.msra.mxu0 0.0
      %6104 = vmatprep.subr.mxu0 0.0
      %6105 = vmatpush1.msra.mxu0 0.0
      %6106 = vmatprep.subr.mxu0 0.0
      %6107 = vmatpush1.msra.mxu0 0.0
      %6108 = vmatprep.subr.mxu0 0.0
      %6109 = vmatpush1.msra.mxu0 0.0
      %6110 = vmatprep.subr.mxu0 0.0
      %6111 = vmatpush1.msra.mxu0 0.0
      %6112 = vmatprep.subr.mxu0 0.0
      %6113 = vmatpush1.msra.mxu0 0.0
      %6114 = vmatprep.subr.mxu0 0.0
      %6115 = vmatpush1.msra.mxu0 0.0
      %6116 = vmatprep.subr.mxu0 0.0
      %6117 = vmatpush1.msra.mxu0 0.0
      %6118 = vmatprep.subr.mxu0 0.0
      %6119 = vmatpush1.msra.mxu0 0.0
      %6120 = vmatprep.subr.mxu0 0.0
      %6121 = vmatpush1.msra.mxu0 0.0
      %6122 = vmatprep.subr.mxu0 0.0
      %6123 = vmatpush1.msra.mxu0 0.0
      %6124 = vmatprep.subr.mxu0 0.0
      %6125 = vmatpush1.msra.mxu0 0.0
      %6126 = vmatprep.subr.mxu0 0.0
      %6127 = vmatpush1.msra.mxu0 0.0
      %6128 = vmatprep.subr.mxu0 0.0
      %6129 = vmatpush1.msra.mxu0 0.0
      %6130 = vmatprep.subr.mxu0 0.0
      %6131 = vmatpush1.msra.mxu0 0.0
      %6132 = vmatprep.subr.mxu0 0.0
      %6133 = vmatpush1.msra.mxu0 0.0
      %6134 = vmatprep.mubr.f32.mxu0 0.0
      %v6135 = vand.u32 %v5694, 4294901760
      %6136 = vmatmul.mubr.f32.gmra.mrb[0].mxu0 %v6135
      %v6137 = vpop.f32.mrb[0].mxu0
      %v6138 = vadd.f32 %v6066, %v6137
      %v6139 = vpop.f32.mrb[0].mxu0
      %6140 = vdwg.mxu0
      %v6141 = vmul.f32 %v5694, 2.0
      %6142 = vmatprep.subr.mxu0 0.0
      %v6143 = vand.u32 %v5694, 4294901760
      %6144 = vmatpush1.msra.mxu0 %v6143
      %6145 = vmatprep.subr.mxu0 0.0
      %6146 = vmatpush1.msra.mxu0 0.0
      %6147 = vmatprep.subr.mxu0 0.0
      %6148 = vmatpush1.msra.mxu0 0.0
      %6149 = vmatprep.subr.mxu0 0.0
      %6150 = vmatpush1.msra.mxu0 0.0
      %6151 = vmatprep.subr.mxu0 0.0
      %6152 = vmatpush1.msra.mxu0 0.0
      %6153 = vmatprep.subr.mxu0 0.0
      %6154 = vmatpush1.msra.mxu0 0.0
      %6155 = vmatprep.subr.mxu0 0.0
      %6156 = vmatpush1.msra.mxu0 0.0
      %6157 = vmatprep.subr.mxu0 0.0
      %6158 = vmatpush1.msra.mxu0 0.0
      %6159 = vmatprep.subr.mxu0 0.0
      %6160 = vmatpush1.msra.mxu0 0.0
      %6161 = vmatprep.subr.mxu0 0.0
      %6162 = vmatpush1.msra.mxu0 0.0
      %6163 = vmatprep.subr.mxu0 0.0
      %6164 = vmatpush1.msra.mxu0 0.0
      %6165 = vmatprep.subr.mxu0 0.0
      %6166 = vmatpush1.msra.mxu0 0.0
      %6167 = vmatprep.subr.mxu0 0.0
      %6168 = vmatpush1.msra.mxu0 0.0
      %6169 = vmatprep.subr.mxu0 0.0
      %6170 = vmatpush1.msra.mxu0 0.0
      %6171 = vmatprep.subr.mxu0 0.0
      %6172 = vmatpush1.msra.mxu0 0.0
      %6173 = vmatprep.subr.mxu0 0.0
      %6174 = vmatpush1.msra.mxu0 0.0
      %6175 = vmatprep.subr.mxu0 0.0
      %6176 = vmatpush1.msra.mxu0 0.0
      %6177 = vmatprep.subr.mxu0 0.0
      %6178 = vmatpush1.msra.mxu0 0.0
      %6179 = vmatprep.subr.mxu0 0.0
      %6180 = vmatpush1.msra.mxu0 0.0
      %6181 = vmatprep.subr.mxu0 0.0
      %6182 = vmatpush1.msra.mxu0 0.0
      %6183 = vmatprep.subr.mxu0 0.0
      %6184 = vmatpush1.msra.mxu0 0.0
      %6185 = vmatprep.subr.mxu0 0.0
      %6186 = vmatpush1.msra.mxu0 0.0
      %6187 = vmatprep.subr.mxu0 0.0
      %6188 = vmatpush1.msra.mxu0 0.0
      %6189 = vmatprep.subr.mxu0 0.0
      %6190 = vmatpush1.msra.mxu0 0.0
      %6191 = vmatprep.subr.mxu0 0.0
      %6192 = vmatpush1.msra.mxu0 0.0
      %6193 = vmatprep.subr.mxu0 0.0
      %6194 = vmatpush1.msra.mxu0 0.0
      %6195 = vmatprep.subr.mxu0 0.0
      %6196 = vmatpush1.msra.mxu0 0.0
      %6197 = vmatprep.subr.mxu0 0.0
      %6198 = vmatpush1.msra.mxu0 0.0
      %6199 = vmatprep.subr.mxu0 0.0
      %6200 = vmatpush1.msra.mxu0 0.0
      %6201 = vmatprep.subr.mxu0 0.0
      %6202 = vmatpush1.msra.mxu0 0.0
      %6203 = vmatprep.subr.mxu0 0.0
      %6204 = vmatpush1.msra.mxu0 0.0
      %6205 = vmatprep.subr.mxu0 0.0
      %6206 = vmatpush1.msra.mxu0 0.0
      %6207 = vmatprep.mubr.f32.mxu0 0.0
      %v6208 = vand.u32 %v6138, 4294901760
      %v6209 = vsub.f32 %v6138, %v6208
      %v6210 = vand.u32 %v6209, 4294901760
      %v6211 = vsub.f32 %v6209, %v6210
      %v6212 = vand.u32 %v6211, 4294901760
      %6213 = vmatmul.mubr.f32.gmra.mrb[0].mxu0 %v6212
      %v6214 = vpop.f32.mrb[0].mxu0
      %v6215 = vadd.f32 0.0, %v6214
      %v6216 = vpop.f32.mrb[0].mxu0
      %6217 = vdwg.mxu0
      %6218 = vmatprep.subr.mxu0 0.0
      %v6219 = vand.u32 %v5694, 4294901760
      %v6220 = vsub.f32 %v5694, %v6219
      %v6221 = vand.u32 %v6220, 4294901760
      %v6222 = vsub.f32 %v6220, %v6221
      %v6223 = vand.u32 %v6222, 4294901760
      %6224 = vmatpush1.msra.mxu0 %v6223
      %6225 = vmatprep.subr.mxu0 0.0
      %6226 = vmatpush1.msra.mxu0 0.0
      %6227 = vmatprep.subr.mxu0 0.0
      %6228 = vmatpush1.msra.mxu0 0.0
      %6229 = vmatprep.subr.mxu0 0.0
      %6230 = vmatpush1.msra.mxu0 0.0
      %6231 = vmatprep.subr.mxu0 0.0
      %6232 = vmatpush1.msra.mxu0 0.0
      %6233 = vmatprep.subr.mxu0 0.0
      %6234 = vmatpush1.msra.mxu0 0.0
      %6235 = vmatprep.subr.mxu0 0.0
      %6236 = vmatpush1.msra.mxu0 0.0
      %6237 = vmatprep.subr.mxu0 0.0
      %6238 = vmatpush1.msra.mxu0 0.0
      %6239 = vmatprep.subr.mxu0 0.0
      %6240 = vmatpush1.msra.mxu0 0.0
      %6241 = vmatprep.subr.mxu0 0.0
      %6242 = vmatpush1.msra.mxu0 0.0
      %6243 = vmatprep.subr.mxu0 0.0
      %6244 = vmatpush1.msra.mxu0 0.0
      %6245 = vmatprep.subr.mxu0 0.0
      %6246 = vmatpush1.msra.mxu0 0.0
      %6247 = vmatprep.subr.mxu0 0.0
      %6248 = vmatpush1.msra.mxu0 0.0
      %6249 = vmatprep.subr.mxu0 0.0
      %6250 = vmatpush1.msra.mxu0 0.0
      %6251 = vmatprep.subr.mxu0 0.0
      %6252 = vmatpush1.msra.mxu0 0.0
      %6253 = vmatprep.subr.mxu0 0.0
      %6254 = vmatpush1.msra.mxu0 0.0
      %6255 = vmatprep.subr.mxu0 0.0
      %6256 = vmatpush1.msra.mxu0 0.0
      %6257 = vmatprep.subr.mxu0 0.0
      %6258 = vmatpush1.msra.mxu0 0.0
      %6259 = vmatprep.subr.mxu0 0.0
      %6260 = vmatpush1.msra.mxu0 0.0
      %6261 = vmatprep.subr.mxu0 0.0
      %6262 = vmatpush1.msra.mxu0 0.0
      %6263 = vmatprep.subr.mxu0 0.0
      %6264 = vmatpush1.msra.mxu0 0.0
      %6265 = vmatprep.subr.mxu0 0.0
      %6266 = vmatpush1.msra.mxu0 0.0
      %6267 = vmatprep.subr.mxu0 0.0
      %6268 = vmatpush1.msra.mxu0 0.0
      %6269 = vmatprep.subr.mxu0 0.0
      %6270 = vmatpush1.msra.mxu0 0.0
      %6271 = vmatprep.subr.mxu0 0.0
      %6272 = vmatpush1.msra.mxu0 0.0
      %6273 = vmatprep.subr.mxu0 0.0
      %6274 = vmatpush1.msra.mxu0 0.0
      %6275 = vmatprep.subr.mxu0 0.0
      %6276 = vmatpush1.msra.mxu0 0.0
      %6277 = vmatprep.subr.mxu0 0.0
      %6278 = vmatpush1.msra.mxu0 0.0
      %6279 = vmatprep.subr.mxu0 0.0
      %6280 = vmatpush1.msra.mxu0 0.0
      %6281 = vmatprep.subr.mxu0 0.0
      %6282 = vmatpush1.msra.mxu0 0.0
      %6283 = vmatprep.subr.mxu0 0.0
      %6284 = vmatpush1.msra.mxu0 0.0
      %6285 = vmatprep.subr.mxu0 0.0
      %6286 = vmatpush1.msra.mxu0 0.0
      %6287 = vmatprep.mubr.f32.mxu0 0.0
      %v6288 = vand.u32 %v6138, 4294901760
      %6289 = vmatmul.mubr.f32.gmra.mrb[0].mxu0 %v6288
      %v6290 = vpop.f32.mrb[0].mxu0
      %v6291 = vadd.f32 %v6215, %v6290
      %v6292 = vpop.f32.mrb[0].mxu0
      %6293 = vdwg.mxu0
      %6294 = vmatprep.subr.mxu0 0.0
      %v6295 = vand.u32 %v5694, 4294901760
      %v6296 = vsub.f32 %v5694, %v6295
      %6297 = vmatpush1.msra.mxu0 %v6296
      %6298 = vmatprep.subr.mxu0 0.0
      %6299 = vmatpush1.msra.mxu0 0.0
      %6300 = vmatprep.subr.mxu0 0.0
      %6301 = vmatpush1.msra.mxu0 0.0
      %6302 = vmatprep.subr.mxu0 0.0
      %6303 = vmatpush1.msra.mxu0 0.0
      %6304 = vmatprep.subr.mxu0 0.0
      %6305 = vmatpush1.msra.mxu0 0.0
      %6306 = vmatprep.subr.mxu0 0.0
      %6307 = vmatpush1.msra.mxu0 0.0
      %6308 = vmatprep.subr.mxu0 0.0
      %6309 = vmatpush1.msra.mxu0 0.0
      %6310 = vmatprep.subr.mxu0 0.0
      %6311 = vmatpush1.msra.mxu0 0.0
      %6312 = vmatprep.subr.mxu0 0.0
      %6313 = vmatpush1.msra.mxu0 0.0
      %6314 = vmatprep.subr.mxu0 0.0
      %6315 = vmatpush1.msra.mxu0 0.0
      %6316 = vmatprep.subr.mxu0 0.0
      %6317 = vmatpush1.msra.mxu0 0.0
      %6318 = vmatprep.subr.mxu0 0.0
      %6319 = vmatpush1.msra.mxu0 0.0
      %6320 = vmatprep.subr.mxu0 0.0
      %6321 = vmatpush1.msra.mxu0 0.0
      %6322 = vmatprep.subr.mxu0 0.0
      %6323 = vmatpush1.msra.mxu0 0.0
      %6324 = vmatprep.subr.mxu0 0.0
      %6325 = vmatpush1.msra.mxu0 0.0
      %6326 = vmatprep.subr.mxu0 0.0
      %6327 = vmatpush1.msra.mxu0 0.0
      %6328 = vmatprep.subr.mxu0 0.0
      %6329 = vmatpush1.msra.mxu0 0.0
      %6330 = vmatprep.subr.mxu0 0.0
      %6331 = vmatpush1.msra.mxu0 0.0
      %6332 = vmatprep.subr.mxu0 0.0
      %6333 = vmatpush1.msra.mxu0 0.0
      %6334 = vmatprep.subr.mxu0 0.0
      %6335 = vmatpush1.msra.mxu0 0.0
      %6336 = vmatprep.subr.mxu0 0.0
      %6337 = vmatpush1.msra.mxu0 0.0
      %6338 = vmatprep.subr.mxu0 0.0
      %6339 = vmatpush1.msra.mxu0 0.0
      %6340 = vmatprep.subr.mxu0 0.0
      %6341 = vmatpush1.msra.mxu0 0.0
      %6342 = vmatprep.subr.mxu0 0.0
      %6343 = vmatpush1.msra.mxu0 0.0
      %6344 = vmatprep.subr.mxu0 0.0
      %6345 = vmatpush1.msra.mxu0 0.0
      %6346 = vmatprep.subr.mxu0 0.0
      %6347 = vmatpush1.msra.mxu0 0.0
      %6348 = vmatprep.subr.mxu0 0.0
      %6349 = vmatpush1.msra.mxu0 0.0
      %6350 = vmatprep.subr.mxu0 0.0
      %6351 = vmatpush1.msra.mxu0 0.0
      %6352 = vmatprep.subr.mxu0 0.0
      %6353 = vmatpush1.msra.mxu0 0.0
      %6354 = vmatprep.subr.mxu0 0.0
      %6355 = vmatpush1.msra.mxu0 0.0
      %6356 = vmatprep.subr.mxu0 0.0
      %6357 = vmatpush1.msra.mxu0 0.0
      %6358 = vmatprep.subr.mxu0 0.0
      %6359 = vmatpush1.msra.mxu0 0.0
      %6360 = vmatprep.mubr.f32.mxu0 0.0
      %v6361 = vand.u32 %v6138, 4294901760
      %v6362 = vsub.f32 %v6138, %v6361
      %6363 = vmatmul.mubr.f32.gmra.mrb[0].mxu0 %v6362
      %v6364 = vpop.f32.mrb[0].mxu0
      %v6365 = vadd.f32 %v6291, %v6364
      %v6366 = vpop.f32.mrb[0].mxu0
      %6367 = vdwg.mxu0
      %6368 = vmatprep.subr.mxu0 0.0
      %v6369 = vand.u32 %v5694, 4294901760
      %6370 = vmatpush1.msra.mxu0 %v6369
      %6371 = vmatprep.subr.mxu0 0.0
      %6372 = vmatpush1.msra.mxu0 0.0
      %6373 = vmatprep.subr.mxu0 0.0
      %6374 = vmatpush1.msra.mxu0 0.0
      %6375 = vmatprep.subr.mxu0 0.0
      %6376 = vmatpush1.msra.mxu0 0.0
      %6377 = vmatprep.subr.mxu0 0.0
      %6378 = vmatpush1.msra.mxu0 0.0
      %6379 = vmatprep.subr.mxu0 0.0
      %6380 = vmatpush1.msra.mxu0 0.0
      %6381 = vmatprep.subr.mxu0 0.0
      %6382 = vmatpush1.msra.mxu0 0.0
      %6383 = vmatprep.subr.mxu0 0.0
      %6384 = vmatpush1.msra.mxu0 0.0
      %6385 = vmatprep.subr.mxu0 0.0
      %6386 = vmatpush1.msra.mxu0 0.0
      %6387 = vmatprep.subr.mxu0 0.0
      %6388 = vmatpush1.msra.mxu0 0.0
      %6389 = vmatprep.subr.mxu0 0.0
      %6390 = vmatpush1.msra.mxu0 0.0
      %6391 = vmatprep.subr.mxu0 0.0
      %6392 = vmatpush1.msra.mxu0 0.0
      %6393 = vmatprep.subr.mxu0 0.0
      %6394 = vmatpush1.msra.mxu0 0.0
      %6395 = vmatprep.subr.mxu0 0.0
      %6396 = vmatpush1.msra.mxu0 0.0
      %6397 = vmatprep.subr.mxu0 0.0
      %6398 = vmatpush1.msra.mxu0 0.0
      %6399 = vmatprep.subr.mxu0 0.0
      %6400 = vmatpush1.msra.mxu0 0.0
      %6401 = vmatprep.subr.mxu0 0.0
      %6402 = vmatpush1.msra.mxu0 0.0
      %6403 = vmatprep.subr.mxu0 0.0
      %6404 = vmatpush1.msra.mxu0 0.0
      %6405 = vmatprep.subr.mxu0 0.0
      %6406 = vmatpush1.msra.mxu0 0.0
      %6407 = vmatprep.subr.mxu0 0.0
      %6408 = vmatpush1.msra.mxu0 0.0
      %6409 = vmatprep.subr.mxu0 0.0
      %6410 = vmatpush1.msra.mxu0 0.0
      %6411 = vmatprep.subr.mxu0 0.0
      %6412 = vmatpush1.msra.mxu0 0.0
      %6413 = vmatprep.subr.mxu0 0.0
      %6414 = vmatpush1.msra.mxu0 0.0
      %6415 = vmatprep.subr.mxu0 0.0
      %6416 = vmatpush1.msra.mxu0 0.0
      %6417 = vmatprep.subr.mxu0 0.0
      %6418 = vmatpush1.msra.mxu0 0.0
      %6419 = vmatprep.subr.mxu0 0.0
      %6420 = vmatpush1.msra.mxu0 0.0
      %6421 = vmatprep.subr.mxu0 0.0
      %6422 = vmatpush1.msra.mxu0 0.0
      %6423 = vmatprep.subr.mxu0 0.0
      %6424 = vmatpush1.msra.mxu0 0.0
      %6425 = vmatprep.subr.mxu0 0.0
      %6426 = vmatpush1.msra.mxu0 0.0
      %6427 = vmatprep.subr.mxu0 0.0
      %6428 = vmatpush1.msra.mxu0 0.0
      %6429 = vmatprep.subr.mxu0 0.0
      %6430 = vmatpush1.msra.mxu0 0.0
      %6431 = vmatprep.subr.mxu0 0.0
      %6432 = vmatpush1.msra.mxu0 0.0
      %6433 = vmatprep.mubr.f32.mxu0 0.0
      %v6434 = vand.u32 %v6138, 4294901760
      %v6435 = vsub.f32 %v6138, %v6434
      %v6436 = vand.u32 %v6435, 4294901760
      %6437 = vmatmul.mubr.f32.gmra.mrb[0].mxu0 %v6436
      %v6438 = vpop.f32.mrb[0].mxu0
      %v6439 = vadd.f32 %v6365, %v6438
      %v6440 = vpop.f32.mrb[0].mxu0
      %6441 = vdwg.mxu0
      %6442 = vmatprep.subr.mxu0 0.0
      %v6443 = vand.u32 %v5694, 4294901760
      %v6444 = vsub.f32 %v5694, %v6443
      %v6445 = vand.u32 %v6444, 4294901760
      %6446 = vmatpush1.msra.mxu0 %v6445
      %6447 = vmatprep.subr.mxu0 0.0
      %6448 = vmatpush1.msra.mxu0 0.0
      %6449 = vmatprep.subr.mxu0 0.0
      %6450 = vmatpush1.msra.mxu0 0.0
      %6451 = vmatprep.subr.mxu0 0.0
      %6452 = vmatpush1.msra.mxu0 0.0
      %6453 = vmatprep.subr.mxu0 0.0
      %6454 = vmatpush1.msra.mxu0 0.0
      %6455 = vmatprep.subr.mxu0 0.0
      %6456 = vmatpush1.msra.mxu0 0.0
      %6457 = vmatprep.subr.mxu0 0.0
      %6458 = vmatpush1.msra.mxu0 0.0
      %6459 = vmatprep.subr.mxu0 0.0
      %6460 = vmatpush1.msra.mxu0 0.0
      %6461 = vmatprep.subr.mxu0 0.0
      %6462 = vmatpush1.msra.mxu0 0.0
      %6463 = vmatprep.subr.mxu0 0.0
      %6464 = vmatpush1.msra.mxu0 0.0
      %6465 = vmatprep.subr.mxu0 0.0
      %6466 = vmatpush1.msra.mxu0 0.0
      %6467 = vmatprep.subr.mxu0 0.0
      %6468 = vmatpush1.msra.mxu0 0.0
      %6469 = vmatprep.subr.mxu0 0.0
      %6470 = vmatpush1.msra.mxu0 0.0
      %6471 = vmatprep.subr.mxu0 0.0
      %6472 = vmatpush1.msra.mxu0 0.0
      %6473 = vmatprep.subr.mxu0 0.0
      %6474 = vmatpush1.msra.mxu0 0.0
      %6475 = vmatprep.subr.mxu0 0.0
      %6476 = vmatpush1.msra.mxu0 0.0
      %6477 = vmatprep.subr.mxu0 0.0
      %6478 = vmatpush1.msra.mxu0 0.0
      %6479 = vmatprep.subr.mxu0 0.0
      %6480 = vmatpush1.msra.mxu0 0.0
      %6481 = vmatprep.subr.mxu0 0.0
      %6482 = vmatpush1.msra.mxu0 0.0
      %6483 = vmatprep.subr.mxu0 0.0
      %6484 = vmatpush1.msra.mxu0 0.0
      %6485 = vmatprep.subr.mxu0 0.0
      %6486 = vmatpush1.msra.mxu0 0.0
      %6487 = vmatprep.subr.mxu0 0.0
      %6488 = vmatpush1.msra.mxu0 0.0
      %6489 = vmatprep.subr.mxu0 0.0
      %6490 = vmatpush1.msra.mxu0 0.0
      %6491 = vmatprep.subr.mxu0 0.0
      %6492 = vmatpush1.msra.mxu0 0.0
      %6493 = vmatprep.subr.mxu0 0.0
      %6494 = vmatpush1.msra.mxu0 0.0
      %6495 = vmatprep.subr.mxu0 0.0
      %6496 = vmatpush1.msra.mxu0 0.0
      %6497 = vmatprep.subr.mxu0 0.0
      %6498 = vmatpush1.msra.mxu0 0.0
      %6499 = vmatprep.subr.mxu0 0.0
      %6500 = vmatpush1.msra.mxu0 0.0
      %6501 = vmatprep.subr.mxu0 0.0
      %6502 = vmatpush1.msra.mxu0 0.0
      %6503 = vmatprep.subr.mxu0 0.0
      %6504 = vmatpush1.msra.mxu0 0.0
      %6505 = vmatprep.subr.mxu0 0.0
      %6506 = vmatpush1.msra.mxu0 0.0
      %6507 = vmatprep.subr.mxu0 0.0
      %6508 = vmatpush1.msra.mxu0 0.0
      %6509 = vmatprep.mubr.f32.mxu0 0.0
      %v6510 = vand.u32 %v6138, 4294901760
      %6511 = vmatmul.mubr.f32.gmra.mrb[0].mxu0 %v6510
      %v6512 = vpop.f32.mrb[0].mxu0
      %v6513 = vadd.f32 %v6439, %v6512
      %v6514 = vpop.f32.mrb[0].mxu0
      %6515 = vdwg.mxu0
      %6516 = vmatprep.subr.mxu0 0.0
      %v6517 = vand.u32 %v5694, 4294901760
      %6518 = vmatpush1.msra.mxu0 %v6517
      %6519 = vmatprep.subr.mxu0 0.0
      %6520 = vmatpush1.msra.mxu0 0.0
      %6521 = vmatprep.subr.mxu0 0.0
      %6522 = vmatpush1.msra.mxu0 0.0
      %6523 = vmatprep.subr.mxu0 0.0
      %6524 = vmatpush1.msra.mxu0 0.0
      %6525 = vmatprep.subr.mxu0 0.0
      %6526 = vmatpush1.msra.mxu0 0.0
      %6527 = vmatprep.subr.mxu0 0.0
      %6528 = vmatpush1.msra.mxu0 0.0
      %6529 = vmatprep.subr.mxu0 0.0
      %6530 = vmatpush1.msra.mxu0 0.0
      %6531 = vmatprep.subr.mxu0 0.0
      %6532 = vmatpush1.msra.mxu0 0.0
      %6533 = vmatprep.subr.mxu0 0.0
      %6534 = vmatpush1.msra.mxu0 0.0
      %6535 = vmatprep.subr.mxu0 0.0
      %6536 = vmatpush1.msra.mxu0 0.0
      %6537 = vmatprep.subr.mxu0 0.0
      %6538 = vmatpush1.msra.mxu0 0.0
      %6539 = vmatprep.subr.mxu0 0.0
      %6540 = vmatpush1.msra.mxu0 0.0
      %6541 = vmatprep.subr.mxu0 0.0
      %6542 = vmatpush1.msra.mxu0 0.0
      %6543 = vmatprep.subr.mxu0 0.0
      %6544 = vmatpush1.msra.mxu0 0.0
      %6545 = vmatprep.subr.mxu0 0.0
      %6546 = vmatpush1.msra.mxu0 0.0
      %6547 = vmatprep.subr.mxu0 0.0
      %6548 = vmatpush1.msra.mxu0 0.0
      %6549 = vmatprep.subr.mxu0 0.0
      %6550 = vmatpush1.msra.mxu0 0.0
      %6551 = vmatprep.subr.mxu0 0.0
      %6552 = vmatpush1.msra.mxu0 0.0
      %6553 = vmatprep.subr.mxu0 0.0
      %6554 = vmatpush1.msra.mxu0 0.0
      %6555 = vmatprep.subr.mxu0 0.0
      %6556 = vmatpush1.msra.mxu0 0.0
      %6557 = vmatprep.subr.mxu0 0.0
      %6558 = vmatpush1.msra.mxu0 0.0
      %6559 = vmatprep.subr.mxu0 0.0
      %6560 = vmatpush1.msra.mxu0 0.0
      %6561 = vmatprep.subr.mxu0 0.0
      %6562 = vmatpush1.msra.mxu0 0.0
      %6563 = vmatprep.subr.mxu0 0.0
      %6564 = vmatpush1.msra.mxu0 0.0
      %6565 = vmatprep.subr.mxu0 0.0
      %6566 = vmatpush1.msra.mxu0 0.0
      %6567 = vmatprep.subr.mxu0 0.0
      %6568 = vmatpush1.msra.mxu0 0.0
      %6569 = vmatprep.subr.mxu0 0.0
      %6570 = vmatpush1.msra.mxu0 0.0
      %6571 = vmatprep.subr.mxu0 0.0
      %6572 = vmatpush1.msra.mxu0 0.0
      %6573 = vmatprep.subr.mxu0 0.0
      %6574 = vmatpush1.msra.mxu0 0.0
      %6575 = vmatprep.subr.mxu0 0.0
      %6576 = vmatpush1.msra.mxu0 0.0
      %6577 = vmatprep.subr.mxu0 0.0
      %6578 = vmatpush1.msra.mxu0 0.0
      %6579 = vmatprep.subr.mxu0 0.0
      %6580 = vmatpush1.msra.mxu0 0.0
      %6581 = vmatprep.mubr.f32.mxu0 0.0
      %v6582 = vand.u32 %v6138, 4294901760
      %6583 = vmatmul.mubr.f32.gmra.mrb[0].mxu0 %v6582
      %v6584 = vpop.f32.mrb[0].mxu0
      %v6585 = vadd.f32 %v6513, %v6584
      %v6586 = vpop.f32.mrb[0].mxu0
      %6587 = vdwg.mxu0
      %v6588 = vsub.f32 %v6141, %v6585
      %6589 = vmatprep.subr.mxu0 0.0
      %v6590 = vand.u32 %v4761, 4294901760
      %6591 = vmatpush1.msra.mxu0 %v6590
      %6592 = vmatprep.subr.mxu0 0.0
      %6593 = vmatpush1.msra.mxu0 0.0
      %6594 = vmatprep.subr.mxu0 0.0
      %6595 = vmatpush1.msra.mxu0 0.0
      %6596 = vmatprep.subr.mxu0 0.0
      %6597 = vmatpush1.msra.mxu0 0.0
      %6598 = vmatprep.subr.mxu0 0.0
      %6599 = vmatpush1.msra.mxu0 0.0
      %6600 = vmatprep.subr.mxu0 0.0
      %6601 = vmatpush1.msra.mxu0 0.0
      %6602 = vmatprep.subr.mxu0 0.0
      %6603 = vmatpush1.msra.mxu0 0.0
      %6604 = vmatprep.subr.mxu0 0.0
      %6605 = vmatpush1.msra.mxu0 0.0
      %6606 = vmatprep.subr.mxu0 0.0
      %6607 = vmatpush1.msra.mxu0 0.0
      %6608 = vmatprep.subr.mxu0 0.0
      %6609 = vmatpush1.msra.mxu0 0.0
      %6610 = vmatprep.subr.mxu0 0.0
      %6611 = vmatpush1.msra.mxu0 0.0
      %6612 = vmatprep.subr.mxu0 0.0
      %6613 = vmatpush1.msra.mxu0 0.0
      %6614 = vmatprep.subr.mxu0 0.0
      %6615 = vmatpush1.msra.mxu0 0.0
      %6616 = vmatprep.subr.mxu0 0.0
      %6617 = vmatpush1.msra.mxu0 0.0
      %6618 = vmatprep.subr.mxu0 0.0
      %6619 = vmatpush1.msra.mxu0 0.0
      %6620 = vmatprep.subr.mxu0 0.0
      %6621 = vmatpush1.msra.mxu0 0.0
      %6622 = vmatprep.subr.mxu0 0.0
      %6623 = vmatpush1.msra.mxu0 0.0
      %6624 = vmatprep.subr.mxu0 0.0
      %6625 = vmatpush1.msra.mxu0 0.0
      %6626 = vmatprep.subr.mxu0 0.0
      %6627 = vmatpush1.msra.mxu0 0.0
      %6628 = vmatprep.subr.mxu0 0.0
      %6629 = vmatpush1.msra.mxu0 0.0
      %6630 = vmatprep.subr.mxu0 0.0
      %6631 = vmatpush1.msra.mxu0 0.0
      %6632 = vmatprep.subr.mxu0 0.0
      %6633 = vmatpush1.msra.mxu0 0.0
      %6634 = vmatprep.subr.mxu0 0.0
      %6635 = vmatpush1.msra.mxu0 0.0
      %6636 = vmatprep.subr.mxu0 0.0
      %6637 = vmatpush1.msra.mxu0 0.0
      %6638 = vmatprep.subr.mxu0 0.0
      %6639 = vmatpush1.msra.mxu0 0.0
      %6640 = vmatprep.subr.mxu0 0.0
      %6641 = vmatpush1.msra.mxu0 0.0
      %6642 = vmatprep.subr.mxu0 0.0
      %6643 = vmatpush1.msra.mxu0 0.0
      %6644 = vmatprep.subr.mxu0 0.0
      %6645 = vmatpush1.msra.mxu0 0.0
      %6646 = vmatprep.subr.mxu0 0.0
      %6647 = vmatpush1.msra.mxu0 0.0
      %6648 = vmatprep.subr.mxu0 0.0
      %6649 = vmatpush1.msra.mxu0 0.0
      %6650 = vmatprep.subr.mxu0 0.0
      %6651 = vmatpush1.msra.mxu0 0.0
      %6652 = vmatprep.subr.mxu0 0.0
      %6653 = vmatpush1.msra.mxu0 0.0
      %6654 = vmatprep.mubr.f32.mxu0 0.0
      %v6655 = vand.u32 %v6588, 4294901760
      %v6656 = vsub.f32 %v6588, %v6655
      %v6657 = vand.u32 %v6656, 4294901760
      %v6658 = vsub.f32 %v6656, %v6657
      %v6659 = vand.u32 %v6658, 4294901760
      %6660 = vmatmul.mubr.f32.gmra.mrb[0].mxu0 %v6659
      %v6661 = vpop.f32.mrb[0].mxu0
      %v6662 = vadd.f32 0.0, %v6661
      %v6663 = vpop.f32.mrb[0].mxu0
      %6664 = vdwg.mxu0
      %6665 = vmatprep.subr.mxu0 0.0
      %v6666 = vand.u32 %v4761, 4294901760
      %v6667 = vsub.f32 %v4761, %v6666
      %v6668 = vand.u32 %v6667, 4294901760
      %v6669 = vsub.f32 %v6667, %v6668
      %v6670 = vand.u32 %v6669, 4294901760
      %6671 = vmatpush1.msra.mxu0 %v6670
      %6672 = vmatprep.subr.mxu0 0.0
      %6673 = vmatpush1.msra.mxu0 0.0
      %6674 = vmatprep.subr.mxu0 0.0
      %6675 = vmatpush1.msra.mxu0 0.0
      %6676 = vmatprep.subr.mxu0 0.0
      %6677 = vmatpush1.msra.mxu0 0.0
      %6678 = vmatprep.subr.mxu0 0.0
      %6679 = vmatpush1.msra.mxu0 0.0
      %6680 = vmatprep.subr.mxu0 0.0
      %6681 = vmatpush1.msra.mxu0 0.0
      %6682 = vmatprep.subr.mxu0 0.0
      %6683 = vmatpush1.msra.mxu0 0.0
      %6684 = vmatprep.subr.mxu0 0.0
      %6685 = vmatpush1.msra.mxu0 0.0
      %6686 = vmatprep.subr.mxu0 0.0
      %6687 = vmatpush1.msra.mxu0 0.0
      %6688 = vmatprep.subr.mxu0 0.0
      %6689 = vmatpush1.msra.mxu0 0.0
      %6690 = vmatprep.subr.mxu0 0.0
      %6691 = vmatpush1.msra.mxu0 0.0
      %6692 = vmatprep.subr.mxu0 0.0
      %6693 = vmatpush1.msra.mxu0 0.0
      %6694 = vmatprep.subr.mxu0 0.0
      %6695 = vmatpush1.msra.mxu0 0.0
      %6696 = vmatprep.subr.mxu0 0.0
      %6697 = vmatpush1.msra.mxu0 0.0
      %6698 = vmatprep.subr.mxu0 0.0
      %6699 = vmatpush1.msra.mxu0 0.0
      %6700 = vmatprep.subr.mxu0 0.0
      %6701 = vmatpush1.msra.mxu0 0.0
      %6702 = vmatprep.subr.mxu0 0.0
      %6703 = vmatpush1.msra.mxu0 0.0
      %6704 = vmatprep.subr.mxu0 0.0
      %6705 = vmatpush1.msra.mxu0 0.0
      %6706 = vmatprep.subr.mxu0 0.0
      %6707 = vmatpush1.msra.mxu0 0.0
      %6708 = vmatprep.subr.mxu0 0.0
      %6709 = vmatpush1.msra.mxu0 0.0
      %6710 = vmatprep.subr.mxu0 0.0
      %6711 = vmatpush1.msra.mxu0 0.0
      %6712 = vmatprep.subr.mxu0 0.0
      %6713 = vmatpush1.msra.mxu0 0.0
      %6714 = vmatprep.subr.mxu0 0.0
      %6715 = vmatpush1.msra.mxu0 0.0
      %6716 = vmatprep.subr.mxu0 0.0
      %6717 = vmatpush1.msra.mxu0 0.0
      %6718 = vmatprep.subr.mxu0 0.0
      %6719 = vmatpush1.msra.mxu0 0.0
      %6720 = vmatprep.subr.mxu0 0.0
      %6721 = vmatpush1.msra.mxu0 0.0
      %6722 = vmatprep.subr.mxu0 0.0
      %6723 = vmatpush1.msra.mxu0 0.0
      %6724 = vmatprep.subr.mxu0 0.0
      %6725 = vmatpush1.msra.mxu0 0.0
      %6726 = vmatprep.subr.mxu0 0.0
      %6727 = vmatpush1.msra.mxu0 0.0
      %6728 = vmatprep.subr.mxu0 0.0
      %6729 = vmatpush1.msra.mxu0 0.0
      %6730 = vmatprep.subr.mxu0 0.0
      %6731 = vmatpush1.msra.mxu0 0.0
      %6732 = vmatprep.subr.mxu0 0.0
      %6733 = vmatpush1.msra.mxu0 0.0
      %6734 = vmatprep.mubr.f32.mxu0 0.0
      %v6735 = vand.u32 %v6588, 4294901760
      %6736 = vmatmul.mubr.f32.gmra.mrb[0].mxu0 %v6735
      %v6737 = vpop.f32.mrb[0].mxu0
      %v6738 = vadd.f32 %v6662, %v6737
      %v6739 = vpop.f32.mrb[0].mxu0
      %6740 = vdwg.mxu0
      %6741 = vmatprep.subr.mxu0 0.0
      %v6742 = vand.u32 %v4761, 4294901760
      %v6743 = vsub.f32 %v4761, %v6742
      %6744 = vmatpush1.msra.mxu0 %v6743
      %6745 = vmatprep.subr.mxu0 0.0
      %6746 = vmatpush1.msra.mxu0 0.0
      %6747 = vmatprep.subr.mxu0 0.0
      %6748 = vmatpush1.msra.mxu0 0.0
      %6749 = vmatprep.subr.mxu0 0.0
      %6750 = vmatpush1.msra.mxu0 0.0
      %6751 = vmatprep.subr.mxu0 0.0
      %6752 = vmatpush1.msra.mxu0 0.0
      %6753 = vmatprep.subr.mxu0 0.0
      %6754 = vmatpush1.msra.mxu0 0.0
      %6755 = vmatprep.subr.mxu0 0.0
      %6756 = vmatpush1.msra.mxu0 0.0
      %6757 = vmatprep.subr.mxu0 0.0
      %6758 = vmatpush1.msra.mxu0 0.0
      %6759 = vmatprep.subr.mxu0 0.0
      %6760 = vmatpush1.msra.mxu0 0.0
      %6761 = vmatprep.subr.mxu0 0.0
      %6762 = vmatpush1.msra.mxu0 0.0
      %6763 = vmatprep.subr.mxu0 0.0
      %6764 = vmatpush1.msra.mxu0 0.0
      %6765 = vmatprep.subr.mxu0 0.0
      %6766 = vmatpush1.msra.mxu0 0.0
      %6767 = vmatprep.subr.mxu0 0.0
      %6768 = vmatpush1.msra.mxu0 0.0
      %6769 = vmatprep.subr.mxu0 0.0
      %6770 = vmatpush1.msra.mxu0 0.0
      %6771 = vmatprep.subr.mxu0 0.0
      %6772 = vmatpush1.msra.mxu0 0.0
      %6773 = vmatprep.subr.mxu0 0.0
      %6774 = vmatpush1.msra.mxu0 0.0
      %6775 = vmatprep.subr.mxu0 0.0
      %6776 = vmatpush1.msra.mxu0 0.0
      %6777 = vmatprep.subr.mxu0 0.0
      %6778 = vmatpush1.msra.mxu0 0.0
      %6779 = vmatprep.subr.mxu0 0.0
      %6780 = vmatpush1.msra.mxu0 0.0
      %6781 = vmatprep.subr.mxu0 0.0
      %6782 = vmatpush1.msra.mxu0 0.0
      %6783 = vmatprep.subr.mxu0 0.0
      %6784 = vmatpush1.msra.mxu0 0.0
      %6785 = vmatprep.subr.mxu0 0.0
      %6786 = vmatpush1.msra.mxu0 0.0
      %6787 = vmatprep.subr.mxu0 0.0
      %6788 = vmatpush1.msra.mxu0 0.0
      %6789 = vmatprep.subr.mxu0 0.0
      %6790 = vmatpush1.msra.mxu0 0.0
      %6791 = vmatprep.subr.mxu0 0.0
      %6792 = vmatpush1.msra.mxu0 0.0
      %6793 = vmatprep.subr.mxu0 0.0
      %6794 = vmatpush1.msra.mxu0 0.0
      %6795 = vmatprep.subr.mxu0 0.0
      %6796 = vmatpush1.msra.mxu0 0.0
      %6797 = vmatprep.subr.mxu0 0.0
      %6798 = vmatpush1.msra.mxu0 0.0
      %6799 = vmatprep.subr.mxu0 0.0
      %6800 = vmatpush1.msra.mxu0 0.0
      %6801 = vmatprep.subr.mxu0 0.0
      %6802 = vmatpush1.msra.mxu0 0.0
      %6803 = vmatprep.subr.mxu0 0.0
      %6804 = vmatpush1.msra.mxu0 0.0
      %6805 = vmatprep.subr.mxu0 0.0
      %6806 = vmatpush1.msra.mxu0 0.0
      %6807 = vmatprep.mubr.f32.mxu0 0.0
      %v6808 = vand.u32 %v6588, 4294901760
      %v6809 = vsub.f32 %v6588, %v6808
      %6810 = vmatmul.mubr.f32.gmra.mrb[0].mxu0 %v6809
      %v6811 = vpop.f32.mrb[0].mxu0
      %v6812 = vadd.f32 %v6738, %v6811
      %v6813 = vpop.f32.mrb[0].mxu0
      %6814 = vdwg.mxu0
      %6815 = vmatprep.subr.mxu0 0.0
      %v6816 = vand.u32 %v4761, 4294901760
      %6817 = vmatpush1.msra.mxu0 %v6816
      %6818 = vmatprep.subr.mxu0 0.0
      %6819 = vmatpush1.msra.mxu0 0.0
      %6820 = vmatprep.subr.mxu0 0.0
      %6821 = vmatpush1.msra.mxu0 0.0
      %6822 = vmatprep.subr.mxu0 0.0
      %6823 = vmatpush1.msra.mxu0 0.0
      %6824 = vmatprep.subr.mxu0 0.0
      %6825 = vmatpush1.msra.mxu0 0.0
      %6826 = vmatprep.subr.mxu0 0.0
      %6827 = vmatpush1.msra.mxu0 0.0
      %6828 = vmatprep.subr.mxu0 0.0
      %6829 = vmatpush1.msra.mxu0 0.0
      %6830 = vmatprep.subr.mxu0 0.0
      %6831 = vmatpush1.msra.mxu0 0.0
      %6832 = vmatprep.subr.mxu0 0.0
      %6833 = vmatpush1.msra.mxu0 0.0
      %6834 = vmatprep.subr.mxu0 0.0
      %6835 = vmatpush1.msra.mxu0 0.0
      %6836 = vmatprep.subr.mxu0 0.0
      %6837 = vmatpush1.msra.mxu0 0.0
      %6838 = vmatprep.subr.mxu0 0.0
      %6839 = vmatpush1.msra.mxu0 0.0
      %6840 = vmatprep.subr.mxu0 0.0
      %6841 = vmatpush1.msra.mxu0 0.0
      %6842 = vmatprep.subr.mxu0 0.0
      %6843 = vmatpush1.msra.mxu0 0.0
      %6844 = vmatprep.subr.mxu0 0.0
      %6845 = vmatpush1.msra.mxu0 0.0
      %6846 = vmatprep.subr.mxu0 0.0
      %6847 = vmatpush1.msra.mxu0 0.0
      %6848 = vmatprep.subr.mxu0 0.0
      %6849 = vmatpush1.msra.mxu0 0.0
      %6850 = vmatprep.subr.mxu0 0.0
      %6851 = vmatpush1.msra.mxu0 0.0
      %6852 = vmatprep.subr.mxu0 0.0
      %6853 = vmatpush1.msra.mxu0 0.0
      %6854 = vmatprep.subr.mxu0 0.0
      %6855 = vmatpush1.msra.mxu0 0.0
      %6856 = vmatprep.subr.mxu0 0.0
      %6857 = vmatpush1.msra.mxu0 0.0
      %6858 = vmatprep.subr.mxu0 0.0
      %6859 = vmatpush1.msra.mxu0 0.0
      %6860 = vmatprep.subr.mxu0 0.0
      %6861 = vmatpush1.msra.mxu0 0.0
      %6862 = vmatprep.subr.mxu0 0.0
      %6863 = vmatpush1.msra.mxu0 0.0
      %6864 = vmatprep.subr.mxu0 0.0
      %6865 = vmatpush1.msra.mxu0 0.0
      %6866 = vmatprep.subr.mxu0 0.0
      %6867 = vmatpush1.msra.mxu0 0.0
      %6868 = vmatprep.subr.mxu0 0.0
      %6869 = vmatpush1.msra.mxu0 0.0
      %6870 = vmatprep.subr.mxu0 0.0
      %6871 = vmatpush1.msra.mxu0 0.0
      %6872 = vmatprep.subr.mxu0 0.0
      %6873 = vmatpush1.msra.mxu0 0.0
      %6874 = vmatprep.subr.mxu0 0.0
      %6875 = vmatpush1.msra.mxu0 0.0
      %6876 = vmatprep.subr.mxu0 0.0
      %6877 = vmatpush1.msra.mxu0 0.0
      %6878 = vmatprep.subr.mxu0 0.0
      %6879 = vmatpush1.msra.mxu0 0.0
      %6880 = vmatprep.mubr.f32.mxu0 0.0
      %v6881 = vand.u32 %v6588, 4294901760
      %v6882 = vsub.f32 %v6588, %v6881
      %v6883 = vand.u32 %v6882, 4294901760
      %6884 = vmatmul.mubr.f32.gmra.mrb[0].mxu0 %v6883
      %v6885 = vpop.f32.mrb[0].mxu0
      %v6886 = vadd.f32 %v6812, %v6885
      %v6887 = vpop.f32.mrb[0].mxu0
      %6888 = vdwg.mxu0
      %6889 = vmatprep.subr.mxu0 0.0
      %v6890 = vand.u32 %v4761, 4294901760
      %v6891 = vsub.f32 %v4761, %v6890
      %v6892 = vand.u32 %v6891, 4294901760
      %6893 = vmatpush1.msra.mxu0 %v6892
      %6894 = vmatprep.subr.mxu0 0.0
      %6895 = vmatpush1.msra.mxu0 0.0
      %6896 = vmatprep.subr.mxu0 0.0
      %6897 = vmatpush1.msra.mxu0 0.0
      %6898 = vmatprep.subr.mxu0 0.0
      %6899 = vmatpush1.msra.mxu0 0.0
      %6900 = vmatprep.subr.mxu0 0.0
      %6901 = vmatpush1.msra.mxu0 0.0
      %6902 = vmatprep.subr.mxu0 0.0
      %6903 = vmatpush1.msra.mxu0 0.0
      %6904 = vmatprep.subr.mxu0 0.0
      %6905 = vmatpush1.msra.mxu0 0.0
      %6906 = vmatprep.subr.mxu0 0.0
      %6907 = vmatpush1.msra.mxu0 0.0
      %6908 = vmatprep.subr.mxu0 0.0
      %6909 = vmatpush1.msra.mxu0 0.0
      %6910 = vmatprep.subr.mxu0 0.0
      %6911 = vmatpush1.msra.mxu0 0.0
      %6912 = vmatprep.subr.mxu0 0.0
      %6913 = vmatpush1.msra.mxu0 0.0
      %6914 = vmatprep.subr.mxu0 0.0
      %6915 = vmatpush1.msra.mxu0 0.0
      %6916 = vmatprep.subr.mxu0 0.0
      %6917 = vmatpush1.msra.mxu0 0.0
      %6918 = vmatprep.subr.mxu0 0.0
      %6919 = vmatpush1.msra.mxu0 0.0
      %6920 = vmatprep.subr.mxu0 0.0
      %6921 = vmatpush1.msra.mxu0 0.0
      %6922 = vmatprep.subr.mxu0 0.0
      %6923 = vmatpush1.msra.mxu0 0.0
      %6924 = vmatprep.subr.mxu0 0.0
      %6925 = vmatpush1.msra.mxu0 0.0
      %6926 = vmatprep.subr.mxu0 0.0
      %6927 = vmatpush1.msra.mxu0 0.0
      %6928 = vmatprep.subr.mxu0 0.0
      %6929 = vmatpush1.msra.mxu0 0.0
      %6930 = vmatprep.subr.mxu0 0.0
      %6931 = vmatpush1.msra.mxu0 0.0
      %6932 = vmatprep.subr.mxu0 0.0
      %6933 = vmatpush1.msra.mxu0 0.0
      %6934 = vmatprep.subr.mxu0 0.0
      %6935 = vmatpush1.msra.mxu0 0.0
      %6936 = vmatprep.subr.mxu0 0.0
      %6937 = vmatpush1.msra.mxu0 0.0
      %6938 = vmatprep.subr.mxu0 0.0
      %6939 = vmatpush1.msra.mxu0 0.0
      %6940 = vmatprep.subr.mxu0 0.0
      %6941 = vmatpush1.msra.mxu0 0.0
      %6942 = vmatprep.subr.mxu0 0.0
      %6943 = vmatpush1.msra.mxu0 0.0
      %6944 = vmatprep.subr.mxu0 0.0
      %6945 = vmatpush1.msra.mxu0 0.0
      %6946 = vmatprep.subr.mxu0 0.0
      %6947 = vmatpush1.msra.mxu0 0.0
      %6948 = vmatprep.subr.mxu0 0.0
      %6949 = vmatpush1.msra.mxu0 0.0
      %6950 = vmatprep.subr.mxu0 0.0
      %6951 = vmatpush1.msra.mxu0 0.0
      %6952 = vmatprep.subr.mxu0 0.0
      %6953 = vmatpush1.msra.mxu0 0.0
      %6954 = vmatprep.subr.mxu0 0.0
      %6955 = vmatpush1.msra.mxu0 0.0
      %6956 = vmatprep.mubr.f32.mxu0 0.0
      %v6957 = vand.u32 %v6588, 4294901760
      %6958 = vmatmul.mubr.f32.gmra.mrb[0].mxu0 %v6957
      %v6959 = vpop.f32.mrb[0].mxu0
      %v6960 = vadd.f32 %v6886, %v6959
      %v6961 = vpop.f32.mrb[0].mxu0
      %6962 = vdwg.mxu0
      %6963 = vmatprep.subr.mxu0 0.0
      %v6964 = vand.u32 %v4761, 4294901760
      %6965 = vmatpush1.msra.mxu0 %v6964
      %6966 = vmatprep.subr.mxu0 0.0
      %6967 = vmatpush1.msra.mxu0 0.0
      %6968 = vmatprep.subr.mxu0 0.0
      %6969 = vmatpush1.msra.mxu0 0.0
      %6970 = vmatprep.subr.mxu0 0.0
      %6971 = vmatpush1.msra.mxu0 0.0
      %6972 = vmatprep.subr.mxu0 0.0
      %6973 = vmatpush1.msra.mxu0 0.0
      %6974 = vmatprep.subr.mxu0 0.0
      %6975 = vmatpush1.msra.mxu0 0.0
      %6976 = vmatprep.subr.mxu0 0.0
      %6977 = vmatpush1.msra.mxu0 0.0
      %6978 = vmatprep.subr.mxu0 0.0
      %6979 = vmatpush1.msra.mxu0 0.0
      %6980 = vmatprep.subr.mxu0 0.0
      %6981 = vmatpush1.msra.mxu0 0.0
      %6982 = vmatprep.subr.mxu0 0.0
      %6983 = vmatpush1.msra.mxu0 0.0
      %6984 = vmatprep.subr.mxu0 0.0
      %6985 = vmatpush1.msra.mxu0 0.0
      %6986 = vmatprep.subr.mxu0 0.0
      %6987 = vmatpush1.msra.mxu0 0.0
      %6988 = vmatprep.subr.mxu0 0.0
      %6989 = vmatpush1.msra.mxu0 0.0
      %6990 = vmatprep.subr.mxu0 0.0
      %6991 = vmatpush1.msra.mxu0 0.0
      %6992 = vmatprep.subr.mxu0 0.0
      %6993 = vmatpush1.msra.mxu0 0.0
      %6994 = vmatprep.subr.mxu0 0.0
      %6995 = vmatpush1.msra.mxu0 0.0
      %6996 = vmatprep.subr.mxu0 0.0
      %6997 = vmatpush1.msra.mxu0 0.0
      %6998 = vmatprep.subr.mxu0 0.0
      %6999 = vmatpush1.msra.mxu0 0.0
      %7000 = vmatprep.subr.mxu0 0.0
      %7001 = vmatpush1.msra.mxu0 0.0
      %7002 = vmatprep.subr.mxu0 0.0
      %7003 = vmatpush1.msra.mxu0 0.0
      %7004 = vmatprep.subr.mxu0 0.0
      %7005 = vmatpush1.msra.mxu0 0.0
      %7006 = vmatprep.subr.mxu0 0.0
      %7007 = vmatpush1.msra.mxu0 0.0
      %7008 = vmatprep.subr.mxu0 0.0
      %7009 = vmatpush1.msra.mxu0 0.0
      %7010 = vmatprep.subr.mxu0 0.0
      %7011 = vmatpush1.msra.mxu0 0.0
      %7012 = vmatprep.subr.mxu0 0.0
      %7013 = vmatpush1.msra.mxu0 0.0
      %7014 = vmatprep.subr.mxu0 0.0
      %7015 = vmatpush1.msra.mxu0 0.0
      %7016 = vmatprep.subr.mxu0 0.0
      %7017 = vmatpush1.msra.mxu0 0.0
      %7018 = vmatprep.subr.mxu0 0.0
      %7019 = vmatpush1.msra.mxu0 0.0
      %7020 = vmatprep.subr.mxu0 0.0
      %7021 = vmatpush1.msra.mxu0 0.0
      %7022 = vmatprep.subr.mxu0 0.0
      %7023 = vmatpush1.msra.mxu0 0.0
      %7024 = vmatprep.subr.mxu0 0.0
      %7025 = vmatpush1.msra.mxu0 0.0
      %7026 = vmatprep.subr.mxu0 0.0
      %7027 = vmatpush1.msra.mxu0 0.0
      %7028 = vmatprep.mubr.f32.mxu0 0.0
      %v7029 = vand.u32 %v6588, 4294901760
      %7030 = vmatmul.mubr.f32.gmra.mrb[0].mxu0 %v7029
      %v7031 = vpop.f32.mrb[0].mxu0
      %v7032 = vadd.f32 %v6960, %v7031
      %v7033 = vpop.f32.mrb[0].mxu0
      %7034 = vdwg.mxu0
      %v7035 = vmul.f32 %v6588, 2.0
      %7036 = vmatprep.subr.mxu0 0.0
      %v7037 = vand.u32 %v6588, 4294901760
      %7038 = vmatpush1.msra.mxu0 %v7037
      %7039 = vmatprep.subr.mxu0 0.0
      %7040 = vmatpush1.msra.mxu0 0.0
      %7041 = vmatprep.subr.mxu0 0.0
      %7042 = vmatpush1.msra.mxu0 0.0
      %7043 = vmatprep.subr.mxu0 0.0
      %7044 = vmatpush1.msra.mxu0 0.0
      %7045 = vmatprep.subr.mxu0 0.0
      %7046 = vmatpush1.msra.mxu0 0.0
      %7047 = vmatprep.subr.mxu0 0.0
      %7048 = vmatpush1.msra.mxu0 0.0
      %7049 = vmatprep.subr.mxu0 0.0
      %7050 = vmatpush1.msra.mxu0 0.0
      %7051 = vmatprep.subr.mxu0 0.0
      %7052 = vmatpush1.msra.mxu0 0.0
      %7053 = vmatprep.subr.mxu0 0.0
      %7054 = vmatpush1.msra.mxu0 0.0
      %7055 = vmatprep.subr.mxu0 0.0
      %7056 = vmatpush1.msra.mxu0 0.0
      %7057 = vmatprep.subr.mxu0 0.0
      %7058 = vmatpush1.msra.mxu0 0.0
      %7059 = vmatprep.subr.mxu0 0.0
      %7060 = vmatpush1.msra.mxu0 0.0
      %7061 = vmatprep.subr.mxu0 0.0
      %7062 = vmatpush1.msra.mxu0 0.0
      %7063 = vmatprep.subr.mxu0 0.0
      %7064 = vmatpush1.msra.mxu0 0.0
      %7065 = vmatprep.subr.mxu0 0.0
      %7066 = vmatpush1.msra.mxu0 0.0
      %7067 = vmatprep.subr.mxu0 0.0
      %7068 = vmatpush1.msra.mxu0 0.0
      %7069 = vmatprep.subr.mxu0 0.0
      %7070 = vmatpush1.msra.mxu0 0.0
      %7071 = vmatprep.subr.mxu0 0.0
      %7072 = vmatpush1.msra.mxu0 0.0
      %7073 = vmatprep.subr.mxu0 0.0
      %7074 = vmatpush1.msra.mxu0 0.0
      %7075 = vmatprep.subr.mxu0 0.0
      %7076 = vmatpush1.msra.mxu0 0.0
      %7077 = vmatprep.subr.mxu0 0.0
      %7078 = vmatpush1.msra.mxu0 0.0
      %7079 = vmatprep.subr.mxu0 0.0
      %7080 = vmatpush1.msra.mxu0 0.0
      %7081 = vmatprep.subr.mxu0 0.0
      %7082 = vmatpush1.msra.mxu0 0.0
      %7083 = vmatprep.subr.mxu0 0.0
      %7084 = vmatpush1.msra.mxu0 0.0
      %7085 = vmatprep.subr.mxu0 0.0
      %7086 = vmatpush1.msra.mxu0 0.0
      %7087 = vmatprep.subr.mxu0 0.0
      %7088 = vmatpush1.msra.mxu0 0.0
      %7089 = vmatprep.subr.mxu0 0.0
      %7090 = vmatpush1.msra.mxu0 0.0
      %7091 = vmatprep.subr.mxu0 0.0
      %7092 = vmatpush1.msra.mxu0 0.0
      %7093 = vmatprep.subr.mxu0 0.0
      %7094 = vmatpush1.msra.mxu0 0.0
      %7095 = vmatprep.subr.mxu0 0.0
      %7096 = vmatpush1.msra.mxu0 0.0
      %7097 = vmatprep.subr.mxu0 0.0
      %7098 = vmatpush1.msra.mxu0 0.0
      %7099 = vmatprep.subr.mxu0 0.0
      %7100 = vmatpush1.msra.mxu0 0.0
      %7101 = vmatprep.mubr.f32.mxu0 0.0
      %v7102 = vand.u32 %v7032, 4294901760
      %v7103 = vsub.f32 %v7032, %v7102
      %v7104 = vand.u32 %v7103, 4294901760
      %v7105 = vsub.f32 %v7103, %v7104
      %v7106 = vand.u32 %v7105, 4294901760
      %7107 = vmatmul.mubr.f32.gmra.mrb[0].mxu0 %v7106
      %v7108 = vpop.f32.mrb[0].mxu0
      %v7109 = vadd.f32 0.0, %v7108
      %v7110 = vpop.f32.mrb[0].mxu0
      %7111 = vdwg.mxu0
      %7112 = vmatprep.subr.mxu0 0.0
      %v7113 = vand.u32 %v6588, 4294901760
      %v7114 = vsub.f32 %v6588, %v7113
      %v7115 = vand.u32 %v7114, 4294901760
      %v7116 = vsub.f32 %v7114, %v7115
      %v7117 = vand.u32 %v7116, 4294901760
      %7118 = vmatpush1.msra.mxu0 %v7117
      %7119 = vmatprep.subr.mxu0 0.0
      %7120 = vmatpush1.msra.mxu0 0.0
      %7121 = vmatprep.subr.mxu0 0.0
      %7122 = vmatpush1.msra.mxu0 0.0
      %7123 = vmatprep.subr.mxu0 0.0
      %7124 = vmatpush1.msra.mxu0 0.0
      %7125 = vmatprep.subr.mxu0 0.0
      %7126 = vmatpush1.msra.mxu0 0.0
      %7127 = vmatprep.subr.mxu0 0.0
      %7128 = vmatpush1.msra.mxu0 0.0
      %7129 = vmatprep.subr.mxu0 0.0
      %7130 = vmatpush1.msra.mxu0 0.0
      %7131 = vmatprep.subr.mxu0 0.0
      %7132 = vmatpush1.msra.mxu0 0.0
      %7133 = vmatprep.subr.mxu0 0.0
      %7134 = vmatpush1.msra.mxu0 0.0
      %7135 = vmatprep.subr.mxu0 0.0
      %7136 = vmatpush1.msra.mxu0 0.0
      %7137 = vmatprep.subr.mxu0 0.0
      %7138 = vmatpush1.msra.mxu0 0.0
      %7139 = vmatprep.subr.mxu0 0.0
      %7140 = vmatpush1.msra.mxu0 0.0
      %7141 = vmatprep.subr.mxu0 0.0
      %7142 = vmatpush1.msra.mxu0 0.0
      %7143 = vmatprep.subr.mxu0 0.0
      %7144 = vmatpush1.msra.mxu0 0.0
      %7145 = vmatprep.subr.mxu0 0.0
      %7146 = vmatpush1.msra.mxu0 0.0
      %7147 = vmatprep.subr.mxu0 0.0
      %7148 = vmatpush1.msra.mxu0 0.0
      %7149 = vmatprep.subr.mxu0 0.0
      %7150 = vmatpush1.msra.mxu0 0.0
      %7151 = vmatprep.subr.mxu0 0.0
      %7152 = vmatpush1.msra.mxu0 0.0
      %7153 = vmatprep.subr.mxu0 0.0
      %7154 = vmatpush1.msra.mxu0 0.0
      %7155 = vmatprep.subr.mxu0 0.0
      %7156 = vmatpush1.msra.mxu0 0.0
      %7157 = vmatprep.subr.mxu0 0.0
      %7158 = vmatpush1.msra.mxu0 0.0
      %7159 = vmatprep.subr.mxu0 0.0
      %7160 = vmatpush1.msra.mxu0 0.0
      %7161 = vmatprep.subr.mxu0 0.0
      %7162 = vmatpush1.msra.mxu0 0.0
      %7163 = vmatprep.subr.mxu0 0.0
      %7164 = vmatpush1.msra.mxu0 0.0
      %7165 = vmatprep.subr.mxu0 0.0
      %7166 = vmatpush1.msra.mxu0 0.0
      %7167 = vmatprep.subr.mxu0 0.0
      %7168 = vmatpush1.msra.mxu0 0.0
      %7169 = vmatprep.subr.mxu0 0.0
      %7170 = vmatpush1.msra.mxu0 0.0
      %7171 = vmatprep.subr.mxu0 0.0
      %7172 = vmatpush1.msra.mxu0 0.0
      %7173 = vmatprep.subr.mxu0 0.0
      %7174 = vmatpush1.msra.mxu0 0.0
      %7175 = vmatprep.subr.mxu0 0.0
      %7176 = vmatpush1.msra.mxu0 0.0
      %7177 = vmatprep.subr.mxu0 0.0
      %7178 = vmatpush1.msra.mxu0 0.0
      %7179 = vmatprep.subr.mxu0 0.0
      %7180 = vmatpush1.msra.mxu0 0.0
      %7181 = vmatprep.mubr.f32.mxu0 0.0
      %v7182 = vand.u32 %v7032, 4294901760
      %7183 = vmatmul.mubr.f32.gmra.mrb[0].mxu0 %v7182
      %v7184 = vpop.f32.mrb[0].mxu0
      %v7185 = vadd.f32 %v7109, %v7184
      %v7186 = vpop.f32.mrb[0].mxu0
      %7187 = vdwg.mxu0
      %7188 = vmatprep.subr.mxu0 0.0
      %v7189 = vand.u32 %v6588, 4294901760
      %v7190 = vsub.f32 %v6588, %v7189
      %7191 = vmatpush1.msra.mxu0 %v7190
      %7192 = vmatprep.subr.mxu0 0.0
      %7193 = vmatpush1.msra.mxu0 0.0
      %7194 = vmatprep.subr.mxu0 0.0
      %7195 = vmatpush1.msra.mxu0 0.0
      %7196 = vmatprep.subr.mxu0 0.0
      %7197 = vmatpush1.msra.mxu0 0.0
      %7198 = vmatprep.subr.mxu0 0.0
      %7199 = vmatpush1.msra.mxu0 0.0
      %7200 = vmatprep.subr.mxu0 0.0
      %7201 = vmatpush1.msra.mxu0 0.0
      %7202 = vmatprep.subr.mxu0 0.0
      %7203 = vmatpush1.msra.mxu0 0.0
      %7204 = vmatprep.subr.mxu0 0.0
      %7205 = vmatpush1.msra.mxu0 0.0
      %7206 = vmatprep.subr.mxu0 0.0
      %7207 = vmatpush1.msra.mxu0 0.0
      %7208 = vmatprep.subr.mxu0 0.0
      %7209 = vmatpush1.msra.mxu0 0.0
      %7210 = vmatprep.subr.mxu0 0.0
      %7211 = vmatpush1.msra.mxu0 0.0
      %7212 = vmatprep.subr.mxu0 0.0
      %7213 = vmatpush1.msra.mxu0 0.0
      %7214 = vmatprep.subr.mxu0 0.0
      %7215 = vmatpush1.msra.mxu0 0.0
      %7216 = vmatprep.subr.mxu0 0.0
      %7217 = vmatpush1.msra.mxu0 0.0
      %7218 = vmatprep.subr.mxu0 0.0
      %7219 = vmatpush1.msra.mxu0 0.0
      %7220 = vmatprep.subr.mxu0 0.0
      %7221 = vmatpush1.msra.mxu0 0.0
      %7222 = vmatprep.subr.mxu0 0.0
      %7223 = vmatpush1.msra.mxu0 0.0
      %7224 = vmatprep.subr.mxu0 0.0
      %7225 = vmatpush1.msra.mxu0 0.0
      %7226 = vmatprep.subr.mxu0 0.0
      %7227 = vmatpush1.msra.mxu0 0.0
      %7228 = vmatprep.subr.mxu0 0.0
      %7229 = vmatpush1.msra.mxu0 0.0
      %7230 = vmatprep.subr.mxu0 0.0
      %7231 = vmatpush1.msra.mxu0 0.0
      %7232 = vmatprep.subr.mxu0 0.0
      %7233 = vmatpush1.msra.mxu0 0.0
      %7234 = vmatprep.subr.mxu0 0.0
      %7235 = vmatpush1.msra.mxu0 0.0
      %7236 = vmatprep.subr.mxu0 0.0
      %7237 = vmatpush1.msra.mxu0 0.0
      %7238 = vmatprep.subr.mxu0 0.0
      %7239 = vmatpush1.msra.mxu0 0.0
      %7240 = vmatprep.subr.mxu0 0.0
      %7241 = vmatpush1.msra.mxu0 0.0
      %7242 = vmatprep.subr.mxu0 0.0
      %7243 = vmatpush1.msra.mxu0 0.0
      %7244 = vmatprep.subr.mxu0 0.0
      %7245 = vmatpush1.msra.mxu0 0.0
      %7246 = vmatprep.subr.mxu0 0.0
      %7247 = vmatpush1.msra.mxu0 0.0
      %7248 = vmatprep.subr.mxu0 0.0
      %7249 = vmatpush1.msra.mxu0 0.0
      %7250 = vmatprep.subr.mxu0 0.0
      %7251 = vmatpush1.msra.mxu0 0.0
      %7252 = vmatprep.subr.mxu0 0.0
      %7253 = vmatpush1.msra.mxu0 0.0
      %7254 = vmatprep.mubr.f32.mxu0 0.0
      %v7255 = vand.u32 %v7032, 4294901760
      %v7256 = vsub.f32 %v7032, %v7255
      %7257 = vmatmul.mubr.f32.gmra.mrb[0].mxu0 %v7256
      %v7258 = vpop.f32.mrb[0].mxu0
      %v7259 = vadd.f32 %v7185, %v7258
      %v7260 = vpop.f32.mrb[0].mxu0
      %7261 = vdwg.mxu0
      %7262 = vmatprep.subr.mxu0 0.0
      %v7263 = vand.u32 %v6588, 4294901760
      %7264 = vmatpush1.msra.mxu0 %v7263
      %7265 = vmatprep.subr.mxu0 0.0
      %7266 = vmatpush1.msra.mxu0 0.0
      %7267 = vmatprep.subr.mxu0 0.0
      %7268 = vmatpush1.msra.mxu0 0.0
      %7269 = vmatprep.subr.mxu0 0.0
      %7270 = vmatpush1.msra.mxu0 0.0
      %7271 = vmatprep.subr.mxu0 0.0
      %7272 = vmatpush1.msra.mxu0 0.0
      %7273 = vmatprep.subr.mxu0 0.0
      %7274 = vmatpush1.msra.mxu0 0.0
      %7275 = vmatprep.subr.mxu0 0.0
      %7276 = vmatpush1.msra.mxu0 0.0
      %7277 = vmatprep.subr.mxu0 0.0
      %7278 = vmatpush1.msra.mxu0 0.0
      %7279 = vmatprep.subr.mxu0 0.0
      %7280 = vmatpush1.msra.mxu0 0.0
      %7281 = vmatprep.subr.mxu0 0.0
      %7282 = vmatpush1.msra.mxu0 0.0
      %7283 = vmatprep.subr.mxu0 0.0
      %7284 = vmatpush1.msra.mxu0 0.0
      %7285 = vmatprep.subr.mxu0 0.0
      %7286 = vmatpush1.msra.mxu0 0.0
      %7287 = vmatprep.subr.mxu0 0.0
      %7288 = vmatpush1.msra.mxu0 0.0
      %7289 = vmatprep.subr.mxu0 0.0
      %7290 = vmatpush1.msra.mxu0 0.0
      %7291 = vmatprep.subr.mxu0 0.0
      %7292 = vmatpush1.msra.mxu0 0.0
      %7293 = vmatprep.subr.mxu0 0.0
      %7294 = vmatpush1.msra.mxu0 0.0
      %7295 = vmatprep.subr.mxu0 0.0
      %7296 = vmatpush1.msra.mxu0 0.0
      %7297 = vmatprep.subr.mxu0 0.0
      %7298 = vmatpush1.msra.mxu0 0.0
      %7299 = vmatprep.subr.mxu0 0.0
      %7300 = vmatpush1.msra.mxu0 0.0
      %7301 = vmatprep.subr.mxu0 0.0
      %7302 = vmatpush1.msra.mxu0 0.0
      %7303 = vmatprep.subr.mxu0 0.0
      %7304 = vmatpush1.msra.mxu0 0.0
      %7305 = vmatprep.subr.mxu0 0.0
      %7306 = vmatpush1.msra.mxu0 0.0
      %7307 = vmatprep.subr.mxu0 0.0
      %7308 = vmatpush1.msra.mxu0 0.0
      %7309 = vmatprep.subr.mxu0 0.0
      %7310 = vmatpush1.msra.mxu0 0.0
      %7311 = vmatprep.subr.mxu0 0.0
      %7312 = vmatpush1.msra.mxu0 0.0
      %7313 = vmatprep.subr.mxu0 0.0
      %7314 = vmatpush1.msra.mxu0 0.0
      %7315 = vmatprep.subr.mxu0 0.0
      %7316 = vmatpush1.msra.mxu0 0.0
      %7317 = vmatprep.subr.mxu0 0.0
      %7318 = vmatpush1.msra.mxu0 0.0
      %7319 = vmatprep.subr.mxu0 0.0
      %7320 = vmatpush1.msra.mxu0 0.0
      %7321 = vmatprep.subr.mxu0 0.0
      %7322 = vmatpush1.msra.mxu0 0.0
      %7323 = vmatprep.subr.mxu0 0.0
      %7324 = vmatpush1.msra.mxu0 0.0
      %7325 = vmatprep.subr.mxu0 0.0
      %7326 = vmatpush1.msra.mxu0 0.0
      %7327 = vmatprep.mubr.f32.mxu0 0.0
      %v7328 = vand.u32 %v7032, 4294901760
      %v7329 = vsub.f32 %v7032, %v7328
      %v7330 = vand.u32 %v7329, 4294901760
      %7331 = vmatmul.mubr.f32.gmra.mrb[0].mxu0 %v7330
      %v7332 = vpop.f32.mrb[0].mxu0
      %v7333 = vadd.f32 %v7259, %v7332
      %v7334 = vpop.f32.mrb[0].mxu0
      %7335 = vdwg.mxu0
      %7336 = vmatprep.subr.mxu0 0.0
      %v7337 = vand.u32 %v6588, 4294901760
      %v7338 = vsub.f32 %v6588, %v7337
      %v7339 = vand.u32 %v7338, 4294901760
      %7340 = vmatpush1.msra.mxu0 %v7339
      %7341 = vmatprep.subr.mxu0 0.0
      %7342 = vmatpush1.msra.mxu0 0.0
      %7343 = vmatprep.subr.mxu0 0.0
      %7344 = vmatpush1.msra.mxu0 0.0
      %7345 = vmatprep.subr.mxu0 0.0
      %7346 = vmatpush1.msra.mxu0 0.0
      %7347 = vmatprep.subr.mxu0 0.0
      %7348 = vmatpush1.msra.mxu0 0.0
      %7349 = vmatprep.subr.mxu0 0.0
      %7350 = vmatpush1.msra.mxu0 0.0
      %7351 = vmatprep.subr.mxu0 0.0
      %7352 = vmatpush1.msra.mxu0 0.0
      %7353 = vmatprep.subr.mxu0 0.0
      %7354 = vmatpush1.msra.mxu0 0.0
      %7355 = vmatprep.subr.mxu0 0.0
      %7356 = vmatpush1.msra.mxu0 0.0
      %7357 = vmatprep.subr.mxu0 0.0
      %7358 = vmatpush1.msra.mxu0 0.0
      %7359 = vmatprep.subr.mxu0 0.0
      %7360 = vmatpush1.msra.mxu0 0.0
      %7361 = vmatprep.subr.mxu0 0.0
      %7362 = vmatpush1.msra.mxu0 0.0
      %7363 = vmatprep.subr.mxu0 0.0
      %7364 = vmatpush1.msra.mxu0 0.0
      %7365 = vmatprep.subr.mxu0 0.0
      %7366 = vmatpush1.msra.mxu0 0.0
      %7367 = vmatprep.subr.mxu0 0.0
      %7368 = vmatpush1.msra.mxu0 0.0
      %7369 = vmatprep.subr.mxu0 0.0
      %7370 = vmatpush1.msra.mxu0 0.0
      %7371 = vmatprep.subr.mxu0 0.0
      %7372 = vmatpush1.msra.mxu0 0.0
      %7373 = vmatprep.subr.mxu0 0.0
      %7374 = vmatpush1.msra.mxu0 0.0
      %7375 = vmatprep.subr.mxu0 0.0
      %7376 = vmatpush1.msra.mxu0 0.0
      %7377 = vmatprep.subr.mxu0 0.0
      %7378 = vmatpush1.msra.mxu0 0.0
      %7379 = vmatprep.subr.mxu0 0.0
      %7380 = vmatpush1.msra.mxu0 0.0
      %7381 = vmatprep.subr.mxu0 0.0
      %7382 = vmatpush1.msra.mxu0 0.0
      %7383 = vmatprep.subr.mxu0 0.0
      %7384 = vmatpush1.msra.mxu0 0.0
      %7385 = vmatprep.subr.mxu0 0.0
      %7386 = vmatpush1.msra.mxu0 0.0
      %7387 = vmatprep.subr.mxu0 0.0
      %7388 = vmatpush1.msra.mxu0 0.0
      %7389 = vmatprep.subr.mxu0 0.0
      %7390 = vmatpush1.msra.mxu0 0.0
      %7391 = vmatprep.subr.mxu0 0.0
      %7392 = vmatpush1.msra.mxu0 0.0
      %7393 = vmatprep.subr.mxu0 0.0
      %7394 = vmatpush1.msra.mxu0 0.0
      %7395 = vmatprep.subr.mxu0 0.0
      %7396 = vmatpush1.msra.mxu0 0.0
      %7397 = vmatprep.subr.mxu0 0.0
      %7398 = vmatpush1.msra.mxu0 0.0
      %7399 = vmatprep.subr.mxu0 0.0
      %7400 = vmatpush1.msra.mxu0 0.0
      %7401 = vmatprep.subr.mxu0 0.0
      %7402 = vmatpush1.msra.mxu0 0.0
      %7403 = vmatprep.mubr.f32.mxu0 0.0
      %v7404 = vand.u32 %v7032, 4294901760
      %7405 = vmatmul.mubr.f32.gmra.mrb[0].mxu0 %v7404
      %v7406 = vpop.f32.mrb[0].mxu0
      %v7407 = vadd.f32 %v7333, %v7406
      %v7408 = vpop.f32.mrb[0].mxu0
      %7409 = vdwg.mxu0
      %7410 = vmatprep.subr.mxu0 0.0
      %v7411 = vand.u32 %v6588, 4294901760
      %7412 = vmatpush1.msra.mxu0 %v7411
      %7413 = vmatprep.subr.mxu0 0.0
      %7414 = vmatpush1.msra.mxu0 0.0
      %7415 = vmatprep.subr.mxu0 0.0
      %7416 = vmatpush1.msra.mxu0 0.0
      %7417 = vmatprep.subr.mxu0 0.0
      %7418 = vmatpush1.msra.mxu0 0.0
      %7419 = vmatprep.subr.mxu0 0.0
      %7420 = vmatpush1.msra.mxu0 0.0
      %7421 = vmatprep.subr.mxu0 0.0
      %7422 = vmatpush1.msra.mxu0 0.0
      %7423 = vmatprep.subr.mxu0 0.0
      %7424 = vmatpush1.msra.mxu0 0.0
      %7425 = vmatprep.subr.mxu0 0.0
      %7426 = vmatpush1.msra.mxu0 0.0
      %7427 = vmatprep.subr.mxu0 0.0
      %7428 = vmatpush1.msra.mxu0 0.0
      %7429 = vmatprep.subr.mxu0 0.0
      %7430 = vmatpush1.msra.mxu0 0.0
      %7431 = vmatprep.subr.mxu0 0.0
      %7432 = vmatpush1.msra.mxu0 0.0
      %7433 = vmatprep.subr.mxu0 0.0
      %7434 = vmatpush1.msra.mxu0 0.0
      %7435 = vmatprep.subr.mxu0 0.0
      %7436 = vmatpush1.msra.mxu0 0.0
      %7437 = vmatprep.subr.mxu0 0.0
      %7438 = vmatpush1.msra.mxu0 0.0
      %7439 = vmatprep.subr.mxu0 0.0
      %7440 = vmatpush1.msra.mxu0 0.0
      %7441 = vmatprep.subr.mxu0 0.0
      %7442 = vmatpush1.msra.mxu0 0.0
      %7443 = vmatprep.subr.mxu0 0.0
      %7444 = vmatpush1.msra.mxu0 0.0
      %7445 = vmatprep.subr.mxu0 0.0
      %7446 = vmatpush1.msra.mxu0 0.0
      %7447 = vmatprep.subr.mxu0 0.0
      %7448 = vmatpush1.msra.mxu0 0.0
      %7449 = vmatprep.subr.mxu0 0.0
      %7450 = vmatpush1.msra.mxu0 0.0
      %7451 = vmatprep.subr.mxu0 0.0
      %7452 = vmatpush1.msra.mxu0 0.0
      %7453 = vmatprep.subr.mxu0 0.0
      %7454 = vmatpush1.msra.mxu0 0.0
      %7455 = vmatprep.subr.mxu0 0.0
      %7456 = vmatpush1.msra.mxu0 0.0
      %7457 = vmatprep.subr.mxu0 0.0
      %7458 = vmatpush1.msra.mxu0 0.0
      %7459 = vmatprep.subr.mxu0 0.0
      %7460 = vmatpush1.msra.mxu0 0.0
      %7461 = vmatprep.subr.mxu0 0.0
      %7462 = vmatpush1.msra.mxu0 0.0
      %7463 = vmatprep.subr.mxu0 0.0
      %7464 = vmatpush1.msra.mxu0 0.0
      %7465 = vmatprep.subr.mxu0 0.0
      %7466 = vmatpush1.msra.mxu0 0.0
      %7467 = vmatprep.subr.mxu0 0.0
      %7468 = vmatpush1.msra.mxu0 0.0
      %7469 = vmatprep.subr.mxu0 0.0
      %7470 = vmatpush1.msra.mxu0 0.0
      %7471 = vmatprep.subr.mxu0 0.0
      %7472 = vmatpush1.msra.mxu0 0.0
      %7473 = vmatprep.subr.mxu0 0.0
      %7474 = vmatpush1.msra.mxu0 0.0
      %7475 = vmatprep.mubr.f32.mxu0 0.0
      %v7476 = vand.u32 %v7032, 4294901760
      %7477 = vmatmul.mubr.f32.gmra.mrb[0].mxu0 %v7476
      %v7478 = vpop.f32.mrb[0].mxu0
      %v7479 = vadd.f32 %v7407, %v7478
      %v7480 = vpop.f32.mrb[0].mxu0
      %7481 = vdwg.mxu0
      %v7482 = vsub.f32 %v7035, %v7479
      %7483 = vmatprep.subr.mxu0 0.0
      %v7484 = vand.u32 %v7482, 4294901760
      %7485 = vmatpush1.msra.mxu0 %v7484
      %7486 = vmatprep.subr.mxu0 0.0
      %7487 = vmatpush1.msra.mxu0 0.0
      %7488 = vmatprep.subr.mxu0 0.0
      %7489 = vmatpush1.msra.mxu0 0.0
      %7490 = vmatprep.subr.mxu0 0.0
      %7491 = vmatpush1.msra.mxu0 0.0
      %7492 = vmatprep.subr.mxu0 0.0
      %7493 = vmatpush1.msra.mxu0 0.0
      %7494 = vmatprep.subr.mxu0 0.0
      %7495 = vmatpush1.msra.mxu0 0.0
      %7496 = vmatprep.subr.mxu0 0.0
      %7497 = vmatpush1.msra.mxu0 0.0
      %7498 = vmatprep.subr.mxu0 0.0
      %7499 = vmatpush1.msra.mxu0 0.0
      %7500 = vmatprep.subr.mxu0 0.0
      %7501 = vmatpush1.msra.mxu0 0.0
      %7502 = vmatprep.subr.mxu0 0.0
      %7503 = vmatpush1.msra.mxu0 0.0
      %7504 = vmatprep.subr.mxu0 0.0
      %7505 = vmatpush1.msra.mxu0 0.0
      %7506 = vmatprep.subr.mxu0 0.0
      %7507 = vmatpush1.msra.mxu0 0.0
      %7508 = vmatprep.subr.mxu0 0.0
      %7509 = vmatpush1.msra.mxu0 0.0
      %7510 = vmatprep.subr.mxu0 0.0
      %7511 = vmatpush1.msra.mxu0 0.0
      %7512 = vmatprep.subr.mxu0 0.0
      %7513 = vmatpush1.msra.mxu0 0.0
      %7514 = vmatprep.subr.mxu0 0.0
      %7515 = vmatpush1.msra.mxu0 0.0
      %7516 = vmatprep.subr.mxu0 0.0
      %7517 = vmatpush1.msra.mxu0 0.0
      %7518 = vmatprep.subr.mxu0 0.0
      %7519 = vmatpush1.msra.mxu0 0.0
      %7520 = vmatprep.subr.mxu0 0.0
      %7521 = vmatpush1.msra.mxu0 0.0
      %7522 = vmatprep.subr.mxu0 0.0
      %7523 = vmatpush1.msra.mxu0 0.0
      %7524 = vmatprep.subr.mxu0 0.0
      %7525 = vmatpush1.msra.mxu0 0.0
      %7526 = vmatprep.subr.mxu0 0.0
      %7527 = vmatpush1.msra.mxu0 0.0
      %7528 = vmatprep.subr.mxu0 0.0
      %7529 = vmatpush1.msra.mxu0 0.0
      %7530 = vmatprep.subr.mxu0 0.0
      %7531 = vmatpush1.msra.mxu0 0.0
      %7532 = vmatprep.subr.mxu0 0.0
      %7533 = vmatpush1.msra.mxu0 0.0
      %7534 = vmatprep.subr.mxu0 0.0
      %7535 = vmatpush1.msra.mxu0 0.0
      %7536 = vmatprep.subr.mxu0 0.0
      %7537 = vmatpush1.msra.mxu0 0.0
      %7538 = vmatprep.subr.mxu0 0.0
      %7539 = vmatpush1.msra.mxu0 0.0
      %7540 = vmatprep.subr.mxu0 0.0
      %7541 = vmatpush1.msra.mxu0 0.0
      %7542 = vmatprep.subr.mxu0 0.0
      %7543 = vmatpush1.msra.mxu0 0.0
      %7544 = vmatprep.subr.mxu0 0.0
      %7545 = vmatpush1.msra.mxu0 0.0
      %7546 = vmatprep.subr.mxu0 0.0
      %7547 = vmatpush1.msra.mxu0 0.0
      %7548 = vmatprep.mubr.f32.mxu0 0.0
      %v7549 = vand.u32 %v3476, 4294901760
      %v7550 = vsub.f32 %v3476, %v7549
      %v7551 = vand.u32 %v7550, 4294901760
      %v7552 = vsub.f32 %v7550, %v7551
      %v7553 = vand.u32 %v7552, 4294901760
      %7554 = vmatmul.mubr.f32.gmra.mrb[0].mxu0 %v7553
      %v7555 = vpop.f32.mrb[0].mxu0
      %v7556 = vadd.f32 0.0, %v7555
      %v7557 = vpop.f32.mrb[0].mxu0
      %7558 = vdwg.mxu0
      %7559 = vmatprep.subr.mxu0 0.0
      %v7560 = vand.u32 %v7482, 4294901760
      %v7561 = vsub.f32 %v7482, %v7560
      %v7562 = vand.u32 %v7561, 4294901760
      %v7563 = vsub.f32 %v7561, %v7562
      %v7564 = vand.u32 %v7563, 4294901760
      %7565 = vmatpush1.msra.mxu0 %v7564
      %7566 = vmatprep.subr.mxu0 0.0
      %7567 = vmatpush1.msra.mxu0 0.0
      %7568 = vmatprep.subr.mxu0 0.0
      %7569 = vmatpush1.msra.mxu0 0.0
      %7570 = vmatprep.subr.mxu0 0.0
      %7571 = vmatpush1.msra.mxu0 0.0
      %7572 = vmatprep.subr.mxu0 0.0
      %7573 = vmatpush1.msra.mxu0 0.0
      %7574 = vmatprep.subr.mxu0 0.0
      %7575 = vmatpush1.msra.mxu0 0.0
      %7576 = vmatprep.subr.mxu0 0.0
      %7577 = vmatpush1.msra.mxu0 0.0
      %7578 = vmatprep.subr.mxu0 0.0
      %7579 = vmatpush1.msra.mxu0 0.0
      %7580 = vmatprep.subr.mxu0 0.0
      %7581 = vmatpush1.msra.mxu0 0.0
      %7582 = vmatprep.subr.mxu0 0.0
      %7583 = vmatpush1.msra.mxu0 0.0
      %7584 = vmatprep.subr.mxu0 0.0
      %7585 = vmatpush1.msra.mxu0 0.0
      %7586 = vmatprep.subr.mxu0 0.0
      %7587 = vmatpush1.msra.mxu0 0.0
      %7588 = vmatprep.subr.mxu0 0.0
      %7589 = vmatpush1.msra.mxu0 0.0
      %7590 = vmatprep.subr.mxu0 0.0
      %7591 = vmatpush1.msra.mxu0 0.0
      %7592 = vmatprep.subr.mxu0 0.0
      %7593 = vmatpush1.msra.mxu0 0.0
      %7594 = vmatprep.subr.mxu0 0.0
      %7595 = vmatpush1.msra.mxu0 0.0
      %7596 = vmatprep.subr.mxu0 0.0
      %7597 = vmatpush1.msra.mxu0 0.0
      %7598 = vmatprep.subr.mxu0 0.0
      %7599 = vmatpush1.msra.mxu0 0.0
      %7600 = vmatprep.subr.mxu0 0.0
      %7601 = vmatpush1.msra.mxu0 0.0
      %7602 = vmatprep.subr.mxu0 0.0
      %7603 = vmatpush1.msra.mxu0 0.0
      %7604 = vmatprep.subr.mxu0 0.0
      %7605 = vmatpush1.msra.mxu0 0.0
      %7606 = vmatprep.subr.mxu0 0.0
      %7607 = vmatpush1.msra.mxu0 0.0
      %7608 = vmatprep.subr.mxu0 0.0
      %7609 = vmatpush1.msra.mxu0 0.0
      %7610 = vmatprep.subr.mxu0 0.0
      %7611 = vmatpush1.msra.mxu0 0.0
      %7612 = vmatprep.subr.mxu0 0.0
      %7613 = vmatpush1.msra.mxu0 0.0
      %7614 = vmatprep.subr.mxu0 0.0
      %7615 = vmatpush1.msra.mxu0 0.0
      %7616 = vmatprep.subr.mxu0 0.0
      %7617 = vmatpush1.msra.mxu0 0.0
      %7618 = vmatprep.subr.mxu0 0.0
      %7619 = vmatpush1.msra.mxu0 0.0
      %7620 = vmatprep.subr.mxu0 0.0
      %7621 = vmatpush1.msra.mxu0 0.0
      %7622 = vmatprep.subr.mxu0 0.0
      %7623 = vmatpush1.msra.mxu0 0.0
      %7624 = vmatprep.subr.mxu0 0.0
      %7625 = vmatpush1.msra.mxu0 0.0
      %7626 = vmatprep.subr.mxu0 0.0
      %7627 = vmatpush1.msra.mxu0 0.0
      %7628 = vmatprep.mubr.f32.mxu0 0.0
      %v7629 = vand.u32 %v3476, 4294901760
      %7630 = vmatmul.mubr.f32.gmra.mrb[0].mxu0 %v7629
      %v7631 = vpop.f32.mrb[0].mxu0
      %v7632 = vadd.f32 %v7556, %v7631
      %v7633 = vpop.f32.mrb[0].mxu0
      %7634 = vdwg.mxu0
      %7635 = vmatprep.subr.mxu0 0.0
      %v7636 = vand.u32 %v7482, 4294901760
      %v7637 = vsub.f32 %v7482, %v7636
      %7638 = vmatpush1.msra.mxu0 %v7637
      %7639 = vmatprep.subr.mxu0 0.0
      %7640 = vmatpush1.msra.mxu0 0.0
      %7641 = vmatprep.subr.mxu0 0.0
      %7642 = vmatpush1.msra.mxu0 0.0
      %7643 = vmatprep.subr.mxu0 0.0
      %7644 = vmatpush1.msra.mxu0 0.0
      %7645 = vmatprep.subr.mxu0 0.0
      %7646 = vmatpush1.msra.mxu0 0.0
      %7647 = vmatprep.subr.mxu0 0.0
      %7648 = vmatpush1.msra.mxu0 0.0
      %7649 = vmatprep.subr.mxu0 0.0
      %7650 = vmatpush1.msra.mxu0 0.0
      %7651 = vmatprep.subr.mxu0 0.0
      %7652 = vmatpush1.msra.mxu0 0.0
      %7653 = vmatprep.subr.mxu0 0.0
      %7654 = vmatpush1.msra.mxu0 0.0
      %7655 = vmatprep.subr.mxu0 0.0
      %7656 = vmatpush1.msra.mxu0 0.0
      %7657 = vmatprep.subr.mxu0 0.0
      %7658 = vmatpush1.msra.mxu0 0.0
      %7659 = vmatprep.subr.mxu0 0.0
      %7660 = vmatpush1.msra.mxu0 0.0
      %7661 = vmatprep.subr.mxu0 0.0
      %7662 = vmatpush1.msra.mxu0 0.0
      %7663 = vmatprep.subr.mxu0 0.0
      %7664 = vmatpush1.msra.mxu0 0.0
      %7665 = vmatprep.subr.mxu0 0.0
      %7666 = vmatpush1.msra.mxu0 0.0
      %7667 = vmatprep.subr.mxu0 0.0
      %7668 = vmatpush1.msra.mxu0 0.0
      %7669 = vmatprep.subr.mxu0 0.0
      %7670 = vmatpush1.msra.mxu0 0.0
      %7671 = vmatprep.subr.mxu0 0.0
      %7672 = vmatpush1.msra.mxu0 0.0
      %7673 = vmatprep.subr.mxu0 0.0
      %7674 = vmatpush1.msra.mxu0 0.0
      %7675 = vmatprep.subr.mxu0 0.0
      %7676 = vmatpush1.msra.mxu0 0.0
      %7677 = vmatprep.subr.mxu0 0.0
      %7678 = vmatpush1.msra.mxu0 0.0
      %7679 = vmatprep.subr.mxu0 0.0
      %7680 = vmatpush1.msra.mxu0 0.0
      %7681 = vmatprep.subr.mxu0 0.0
      %7682 = vmatpush1.msra.mxu0 0.0
      %7683 = vmatprep.subr.mxu0 0.0
      %7684 = vmatpush1.msra.mxu0 0.0
      %7685 = vmatprep.subr.mxu0 0.0
      %7686 = vmatpush1.msra.mxu0 0.0
      %7687 = vmatprep.subr.mxu0 0.0
      %7688 = vmatpush1.msra.mxu0 0.0
      %7689 = vmatprep.subr.mxu0 0.0
      %7690 = vmatpush1.msra.mxu0 0.0
      %7691 = vmatprep.subr.mxu0 0.0
      %7692 = vmatpush1.msra.mxu0 0.0
      %7693 = vmatprep.subr.mxu0 0.0
      %7694 = vmatpush1.msra.mxu0 0.0
      %7695 = vmatprep.subr.mxu0 0.0
      %7696 = vmatpush1.msra.mxu0 0.0
      %7697 = vmatprep.subr.mxu0 0.0
      %7698 = vmatpush1.msra.mxu0 0.0
      %7699 = vmatprep.subr.mxu0 0.0
      %7700 = vmatpush1.msra.mxu0 0.0
      %7701 = vmatprep.mubr.f32.mxu0 0.0
      %v7702 = vand.u32 %v3476, 4294901760
      %v7703 = vsub.f32 %v3476, %v7702
      %7704 = vmatmul.mubr.f32.gmra.mrb[0].mxu0 %v7703
      %v7705 = vpop.f32.mrb[0].mxu0
      %v7706 = vadd.f32 %v7632, %v7705
      %v7707 = vpop.f32.mrb[0].mxu0
      %7708 = vdwg.mxu0
      %7709 = vmatprep.subr.mxu0 0.0
      %v7710 = vand.u32 %v7482, 4294901760
      %7711 = vmatpush1.msra.mxu0 %v7710
      %7712 = vmatprep.subr.mxu0 0.0
      %7713 = vmatpush1.msra.mxu0 0.0
      %7714 = vmatprep.subr.mxu0 0.0
      %7715 = vmatpush1.msra.mxu0 0.0
      %7716 = vmatprep.subr.mxu0 0.0
      %7717 = vmatpush1.msra.mxu0 0.0
      %7718 = vmatprep.subr.mxu0 0.0
      %7719 = vmatpush1.msra.mxu0 0.0
      %7720 = vmatprep.subr.mxu0 0.0
      %7721 = vmatpush1.msra.mxu0 0.0
      %7722 = vmatprep.subr.mxu0 0.0
      %7723 = vmatpush1.msra.mxu0 0.0
      %7724 = vmatprep.subr.mxu0 0.0
      %7725 = vmatpush1.msra.mxu0 0.0
      %7726 = vmatprep.subr.mxu0 0.0
      %7727 = vmatpush1.msra.mxu0 0.0
      %7728 = vmatprep.subr.mxu0 0.0
      %7729 = vmatpush1.msra.mxu0 0.0
      %7730 = vmatprep.subr.mxu0 0.0
      %7731 = vmatpush1.msra.mxu0 0.0
      %7732 = vmatprep.subr.mxu0 0.0
      %7733 = vmatpush1.msra.mxu0 0.0
      %7734 = vmatprep.subr.mxu0 0.0
      %7735 = vmatpush1.msra.mxu0 0.0
      %7736 = vmatprep.subr.mxu0 0.0
      %7737 = vmatpush1.msra.mxu0 0.0
      %7738 = vmatprep.subr.mxu0 0.0
      %7739 = vmatpush1.msra.mxu0 0.0
      %7740 = vmatprep.subr.mxu0 0.0
      %7741 = vmatpush1.msra.mxu0 0.0
      %7742 = vmatprep.subr.mxu0 0.0
      %7743 = vmatpush1.msra.mxu0 0.0
      %7744 = vmatprep.subr.mxu0 0.0
      %7745 = vmatpush1.msra.mxu0 0.0
      %7746 = vmatprep.subr.mxu0 0.0
      %7747 = vmatpush1.msra.mxu0 0.0
      %7748 = vmatprep.subr.mxu0 0.0
      %7749 = vmatpush1.msra.mxu0 0.0
      %7750 = vmatprep.subr.mxu0 0.0
      %7751 = vmatpush1.msra.mxu0 0.0
      %7752 = vmatprep.subr.mxu0 0.0
      %7753 = vmatpush1.msra.mxu0 0.0
      %7754 = vmatprep.subr.mxu0 0.0
      %7755 = vmatpush1.msra.mxu0 0.0
      %7756 = vmatprep.subr.mxu0 0.0
      %7757 = vmatpush1.msra.mxu0 0.0
      %7758 = vmatprep.subr.mxu0 0.0
      %7759 = vmatpush1.msra.mxu0 0.0
      %7760 = vmatprep.subr.mxu0 0.0
      %7761 = vmatpush1.msra.mxu0 0.0
      %7762 = vmatprep.subr.mxu0 0.0
      %7763 = vmatpush1.msra.mxu0 0.0
      %7764 = vmatprep.subr.mxu0 0.0
      %7765 = vmatpush1.msra.mxu0 0.0
      %7766 = vmatprep.subr.mxu0 0.0
      %7767 = vmatpush1.msra.mxu0 0.0
      %7768 = vmatprep.subr.mxu0 0.0
      %7769 = vmatpush1.msra.mxu0 0.0
      %7770 = vmatprep.subr.mxu0 0.0
      %7771 = vmatpush1.msra.mxu0 0.0
      %7772 = vmatprep.subr.mxu0 0.0
      %7773 = vmatpush1.msra.mxu0 0.0
      %7774 = vmatprep.mubr.f32.mxu0 0.0
      %v7775 = vand.u32 %v3476, 4294901760
      %v7776 = vsub.f32 %v3476, %v7775
      %v7777 = vand.u32 %v7776, 4294901760
      %7778 = vmatmul.mubr.f32.gmra.mrb[0].mxu0 %v7777
      %v7779 = vpop.f32.mrb[0].mxu0
      %v7780 = vadd.f32 %v7706, %v7779
      %v7781 = vpop.f32.mrb[0].mxu0
      %7782 = vdwg.mxu0
      %7783 = vmatprep.subr.mxu0 0.0
      %v7784 = vand.u32 %v7482, 4294901760
      %v7785 = vsub.f32 %v7482, %v7784
      %v7786 = vand.u32 %v7785, 4294901760
      %7787 = vmatpush1.msra.mxu0 %v7786
      %7788 = vmatprep.subr.mxu0 0.0
      %7789 = vmatpush1.msra.mxu0 0.0
      %7790 = vmatprep.subr.mxu0 0.0
      %7791 = vmatpush1.msra.mxu0 0.0
      %7792 = vmatprep.subr.mxu0 0.0
      %7793 = vmatpush1.msra.mxu0 0.0
      %7794 = vmatprep.subr.mxu0 0.0
      %7795 = vmatpush1.msra.mxu0 0.0
      %7796 = vmatprep.subr.mxu0 0.0
      %7797 = vmatpush1.msra.mxu0 0.0
      %7798 = vmatprep.subr.mxu0 0.0
      %7799 = vmatpush1.msra.mxu0 0.0
      %7800 = vmatprep.subr.mxu0 0.0
      %7801 = vmatpush1.msra.mxu0 0.0
      %7802 = vmatprep.subr.mxu0 0.0
      %7803 = vmatpush1.msra.mxu0 0.0
      %7804 = vmatprep.subr.mxu0 0.0
      %7805 = vmatpush1.msra.mxu0 0.0
      %7806 = vmatprep.subr.mxu0 0.0
      %7807 = vmatpush1.msra.mxu0 0.0
      %7808 = vmatprep.subr.mxu0 0.0
      %7809 = vmatpush1.msra.mxu0 0.0
      %7810 = vmatprep.subr.mxu0 0.0
      %7811 = vmatpush1.msra.mxu0 0.0
      %7812 = vmatprep.subr.mxu0 0.0
      %7813 = vmatpush1.msra.mxu0 0.0
      %7814 = vmatprep.subr.mxu0 0.0
      %7815 = vmatpush1.msra.mxu0 0.0
      %7816 = vmatprep.subr.mxu0 0.0
      %7817 = vmatpush1.msra.mxu0 0.0
      %7818 = vmatprep.subr.mxu0 0.0
      %7819 = vmatpush1.msra.mxu0 0.0
      %7820 = vmatprep.subr.mxu0 0.0
      %7821 = vmatpush1.msra.mxu0 0.0
      %7822 = vmatprep.subr.mxu0 0.0
      %7823 = vmatpush1.msra.mxu0 0.0
      %7824 = vmatprep.subr.mxu0 0.0
      %7825 = vmatpush1.msra.mxu0 0.0
      %7826 = vmatprep.subr.mxu0 0.0
      %7827 = vmatpush1.msra.mxu0 0.0
      %7828 = vmatprep.subr.mxu0 0.0
      %7829 = vmatpush1.msra.mxu0 0.0
      %7830 = vmatprep.subr.mxu0 0.0
      %7831 = vmatpush1.msra.mxu0 0.0
      %7832 = vmatprep.subr.mxu0 0.0
      %7833 = vmatpush1.msra.mxu0 0.0
      %7834 = vmatprep.subr.mxu0 0.0
      %7835 = vmatpush1.msra.mxu0 0.0
      %7836 = vmatprep.subr.mxu0 0.0
      %7837 = vmatpush1.msra.mxu0 0.0
      %7838 = vmatprep.subr.mxu0 0.0
      %7839 = vmatpush1.msra.mxu0 0.0
      %7840 = vmatprep.subr.mxu0 0.0
      %7841 = vmatpush1.msra.mxu0 0.0
      %7842 = vmatprep.subr.mxu0 0.0
      %7843 = vmatpush1.msra.mxu0 0.0
      %7844 = vmatprep.subr.mxu0 0.0
      %7845 = vmatpush1.msra.mxu0 0.0
      %7846 = vmatprep.subr.mxu0 0.0
      %7847 = vmatpush1.msra.mxu0 0.0
      %7848 = vmatprep.subr.mxu0 0.0
      %7849 = vmatpush1.msra.mxu0 0.0
      %7850 = vmatprep.mubr.f32.mxu0 0.0
      %v7851 = vand.u32 %v3476, 4294901760
      %7852 = vmatmul.mubr.f32.gmra.mrb[0].mxu0 %v7851
      %v7853 = vpop.f32.mrb[0].mxu0
      %v7854 = vadd.f32 %v7780, %v7853
      %v7855 = vpop.f32.mrb[0].mxu0
      %7856 = vdwg.mxu0
      %7857 = vmatprep.subr.mxu0 0.0
      %v7858 = vand.u32 %v7482, 4294901760
      %7859 = vmatpush1.msra.mxu0 %v7858
      %7860 = vmatprep.subr.mxu0 0.0
      %7861 = vmatpush1.msra.mxu0 0.0
      %7862 = vmatprep.subr.mxu0 0.0
      %7863 = vmatpush1.msra.mxu0 0.0
      %7864 = vmatprep.subr.mxu0 0.0
      %7865 = vmatpush1.msra.mxu0 0.0
      %7866 = vmatprep.subr.mxu0 0.0
      %7867 = vmatpush1.msra.mxu0 0.0
      %7868 = vmatprep.subr.mxu0 0.0
      %7869 = vmatpush1.msra.mxu0 0.0
      %7870 = vmatprep.subr.mxu0 0.0
      %7871 = vmatpush1.msra.mxu0 0.0
      %7872 = vmatprep.subr.mxu0 0.0
      %7873 = vmatpush1.msra.mxu0 0.0
      %7874 = vmatprep.subr.mxu0 0.0
      %7875 = vmatpush1.msra.mxu0 0.0
      %7876 = vmatprep.subr.mxu0 0.0
      %7877 = vmatpush1.msra.mxu0 0.0
      %7878 = vmatprep.subr.mxu0 0.0
      %7879 = vmatpush1.msra.mxu0 0.0
      %7880 = vmatprep.subr.mxu0 0.0
      %7881 = vmatpush1.msra.mxu0 0.0
      %7882 = vmatprep.subr.mxu0 0.0
      %7883 = vmatpush1.msra.mxu0 0.0
      %7884 = vmatprep.subr.mxu0 0.0
      %7885 = vmatpush1.msra.mxu0 0.0
      %7886 = vmatprep.subr.mxu0 0.0
      %7887 = vmatpush1.msra.mxu0 0.0
      %7888 = vmatprep.subr.mxu0 0.0
      %7889 = vmatpush1.msra.mxu0 0.0
      %7890 = vmatprep.subr.mxu0 0.0
      %7891 = vmatpush1.msra.mxu0 0.0
      %7892 = vmatprep.subr.mxu0 0.0
      %7893 = vmatpush1.msra.mxu0 0.0
      %7894 = vmatprep.subr.mxu0 0.0
      %7895 = vmatpush1.msra.mxu0 0.0
      %7896 = vmatprep.subr.mxu0 0.0
      %7897 = vmatpush1.msra.mxu0 0.0
      %7898 = vmatprep.subr.mxu0 0.0
      %7899 = vmatpush1.msra.mxu0 0.0
      %7900 = vmatprep.subr.mxu0 0.0
      %7901 = vmatpush1.msra.mxu0 0.0
      %7902 = vmatprep.subr.mxu0 0.0
      %7903 = vmatpush1.msra.mxu0 0.0
      %7904 = vmatprep.subr.mxu0 0.0
      %7905 = vmatpush1.msra.mxu0 0.0
      %7906 = vmatprep.subr.mxu0 0.0
      %7907 = vmatpush1.msra.mxu0 0.0
      %7908 = vmatprep.subr.mxu0 0.0
      %7909 = vmatpush1.msra.mxu0 0.0
      %7910 = vmatprep.subr.mxu0 0.0
      %7911 = vmatpush1.msra.mxu0 0.0
      %7912 = vmatprep.subr.mxu0 0.0
      %7913 = vmatpush1.msra.mxu0 0.0
      %7914 = vmatprep.subr.mxu0 0.0
      %7915 = vmatpush1.msra.mxu0 0.0
      %7916 = vmatprep.subr.mxu0 0.0
      %7917 = vmatpush1.msra.mxu0 0.0
      %7918 = vmatprep.subr.mxu0 0.0
      %7919 = vmatpush1.msra.mxu0 0.0
      %7920 = vmatprep.subr.mxu0 0.0
      %7921 = vmatpush1.msra.mxu0 0.0
      %7922 = vmatprep.mubr.f32.mxu0 0.0
      %v7923 = vand.u32 %v3476, 4294901760
      %7924 = vmatmul.mubr.f32.gmra.mrb[0].mxu0 %v7923
      %v7925 = vpop.f32.mrb[0].mxu0
      %v7926 = vadd.f32 %v7854, %v7925
      %v7927 = vpop.f32.mrb[0].mxu0
      %7928 = vdwg.mxu0
      %v7929 = vadd.f32 %v110, %v2835
      %7930 = vmatprep.subr.mxu0 0.0
      %v7931 = vand.u32 %v4117, 4294901760
      %7932 = vmatpush1.msra.mxu0 %v7931
      %7933 = vmatprep.subr.mxu0 0.0
      %7934 = vmatpush1.msra.mxu0 0.0
      %7935 = vmatprep.subr.mxu0 0.0
      %7936 = vmatpush1.msra.mxu0 0.0
      %7937 = vmatprep.subr.mxu0 0.0
      %7938 = vmatpush1.msra.mxu0 0.0
      %7939 = vmatprep.subr.mxu0 0.0
      %7940 = vmatpush1.msra.mxu0 0.0
      %7941 = vmatprep.subr.mxu0 0.0
      %7942 = vmatpush1.msra.mxu0 0.0
      %7943 = vmatprep.subr.mxu0 0.0
      %7944 = vmatpush1.msra.mxu0 0.0
      %7945 = vmatprep.subr.mxu0 0.0
      %7946 = vmatpush1.msra.mxu0 0.0
      %7947 = vmatprep.subr.mxu0 0.0
      %7948 = vmatpush1.msra.mxu0 0.0
      %7949 = vmatprep.subr.mxu0 0.0
      %7950 = vmatpush1.msra.mxu0 0.0
      %7951 = vmatprep.subr.mxu0 0.0
      %7952 = vmatpush1.msra.mxu0 0.0
      %7953 = vmatprep.subr.mxu0 0.0
      %7954 = vmatpush1.msra.mxu0 0.0
      %7955 = vmatprep.subr.mxu0 0.0
      %7956 = vmatpush1.msra.mxu0 0.0
      %7957 = vmatprep.subr.mxu0 0.0
      %7958 = vmatpush1.msra.mxu0 0.0
      %7959 = vmatprep.subr.mxu0 0.0
      %7960 = vmatpush1.msra.mxu0 0.0
      %7961 = vmatprep.subr.mxu0 0.0
      %7962 = vmatpush1.msra.mxu0 0.0
      %7963 = vmatprep.subr.mxu0 0.0
      %7964 = vmatpush1.msra.mxu0 0.0
      %7965 = vmatprep.subr.mxu0 0.0
      %7966 = vmatpush1.msra.mxu0 0.0
      %7967 = vmatprep.subr.mxu0 0.0
      %7968 = vmatpush1.msra.mxu0 0.0
      %7969 = vmatprep.subr.mxu0 0.0
      %7970 = vmatpush1.msra.mxu0 0.0
      %7971 = vmatprep.subr.mxu0 0.0
      %7972 = vmatpush1.msra.mxu0 0.0
      %7973 = vmatprep.subr.mxu0 0.0
      %7974 = vmatpush1.msra.mxu0 0.0
      %7975 = vmatprep.subr.mxu0 0.0
      %7976 = vmatpush1.msra.mxu0 0.0
      %7977 = vmatprep.subr.mxu0 0.0
      %7978 = vmatpush1.msra.mxu0 0.0
      %7979 = vmatprep.subr.mxu0 0.0
      %7980 = vmatpush1.msra.mxu0 0.0
      %7981 = vmatprep.subr.mxu0 0.0
      %7982 = vmatpush1.msra.mxu0 0.0
      %7983 = vmatprep.subr.mxu0 0.0
      %7984 = vmatpush1.msra.mxu0 0.0
      %7985 = vmatprep.subr.mxu0 0.0
      %7986 = vmatpush1.msra.mxu0 0.0
      %7987 = vmatprep.subr.mxu0 0.0
      %7988 = vmatpush1.msra.mxu0 0.0
      %7989 = vmatprep.subr.mxu0 0.0
      %7990 = vmatpush1.msra.mxu0 0.0
      %7991 = vmatprep.subr.mxu0 0.0
      %7992 = vmatpush1.msra.mxu0 0.0
      %7993 = vmatprep.subr.mxu0 0.0
      %7994 = vmatpush1.msra.mxu0 0.0
      %7995 = vmatprep.mubr.f32.mxu0 0.0
      %v7996 = vand.u32 %v7926, 4294901760
      %v7997 = vsub.f32 %v7926, %v7996
      %v7998 = vand.u32 %v7997, 4294901760
      %v7999 = vsub.f32 %v7997, %v7998
      %v8000 = vand.u32 %v7999, 4294901760
      %8001 = vmatmul.mubr.f32.gmra.mrb[0].mxu0 %v8000
      %v8002 = vpop.f32.mrb[0].mxu0
      %v8003 = vadd.f32 0.0, %v8002
      %v8004 = vpop.f32.mrb[0].mxu0
      %8005 = vdwg.mxu0
      %8006 = vmatprep.subr.mxu0 0.0
      %v8007 = vand.u32 %v4117, 4294901760
      %v8008 = vsub.f32 %v4117, %v8007
      %v8009 = vand.u32 %v8008, 4294901760
      %v8010 = vsub.f32 %v8008, %v8009
      %v8011 = vand.u32 %v8010, 4294901760
      %8012 = vmatpush1.msra.mxu0 %v8011
      %8013 = vmatprep.subr.mxu0 0.0
      %8014 = vmatpush1.msra.mxu0 0.0
      %8015 = vmatprep.subr.mxu0 0.0
      %8016 = vmatpush1.msra.mxu0 0.0
      %8017 = vmatprep.subr.mxu0 0.0
      %8018 = vmatpush1.msra.mxu0 0.0
      %8019 = vmatprep.subr.mxu0 0.0
      %8020 = vmatpush1.msra.mxu0 0.0
      %8021 = vmatprep.subr.mxu0 0.0
      %8022 = vmatpush1.msra.mxu0 0.0
      %8023 = vmatprep.subr.mxu0 0.0
      %8024 = vmatpush1.msra.mxu0 0.0
      %8025 = vmatprep.subr.mxu0 0.0
      %8026 = vmatpush1.msra.mxu0 0.0
      %8027 = vmatprep.subr.mxu0 0.0
      %8028 = vmatpush1.msra.mxu0 0.0
      %8029 = vmatprep.subr.mxu0 0.0
      %8030 = vmatpush1.msra.mxu0 0.0
      %8031 = vmatprep.subr.mxu0 0.0
      %8032 = vmatpush1.msra.mxu0 0.0
      %8033 = vmatprep.subr.mxu0 0.0
      %8034 = vmatpush1.msra.mxu0 0.0
      %8035 = vmatprep.subr.mxu0 0.0
      %8036 = vmatpush1.msra.mxu0 0.0
      %8037 = vmatprep.subr.mxu0 0.0
      %8038 = vmatpush1.msra.mxu0 0.0
      %8039 = vmatprep.subr.mxu0 0.0
      %8040 = vmatpush1.msra.mxu0 0.0
      %8041 = vmatprep.subr.mxu0 0.0
      %8042 = vmatpush1.msra.mxu0 0.0
      %8043 = vmatprep.subr.mxu0 0.0
      %8044 = vmatpush1.msra.mxu0 0.0
      %8045 = vmatprep.subr.mxu0 0.0
      %8046 = vmatpush1.msra.mxu0 0.0
      %8047 = vmatprep.subr.mxu0 0.0
      %8048 = vmatpush1.msra.mxu0 0.0
      %8049 = vmatprep.subr.mxu0 0.0
      %8050 = vmatpush1.msra.mxu0 0.0
      %8051 = vmatprep.subr.mxu0 0.0
      %8052 = vmatpush1.msra.mxu0 0.0
      %8053 = vmatprep.subr.mxu0 0.0
      %8054 = vmatpush1.msra.mxu0 0.0
      %8055 = vmatprep.subr.mxu0 0.0
      %8056 = vmatpush1.msra.mxu0 0.0
      %8057 = vmatprep.subr.mxu0 0.0
      %8058 = vmatpush1.msra.mxu0 0.0
      %8059 = vmatprep.subr.mxu0 0.0
      %8060 = vmatpush1.msra.mxu0 0.0
      %8061 = vmatprep.subr.mxu0 0.0
      %8062 = vmatpush1.msra.mxu0 0.0
      %8063 = vmatprep.subr.mxu0 0.0
      %8064 = vmatpush1.msra.mxu0 0.0
      %8065 = vmatprep.subr.mxu0 0.0
      %8066 = vmatpush1.msra.mxu0 0.0
      %8067 = vmatprep.subr.mxu0 0.0
      %8068 = vmatpush1.msra.mxu0 0.0
      %8069 = vmatprep.subr.mxu0 0.0
      %8070 = vmatpush1.msra.mxu0 0.0
      %8071 = vmatprep.subr.mxu0 0.0
      %8072 = vmatpush1.msra.mxu0 0.0
      %8073 = vmatprep.subr.mxu0 0.0
      %8074 = vmatpush1.msra.mxu0 0.0
      %8075 = vmatprep.mubr.f32.mxu0 0.0
      %v8076 = vand.u32 %v7926, 4294901760
      %8077 = vmatmul.mubr.f32.gmra.mrb[0].mxu0 %v8076
      %v8078 = vpop.f32.mrb[0].mxu0
      %v8079 = vadd.f32 %v8003, %v8078
      %v8080 = vpop.f32.mrb[0].mxu0
      %8081 = vdwg.mxu0
      %8082 = vmatprep.subr.mxu0 0.0
      %v8083 = vand.u32 %v4117, 4294901760
      %v8084 = vsub.f32 %v4117, %v8083
      %8085 = vmatpush1.msra.mxu0 %v8084
      %8086 = vmatprep.subr.mxu0 0.0
      %8087 = vmatpush1.msra.mxu0 0.0
      %8088 = vmatprep.subr.mxu0 0.0
      %8089 = vmatpush1.msra.mxu0 0.0
      %8090 = vmatprep.subr.mxu0 0.0
      %8091 = vmatpush1.msra.mxu0 0.0
      %8092 = vmatprep.subr.mxu0 0.0
      %8093 = vmatpush1.msra.mxu0 0.0
      %8094 = vmatprep.subr.mxu0 0.0
      %8095 = vmatpush1.msra.mxu0 0.0
      %8096 = vmatprep.subr.mxu0 0.0
      %8097 = vmatpush1.msra.mxu0 0.0
      %8098 = vmatprep.subr.mxu0 0.0
      %8099 = vmatpush1.msra.mxu0 0.0
      %8100 = vmatprep.subr.mxu0 0.0
      %8101 = vmatpush1.msra.mxu0 0.0
      %8102 = vmatprep.subr.mxu0 0.0
      %8103 = vmatpush1.msra.mxu0 0.0
      %8104 = vmatprep.subr.mxu0 0.0
      %8105 = vmatpush1.msra.mxu0 0.0
      %8106 = vmatprep.subr.mxu0 0.0
      %8107 = vmatpush1.msra.mxu0 0.0
      %8108 = vmatprep.subr.mxu0 0.0
      %8109 = vmatpush1.msra.mxu0 0.0
      %8110 = vmatprep.subr.mxu0 0.0
      %8111 = vmatpush1.msra.mxu0 0.0
      %8112 = vmatprep.subr.mxu0 0.0
      %8113 = vmatpush1.msra.mxu0 0.0
      %8114 = vmatprep.subr.mxu0 0.0
      %8115 = vmatpush1.msra.mxu0 0.0
      %8116 = vmatprep.subr.mxu0 0.0
      %8117 = vmatpush1.msra.mxu0 0.0
      %8118 = vmatprep.subr.mxu0 0.0
      %8119 = vmatpush1.msra.mxu0 0.0
      %8120 = vmatprep.subr.mxu0 0.0
      %8121 = vmatpush1.msra.mxu0 0.0
      %8122 = vmatprep.subr.mxu0 0.0
      %8123 = vmatpush1.msra.mxu0 0.0
      %8124 = vmatprep.subr.mxu0 0.0
      %8125 = vmatpush1.msra.mxu0 0.0
      %8126 = vmatprep.subr.mxu0 0.0
      %8127 = vmatpush1.msra.mxu0 0.0
      %8128 = vmatprep.subr.mxu0 0.0
      %8129 = vmatpush1.msra.mxu0 0.0
      %8130 = vmatprep.subr.mxu0 0.0
      %8131 = vmatpush1.msra.mxu0 0.0
      %8132 = vmatprep.subr.mxu0 0.0
      %8133 = vmatpush1.msra.mxu0 0.0
      %8134 = vmatprep.subr.mxu0 0.0
      %8135 = vmatpush1.msra.mxu0 0.0
      %8136 = vmatprep.subr.mxu0 0.0
      %8137 = vmatpush1.msra.mxu0 0.0
      %8138 = vmatprep.subr.mxu0 0.0
      %8139 = vmatpush1.msra.mxu0 0.0
      %8140 = vmatprep.subr.mxu0 0.0
      %8141 = vmatpush1.msra.mxu0 0.0
      %8142 = vmatprep.subr.mxu0 0.0
      %8143 = vmatpush1.msra.mxu0 0.0
      %8144 = vmatprep.subr.mxu0 0.0
      %8145 = vmatpush1.msra.mxu0 0.0
      %8146 = vmatprep.subr.mxu0 0.0
      %8147 = vmatpush1.msra.mxu0 0.0
      %8148 = vmatprep.mubr.f32.mxu0 0.0
      %v8149 = vand.u32 %v7926, 4294901760
      %v8150 = vsub.f32 %v7926, %v8149
      %8151 = vmatmul.mubr.f32.gmra.mrb[0].mxu0 %v8150
      %v8152 = vpop.f32.mrb[0].mxu0
      %v8153 = vadd.f32 %v8079, %v8152
      %v8154 = vpop.f32.mrb[0].mxu0
      %8155 = vdwg.mxu0
      %8156 = vmatprep.subr.mxu0 0.0
      %v8157 = vand.u32 %v4117, 4294901760
      %8158 = vmatpush1.msra.mxu0 %v8157
      %8159 = vmatprep.subr.mxu0 0.0
      %8160 = vmatpush1.msra.mxu0 0.0
      %8161 = vmatprep.subr.mxu0 0.0
      %8162 = vmatpush1.msra.mxu0 0.0
      %8163 = vmatprep.subr.mxu0 0.0
      %8164 = vmatpush1.msra.mxu0 0.0
      %8165 = vmatprep.subr.mxu0 0.0
      %8166 = vmatpush1.msra.mxu0 0.0
      %8167 = vmatprep.subr.mxu0 0.0
      %8168 = vmatpush1.msra.mxu0 0.0
      %8169 = vmatprep.subr.mxu0 0.0
      %8170 = vmatpush1.msra.mxu0 0.0
      %8171 = vmatprep.subr.mxu0 0.0
      %8172 = vmatpush1.msra.mxu0 0.0
      %8173 = vmatprep.subr.mxu0 0.0
      %8174 = vmatpush1.msra.mxu0 0.0
      %8175 = vmatprep.subr.mxu0 0.0
      %8176 = vmatpush1.msra.mxu0 0.0
      %8177 = vmatprep.subr.mxu0 0.0
      %8178 = vmatpush1.msra.mxu0 0.0
      %8179 = vmatprep.subr.mxu0 0.0
      %8180 = vmatpush1.msra.mxu0 0.0
      %8181 = vmatprep.subr.mxu0 0.0
      %8182 = vmatpush1.msra.mxu0 0.0
      %8183 = vmatprep.subr.mxu0 0.0
      %8184 = vmatpush1.msra.mxu0 0.0
      %8185 = vmatprep.subr.mxu0 0.0
      %8186 = vmatpush1.msra.mxu0 0.0
      %8187 = vmatprep.subr.mxu0 0.0
      %8188 = vmatpush1.msra.mxu0 0.0
      %8189 = vmatprep.subr.mxu0 0.0
      %8190 = vmatpush1.msra.mxu0 0.0
      %8191 = vmatprep.subr.mxu0 0.0
      %8192 = vmatpush1.msra.mxu0 0.0
      %8193 = vmatprep.subr.mxu0 0.0
      %8194 = vmatpush1.msra.mxu0 0.0
      %8195 = vmatprep.subr.mxu0 0.0
      %8196 = vmatpush1.msra.mxu0 0.0
      %8197 = vmatprep.subr.mxu0 0.0
      %8198 = vmatpush1.msra.mxu0 0.0
      %8199 = vmatprep.subr.mxu0 0.0
      %8200 = vmatpush1.msra.mxu0 0.0
      %8201 = vmatprep.subr.mxu0 0.0
      %8202 = vmatpush1.msra.mxu0 0.0
      %8203 = vmatprep.subr.mxu0 0.0
      %8204 = vmatpush1.msra.mxu0 0.0
      %8205 = vmatprep.subr.mxu0 0.0
      %8206 = vmatpush1.msra.mxu0 0.0
      %8207 = vmatprep.subr.mxu0 0.0
      %8208 = vmatpush1.msra.mxu0 0.0
      %8209 = vmatprep.subr.mxu0 0.0
      %8210 = vmatpush1.msra.mxu0 0.0
      %8211 = vmatprep.subr.mxu0 0.0
      %8212 = vmatpush1.msra.mxu0 0.0
      %8213 = vmatprep.subr.mxu0 0.0
      %8214 = vmatpush1.msra.mxu0 0.0
      %8215 = vmatprep.subr.mxu0 0.0
      %8216 = vmatpush1.msra.mxu0 0.0
      %8217 = vmatprep.subr.mxu0 0.0
      %8218 = vmatpush1.msra.mxu0 0.0
      %8219 = vmatprep.subr.mxu0 0.0
      %8220 = vmatpush1.msra.mxu0 0.0
      %8221 = vmatprep.mubr.f32.mxu0 0.0
      %v8222 = vand.u32 %v7926, 4294901760
      %v8223 = vsub.f32 %v7926, %v8222
      %v8224 = vand.u32 %v8223, 4294901760
      %8225 = vmatmul.mubr.f32.gmra.mrb[0].mxu0 %v8224
      %v8226 = vpop.f32.mrb[0].mxu0
      %v8227 = vadd.f32 %v8153, %v8226
      %v8228 = vpop.f32.mrb[0].mxu0
      %8229 = vdwg.mxu0
      %8230 = vmatprep.subr.mxu0 0.0
      %v8231 = vand.u32 %v4117, 4294901760
      %v8232 = vsub.f32 %v4117, %v8231
      %v8233 = vand.u32 %v8232, 4294901760
      %8234 = vmatpush1.msra.mxu0 %v8233
      %8235 = vmatprep.subr.mxu0 0.0
      %8236 = vmatpush1.msra.mxu0 0.0
      %8237 = vmatprep.subr.mxu0 0.0
      %8238 = vmatpush1.msra.mxu0 0.0
      %8239 = vmatprep.subr.mxu0 0.0
      %8240 = vmatpush1.msra.mxu0 0.0
      %8241 = vmatprep.subr.mxu0 0.0
      %8242 = vmatpush1.msra.mxu0 0.0
      %8243 = vmatprep.subr.mxu0 0.0
      %8244 = vmatpush1.msra.mxu0 0.0
      %8245 = vmatprep.subr.mxu0 0.0
      %8246 = vmatpush1.msra.mxu0 0.0
      %8247 = vmatprep.subr.mxu0 0.0
      %8248 = vmatpush1.msra.mxu0 0.0
      %8249 = vmatprep.subr.mxu0 0.0
      %8250 = vmatpush1.msra.mxu0 0.0
      %8251 = vmatprep.subr.mxu0 0.0
      %8252 = vmatpush1.msra.mxu0 0.0
      %8253 = vmatprep.subr.mxu0 0.0
      %8254 = vmatpush1.msra.mxu0 0.0
      %8255 = vmatprep.subr.mxu0 0.0
      %8256 = vmatpush1.msra.mxu0 0.0
      %8257 = vmatprep.subr.mxu0 0.0
      %8258 = vmatpush1.msra.mxu0 0.0
      %8259 = vmatprep.subr.mxu0 0.0
      %8260 = vmatpush1.msra.mxu0 0.0
      %8261 = vmatprep.subr.mxu0 0.0
      %8262 = vmatpush1.msra.mxu0 0.0
      %8263 = vmatprep.subr.mxu0 0.0
      %8264 = vmatpush1.msra.mxu0 0.0
      %8265 = vmatprep.subr.mxu0 0.0
      %8266 = vmatpush1.msra.mxu0 0.0
      %8267 = vmatprep.subr.mxu0 0.0
      %8268 = vmatpush1.msra.mxu0 0.0
      %8269 = vmatprep.subr.mxu0 0.0
      %8270 = vmatpush1.msra.mxu0 0.0
      %8271 = vmatprep.subr.mxu0 0.0
      %8272 = vmatpush1.msra.mxu0 0.0
      %8273 = vmatprep.subr.mxu0 0.0
      %8274 = vmatpush1.msra.mxu0 0.0
      %8275 = vmatprep.subr.mxu0 0.0
      %8276 = vmatpush1.msra.mxu0 0.0
      %8277 = vmatprep.subr.mxu0 0.0
      %8278 = vmatpush1.msra.mxu0 0.0
      %8279 = vmatprep.subr.mxu0 0.0
      %8280 = vmatpush1.msra.mxu0 0.0
      %8281 = vmatprep.subr.mxu0 0.0
      %8282 = vmatpush1.msra.mxu0 0.0
      %8283 = vmatprep.subr.mxu0 0.0
      %8284 = vmatpush1.msra.mxu0 0.0
      %8285 = vmatprep.subr.mxu0 0.0
      %8286 = vmatpush1.msra.mxu0 0.0
      %8287 = vmatprep.subr.mxu0 0.0
      %8288 = vmatpush1.msra.mxu0 0.0
      %8289 = vmatprep.subr.mxu0 0.0
      %8290 = vmatpush1.msra.mxu0 0.0
      %8291 = vmatprep.subr.mxu0 0.0
      %8292 = vmatpush1.msra.mxu0 0.0
      %8293 = vmatprep.subr.mxu0 0.0
      %8294 = vmatpush1.msra.mxu0 0.0
      %8295 = vmatprep.subr.mxu0 0.0
      %8296 = vmatpush1.msra.mxu0 0.0
      %8297 = vmatprep.mubr.f32.mxu0 0.0
      %v8298 = vand.u32 %v7926, 4294901760
      %8299 = vmatmul.mubr.f32.gmra.mrb[0].mxu0 %v8298
      %v8300 = vpop.f32.mrb[0].mxu0
      %v8301 = vadd.f32 %v8227, %v8300
      %v8302 = vpop.f32.mrb[0].mxu0
      %8303 = vdwg.mxu0
      %8304 = vmatprep.subr.mxu0 0.0
      %v8305 = vand.u32 %v4117, 4294901760
      %8306 = vmatpush1.msra.mxu0 %v8305
      %8307 = vmatprep.subr.mxu0 0.0
      %8308 = vmatpush1.msra.mxu0 0.0
      %8309 = vmatprep.subr.mxu0 0.0
      %8310 = vmatpush1.msra.mxu0 0.0
      %8311 = vmatprep.subr.mxu0 0.0
      %8312 = vmatpush1.msra.mxu0 0.0
      %8313 = vmatprep.subr.mxu0 0.0
      %8314 = vmatpush1.msra.mxu0 0.0
      %8315 = vmatprep.subr.mxu0 0.0
      %8316 = vmatpush1.msra.mxu0 0.0
      %8317 = vmatprep.subr.mxu0 0.0
      %8318 = vmatpush1.msra.mxu0 0.0
      %8319 = vmatprep.subr.mxu0 0.0
      %8320 = vmatpush1.msra.mxu0 0.0
      %8321 = vmatprep.subr.mxu0 0.0
      %8322 = vmatpush1.msra.mxu0 0.0
      %8323 = vmatprep.subr.mxu0 0.0
      %8324 = vmatpush1.msra.mxu0 0.0
      %8325 = vmatprep.subr.mxu0 0.0
      %8326 = vmatpush1.msra.mxu0 0.0
      %8327 = vmatprep.subr.mxu0 0.0
      %8328 = vmatpush1.msra.mxu0 0.0
      %8329 = vmatprep.subr.mxu0 0.0
      %8330 = vmatpush1.msra.mxu0 0.0
      %8331 = vmatprep.subr.mxu0 0.0
      %8332 = vmatpush1.msra.mxu0 0.0
      %8333 = vmatprep.subr.mxu0 0.0
      %8334 = vmatpush1.msra.mxu0 0.0
      %8335 = vmatprep.subr.mxu0 0.0
      %8336 = vmatpush1.msra.mxu0 0.0
      %8337 = vmatprep.subr.mxu0 0.0
      %8338 = vmatpush1.msra.mxu0 0.0
      %8339 = vmatprep.subr.mxu0 0.0
      %8340 = vmatpush1.msra.mxu0 0.0
      %8341 = vmatprep.subr.mxu0 0.0
      %8342 = vmatpush1.msra.mxu0 0.0
      %8343 = vmatprep.subr.mxu0 0.0
      %8344 = vmatpush1.msra.mxu0 0.0
      %8345 = vmatprep.subr.mxu0 0.0
      %8346 = vmatpush1.msra.mxu0 0.0
      %8347 = vmatprep.subr.mxu0 0.0
      %8348 = vmatpush1.msra.mxu0 0.0
      %8349 = vmatprep.subr.mxu0 0.0
      %8350 = vmatpush1.msra.mxu0 0.0
      %8351 = vmatprep.subr.mxu0 0.0
      %8352 = vmatpush1.msra.mxu0 0.0
      %8353 = vmatprep.subr.mxu0 0.0
      %8354 = vmatpush1.msra.mxu0 0.0
      %8355 = vmatprep.subr.mxu0 0.0
      %8356 = vmatpush1.msra.mxu0 0.0
      %8357 = vmatprep.subr.mxu0 0.0
      %8358 = vmatpush1.msra.mxu0 0.0
      %8359 = vmatprep.subr.mxu0 0.0
      %8360 = vmatpush1.msra.mxu0 0.0
      %8361 = vmatprep.subr.mxu0 0.0
      %8362 = vmatpush1.msra.mxu0 0.0
      %8363 = vmatprep.subr.mxu0 0.0
      %8364 = vmatpush1.msra.mxu0 0.0
      %8365 = vmatprep.subr.mxu0 0.0
      %8366 = vmatpush1.msra.mxu0 0.0
      %8367 = vmatprep.subr.mxu0 0.0
      %8368 = vmatpush1.msra.mxu0 0.0
      %8369 = vmatprep.mubr.f32.mxu0 0.0
      %v8370 = vand.u32 %v7926, 4294901760
      %8371 = vmatmul.mubr.f32.gmra.mrb[0].mxu0 %v8370
      %v8372 = vpop.f32.mrb[0].mxu0
      %v8373 = vadd.f32 %v8301, %v8372
      %v8374 = vpop.f32.mrb[0].mxu0
      %8375 = vdwg.mxu0
      %v8376 = vsub.f32 %v7929, %v8373
      %8377 = vxpose.xlu0.b32.start [1/16] %v8376, 128
      %8378 = vxpose.xlu0.b32.cont [2/16] 0.0, 128
      %8379 = vxpose.xlu0.b32.cont [3/16] 0.0, 128
      %8380 = vxpose.xlu0.b32.cont [4/16] 0.0, 128
      %8381 = vxpose.xlu0.b32.cont [5/16] 0.0, 128
      %8382 = vxpose.xlu0.b32.cont [6/16] 0.0, 128
      %8383 = vxpose.xlu0.b32.cont [7/16] 0.0, 128
      %8384 = vxpose.xlu0.b32.cont [8/16] 0.0, 128
      %8385 = vxpose.xlu0.b32.cont [9/16] 0.0, 128
      %8386 = vxpose.xlu0.b32.cont [10/16] 0.0, 128
      %8387 = vxpose.xlu0.b32.cont [11/16] 0.0, 128
      %8388 = vxpose.xlu0.b32.cont [12/16] 0.0, 128
      %8389 = vxpose.xlu0.b32.cont [13/16] 0.0, 128
      %8390 = vxpose.xlu0.b32.cont [14/16] 0.0, 128
      %8391 = vxpose.xlu0.b32.cont [15/16] 0.0, 128
      %8392 = vxpose.xlu0.b32.end [16/16] 0.0, 128
      %v8393 = vpop.trf.xlu0
      %v8394 = vpop.trf.xlu0
      %v8395 = vpop.trf.xlu0
      %v8396 = vpop.trf.xlu0
      %v8397 = vpop.trf.xlu0
      %v8398 = vpop.trf.xlu0
      %v8399 = vpop.trf.xlu0
      %v8400 = vpop.trf.xlu0
      %v8401 = vpop.trf.xlu0
      %v8402 = vpop.trf.xlu0
      %v8403 = vpop.trf.xlu0
      %v8404 = vpop.trf.xlu0
      %v8405 = vpop.trf.xlu0
      %v8406 = vpop.trf.xlu0
      %v8407 = vpop.trf.xlu0
      %v8408 = vpop.trf.xlu0
      %v8409 = vadd.f32 %v8376, %v8393
      %v8410 = vadd.f32 %v8394, 0.0
      %v8411 = vadd.f32 %v8395, 0.0
      %v8412 = vadd.f32 %v8396, 0.0
      %v8413 = vadd.f32 %v8397, 0.0
      %v8414 = vadd.f32 %v8398, 0.0
      %v8415 = vadd.f32 %v8399, 0.0
      %v8416 = vadd.f32 %v8400, 0.0
      %v8417 = vadd.f32 %v8401, 0.0
      %v8418 = vadd.f32 %v8402, 0.0
      %v8419 = vadd.f32 %v8403, 0.0
      %v8420 = vadd.f32 %v8404, 0.0
      %v8421 = vadd.f32 %v8405, 0.0
      %v8422 = vadd.f32 %v8406, 0.0
      %v8423 = vadd.f32 %v8407, 0.0
      %v8424 = vadd.f32 %v8408, 0.0
      %v8425 = vmul.f32 %v8409, 0.5
      %v8426 = vmul.f32 %v8410, 0.5
      %v8427 = vmul.f32 %v8411, 0.5
      %v8428 = vmul.f32 %v8412, 0.5
      %v8429 = vmul.f32 %v8413, 0.5
      %v8430 = vmul.f32 %v8414, 0.5
      %v8431 = vmul.f32 %v8415, 0.5
      %v8432 = vmul.f32 %v8416, 0.5
      %v8433 = vmul.f32 %v8417, 0.5
      %v8434 = vmul.f32 %v8418, 0.5
      %v8435 = vmul.f32 %v8419, 0.5
      %v8436 = vmul.f32 %v8420, 0.5
      %v8437 = vmul.f32 %v8421, 0.5
      %v8438 = vmul.f32 %v8422, 0.5
      %v8439 = vmul.f32 %v8423, 0.5
      %v8440 = vmul.f32 %v8424, 0.5
    $region60: #{tpu_custom_call.1} parent=1 // loop_footer
      %s897 = sadd.s32 1, %s893
    $region61: #{tpu_custom_call.1} parent=1 // loop_footer_branch
      %892 = sbr.rel target = $region57
    $region62: #{tpu_custom_call.1} parent=1 // loop_exit
      _
    %8441 = vst [vmem:[#allocation10] sm:$0xff] %v898
    // Predicated region
    $region63: #{tpu_custom_call.1} parent=1 // pred_check
      _
    $region64: #{tpu_custom_call.1} parent=1 // pred_check_branch
      %8443 = sbr.rel (0) target = $region66
    $region65: #{tpu_custom_call.1} parent=1 // pred_region
      %s8445 = ssub.s32 128, 128
      %8446 = vsyncadd [#allocation4], %s8445
      %s8448 = sshll.u32 [#allocation10], 4
      %s8449 = int_to_ptr.vmem [resolvable:$true] %s8448
      %8451 = dma.vmem_to_hbm [thread:$0]  %s8449, 128, %s6, [#allocation4]
    $region66: #{tpu_custom_call.1} parent=1 // pred_fallthru
      _
    // Predicated region
    $region67: #{tpu_custom_call.1} parent=1 // pred_check
      _
    $region68: #{tpu_custom_call.1} parent=1 // pred_check_branch
      %8453 = sbr.rel (0) target = $region70
    $region69: #{tpu_custom_call.1} parent=1 // pred_region
      %8454 = dma.done [#allocation4], 128
    $region70: #{tpu_custom_call.1} parent=1 // pred_fallthru
      _
    %8455 = vsyncpa [#allocation3], 1
    %8456 = vsyncpa [#allocation6], 1
    %8457 = vsyncpa [#allocation9], 1
    %8458 = vsyncpa [#allocation4], 1

</llo_original>
